<compile_context>
chip_gen: v7x
topology: tpu7x:2x2x1
jax: 0.10.0
libtpu: 0.0.40
codegen_flags: <defaults>
</compile_context>

<pallas_src>
import numpy as np
import jax
import jax.numpy as jnp
from jax.experimental import pallas as pl
from jax.experimental.pallas import tpu as pltpu

# ----------------------- small, deterministic config -----------------------
B = 2                    # batch
C = 128                  # stand-in for regnet_y_1_6gf embed dim (888 real)
H = W = 16               # spatial size of the branch feature maps
HW = H * W
BLOCKS = (2, 4)          # three_view_net(block='2,4')
F = 1024                 # feature dim of the Linear heads (hard-coded)
NUM_CLASSES = 16
N_HEADS = sum(BLOCKS) + 2            # 8
NHB = N_HEADS * B                    # 16  (sublane-dense pools/bn rows)
NHC = N_HEADS * C                    # 1024 (K of the fused matmul)
NHP = N_HEADS * NUM_CLASSES          # 128 (lane-dense classifier columns)
BN_EPS = 1e-5
NEG = -3.0e38                        # f32 sentinel; keep masking math in f32


# ----------------------------- mask construction ---------------------------
def build_additive_masks(height, width, block):
    """Additive masks for get_part_pool: 0 where element participates in the
    max, NEG outside.  Regions i>0 additionally include zero-padded interiors
    in the max domain — handled in-kernel by clamping the masked max with 0."""
    per_h, per_w = height // (2 * block), width // (2 * block)
    c_h, c_w = height // 2, width // 2
    hh = np.arange(height)[:, None]
    ww = np.arange(width)[None, :]

    def square(r_h, r_w):
        return ((hh >= c_h - r_h) & (hh < c_h + r_h) &
                (ww >= c_w - r_w) & (ww < c_w + r_w))

    masks = []
    for i in range(block):
        if block == 1:
            m = np.ones((height, width), bool)
        elif i == 0:
            m = square(per_h, per_w)
        elif i < block - 1:
            m = square((i + 1) * per_h, (i + 1) * per_w) & ~square(i * per_h, i * per_w)
        else:
            m = ~square(i * per_h, i * per_w)
        masks.append(m)
    m = np.stack(masks).reshape(block, height * width)
    return np.where(m, 0.0, NEG).astype(np.float32)


# ------------------------------ fused kernel --------------------------------
def _fused_kernel(x1_ref, x2_ref, am1_ref, am2_ref, wf_ref, scale_ref, shift_ref,
                  wc_ref, bc_ref, bn_ref, pred_ref, bd_ref):
    # x*_ref : [B, C, HW] f32        am*_ref : [block, HW] f32 additive masks
    # wf_ref : [NHC, F]  bf16        scale/shift_ref : [NHB, F] f32
    # wc_ref : [F, NHP]  bf16        bc_ref : [1, NHP] f32
    # bn_ref : [NHB, F]  f32 out     pred_ref : [NHB, NHP] f32 out
    # bd_ref : [NHB, NHC] f32 scratch (block-diagonal pools slab)
    bd_ref[...] = jnp.zeros_like(bd_ref)

    x1 = x1_ref[...]
    x2 = x2_ref[...]

    def write(head, val):               # diagonal block of head `head`
        bd_ref[pl.ds(head * B, B), pl.ds(head * C, C)] = val

    # Heads 0/1: AdaptiveAvgPool2d(1) of each branch.
    write(0, jnp.mean(x1, axis=-1))
    write(1, jnp.mean(x2, axis=-1))

    # Region max pools (get_part_pool): additive mask -> one vadd + lane reduce.
    head = 2
    for x, m_ref, nblk in ((x1, am1_ref, BLOCKS[0]), (x2, am2_ref, BLOCKS[1])):
        m = m_ref[...]                                    # [nblk, HW]
        for i in range(nblk):
            r = jnp.max(x + m[i][None, None, :], axis=-1)  # [B, C]
            if nblk > 1 and i > 0:
                # rings i>0 include a zero-padded interior in the max domain
                r = jnp.maximum(r, 0.0)
            write(head, r)
            head += 1

    # One MXU matmul for all 8 heads: block-diag pools @ stacked feature weights.
    bd = bd_ref[...].astype(jnp.bfloat16)                  # [NHB, NHC]
    feat = jnp.dot(bd, wf_ref[...], preferred_element_type=jnp.float32)  # [NHB, F]

    # Folded BatchNorm1d (eval mode): single FMA per element.
    bn = feat * scale_ref[...] + shift_ref[...]
    bn_ref[...] = bn

    # All classifiers at once; lane-dense [NHB, NHP] output (+ per-column bias).
    pred = jnp.dot(bn.astype(jnp.bfloat16), wc_ref[...],
                   preferred_element_type=jnp.float32)
    pred_ref[...] = pred + bc_ref[...]


def fused_heads_call(x1_flat, x2_flat, kp):
    vmem = lambda: pl.BlockSpec(memory_space=pltpu.MemorySpace.VMEM)
    return pl.pallas_call(
        _fused_kernel,
        out_shape=(jax.ShapeDtypeStruct((NHB, F), jnp.float32),
                   jax.ShapeDtypeStruct((NHB, NHP), jnp.float32)),
        in_specs=[vmem() for _ in range(9)],
        out_specs=(vmem(), vmem()),
        scratch_shapes=[pltpu.VMEM((NHB, NHC), jnp.float32)],
    )(x1_flat, x2_flat, kp["am1"], kp["am2"], kp["wf"], kp["scale"],
      kp["shift"], kp["wc"], kp["bc"])


# ------------------------------ full forward --------------------------------
def three_view_net_forward(x1, x2, kp):
    bn_all, pred_all = fused_heads_call(
        x1.reshape(B, C, HW), x2.reshape(B, C, HW), kp)
    bn = bn_all.reshape(N_HEADS, B, F)
    # eval-mode return of three_view_net: torch.stack(bn_list, dim=2) -> [B, F, N_HEADS]
    bn_stacked = jnp.transpose(bn, (1, 2, 0))
    # per-head classifier predictions: take the diagonal head blocks.
    pred_blocks = pred_all.reshape(N_HEADS, B, N_HEADS, NUM_CLASSES)
    idx = jnp.arange(N_HEADS)
    pred = pred_blocks[idx, :, idx, :]                     # [N_HEADS, B, NUM_CLASSES]
    return bn_stacked, pred


# ------------------------- deterministic parameters -------------------------
def init_params(key):
    k0, k1, k2, k3 = jax.random.split(key, 4)
    return {
        # feature Linear(embed, 1024, bias=False), kaiming fan_out -> std=sqrt(2/F)
        "wf": jax.random.normal(k0, (N_HEADS, C, F), jnp.float32) * np.sqrt(2.0 / F),
        # BatchNorm1d(1024): weight ~ N(1, 0.1), bias ~ N(0, 0.1), running stats (0, 1)
        "gamma": 1.0 + 0.1 * jax.random.normal(k1, (N_HEADS, F), jnp.float32),
        "beta": 0.1 * jax.random.normal(k2, (N_HEADS, F), jnp.float32),
        "mu": jnp.zeros((N_HEADS, F), jnp.float32),
        "var": jnp.ones((N_HEADS, F), jnp.float32),
        # classifier Linear(1024, class_num): weight ~ N(0, 0.001), bias = 0
        "wc": 0.001 * jax.random.normal(k3, (N_HEADS, F, NUM_CLASSES), jnp.float32),
        "bc": jnp.zeros((N_HEADS, NUM_CLASSES), jnp.float32),
    }


def prepare_params(params):
    """One-time packing into kernel-friendly layouts (done outside jit)."""
    scale = params["gamma"] * jax.lax.rsqrt(params["var"] + BN_EPS)   # [NH, F]
    shift = params["beta"] - params["mu"] * scale
    return {
        # per-head feature weights stacked along K -> [NH*C, F], bf16 stream
        "wf": params["wf"].reshape(NHC, F).astype(jnp.bfloat16),
        # folded BN, expanded to one row per (head, batch)
        "scale": jnp.repeat(scale, B, axis=0),                        # [NHB, F]
        "shift": jnp.repeat(shift, B, axis=0),
        # classifiers concatenated on N -> lane-dense [F, NH*NUM_CLASSES]
        "wc": jnp.transpose(params["wc"], (1, 0, 2)).reshape(F, NHP).astype(jnp.bfloat16),
        "bc": params["bc"].reshape(1, NHP),
        # additive region masks (f32; -3e38 sentinel must stay f32)
        "am1": jnp.asarray(build_additive_masks(H, W, BLOCKS[0])),
        "am2": jnp.asarray(build_additive_masks(H, W, BLOCKS[1])),
    }


# --------------------------- pure numpy reference ---------------------------
def _part_pool_ref(x, block):
    _, _, h, w = x.shape
    per_h, per_w = h // (2 * block), w // (2 * block)
    c_h, c_w = h // 2, w // 2
    res = []
    for i in range(block):
        if block == 1:
            x_curr = x
        elif i < block - 1:
            x_curr = x[:, :, c_h - (i + 1) * per_h:c_h + (i + 1) * per_h,
                             c_w - (i + 1) * per_w:c_w + (i + 1) * per_w]
            if i > 0:
                x_pre = x[:, :, c_h - i * per_h:c_h + i * per_h,
                                c_w - i * per_w:c_w + i * per_w]
                x_pad = np.pad(x_pre, ((0, 0), (0, 0), (per_w, per_w), (per_h, per_h)))
                x_curr = x_curr - x_pad
        else:
            x_pre = x[:, :, c_h - i * per_h:c_h + i * per_h,
                            c_w - i * per_w:c_w + i * per_w]
            pad_h = c_h - i * per_h
            pad_w = c_w - i * per_w
            x_pad = np.pad(x_pre, ((0, 0), (0, 0), (pad_w, pad_w), (pad_h, pad_h)))
            x_curr = x - x_pad
        res.append(x_curr.max(axis=(2, 3)))
    return x.mean(axis=(2, 3)), res


def reference_forward(x1, x2, params):
    g1, r1 = _part_pool_ref(x1, BLOCKS[0])
    g2, r2 = _part_pool_ref(x2, BLOCKS[1])
    pools = [g1, g2] + r1 + r2
    wf = np.asarray(params["wf"]); gamma = np.asarray(params["gamma"])
    beta = np.asarray(params["beta"]); mu = np.asarray(params["mu"])
    var = np.asarray(params["var"]); wc = np.asarray(params["wc"])
    bc = np.asarray(params["bc"])
    bns, preds = [], []
    for i in range(N_HEADS):
        feat = pools[i] @ wf[i]
        bn = (feat - mu[i]) / np.sqrt(var[i] + BN_EPS) * gamma[i] + beta[i]
        bns.append(bn)
        preds.append(bn @ wc[i] + bc[i])
    return np.stack(bns, axis=2), np.stack(preds, axis=0)   # [B,F,NH], [NH,B,NC]


# ----------------------------------- main ------------------------------------
if __name__ == "__main__":
    assert H % (2 * max(BLOCKS)) == 0 and W % (2 * max(BLOCKS)) == 0

    key = jax.random.PRNGKey(0)
    kx1, kx2, kp_key = jax.random.split(key, 3)
    x1 = jax.random.normal(kx1, (B, C, H, W), jnp.float32)
    x2 = jax.random.normal(kx2, (B, C, H, W), jnp.float32)
    params = init_params(kp_key)
    kparams = prepare_params(params)          # packed once, outside jit

    fwd = jax.jit(three_view_net_forward)
    bn_stacked, pred = fwd(x1, x2, kparams)
    bn_stacked = jax.block_until_ready(bn_stacked)
    pred = jax.block_until_ready(pred)

    bn_ref, pred_ref = reference_forward(np.asarray(x1), np.asarray(x2), params)
    np.testing.assert_allclose(np.asarray(bn_stacked), bn_ref, rtol=5e-2, atol=5e-2)
    np.testing.assert_allclose(np.asarray(pred), pred_ref, rtol=5e-2, atol=2e-3)

    print("KERNEL_OK")
</pallas_src>

<mosaic_0001>
module attributes {stable_mosaic.version = 11 : i64} {
  func.func @_fused_kernel(%arg0: memref<2x128x256xf32, #tpu.memory_space<vmem>>, %arg1: memref<2x128x256xf32, #tpu.memory_space<vmem>>, %arg2: memref<2x256xf32, #tpu.memory_space<vmem>>, %arg3: memref<4x256xf32, #tpu.memory_space<vmem>>, %arg4: memref<1024x1024xbf16, #tpu.memory_space<vmem>>, %arg5: memref<16x1024xf32, #tpu.memory_space<vmem>>, %arg6: memref<16x1024xf32, #tpu.memory_space<vmem>>, %arg7: memref<1024x128xbf16, #tpu.memory_space<vmem>>, %arg8: memref<1x128xf32, #tpu.memory_space<vmem>>, %arg9: memref<16x1024xf32, #tpu.memory_space<vmem>>, %arg10: memref<16x128xf32, #tpu.memory_space<vmem>>, %arg11: memref<16x1024xf32, #tpu.memory_space<vmem>>) attributes {dimension_semantics = [], scalar_prefetch = 0 : i64, scratch_operands = 1 : i64, tpu.core_type = #tpu.core_type<tc>} {
    %cst = arith.constant 0.000000e+00 : f32
    %0 = vector.broadcast %cst : f32 to vector<16x1024xf32>
    %c0 = arith.constant 0 : index
    %c0_0 = arith.constant 0 : index
    %1 = vector.load %arg11[%c0, %c0_0] : memref<16x1024xf32, #tpu.memory_space<vmem>>, vector<16x1024xf32>
    tpu.vector_store %arg11[%c0, %c0_0], %0 {strides = array<i32>} : memref<16x1024xf32, #tpu.memory_space<vmem>>, vector<16x1024xf32>,
    %c0_1 = arith.constant 0 : index
    %c0_2 = arith.constant 0 : index
    %c0_3 = arith.constant 0 : index
    %2 = vector.load %arg0[%c0_1, %c0_2, %c0_3] : memref<2x128x256xf32, #tpu.memory_space<vmem>>, vector<2x128x256xf32>
    %c0_4 = arith.constant 0 : index
    %c0_5 = arith.constant 0 : index
    %c0_6 = arith.constant 0 : index
    %3 = vector.load %arg1[%c0_4, %c0_5, %c0_6] : memref<2x128x256xf32, #tpu.memory_space<vmem>>, vector<2x128x256xf32>
    %cst_7 = arith.constant dense<0.000000e+00> : vector<2x128xf32>
    %4 = vector.multi_reduction <add>, %2, %cst_7 [2] : vector<2x128x256xf32> to vector<2x128xf32>
    %cst_8 = arith.constant 2.560000e+02 : f32
    %5 = vector.broadcast %cst_8 : f32 to vector<2x128xf32>
    %6 = arith.divf %4, %5 : vector<2x128xf32>
    %c0_9 = arith.constant 0 : index
    %c0_10 = arith.constant 0 : index
    %7 = vector.load %arg11[%c0_9, %c0_10] : memref<16x1024xf32, #tpu.memory_space<vmem>>, vector<2x128xf32>
    tpu.vector_store %arg11[%c0_9, %c0_10], %6 {strides = array<i32>} : memref<16x1024xf32, #tpu.memory_space<vmem>>, vector<2x128xf32>,
    %cst_11 = arith.constant dense<0.000000e+00> : vector<2x128xf32>
    %8 = vector.multi_reduction <add>, %3, %cst_11 [2] : vector<2x128x256xf32> to vector<2x128xf32>
    %cst_12 = arith.constant 2.560000e+02 : f32
    %9 = vector.broadcast %cst_12 : f32 to vector<2x128xf32>
    %10 = arith.divf %8, %9 : vector<2x128xf32>
    %c2 = arith.constant 2 : index
    %c128 = arith.constant 128 : index
    %11 = vector.load %arg11[%c2, %c128] : memref<16x1024xf32, #tpu.memory_space<vmem>>, vector<2x128xf32>
    tpu.vector_store %arg11[%c2, %c128], %10 {strides = array<i32>} : memref<16x1024xf32, #tpu.memory_space<vmem>>, vector<2x128xf32>,
    %c0_13 = arith.constant 0 : index
    %c0_14 = arith.constant 0 : index
    %12 = vector.load %arg2[%c0_13, %c0_14] : memref<2x256xf32, #tpu.memory_space<vmem>>, vector<2x256xf32>
    %13 = vector.extract_strided_slice %12 {offsets = [0, 0], sizes = [1, 256], strides = [1, 1]} : vector<2x256xf32> to vector<1x256xf32>
    %14 = vector.shape_cast %13 : vector<1x256xf32> to vector<256xf32>
    %15 = vector.shape_cast %14 : vector<256xf32> to vector<1x1x256xf32>
    %16 = vector.broadcast %15 : vector<1x1x256xf32> to vector<2x128x256xf32>
    %17 = arith.addf %2, %16 : vector<2x128x256xf32>
    %cst_15 = arith.constant dense<0xFF800000> : vector<2x128xf32>
    %18 = vector.multi_reduction <maximumf>, %17, %cst_15 [2] : vector<2x128x256xf32> to vector<2x128xf32>
    %c4 = arith.constant 4 : index
    %c256 = arith.constant 256 : index
    %19 = vector.load %arg11[%c4, %c256] : memref<16x1024xf32, #tpu.memory_space<vmem>>, vector<2x128xf32>
    tpu.vector_store %arg11[%c4, %c256], %18 {strides = array<i32>} : memref<16x1024xf32, #tpu.memory_space<vmem>>, vector<2x128xf32>,
    %20 = vector.extract_strided_slice %12 {offsets = [1, 0], sizes = [1, 256], strides = [1, 1]} : vector<2x256xf32> to vector<1x256xf32>
    %21 = vector.shape_cast %20 : vector<1x256xf32> to vector<256xf32>
    %22 = vector.shape_cast %21 : vector<256xf32> to vector<1x1x256xf32>
    %23 = vector.broadcast %22 : vector<1x1x256xf32> to vector<2x128x256xf32>
    %24 = arith.addf %2, %23 : vector<2x128x256xf32>
    %cst_16 = arith.constant dense<0xFF800000> : vector<2x128xf32>
    %25 = vector.multi_reduction <maximumf>, %24, %cst_16 [2] : vector<2x128x256xf32> to vector<2x128xf32>
    %cst_17 = arith.constant 0.000000e+00 : f32
    %26 = vector.broadcast %cst_17 : f32 to vector<2x128xf32>
    %27 = arith.maximumf %25, %26 : vector<2x128xf32>
    %c6 = arith.constant 6 : index
    %c384 = arith.constant 384 : index
    %28 = vector.load %arg11[%c6, %c384] : memref<16x1024xf32, #tpu.memory_space<vmem>>, vector<2x128xf32>
    tpu.vector_store %arg11[%c6, %c384], %27 {strides = array<i32>} : memref<16x1024xf32, #tpu.memory_space<vmem>>, vector<2x128xf32>,
    %c0_18 = arith.constant 0 : index
    %c0_19 = arith.constant 0 : index
    %29 = vector.load %arg3[%c0_18, %c0_19] : memref<4x256xf32, #tpu.memory_space<vmem>>, vector<4x256xf32>
    %30 = vector.extract_strided_slice %29 {offsets = [0, 0], sizes = [1, 256], strides = [1, 1]} : vector<4x256xf32> to vector<1x256xf32>
    %31 = vector.shape_cast %30 : vector<1x256xf32> to vector<256xf32>
    %32 = vector.shape_cast %31 : vector<256xf32> to vector<1x1x256xf32>
    %33 = vector.broadcast %32 : vector<1x1x256xf32> to vector<2x128x256xf32>
    %34 = arith.addf %3, %33 : vector<2x128x256xf32>
    %cst_20 = arith.constant dense<0xFF800000> : vector<2x128xf32>
    %35 = vector.multi_reduction <maximumf>, %34, %cst_20 [2] : vector<2x128x256xf32> to vector<2x128xf32>
    %c8 = arith.constant 8 : index
    %c512 = arith.constant 512 : index
    %36 = vector.load %arg11[%c8, %c512] : memref<16x1024xf32, #tpu.memory_space<vmem>>, vector<2x128xf32>
    tpu.vector_store %arg11[%c8, %c512], %35 {strides = array<i32>} : memref<16x1024xf32, #tpu.memory_space<vmem>>, vector<2x128xf32>,
    %37 = vector.extract_strided_slice %29 {offsets = [1, 0], sizes = [1, 256], strides = [1, 1]} : vector<4x256xf32> to vector<1x256xf32>
    %38 = vector.shape_cast %37 : vector<1x256xf32> to vector<256xf32>
    %39 = vector.shape_cast %38 : vector<256xf32> to vector<1x1x256xf32>
    %40 = vector.broadcast %39 : vector<1x1x256xf32> to vector<2x128x256xf32>
    %41 = arith.addf %3, %40 : vector<2x128x256xf32>
    %cst_21 = arith.constant dense<0xFF800000> : vector<2x128xf32>
    %42 = vector.multi_reduction <maximumf>, %41, %cst_21 [2] : vector<2x128x256xf32> to vector<2x128xf32>
    %cst_22 = arith.constant 0.000000e+00 : f32
    %43 = vector.broadcast %cst_22 : f32 to vector<2x128xf32>
    %44 = arith.maximumf %42, %43 : vector<2x128xf32>
    %c10 = arith.constant 10 : index
    %c640 = arith.constant 640 : index
    %45 = vector.load %arg11[%c10, %c640] : memref<16x1024xf32, #tpu.memory_space<vmem>>, vector<2x128xf32>
    tpu.vector_store %arg11[%c10, %c640], %44 {strides = array<i32>} : memref<16x1024xf32, #tpu.memory_space<vmem>>, vector<2x128xf32>,
    %46 = vector.extract_strided_slice %29 {offsets = [2, 0], sizes = [1, 256], strides = [1, 1]} : vector<4x256xf32> to vector<1x256xf32>
    %47 = vector.shape_cast %46 : vector<1x256xf32> to vector<256xf32>
    %48 = vector.shape_cast %47 : vector<256xf32> to vector<1x1x256xf32>
    %49 = vector.broadcast %48 : vector<1x1x256xf32> to vector<2x128x256xf32>
    %50 = arith.addf %3, %49 : vector<2x128x256xf32>
    %cst_23 = arith.constant dense<0xFF800000> : vector<2x128xf32>
    %51 = vector.multi_reduction <maximumf>, %50, %cst_23 [2] : vector<2x128x256xf32> to vector<2x128xf32>
    %cst_24 = arith.constant 0.000000e+00 : f32
    %52 = vector.broadcast %cst_24 : f32 to vector<2x128xf32>
    %53 = arith.maximumf %51, %52 : vector<2x128xf32>
    %c12 = arith.constant 12 : index
    %c768 = arith.constant 768 : index
    %54 = vector.load %arg11[%c12, %c768] : memref<16x1024xf32, #tpu.memory_space<vmem>>, vector<2x128xf32>
    tpu.vector_store %arg11[%c12, %c768], %53 {strides = array<i32>} : memref<16x1024xf32, #tpu.memory_space<vmem>>, vector<2x128xf32>,
    %55 = vector.extract_strided_slice %29 {offsets = [3, 0], sizes = [1, 256], strides = [1, 1]} : vector<4x256xf32> to vector<1x256xf32>
    %56 = vector.shape_cast %55 : vector<1x256xf32> to vector<256xf32>
    %57 = vector.shape_cast %56 : vector<256xf32> to vector<1x1x256xf32>
    %58 = vector.broadcast %57 : vector<1x1x256xf32> to vector<2x128x256xf32>
    %59 = arith.addf %3, %58 : vector<2x128x256xf32>
    %cst_25 = arith.constant dense<0xFF800000> : vector<2x128xf32>
    %60 = vector.multi_reduction <maximumf>, %59, %cst_25 [2] : vector<2x128x256xf32> to vector<2x128xf32>
    %cst_26 = arith.constant 0.000000e+00 : f32
    %61 = vector.broadcast %cst_26 : f32 to vector<2x128xf32>
    %62 = arith.maximumf %60, %61 : vector<2x128xf32>
    %c14 = arith.constant 14 : index
    %c896 = arith.constant 896 : index
    %63 = vector.load %arg11[%c14, %c896] : memref<16x1024xf32, #tpu.memory_space<vmem>>, vector<2x128xf32>
    tpu.vector_store %arg11[%c14, %c896], %62 {strides = array<i32>} : memref<16x1024xf32, #tpu.memory_space<vmem>>, vector<2x128xf32>,
    %c0_27 = arith.constant 0 : index
    %c0_28 = arith.constant 0 : index
    %64 = vector.load %arg11[%c0_27, %c0_28] : memref<16x1024xf32, #tpu.memory_space<vmem>>, vector<16x1024xf32>
    %65 = arith.truncf %64 : vector<16x1024xf32> to vector<16x1024xbf16>
    %c0_29 = arith.constant 0 : index
    %c0_30 = arith.constant 0 : index
    %66 = vector.load %arg4[%c0_29, %c0_30] : memref<1024x1024xbf16, #tpu.memory_space<vmem>>, vector<1024x1024xbf16>
    %cst_31 = arith.constant dense<0.000000e+00> : vector<16x1024xf32>
    %67 = tpu.matmul %65, %66, %cst_31 {dimension_numbers = #tpu.dot_dimension_numbers<[1], [0], [0], [1], [0, 0, 1, 1], [], []>} : vector<16x1024xbf16>, vector<1024x1024xbf16>, vector<16x1024xf32> -> vector<16x1024xf32>
    %c0_32 = arith.constant 0 : index
    %c0_33 = arith.constant 0 : index
    %68 = vector.load %arg5[%c0_32, %c0_33] : memref<16x1024xf32, #tpu.memory_space<vmem>>, vector<16x1024xf32>
    %69 = arith.mulf %67, %68 : vector<16x1024xf32>
    %c0_34 = arith.constant 0 : index
    %c0_35 = arith.constant 0 : index
    %70 = vector.load %arg6[%c0_34, %c0_35] : memref<16x1024xf32, #tpu.memory_space<vmem>>, vector<16x1024xf32>
    %71 = arith.addf %69, %70 : vector<16x1024xf32>
    %c0_36 = arith.constant 0 : index
    %c0_37 = arith.constant 0 : index
    %72 = vector.load %arg9[%c0_36, %c0_37] : memref<16x1024xf32, #tpu.memory_space<vmem>>, vector<16x1024xf32>
    tpu.vector_store %arg9[%c0_36, %c0_37], %71 {strides = array<i32>} : memref<16x1024xf32, #tpu.memory_space<vmem>>, vector<16x1024xf32>,
    %73 = arith.truncf %71 : vector<16x1024xf32> to vector<16x1024xbf16>
    %c0_38 = arith.constant 0 : index
    %c0_39 = arith.constant 0 : index
    %74 = vector.load %arg7[%c0_38, %c0_39] : memref<1024x128xbf16, #tpu.memory_space<vmem>>, vector<1024x128xbf16>
    %cst_40 = arith.constant dense<0.000000e+00> : vector<16x128xf32>
    %75 = tpu.matmul %73, %74, %cst_40 {dimension_numbers = #tpu.dot_dimension_numbers<[1], [0], [0], [1], [0, 0, 1, 1], [], []>} : vector<16x1024xbf16>, vector<1024x128xbf16>, vector<16x128xf32> -> vector<16x128xf32>
    %c0_41 = arith.constant 0 : index
    %c0_42 = arith.constant 0 : index
    %76 = vector.load %arg8[%c0_41, %c0_42] : memref<1x128xf32, #tpu.memory_space<vmem>>, vector<1x128xf32>
    %77 = vector.broadcast %76 : vector<1x128xf32> to vector<16x128xf32>
    %78 = arith.addf %75, %77 : vector<16x128xf32>
    %c0_43 = arith.constant 0 : index
    %c0_44 = arith.constant 0 : index
    %79 = vector.load %arg10[%c0_43, %c0_44] : memref<16x128xf32, #tpu.memory_space<vmem>>, vector<16x128xf32>
    tpu.vector_store %arg10[%c0_43, %c0_44], %78 {strides = array<i32>} : memref<16x128xf32, #tpu.memory_space<vmem>>, vector<16x128xf32>,
    return
  }
}

</mosaic_0001>

<llo_original>
// kernel: three_view_net_forward.1
$region0: #{three_view_net_forward.1}
  #allocation0 [shape = 'u32[]', space=smem, size = 0x4, offset = 0x4, fixed_abs, tag = 'smem constant byte address 0x4 - core index']
  #allocation1 [shape = 'u32[144,128]{1,0:T(1,128)}', space=vmem, size = 0x12000, scoped, tag = 'internal scratch']
  #allocation2 [shape = 'f32[16,1024]{1,0:T(8,128)}', space=vmem, size = 0x10000, scoped, tag = 'scratch operand']
  %s0 = inlined_call_operand.vmem [shape: f32[2,128,256], index: 0, kind: input, shape index: {}]
  %s1 = inlined_call_operand.vmem [shape: f32[2,128,256], index: 1, kind: input, shape index: {}]
  %s2 = inlined_call_operand.hbm [shape: f32[2,256], index: 2, kind: input, shape index: {}]
  %s3 = inlined_call_operand.hbm [shape: f32[4,256], index: 3, kind: input, shape index: {}]
  %s4 = inlined_call_operand.hbm [shape: bf16[1024,1024], index: 4, kind: input, shape index: {}]
  %s5 = inlined_call_operand.hbm [shape: f32[16,1024], index: 5, kind: input, shape index: {}]
  %s6 = inlined_call_operand.hbm [shape: f32[16,1024], index: 6, kind: input, shape index: {}]
  %s7 = inlined_call_operand.hbm [shape: bf16[1024,128], index: 7, kind: input, shape index: {}]
  %s8 = inlined_call_operand.hbm [shape: f32[1,128], index: 8, kind: input, shape index: {}]
  %s9 = inlined_call_operand.vmem [shape: f32[16,1024], index: 9, kind: output, shape index: {0}]
  %s10 = inlined_call_operand.vmem [shape: f32[16,128], index: 10, kind: output, shape index: {1}]
  %11 = xla_tuple %s9, %s10
  %s12 = sld [smem:[#allocation0]]
  $region82: #{three_view_net_forward.1} parent=0
    _
  %s14 = ssub.s32 1, %s12
  %s15 = scalar_select 0, %s14, %s12
  $region1: #{three_view_net_forward.1} parent=0
    #allocation3 [shape = 'u8[2048]{0}', space=vmem, size = 0x800, scoped, tag = 'input window, operand 2, single buffered']
    #allocation4 [shape = 's32[1]{0}', space=sflag, size = 0x4, scoped, tag = 'scoped memory for three_view_net_forward.1']
    #allocation5 [shape = 'u8[4096]{0}', space=vmem, size = 0x1000, scoped, tag = 'input window, operand 3, single buffered']
    #allocation6 [shape = 's32[1]{0}', space=sflag, size = 0x4, scoped, tag = 'scoped memory for three_view_net_forward.1']
    #allocation7 [shape = 'u8[2097152]{0}', space=vmem, size = 0x200000, scoped, tag = 'input window, operand 4, single buffered']
    #allocation8 [shape = 'u8[65536]{0}', space=vmem, size = 0x10000, scoped, tag = 'input window, operand 5, single buffered']
    #allocation9 [shape = 's32[1]{0}', space=sflag, size = 0x4, scoped, tag = 'scoped memory for three_view_net_forward.1']
    #allocation10 [shape = 'u8[65536]{0}', space=vmem, size = 0x10000, scoped, tag = 'input window, operand 6, single buffered']
    #allocation11 [shape = 'u8[262144]{0}', space=vmem, size = 0x40000, scoped, tag = 'input window, operand 7, single buffered']
    #allocation12 [shape = 's32[1]{0}', space=sflag, size = 0x4, scoped, tag = 'scoped memory for three_view_net_forward.1']
    #allocation13 [shape = 'u8[512]{0}', space=vmem, size = 0x400, scoped, tag = 'input window, operand 8, single buffered']
    %16 = vsyncpa [#allocation4], 0
    %17 = vsyncpa [#allocation6], 0
    %18 = vsyncpa [#allocation9], 0
    %19 = vsyncpa [#allocation12], 0
    // Predicated region
    $region2: #{three_view_net_forward.1} parent=1 // pred_check
      _
    $region3: #{three_view_net_forward.1} parent=1 // pred_check_branch
      %21 = sbr.rel (0) target = $region5
    $region4: #{three_view_net_forward.1} parent=1 // pred_region
      _
    $region5: #{three_view_net_forward.1} parent=1 // pred_fallthru
      _
    // Predicated region
    $region6: #{three_view_net_forward.1} parent=1 // pred_check
      _
    $region7: #{three_view_net_forward.1} parent=1 // pred_check_branch
      %23 = sbr.rel (0) target = $region9
    $region8: #{three_view_net_forward.1} parent=1 // pred_region
      _
    $region9: #{three_view_net_forward.1} parent=1 // pred_fallthru
      _
    // Predicated region
    $region10: #{three_view_net_forward.1} parent=1 // pred_check
      _
    $region11: #{three_view_net_forward.1} parent=1 // pred_check_branch
      %25 = sbr.rel (0) target = $region13
    $region12: #{three_view_net_forward.1} parent=1 // pred_region
      %s27 = ssub.s32 64, 64
      %28 = vsyncadd [#allocation4], %s27
      %s30 = sshll.u32 [#allocation3], 4
      %s31 = int_to_ptr.vmem [resolvable:$true] %s30
      %33 = dma.hbm_to_vmem [thread:$0]  %s2, 64, %s31, [#allocation4]
    $region13: #{three_view_net_forward.1} parent=1 // pred_fallthru
      _
    // Predicated region
    $region14: #{three_view_net_forward.1} parent=1 // pred_check
      _
    $region15: #{three_view_net_forward.1} parent=1 // pred_check_branch
      %35 = sbr.rel (0) target = $region17
    $region16: #{three_view_net_forward.1} parent=1 // pred_region
      %s37 = ssub.s32 128, 128
      %38 = vsyncadd [#allocation6], %s37
      %s40 = sshll.u32 [#allocation5], 4
      %s41 = int_to_ptr.vmem [resolvable:$true] %s40
      %43 = dma.hbm_to_vmem [thread:$0]  %s3, 128, %s41, [#allocation6]
    $region17: #{three_view_net_forward.1} parent=1 // pred_fallthru
      _
    // Predicated region
    $region18: #{three_view_net_forward.1} parent=1 // pred_check
      _
    $region19: #{three_view_net_forward.1} parent=1 // pred_check_branch
      %45 = sbr.rel (0) target = $region21
    $region20: #{three_view_net_forward.1} parent=1 // pred_region
      %s47 = ssub.s32 65536, 65536
      %48 = vsyncadd [#allocation6], %s47
      %s49 = sshll.u32 [#allocation7], 4
      %s50 = int_to_ptr.vmem [resolvable:$true] %s49
      %55 = dma.hbm_to_vmem [thread:$0]  %s4, 65536, %s50, [#allocation6], 512, 512, 32
    $region21: #{three_view_net_forward.1} parent=1 // pred_fallthru
      _
    // Predicated region
    $region22: #{three_view_net_forward.1} parent=1 // pred_check
      _
    $region23: #{three_view_net_forward.1} parent=1 // pred_check_branch
      %57 = sbr.rel (0) target = $region25
    $region24: #{three_view_net_forward.1} parent=1 // pred_region
      %s59 = ssub.s32 2048, 2048
      %60 = vsyncadd [#allocation9], %s59
      %s61 = sshll.u32 [#allocation8], 4
      %s62 = int_to_ptr.vmem [resolvable:$true] %s61
      %67 = dma.hbm_to_vmem [thread:$0]  %s5, 2048, %s62, [#allocation9], 1024, 1024, 64
    $region25: #{three_view_net_forward.1} parent=1 // pred_fallthru
      _
    // Predicated region
    $region26: #{three_view_net_forward.1} parent=1 // pred_check
      _
    $region27: #{three_view_net_forward.1} parent=1 // pred_check_branch
      %69 = sbr.rel (0) target = $region29
    $region28: #{three_view_net_forward.1} parent=1 // pred_region
      %s71 = ssub.s32 2048, 2048
      %72 = vsyncadd [#allocation9], %s71
      %s73 = sshll.u32 [#allocation10], 4
      %s74 = int_to_ptr.vmem [resolvable:$true] %s73
      %79 = dma.hbm_to_vmem [thread:$0]  %s6, 2048, %s74, [#allocation9], 1024, 1024, 64
    $region29: #{three_view_net_forward.1} parent=1 // pred_fallthru
      _
    // Predicated region
    $region30: #{three_view_net_forward.1} parent=1 // pred_check
      _
    $region31: #{three_view_net_forward.1} parent=1 // pred_check_branch
      %81 = sbr.rel (0) target = $region33
    $region32: #{three_view_net_forward.1} parent=1 // pred_region
      %s83 = ssub.s32 8192, 8192
      %84 = vsyncadd [#allocation12], %s83
      %s85 = sshll.u32 [#allocation11], 4
      %s86 = int_to_ptr.vmem [resolvable:$true] %s85
      %91 = dma.hbm_to_vmem [thread:$0]  %s7, 8192, %s86, [#allocation12], 64, 64, 4
    $region33: #{three_view_net_forward.1} parent=1 // pred_fallthru
      _
    // Predicated region
    $region34: #{three_view_net_forward.1} parent=1 // pred_check
      _
    $region35: #{three_view_net_forward.1} parent=1 // pred_check_branch
      %93 = sbr.rel (0) target = $region37
    $region36: #{three_view_net_forward.1} parent=1 // pred_region
      %s95 = ssub.s32 16, 16
      %96 = vsyncadd [#allocation12], %s95
      %s98 = sshll.u32 [#allocation13], 4
      %s99 = int_to_ptr.vmem [resolvable:$true] %s98
      %101 = dma.hbm_to_vmem [thread:$0]  %s8, 16, %s99, [#allocation12]
    $region37: #{three_view_net_forward.1} parent=1 // pred_fallthru
      _
    // Predicated region
    $region38: #{three_view_net_forward.1} parent=1 // pred_check
      _
    $region39: #{three_view_net_forward.1} parent=1 // pred_check_branch
      %103 = sbr.rel (0) target = $region41
    $region40: #{three_view_net_forward.1} parent=1 // pred_region
      %104 = dma.done [#allocation4], 64
    $region41: #{three_view_net_forward.1} parent=1 // pred_fallthru
      _
    // Predicated region
    $region42: #{three_view_net_forward.1} parent=1 // pred_check
      _
    $region43: #{three_view_net_forward.1} parent=1 // pred_check_branch
      %106 = sbr.rel (0) target = $region45
    $region44: #{three_view_net_forward.1} parent=1 // pred_region
      %107 = dma.done [#allocation6], 128
    $region45: #{three_view_net_forward.1} parent=1 // pred_fallthru
      _
    // Predicated region
    $region46: #{three_view_net_forward.1} parent=1 // pred_check
      _
    $region47: #{three_view_net_forward.1} parent=1 // pred_check_branch
      %109 = sbr.rel (0) target = $region49
    $region48: #{three_view_net_forward.1} parent=1 // pred_region
      %110 = dma.done [#allocation6], 65536
    $region49: #{three_view_net_forward.1} parent=1 // pred_fallthru
      _
    // Predicated region
    $region50: #{three_view_net_forward.1} parent=1 // pred_check
      _
    $region51: #{three_view_net_forward.1} parent=1 // pred_check_branch
      %112 = sbr.rel (0) target = $region53
    $region52: #{three_view_net_forward.1} parent=1 // pred_region
      %113 = dma.done [#allocation9], 2048
    $region53: #{three_view_net_forward.1} parent=1 // pred_fallthru
      _
    // Predicated region
    $region54: #{three_view_net_forward.1} parent=1 // pred_check
      _
    $region55: #{three_view_net_forward.1} parent=1 // pred_check_branch
      %115 = sbr.rel (0) target = $region57
    $region56: #{three_view_net_forward.1} parent=1 // pred_region
      %116 = dma.done [#allocation9], 2048
    $region57: #{three_view_net_forward.1} parent=1 // pred_fallthru
      _
    // Predicated region
    $region58: #{three_view_net_forward.1} parent=1 // pred_check
      _
    $region59: #{three_view_net_forward.1} parent=1 // pred_check_branch
      %118 = sbr.rel (0) target = $region61
    $region60: #{three_view_net_forward.1} parent=1 // pred_region
      %119 = dma.done [#allocation12], 8192
    $region61: #{three_view_net_forward.1} parent=1 // pred_fallthru
      _
    // Predicated region
    $region62: #{three_view_net_forward.1} parent=1 // pred_check
      _
    $region63: #{three_view_net_forward.1} parent=1 // pred_check_branch
      %121 = sbr.rel (0) target = $region65
    $region64: #{three_view_net_forward.1} parent=1 // pred_region
      %122 = dma.done [#allocation12], 16
    $region65: #{three_view_net_forward.1} parent=1 // pred_fallthru
      _
    %124 = vst [vmem:[#allocation2] sm:$0xff] 0.0
    %125 = vst [vmem:[#allocation2 + $0x8] sm:$0xff] 0.0
    %126 = vst [vmem:[#allocation2 + $0x10] sm:$0xff] 0.0
    %127 = vst [vmem:[#allocation2 + $0x18] sm:$0xff] 0.0
    %128 = vst [vmem:[#allocation2 + $0x20] sm:$0xff] 0.0
    %129 = vst [vmem:[#allocation2 + $0x28] sm:$0xff] 0.0
    %130 = vst [vmem:[#allocation2 + $0x30] sm:$0xff] 0.0
    %131 = vst [vmem:[#allocation2 + $0x38] sm:$0xff] 0.0
    %132 = vst [vmem:[#allocation2 + $0x40] sm:$0xff] 0.0
    %133 = vst [vmem:[#allocation2 + $0x48] sm:$0xff] 0.0
    %134 = vst [vmem:[#allocation2 + $0x50] sm:$0xff] 0.0
    %135 = vst [vmem:[#allocation2 + $0x58] sm:$0xff] 0.0
    %136 = vst [vmem:[#allocation2 + $0x60] sm:$0xff] 0.0
    %137 = vst [vmem:[#allocation2 + $0x68] sm:$0xff] 0.0
    %138 = vst [vmem:[#allocation2 + $0x70] sm:$0xff] 0.0
    %139 = vst [vmem:[#allocation2 + $0x78] sm:$0xff] 0.0
    %v140 = vld [vmem:[%s0] sm:$0xff]
    %v141 = vld [vmem:[%s0 + $0x8] sm:$0xff]
    %v142 = vld [vmem:[%s0 + $0x10] sm:$0xff]
    %v143 = vld [vmem:[%s0 + $0x18] sm:$0xff]
    %v144 = vld [vmem:[%s0 + $0x20] sm:$0xff]
    %v145 = vld [vmem:[%s0 + $0x28] sm:$0xff]
    %v146 = vld [vmem:[%s0 + $0x30] sm:$0xff]
    %v147 = vld [vmem:[%s0 + $0x38] sm:$0xff]
    %v148 = vld [vmem:[%s0 + $0x40] sm:$0xff]
    %v149 = vld [vmem:[%s0 + $0x48] sm:$0xff]
    %v150 = vld [vmem:[%s0 + $0x50] sm:$0xff]
    %v151 = vld [vmem:[%s0 + $0x58] sm:$0xff]
    %v152 = vld [vmem:[%s0 + $0x60] sm:$0xff]
    %v153 = vld [vmem:[%s0 + $0x68] sm:$0xff]
    %v154 = vld [vmem:[%s0 + $0x70] sm:$0xff]
    %v155 = vld [vmem:[%s0 + $0x78] sm:$0xff]
    %v156 = vld [vmem:[%s0 + $0x80] sm:$0xff]
    %v157 = vld [vmem:[%s0 + $0x88] sm:$0xff]
    %v158 = vld [vmem:[%s0 + $0x90] sm:$0xff]
    %v159 = vld [vmem:[%s0 + $0x98] sm:$0xff]
    %v160 = vld [vmem:[%s0 + $0xa0] sm:$0xff]
    %v161 = vld [vmem:[%s0 + $0xa8] sm:$0xff]
    %v162 = vld [vmem:[%s0 + $0xb0] sm:$0xff]
    %v163 = vld [vmem:[%s0 + $0xb8] sm:$0xff]
    %v164 = vld [vmem:[%s0 + $0xc0] sm:$0xff]
    %v165 = vld [vmem:[%s0 + $0xc8] sm:$0xff]
    %v166 = vld [vmem:[%s0 + $0xd0] sm:$0xff]
    %v167 = vld [vmem:[%s0 + $0xd8] sm:$0xff]
    %v168 = vld [vmem:[%s0 + $0xe0] sm:$0xff]
    %v169 = vld [vmem:[%s0 + $0xe8] sm:$0xff]
    %v170 = vld [vmem:[%s0 + $0xf0] sm:$0xff]
    %v171 = vld [vmem:[%s0 + $0xf8] sm:$0xff]
    %v172 = vld [vmem:[%s0 + $0x100] sm:$0xff]
    %v173 = vld [vmem:[%s0 + $0x108] sm:$0xff]
    %v174 = vld [vmem:[%s0 + $0x110] sm:$0xff]
    %v175 = vld [vmem:[%s0 + $0x118] sm:$0xff]
    %v176 = vld [vmem:[%s0 + $0x120] sm:$0xff]
    %v177 = vld [vmem:[%s0 + $0x128] sm:$0xff]
    %v178 = vld [vmem:[%s0 + $0x130] sm:$0xff]
    %v179 = vld [vmem:[%s0 + $0x138] sm:$0xff]
    %v180 = vld [vmem:[%s0 + $0x140] sm:$0xff]
    %v181 = vld [vmem:[%s0 + $0x148] sm:$0xff]
    %v182 = vld [vmem:[%s0 + $0x150] sm:$0xff]
    %v183 = vld [vmem:[%s0 + $0x158] sm:$0xff]
    %v184 = vld [vmem:[%s0 + $0x160] sm:$0xff]
    %v185 = vld [vmem:[%s0 + $0x168] sm:$0xff]
    %v186 = vld [vmem:[%s0 + $0x170] sm:$0xff]
    %v187 = vld [vmem:[%s0 + $0x178] sm:$0xff]
    %v188 = vld [vmem:[%s0 + $0x180] sm:$0xff]
    %v189 = vld [vmem:[%s0 + $0x188] sm:$0xff]
    %v190 = vld [vmem:[%s0 + $0x190] sm:$0xff]
    %v191 = vld [vmem:[%s0 + $0x198] sm:$0xff]
    %v192 = vld [vmem:[%s0 + $0x1a0] sm:$0xff]
    %v193 = vld [vmem:[%s0 + $0x1a8] sm:$0xff]
    %v194 = vld [vmem:[%s0 + $0x1b0] sm:$0xff]
    %v195 = vld [vmem:[%s0 + $0x1b8] sm:$0xff]
    %v196 = vld [vmem:[%s0 + $0x1c0] sm:$0xff]
    %v197 = vld [vmem:[%s0 + $0x1c8] sm:$0xff]
    %v198 = vld [vmem:[%s0 + $0x1d0] sm:$0xff]
    %v199 = vld [vmem:[%s0 + $0x1d8] sm:$0xff]
    %v200 = vld [vmem:[%s0 + $0x1e0] sm:$0xff]
    %v201 = vld [vmem:[%s0 + $0x1e8] sm:$0xff]
    %v202 = vld [vmem:[%s0 + $0x1f0] sm:$0xff]
    %v203 = vld [vmem:[%s0 + $0x1f8] sm:$0xff]
    %v204 = vld [vmem:[%s1] sm:$0xff]
    %v205 = vld [vmem:[%s1 + $0x8] sm:$0xff]
    %v206 = vld [vmem:[%s1 + $0x10] sm:$0xff]
    %v207 = vld [vmem:[%s1 + $0x18] sm:$0xff]
    %v208 = vld [vmem:[%s1 + $0x20] sm:$0xff]
    %v209 = vld [vmem:[%s1 + $0x28] sm:$0xff]
    %v210 = vld [vmem:[%s1 + $0x30] sm:$0xff]
    %v211 = vld [vmem:[%s1 + $0x38] sm:$0xff]
    %v212 = vld [vmem:[%s1 + $0x40] sm:$0xff]
    %v213 = vld [vmem:[%s1 + $0x48] sm:$0xff]
    %v214 = vld [vmem:[%s1 + $0x50] sm:$0xff]
    %v215 = vld [vmem:[%s1 + $0x58] sm:$0xff]
    %v216 = vld [vmem:[%s1 + $0x60] sm:$0xff]
    %v217 = vld [vmem:[%s1 + $0x68] sm:$0xff]
    %v218 = vld [vmem:[%s1 + $0x70] sm:$0xff]
    %v219 = vld [vmem:[%s1 + $0x78] sm:$0xff]
    %v220 = vld [vmem:[%s1 + $0x80] sm:$0xff]
    %v221 = vld [vmem:[%s1 + $0x88] sm:$0xff]
    %v222 = vld [vmem:[%s1 + $0x90] sm:$0xff]
    %v223 = vld [vmem:[%s1 + $0x98] sm:$0xff]
    %v224 = vld [vmem:[%s1 + $0xa0] sm:$0xff]
    %v225 = vld [vmem:[%s1 + $0xa8] sm:$0xff]
    %v226 = vld [vmem:[%s1 + $0xb0] sm:$0xff]
    %v227 = vld [vmem:[%s1 + $0xb8] sm:$0xff]
    %v228 = vld [vmem:[%s1 + $0xc0] sm:$0xff]
    %v229 = vld [vmem:[%s1 + $0xc8] sm:$0xff]
    %v230 = vld [vmem:[%s1 + $0xd0] sm:$0xff]
    %v231 = vld [vmem:[%s1 + $0xd8] sm:$0xff]
    %v232 = vld [vmem:[%s1 + $0xe0] sm:$0xff]
    %v233 = vld [vmem:[%s1 + $0xe8] sm:$0xff]
    %v234 = vld [vmem:[%s1 + $0xf0] sm:$0xff]
    %v235 = vld [vmem:[%s1 + $0xf8] sm:$0xff]
    %v236 = vld [vmem:[%s1 + $0x100] sm:$0xff]
    %v237 = vld [vmem:[%s1 + $0x108] sm:$0xff]
    %v238 = vld [vmem:[%s1 + $0x110] sm:$0xff]
    %v239 = vld [vmem:[%s1 + $0x118] sm:$0xff]
    %v240 = vld [vmem:[%s1 + $0x120] sm:$0xff]
    %v241 = vld [vmem:[%s1 + $0x128] sm:$0xff]
    %v242 = vld [vmem:[%s1 + $0x130] sm:$0xff]
    %v243 = vld [vmem:[%s1 + $0x138] sm:$0xff]
    %v244 = vld [vmem:[%s1 + $0x140] sm:$0xff]
    %v245 = vld [vmem:[%s1 + $0x148] sm:$0xff]
    %v246 = vld [vmem:[%s1 + $0x150] sm:$0xff]
    %v247 = vld [vmem:[%s1 + $0x158] sm:$0xff]
    %v248 = vld [vmem:[%s1 + $0x160] sm:$0xff]
    %v249 = vld [vmem:[%s1 + $0x168] sm:$0xff]
    %v250 = vld [vmem:[%s1 + $0x170] sm:$0xff]
    %v251 = vld [vmem:[%s1 + $0x178] sm:$0xff]
    %v252 = vld [vmem:[%s1 + $0x180] sm:$0xff]
    %v253 = vld [vmem:[%s1 + $0x188] sm:$0xff]
    %v254 = vld [vmem:[%s1 + $0x190] sm:$0xff]
    %v255 = vld [vmem:[%s1 + $0x198] sm:$0xff]
    %v256 = vld [vmem:[%s1 + $0x1a0] sm:$0xff]
    %v257 = vld [vmem:[%s1 + $0x1a8] sm:$0xff]
    %v258 = vld [vmem:[%s1 + $0x1b0] sm:$0xff]
    %v259 = vld [vmem:[%s1 + $0x1b8] sm:$0xff]
    %v260 = vld [vmem:[%s1 + $0x1c0] sm:$0xff]
    %v261 = vld [vmem:[%s1 + $0x1c8] sm:$0xff]
    %v262 = vld [vmem:[%s1 + $0x1d0] sm:$0xff]
    %v263 = vld [vmem:[%s1 + $0x1d8] sm:$0xff]
    %v264 = vld [vmem:[%s1 + $0x1e0] sm:$0xff]
    %v265 = vld [vmem:[%s1 + $0x1e8] sm:$0xff]
    %v266 = vld [vmem:[%s1 + $0x1f0] sm:$0xff]
    %v267 = vld [vmem:[%s1 + $0x1f8] sm:$0xff]
    %v268 = vadd.f32 %v140, %v141
    %269 = vadd.xlane.f32.xlu0 %v268
    %v270 = vpop.xlane.xlu0 %269
    %v271 = vadd.f32 %v142, %v143
    %272 = vadd.xlane.f32.xlu0 %v271
    %v273 = vpop.xlane.xlu0 %272
    %v274 = vadd.f32 %v144, %v145
    %275 = vadd.xlane.f32.xlu0 %v274
    %v276 = vpop.xlane.xlu0 %275
    %v277 = vadd.f32 %v146, %v147
    %278 = vadd.xlane.f32.xlu0 %v277
    %v279 = vpop.xlane.xlu0 %278
    %v280 = vadd.f32 %v148, %v149
    %281 = vadd.xlane.f32.xlu0 %v280
    %v282 = vpop.xlane.xlu0 %281
    %v283 = vadd.f32 %v150, %v151
    %284 = vadd.xlane.f32.xlu0 %v283
    %v285 = vpop.xlane.xlu0 %284
    %v286 = vadd.f32 %v152, %v153
    %287 = vadd.xlane.f32.xlu0 %v286
    %v288 = vpop.xlane.xlu0 %287
    %v289 = vadd.f32 %v154, %v155
    %290 = vadd.xlane.f32.xlu0 %v289
    %v291 = vpop.xlane.xlu0 %290
    %v292 = vadd.f32 %v156, %v157
    %293 = vadd.xlane.f32.xlu0 %v292
    %v294 = vpop.xlane.xlu0 %293
    %v295 = vadd.f32 %v158, %v159
    %296 = vadd.xlane.f32.xlu0 %v295
    %v297 = vpop.xlane.xlu0 %296
    %v298 = vadd.f32 %v160, %v161
    %299 = vadd.xlane.f32.xlu0 %v298
    %v300 = vpop.xlane.xlu0 %299
    %v301 = vadd.f32 %v162, %v163
    %302 = vadd.xlane.f32.xlu0 %v301
    %v303 = vpop.xlane.xlu0 %302
    %v304 = vadd.f32 %v164, %v165
    %305 = vadd.xlane.f32.xlu0 %v304
    %v306 = vpop.xlane.xlu0 %305
    %v307 = vadd.f32 %v166, %v167
    %308 = vadd.xlane.f32.xlu0 %v307
    %v309 = vpop.xlane.xlu0 %308
    %v310 = vadd.f32 %v168, %v169
    %311 = vadd.xlane.f32.xlu0 %v310
    %v312 = vpop.xlane.xlu0 %311
    %v313 = vadd.f32 %v170, %v171
    %314 = vadd.xlane.f32.xlu0 %v313
    %v315 = vpop.xlane.xlu0 %314
    %v316 = vadd.f32 %v172, %v173
    %317 = vadd.xlane.f32.xlu0 %v316
    %v318 = vpop.xlane.xlu0 %317
    %v319 = vadd.f32 %v174, %v175
    %320 = vadd.xlane.f32.xlu0 %v319
    %v321 = vpop.xlane.xlu0 %320
    %v322 = vadd.f32 %v176, %v177
    %323 = vadd.xlane.f32.xlu0 %v322
    %v324 = vpop.xlane.xlu0 %323
    %v325 = vadd.f32 %v178, %v179
    %326 = vadd.xlane.f32.xlu0 %v325
    %v327 = vpop.xlane.xlu0 %326
    %v328 = vadd.f32 %v180, %v181
    %329 = vadd.xlane.f32.xlu0 %v328
    %v330 = vpop.xlane.xlu0 %329
    %v331 = vadd.f32 %v182, %v183
    %332 = vadd.xlane.f32.xlu0 %v331
    %v333 = vpop.xlane.xlu0 %332
    %v334 = vadd.f32 %v184, %v185
    %335 = vadd.xlane.f32.xlu0 %v334
    %v336 = vpop.xlane.xlu0 %335
    %v337 = vadd.f32 %v186, %v187
    %338 = vadd.xlane.f32.xlu0 %v337
    %v339 = vpop.xlane.xlu0 %338
    %v340 = vadd.f32 %v188, %v189
    %341 = vadd.xlane.f32.xlu0 %v340
    %v342 = vpop.xlane.xlu0 %341
    %v343 = vadd.f32 %v190, %v191
    %344 = vadd.xlane.f32.xlu0 %v343
    %v345 = vpop.xlane.xlu0 %344
    %v346 = vadd.f32 %v192, %v193
    %347 = vadd.xlane.f32.xlu0 %v346
    %v348 = vpop.xlane.xlu0 %347
    %v349 = vadd.f32 %v194, %v195
    %350 = vadd.xlane.f32.xlu0 %v349
    %v351 = vpop.xlane.xlu0 %350
    %v352 = vadd.f32 %v196, %v197
    %353 = vadd.xlane.f32.xlu0 %v352
    %v354 = vpop.xlane.xlu0 %353
    %v355 = vadd.f32 %v198, %v199
    %356 = vadd.xlane.f32.xlu0 %v355
    %v357 = vpop.xlane.xlu0 %356
    %v358 = vadd.f32 %v200, %v201
    %359 = vadd.xlane.f32.xlu0 %v358
    %v360 = vpop.xlane.xlu0 %359
    %v361 = vadd.f32 %v202, %v203
    %362 = vadd.xlane.f32.xlu0 %v361
    %v363 = vpop.xlane.xlu0 %362
    %v364 = vrcp.pop 256.0
    %v365 = vmul.f32 %v270, %v364
    %v366 = vmul.f32 %v273, %v364
    %v367 = vmul.f32 %v276, %v364
    %v368 = vmul.f32 %v279, %v364
    %v369 = vmul.f32 %v282, %v364
    %v370 = vmul.f32 %v285, %v364
    %v371 = vmul.f32 %v288, %v364
    %v372 = vmul.f32 %v291, %v364
    %v373 = vmul.f32 %v294, %v364
    %v374 = vmul.f32 %v297, %v364
    %v375 = vmul.f32 %v300, %v364
    %v376 = vmul.f32 %v303, %v364
    %v377 = vmul.f32 %v306, %v364
    %v378 = vmul.f32 %v309, %v364
    %v379 = vmul.f32 %v312, %v364
    %v380 = vmul.f32 %v315, %v364
    %v381 = vmul.f32 %v318, %v364
    %v382 = vmul.f32 %v321, %v364
    %v383 = vmul.f32 %v324, %v364
    %v384 = vmul.f32 %v327, %v364
    %v385 = vmul.f32 %v330, %v364
    %v386 = vmul.f32 %v333, %v364
    %v387 = vmul.f32 %v336, %v364
    %v388 = vmul.f32 %v339, %v364
    %v389 = vmul.f32 %v342, %v364
    %v390 = vmul.f32 %v345, %v364
    %v391 = vmul.f32 %v348, %v364
    %v392 = vmul.f32 %v351, %v364
    %v393 = vmul.f32 %v354, %v364
    %v394 = vmul.f32 %v357, %v364
    %v395 = vmul.f32 %v360, %v364
    %v396 = vmul.f32 %v363, %v364
    %v429 = vlaneseq
    %v430 = vand.u32 %v429, 127
    %v431 = vlaneseq
    %v432 = vshrl.u32 %v431, 7
    %v433 = vsub.s32 %v430, %v432
    %v434 = vrot.slane %v365, %v433
    %v435 = vadd.s32 %v430, 4294967288
    %v436 = vlaneseq
    %v437 = vshrl.u32 %v436, 7
    %v438 = vsub.s32 %v435, %v437
    %v439 = vrot.slane %v366, %v438
    %vm440 = vcmask 130112
    %v441 = vsel %vm440, %v439, %v434
    %v442 = vadd.s32 %v430, 4294967280
    %v443 = vlaneseq
    %v444 = vshrl.u32 %v443, 7
    %v445 = vsub.s32 %v442, %v444
    %v446 = vrot.slane %v367, %v445
    %vm447 = vcmask 195712
    %v448 = vsel %vm447, %v446, %v441
    %v449 = vadd.s32 %v430, 4294967272
    %v450 = vlaneseq
    %v451 = vshrl.u32 %v450, 7
    %v452 = vsub.s32 %v449, %v451
    %v453 = vrot.slane %v368, %v452
    %vm454 = vcmask 261312
    %v455 = vsel %vm454, %v453, %v448
    %v456 = vadd.s32 %v430, 4294967264
    %v457 = vlaneseq
    %v458 = vshrl.u32 %v457, 7
    %v459 = vsub.s32 %v456, %v458
    %v460 = vrot.slane %v369, %v459
    %vm461 = vcmask 326912
    %v462 = vsel %vm461, %v460, %v455
    %v463 = vadd.s32 %v430, 4294967256
    %v464 = vlaneseq
    %v465 = vshrl.u32 %v464, 7
    %v466 = vsub.s32 %v463, %v465
    %v467 = vrot.slane %v370, %v466
    %vm468 = vcmask 392512
    %v469 = vsel %vm468, %v467, %v462
    %v470 = vadd.s32 %v430, 4294967248
    %v471 = vlaneseq
    %v472 = vshrl.u32 %v471, 7
    %v473 = vsub.s32 %v470, %v472
    %v474 = vrot.slane %v371, %v473
    %vm475 = vcmask 458112
    %v476 = vsel %vm475, %v474, %v469
    %v477 = vadd.s32 %v430, 4294967240
    %v478 = vlaneseq
    %v479 = vshrl.u32 %v478, 7
    %v480 = vsub.s32 %v477, %v479
    %v481 = vrot.slane %v372, %v480
    %vm482 = vcmask 523712
    %v483 = vsel %vm482, %v481, %v476
    %v484 = vadd.s32 %v430, 4294967232
    %v485 = vlaneseq
    %v486 = vshrl.u32 %v485, 7
    %v487 = vsub.s32 %v484, %v486
    %v488 = vrot.slane %v373, %v487
    %vm489 = vcmask 589312
    %v490 = vsel %vm489, %v488, %v483
    %v491 = vadd.s32 %v430, 4294967224
    %v492 = vlaneseq
    %v493 = vshrl.u32 %v492, 7
    %v494 = vsub.s32 %v491, %v493
    %v495 = vrot.slane %v374, %v494
    %vm496 = vcmask 654912
    %v497 = vsel %vm496, %v495, %v490
    %v498 = vadd.s32 %v430, 4294967216
    %v499 = vlaneseq
    %v500 = vshrl.u32 %v499, 7
    %v501 = vsub.s32 %v498, %v500
    %v502 = vrot.slane %v375, %v501
    %vm503 = vcmask 720512
    %v504 = vsel %vm503, %v502, %v497
    %v505 = vadd.s32 %v430, 4294967208
    %v506 = vlaneseq
    %v507 = vshrl.u32 %v506, 7
    %v508 = vsub.s32 %v505, %v507
    %v509 = vrot.slane %v376, %v508
    %vm510 = vcmask 786112
    %v511 = vsel %vm510, %v509, %v504
    %v512 = vadd.s32 %v430, 4294967200
    %v513 = vlaneseq
    %v514 = vshrl.u32 %v513, 7
    %v515 = vsub.s32 %v512, %v514
    %v516 = vrot.slane %v377, %v515
    %vm517 = vcmask 851712
    %v518 = vsel %vm517, %v516, %v511
    %v519 = vadd.s32 %v430, 4294967192
    %v520 = vlaneseq
    %v521 = vshrl.u32 %v520, 7
    %v522 = vsub.s32 %v519, %v521
    %v523 = vrot.slane %v378, %v522
    %vm524 = vcmask 917312
    %v525 = vsel %vm524, %v523, %v518
    %v526 = vadd.s32 %v430, 4294967184
    %v527 = vlaneseq
    %v528 = vshrl.u32 %v527, 7
    %v529 = vsub.s32 %v526, %v528
    %v530 = vrot.slane %v379, %v529
    %vm531 = vcmask 982912
    %v532 = vsel %vm531, %v530, %v525
    %v533 = vadd.s32 %v430, 4294967176
    %v534 = vlaneseq
    %v535 = vshrl.u32 %v534, 7
    %v536 = vsub.s32 %v533, %v535
    %v537 = vrot.slane %v380, %v536
    %vm538 = vcmask 1048512
    %v539 = vsel %vm538, %v537, %v532
    %v540 = vlaneseq
    %v541 = vshrl.u32 %v540, 7
    %v542 = vsub.s32 %v430, %v541
    %v543 = vrot.slane %v381, %v542
    %v544 = vlaneseq
    %v545 = vshrl.u32 %v544, 7
    %v546 = vsub.s32 %v435, %v545
    %v547 = vrot.slane %v382, %v546
    %v548 = vsel %vm440, %v547, %v543
    %v549 = vlaneseq
    %v550 = vshrl.u32 %v549, 7
    %v551 = vsub.s32 %v442, %v550
    %v552 = vrot.slane %v383, %v551
    %v553 = vsel %vm447, %v552, %v548
    %v554 = vlaneseq
    %v555 = vshrl.u32 %v554, 7
    %v556 = vsub.s32 %v449, %v555
    %v557 = vrot.slane %v384, %v556
    %v558 = vsel %vm454, %v557, %v553
    %v559 = vlaneseq
    %v560 = vshrl.u32 %v559, 7
    %v561 = vsub.s32 %v456, %v560
    %v562 = vrot.slane %v385, %v561
    %v563 = vsel %vm461, %v562, %v558
    %v564 = vlaneseq
    %v565 = vshrl.u32 %v564, 7
    %v566 = vsub.s32 %v463, %v565
    %v567 = vrot.slane %v386, %v566
    %v568 = vsel %vm468, %v567, %v563
    %v569 = vlaneseq
    %v570 = vshrl.u32 %v569, 7
    %v571 = vsub.s32 %v470, %v570
    %v572 = vrot.slane %v387, %v571
    %v573 = vsel %vm475, %v572, %v568
    %v574 = vlaneseq
    %v575 = vshrl.u32 %v574, 7
    %v576 = vsub.s32 %v477, %v575
    %v577 = vrot.slane %v388, %v576
    %v578 = vsel %vm482, %v577, %v573
    %v579 = vlaneseq
    %v580 = vshrl.u32 %v579, 7
    %v581 = vsub.s32 %v484, %v580
    %v582 = vrot.slane %v389, %v581
    %v583 = vsel %vm489, %v582, %v578
    %v584 = vlaneseq
    %v585 = vshrl.u32 %v584, 7
    %v586 = vsub.s32 %v491, %v585
    %v587 = vrot.slane %v390, %v586
    %v588 = vsel %vm496, %v587, %v583
    %v589 = vlaneseq
    %v590 = vshrl.u32 %v589, 7
    %v591 = vsub.s32 %v498, %v590
    %v592 = vrot.slane %v391, %v591
    %v593 = vsel %vm503, %v592, %v588
    %v594 = vlaneseq
    %v595 = vshrl.u32 %v594, 7
    %v596 = vsub.s32 %v505, %v595
    %v597 = vrot.slane %v392, %v596
    %v598 = vsel %vm510, %v597, %v593
    %v599 = vlaneseq
    %v600 = vshrl.u32 %v599, 7
    %v601 = vsub.s32 %v512, %v600
    %v602 = vrot.slane %v393, %v601
    %v603 = vsel %vm517, %v602, %v598
    %v604 = vlaneseq
    %v605 = vshrl.u32 %v604, 7
    %v606 = vsub.s32 %v519, %v605
    %v607 = vrot.slane %v394, %v606
    %v608 = vsel %vm524, %v607, %v603
    %v609 = vlaneseq
    %v610 = vshrl.u32 %v609, 7
    %v611 = vsub.s32 %v526, %v610
    %v612 = vrot.slane %v395, %v611
    %v613 = vsel %vm531, %v612, %v608
    %v614 = vlaneseq
    %v615 = vshrl.u32 %v614, 7
    %v616 = vsub.s32 %v533, %v615
    %v617 = vrot.slane %v396, %v616
    %v618 = vsel %vm538, %v617, %v613
    %vm619 = vcmask 1041409
    %v620 = vsel %vm619, %v618, %v539
    %622 = vst [vmem:[#allocation2] sm:$0x3] %v620
    %v623 = vadd.f32 %v204, %v205
    %624 = vadd.xlane.f32.xlu0 %v623
    %v625 = vpop.xlane.xlu0 %624
    %v626 = vadd.f32 %v206, %v207
    %627 = vadd.xlane.f32.xlu0 %v626
    %v628 = vpop.xlane.xlu0 %627
    %v629 = vadd.f32 %v208, %v209
    %630 = vadd.xlane.f32.xlu0 %v629
    %v631 = vpop.xlane.xlu0 %630
    %v632 = vadd.f32 %v210, %v211
    %633 = vadd.xlane.f32.xlu0 %v632
    %v634 = vpop.xlane.xlu0 %633
    %v635 = vadd.f32 %v212, %v213
    %636 = vadd.xlane.f32.xlu0 %v635
    %v637 = vpop.xlane.xlu0 %636
    %v638 = vadd.f32 %v214, %v215
    %639 = vadd.xlane.f32.xlu0 %v638
    %v640 = vpop.xlane.xlu0 %639
    %v641 = vadd.f32 %v216, %v217
    %642 = vadd.xlane.f32.xlu0 %v641
    %v643 = vpop.xlane.xlu0 %642
    %v644 = vadd.f32 %v218, %v219
    %645 = vadd.xlane.f32.xlu0 %v644
    %v646 = vpop.xlane.xlu0 %645
    %v647 = vadd.f32 %v220, %v221
    %648 = vadd.xlane.f32.xlu0 %v647
    %v649 = vpop.xlane.xlu0 %648
    %v650 = vadd.f32 %v222, %v223
    %651 = vadd.xlane.f32.xlu0 %v650
    %v652 = vpop.xlane.xlu0 %651
    %v653 = vadd.f32 %v224, %v225
    %654 = vadd.xlane.f32.xlu0 %v653
    %v655 = vpop.xlane.xlu0 %654
    %v656 = vadd.f32 %v226, %v227
    %657 = vadd.xlane.f32.xlu0 %v656
    %v658 = vpop.xlane.xlu0 %657
    %v659 = vadd.f32 %v228, %v229
    %660 = vadd.xlane.f32.xlu0 %v659
    %v661 = vpop.xlane.xlu0 %660
    %v662 = vadd.f32 %v230, %v231
    %663 = vadd.xlane.f32.xlu0 %v662
    %v664 = vpop.xlane.xlu0 %663
    %v665 = vadd.f32 %v232, %v233
    %666 = vadd.xlane.f32.xlu0 %v665
    %v667 = vpop.xlane.xlu0 %666
    %v668 = vadd.f32 %v234, %v235
    %669 = vadd.xlane.f32.xlu0 %v668
    %v670 = vpop.xlane.xlu0 %669
    %v671 = vadd.f32 %v236, %v237
    %672 = vadd.xlane.f32.xlu0 %v671
    %v673 = vpop.xlane.xlu0 %672
    %v674 = vadd.f32 %v238, %v239
    %675 = vadd.xlane.f32.xlu0 %v674
    %v676 = vpop.xlane.xlu0 %675
    %v677 = vadd.f32 %v240, %v241
    %678 = vadd.xlane.f32.xlu0 %v677
    %v679 = vpop.xlane.xlu0 %678
    %v680 = vadd.f32 %v242, %v243
    %681 = vadd.xlane.f32.xlu0 %v680
    %v682 = vpop.xlane.xlu0 %681
    %v683 = vadd.f32 %v244, %v245
    %684 = vadd.xlane.f32.xlu0 %v683
    %v685 = vpop.xlane.xlu0 %684
    %v686 = vadd.f32 %v246, %v247
    %687 = vadd.xlane.f32.xlu0 %v686
    %v688 = vpop.xlane.xlu0 %687
    %v689 = vadd.f32 %v248, %v249
    %690 = vadd.xlane.f32.xlu0 %v689
    %v691 = vpop.xlane.xlu0 %690
    %v692 = vadd.f32 %v250, %v251
    %693 = vadd.xlane.f32.xlu0 %v692
    %v694 = vpop.xlane.xlu0 %693
    %v695 = vadd.f32 %v252, %v253
    %696 = vadd.xlane.f32.xlu0 %v695
    %v697 = vpop.xlane.xlu0 %696
    %v698 = vadd.f32 %v254, %v255
    %699 = vadd.xlane.f32.xlu0 %v698
    %v700 = vpop.xlane.xlu0 %699
    %v701 = vadd.f32 %v256, %v257
    %702 = vadd.xlane.f32.xlu0 %v701
    %v703 = vpop.xlane.xlu0 %702
    %v704 = vadd.f32 %v258, %v259
    %705 = vadd.xlane.f32.xlu0 %v704
    %v706 = vpop.xlane.xlu0 %705
    %v707 = vadd.f32 %v260, %v261
    %708 = vadd.xlane.f32.xlu0 %v707
    %v709 = vpop.xlane.xlu0 %708
    %v710 = vadd.f32 %v262, %v263
    %711 = vadd.xlane.f32.xlu0 %v710
    %v712 = vpop.xlane.xlu0 %711
    %v713 = vadd.f32 %v264, %v265
    %714 = vadd.xlane.f32.xlu0 %v713
    %v715 = vpop.xlane.xlu0 %714
    %v716 = vadd.f32 %v266, %v267
    %717 = vadd.xlane.f32.xlu0 %v716
    %v718 = vpop.xlane.xlu0 %717
    %v719 = vmul.f32 %v625, %v364
    %v720 = vmul.f32 %v628, %v364
    %v721 = vmul.f32 %v631, %v364
    %v722 = vmul.f32 %v634, %v364
    %v723 = vmul.f32 %v637, %v364
    %v724 = vmul.f32 %v640, %v364
    %v725 = vmul.f32 %v643, %v364
    %v726 = vmul.f32 %v646, %v364
    %v727 = vmul.f32 %v649, %v364
    %v728 = vmul.f32 %v652, %v364
    %v729 = vmul.f32 %v655, %v364
    %v730 = vmul.f32 %v658, %v364
    %v731 = vmul.f32 %v661, %v364
    %v732 = vmul.f32 %v664, %v364
    %v733 = vmul.f32 %v667, %v364
    %v734 = vmul.f32 %v670, %v364
    %v735 = vmul.f32 %v673, %v364
    %v736 = vmul.f32 %v676, %v364
    %v737 = vmul.f32 %v679, %v364
    %v738 = vmul.f32 %v682, %v364
    %v739 = vmul.f32 %v685, %v364
    %v740 = vmul.f32 %v688, %v364
    %v741 = vmul.f32 %v691, %v364
    %v742 = vmul.f32 %v694, %v364
    %v743 = vmul.f32 %v697, %v364
    %v744 = vmul.f32 %v700, %v364
    %v745 = vmul.f32 %v703, %v364
    %v746 = vmul.f32 %v706, %v364
    %v747 = vmul.f32 %v709, %v364
    %v748 = vmul.f32 %v712, %v364
    %v749 = vmul.f32 %v715, %v364
    %v750 = vmul.f32 %v718, %v364
    %v783 = vlaneseq
    %v784 = vshrl.u32 %v783, 7
    %v785 = vsub.s32 %v430, %v784
    %v786 = vrot.slane %v719, %v785
    %v787 = vlaneseq
    %v788 = vshrl.u32 %v787, 7
    %v789 = vsub.s32 %v435, %v788
    %v790 = vrot.slane %v720, %v789
    %v791 = vsel %vm440, %v790, %v786
    %v792 = vlaneseq
    %v793 = vshrl.u32 %v792, 7
    %v794 = vsub.s32 %v442, %v793
    %v795 = vrot.slane %v721, %v794
    %v796 = vsel %vm447, %v795, %v791
    %v797 = vlaneseq
    %v798 = vshrl.u32 %v797, 7
    %v799 = vsub.s32 %v449, %v798
    %v800 = vrot.slane %v722, %v799
    %v801 = vsel %vm454, %v800, %v796
    %v802 = vlaneseq
    %v803 = vshrl.u32 %v802, 7
    %v804 = vsub.s32 %v456, %v803
    %v805 = vrot.slane %v723, %v804
    %v806 = vsel %vm461, %v805, %v801
    %v807 = vlaneseq
    %v808 = vshrl.u32 %v807, 7
    %v809 = vsub.s32 %v463, %v808
    %v810 = vrot.slane %v724, %v809
    %v811 = vsel %vm468, %v810, %v806
    %v812 = vlaneseq
    %v813 = vshrl.u32 %v812, 7
    %v814 = vsub.s32 %v470, %v813
    %v815 = vrot.slane %v725, %v814
    %v816 = vsel %vm475, %v815, %v811
    %v817 = vlaneseq
    %v818 = vshrl.u32 %v817, 7
    %v819 = vsub.s32 %v477, %v818
    %v820 = vrot.slane %v726, %v819
    %v821 = vsel %vm482, %v820, %v816
    %v822 = vlaneseq
    %v823 = vshrl.u32 %v822, 7
    %v824 = vsub.s32 %v484, %v823
    %v825 = vrot.slane %v727, %v824
    %v826 = vsel %vm489, %v825, %v821
    %v827 = vlaneseq
    %v828 = vshrl.u32 %v827, 7
    %v829 = vsub.s32 %v491, %v828
    %v830 = vrot.slane %v728, %v829
    %v831 = vsel %vm496, %v830, %v826
    %v832 = vlaneseq
    %v833 = vshrl.u32 %v832, 7
    %v834 = vsub.s32 %v498, %v833
    %v835 = vrot.slane %v729, %v834
    %v836 = vsel %vm503, %v835, %v831
    %v837 = vlaneseq
    %v838 = vshrl.u32 %v837, 7
    %v839 = vsub.s32 %v505, %v838
    %v840 = vrot.slane %v730, %v839
    %v841 = vsel %vm510, %v840, %v836
    %v842 = vlaneseq
    %v843 = vshrl.u32 %v842, 7
    %v844 = vsub.s32 %v512, %v843
    %v845 = vrot.slane %v731, %v844
    %v846 = vsel %vm517, %v845, %v841
    %v847 = vlaneseq
    %v848 = vshrl.u32 %v847, 7
    %v849 = vsub.s32 %v519, %v848
    %v850 = vrot.slane %v732, %v849
    %v851 = vsel %vm524, %v850, %v846
    %v852 = vlaneseq
    %v853 = vshrl.u32 %v852, 7
    %v854 = vsub.s32 %v526, %v853
    %v855 = vrot.slane %v733, %v854
    %v856 = vsel %vm531, %v855, %v851
    %v857 = vlaneseq
    %v858 = vshrl.u32 %v857, 7
    %v859 = vsub.s32 %v533, %v858
    %v860 = vrot.slane %v734, %v859
    %v861 = vsel %vm538, %v860, %v856
    %v862 = vlaneseq
    %v863 = vshrl.u32 %v862, 7
    %v864 = vsub.s32 %v430, %v863
    %v865 = vrot.slane %v735, %v864
    %v866 = vlaneseq
    %v867 = vshrl.u32 %v866, 7
    %v868 = vsub.s32 %v435, %v867
    %v869 = vrot.slane %v736, %v868
    %v870 = vsel %vm440, %v869, %v865
    %v871 = vlaneseq
    %v872 = vshrl.u32 %v871, 7
    %v873 = vsub.s32 %v442, %v872
    %v874 = vrot.slane %v737, %v873
    %v875 = vsel %vm447, %v874, %v870
    %v876 = vlaneseq
    %v877 = vshrl.u32 %v876, 7
    %v878 = vsub.s32 %v449, %v877
    %v879 = vrot.slane %v738, %v878
    %v880 = vsel %vm454, %v879, %v875
    %v881 = vlaneseq
    %v882 = vshrl.u32 %v881, 7
    %v883 = vsub.s32 %v456, %v882
    %v884 = vrot.slane %v739, %v883
    %v885 = vsel %vm461, %v884, %v880
    %v886 = vlaneseq
    %v887 = vshrl.u32 %v886, 7
    %v888 = vsub.s32 %v463, %v887
    %v889 = vrot.slane %v740, %v888
    %v890 = vsel %vm468, %v889, %v885
    %v891 = vlaneseq
    %v892 = vshrl.u32 %v891, 7
    %v893 = vsub.s32 %v470, %v892
    %v894 = vrot.slane %v741, %v893
    %v895 = vsel %vm475, %v894, %v890
    %v896 = vlaneseq
    %v897 = vshrl.u32 %v896, 7
    %v898 = vsub.s32 %v477, %v897
    %v899 = vrot.slane %v742, %v898
    %v900 = vsel %vm482, %v899, %v895
    %v901 = vlaneseq
    %v902 = vshrl.u32 %v901, 7
    %v903 = vsub.s32 %v484, %v902
    %v904 = vrot.slane %v743, %v903
    %v905 = vsel %vm489, %v904, %v900
    %v906 = vlaneseq
    %v907 = vshrl.u32 %v906, 7
    %v908 = vsub.s32 %v491, %v907
    %v909 = vrot.slane %v744, %v908
    %v910 = vsel %vm496, %v909, %v905
    %v911 = vlaneseq
    %v912 = vshrl.u32 %v911, 7
    %v913 = vsub.s32 %v498, %v912
    %v914 = vrot.slane %v745, %v913
    %v915 = vsel %vm503, %v914, %v910
    %v916 = vlaneseq
    %v917 = vshrl.u32 %v916, 7
    %v918 = vsub.s32 %v505, %v917
    %v919 = vrot.slane %v746, %v918
    %v920 = vsel %vm510, %v919, %v915
    %v921 = vlaneseq
    %v922 = vshrl.u32 %v921, 7
    %v923 = vsub.s32 %v512, %v922
    %v924 = vrot.slane %v747, %v923
    %v925 = vsel %vm517, %v924, %v920
    %v926 = vlaneseq
    %v927 = vshrl.u32 %v926, 7
    %v928 = vsub.s32 %v519, %v927
    %v929 = vrot.slane %v748, %v928
    %v930 = vsel %vm524, %v929, %v925
    %v931 = vlaneseq
    %v932 = vshrl.u32 %v931, 7
    %v933 = vsub.s32 %v526, %v932
    %v934 = vrot.slane %v749, %v933
    %v935 = vsel %vm531, %v934, %v930
    %v936 = vlaneseq
    %v937 = vshrl.u32 %v936, 7
    %v938 = vsub.s32 %v533, %v937
    %v939 = vrot.slane %v750, %v938
    %v940 = vsel %vm538, %v939, %v935
    %vm941 = vcmask 1043459
    %v942 = vsel %vm941, %v940, %v861
    %944 = vst [vmem:[#allocation2 + $0x8] sm:$0xc] %v942
    %v945 = vld [vmem:[#allocation3] sm:$0xf]
    %v947 = vlaneseq
    %v948 = vshrl.u32 %v947, 7
    %v949 = vsub.s32 0, %v948
    %v950 = vrot.slane %v945, %v949
    %v951 = vlaneseq
    %v952 = vshrl.u32 %v951, 7
    %v953 = vsub.s32 2, %v952
    %v954 = vrot.slane %v945, %v953
    %v957 = vlaneseq
    %v958 = vshrl.u32 %v957, 7
    %v959 = vsub.s32 0, %v958
    %v960 = vrot.slane %v950, %v959
    %v961 = vlaneseq
    %v962 = vshrl.u32 %v961, 7
    %v963 = vsub.s32 0, %v962
    %v964 = vrot.slane %v954, %v963
    %v965 = vadd.f32 %v140, %v960
    %v966 = vadd.f32 %v141, %v964
    %v967 = vadd.f32 %v142, %v960
    %v968 = vadd.f32 %v143, %v964
    %v969 = vadd.f32 %v144, %v960
    %v970 = vadd.f32 %v145, %v964
    %v971 = vadd.f32 %v146, %v960
    %v972 = vadd.f32 %v147, %v964
    %v973 = vadd.f32 %v148, %v960
    %v974 = vadd.f32 %v149, %v964
    %v975 = vadd.f32 %v150, %v960
    %v976 = vadd.f32 %v151, %v964
    %v977 = vadd.f32 %v152, %v960
    %v978 = vadd.f32 %v153, %v964
    %v979 = vadd.f32 %v154, %v960
    %v980 = vadd.f32 %v155, %v964
    %v981 = vadd.f32 %v156, %v960
    %v982 = vadd.f32 %v157, %v964
    %v983 = vadd.f32 %v158, %v960
    %v984 = vadd.f32 %v159, %v964
    %v985 = vadd.f32 %v160, %v960
    %v986 = vadd.f32 %v161, %v964
    %v987 = vadd.f32 %v162, %v960
    %v988 = vadd.f32 %v163, %v964
    %v989 = vadd.f32 %v164, %v960
    %v990 = vadd.f32 %v165, %v964
    %v991 = vadd.f32 %v166, %v960
    %v992 = vadd.f32 %v167, %v964
    %v993 = vadd.f32 %v168, %v960
    %v994 = vadd.f32 %v169, %v964
    %v995 = vadd.f32 %v170, %v960
    %v996 = vadd.f32 %v171, %v964
    %v997 = vadd.f32 %v172, %v960
    %v998 = vadd.f32 %v173, %v964
    %v999 = vadd.f32 %v174, %v960
    %v1000 = vadd.f32 %v175, %v964
    %v1001 = vadd.f32 %v176, %v960
    %v1002 = vadd.f32 %v177, %v964
    %v1003 = vadd.f32 %v178, %v960
    %v1004 = vadd.f32 %v179, %v964
    %v1005 = vadd.f32 %v180, %v960
    %v1006 = vadd.f32 %v181, %v964
    %v1007 = vadd.f32 %v182, %v960
    %v1008 = vadd.f32 %v183, %v964
    %v1009 = vadd.f32 %v184, %v960
    %v1010 = vadd.f32 %v185, %v964
    %v1011 = vadd.f32 %v186, %v960
    %v1012 = vadd.f32 %v187, %v964
    %v1013 = vadd.f32 %v188, %v960
    %v1014 = vadd.f32 %v189, %v964
    %v1015 = vadd.f32 %v190, %v960
    %v1016 = vadd.f32 %v191, %v964
    %v1017 = vadd.f32 %v192, %v960
    %v1018 = vadd.f32 %v193, %v964
    %v1019 = vadd.f32 %v194, %v960
    %v1020 = vadd.f32 %v195, %v964
    %v1021 = vadd.f32 %v196, %v960
    %v1022 = vadd.f32 %v197, %v964
    %v1023 = vadd.f32 %v198, %v960
    %v1024 = vadd.f32 %v199, %v964
    %v1025 = vadd.f32 %v200, %v960
    %v1026 = vadd.f32 %v201, %v964
    %v1027 = vadd.f32 %v202, %v960
    %v1028 = vadd.f32 %v203, %v964
    %v1029 = vmax.f32 %v965, %v966
    %1030 = vmax.xlane.f32.xlu0 %v1029
    %v1031 = vpop.xlane.xlu0 %1030
    %v1032 = vmax.f32 %v967, %v968
    %1033 = vmax.xlane.f32.xlu0 %v1032
    %v1034 = vpop.xlane.xlu0 %1033
    %v1035 = vmax.f32 %v969, %v970
    %1036 = vmax.xlane.f32.xlu0 %v1035
    %v1037 = vpop.xlane.xlu0 %1036
    %v1038 = vmax.f32 %v971, %v972
    %1039 = vmax.xlane.f32.xlu0 %v1038
    %v1040 = vpop.xlane.xlu0 %1039
    %v1041 = vmax.f32 %v973, %v974
    %1042 = vmax.xlane.f32.xlu0 %v1041
    %v1043 = vpop.xlane.xlu0 %1042
    %v1044 = vmax.f32 %v975, %v976
    %1045 = vmax.xlane.f32.xlu0 %v1044
    %v1046 = vpop.xlane.xlu0 %1045
    %v1047 = vmax.f32 %v977, %v978
    %1048 = vmax.xlane.f32.xlu0 %v1047
    %v1049 = vpop.xlane.xlu0 %1048
    %v1050 = vmax.f32 %v979, %v980
    %1051 = vmax.xlane.f32.xlu0 %v1050
    %v1052 = vpop.xlane.xlu0 %1051
    %v1053 = vmax.f32 %v981, %v982
    %1054 = vmax.xlane.f32.xlu0 %v1053
    %v1055 = vpop.xlane.xlu0 %1054
    %v1056 = vmax.f32 %v983, %v984
    %1057 = vmax.xlane.f32.xlu0 %v1056
    %v1058 = vpop.xlane.xlu0 %1057
    %v1059 = vmax.f32 %v985, %v986
    %1060 = vmax.xlane.f32.xlu0 %v1059
    %v1061 = vpop.xlane.xlu0 %1060
    %v1062 = vmax.f32 %v987, %v988
    %1063 = vmax.xlane.f32.xlu0 %v1062
    %v1064 = vpop.xlane.xlu0 %1063
    %v1065 = vmax.f32 %v989, %v990
    %1066 = vmax.xlane.f32.xlu0 %v1065
    %v1067 = vpop.xlane.xlu0 %1066
    %v1068 = vmax.f32 %v991, %v992
    %1069 = vmax.xlane.f32.xlu0 %v1068
    %v1070 = vpop.xlane.xlu0 %1069
    %v1071 = vmax.f32 %v993, %v994
    %1072 = vmax.xlane.f32.xlu0 %v1071
    %v1073 = vpop.xlane.xlu0 %1072
    %v1074 = vmax.f32 %v995, %v996
    %1075 = vmax.xlane.f32.xlu0 %v1074
    %v1076 = vpop.xlane.xlu0 %1075
    %v1077 = vmax.f32 %v997, %v998
    %1078 = vmax.xlane.f32.xlu0 %v1077
    %v1079 = vpop.xlane.xlu0 %1078
    %v1080 = vmax.f32 %v999, %v1000
    %1081 = vmax.xlane.f32.xlu0 %v1080
    %v1082 = vpop.xlane.xlu0 %1081
    %v1083 = vmax.f32 %v1001, %v1002
    %1084 = vmax.xlane.f32.xlu0 %v1083
    %v1085 = vpop.xlane.xlu0 %1084
    %v1086 = vmax.f32 %v1003, %v1004
    %1087 = vmax.xlane.f32.xlu0 %v1086
    %v1088 = vpop.xlane.xlu0 %1087
    %v1089 = vmax.f32 %v1005, %v1006
    %1090 = vmax.xlane.f32.xlu0 %v1089
    %v1091 = vpop.xlane.xlu0 %1090
    %v1092 = vmax.f32 %v1007, %v1008
    %1093 = vmax.xlane.f32.xlu0 %v1092
    %v1094 = vpop.xlane.xlu0 %1093
    %v1095 = vmax.f32 %v1009, %v1010
    %1096 = vmax.xlane.f32.xlu0 %v1095
    %v1097 = vpop.xlane.xlu0 %1096
    %v1098 = vmax.f32 %v1011, %v1012
    %1099 = vmax.xlane.f32.xlu0 %v1098
    %v1100 = vpop.xlane.xlu0 %1099
    %v1101 = vmax.f32 %v1013, %v1014
    %1102 = vmax.xlane.f32.xlu0 %v1101
    %v1103 = vpop.xlane.xlu0 %1102
    %v1104 = vmax.f32 %v1015, %v1016
    %1105 = vmax.xlane.f32.xlu0 %v1104
    %v1106 = vpop.xlane.xlu0 %1105
    %v1107 = vmax.f32 %v1017, %v1018
    %1108 = vmax.xlane.f32.xlu0 %v1107
    %v1109 = vpop.xlane.xlu0 %1108
    %v1110 = vmax.f32 %v1019, %v1020
    %1111 = vmax.xlane.f32.xlu0 %v1110
    %v1112 = vpop.xlane.xlu0 %1111
    %v1113 = vmax.f32 %v1021, %v1022
    %1114 = vmax.xlane.f32.xlu0 %v1113
    %v1115 = vpop.xlane.xlu0 %1114
    %v1116 = vmax.f32 %v1023, %v1024
    %1117 = vmax.xlane.f32.xlu0 %v1116
    %v1118 = vpop.xlane.xlu0 %1117
    %v1119 = vmax.f32 %v1025, %v1026
    %1120 = vmax.xlane.f32.xlu0 %v1119
    %v1121 = vpop.xlane.xlu0 %1120
    %v1122 = vmax.f32 %v1027, %v1028
    %1123 = vmax.xlane.f32.xlu0 %v1122
    %v1124 = vpop.xlane.xlu0 %1123
    %v1157 = vlaneseq
    %v1158 = vshrl.u32 %v1157, 7
    %v1159 = vsub.s32 %v430, %v1158
    %v1160 = vrot.slane %v1031, %v1159
    %v1161 = vlaneseq
    %v1162 = vshrl.u32 %v1161, 7
    %v1163 = vsub.s32 %v435, %v1162
    %v1164 = vrot.slane %v1034, %v1163
    %v1165 = vsel %vm440, %v1164, %v1160
    %v1166 = vlaneseq
    %v1167 = vshrl.u32 %v1166, 7
    %v1168 = vsub.s32 %v442, %v1167
    %v1169 = vrot.slane %v1037, %v1168
    %v1170 = vsel %vm447, %v1169, %v1165
    %v1171 = vlaneseq
    %v1172 = vshrl.u32 %v1171, 7
    %v1173 = vsub.s32 %v449, %v1172
    %v1174 = vrot.slane %v1040, %v1173
    %v1175 = vsel %vm454, %v1174, %v1170
    %v1176 = vlaneseq
    %v1177 = vshrl.u32 %v1176, 7
    %v1178 = vsub.s32 %v456, %v1177
    %v1179 = vrot.slane %v1043, %v1178
    %v1180 = vsel %vm461, %v1179, %v1175
    %v1181 = vlaneseq
    %v1182 = vshrl.u32 %v1181, 7
    %v1183 = vsub.s32 %v463, %v1182
    %v1184 = vrot.slane %v1046, %v1183
    %v1185 = vsel %vm468, %v1184, %v1180
    %v1186 = vlaneseq
    %v1187 = vshrl.u32 %v1186, 7
    %v1188 = vsub.s32 %v470, %v1187
    %v1189 = vrot.slane %v1049, %v1188
    %v1190 = vsel %vm475, %v1189, %v1185
    %v1191 = vlaneseq
    %v1192 = vshrl.u32 %v1191, 7
    %v1193 = vsub.s32 %v477, %v1192
    %v1194 = vrot.slane %v1052, %v1193
    %v1195 = vsel %vm482, %v1194, %v1190
    %v1196 = vlaneseq
    %v1197 = vshrl.u32 %v1196, 7
    %v1198 = vsub.s32 %v484, %v1197
    %v1199 = vrot.slane %v1055, %v1198
    %v1200 = vsel %vm489, %v1199, %v1195
    %v1201 = vlaneseq
    %v1202 = vshrl.u32 %v1201, 7
    %v1203 = vsub.s32 %v491, %v1202
    %v1204 = vrot.slane %v1058, %v1203
    %v1205 = vsel %vm496, %v1204, %v1200
    %v1206 = vlaneseq
    %v1207 = vshrl.u32 %v1206, 7
    %v1208 = vsub.s32 %v498, %v1207
    %v1209 = vrot.slane %v1061, %v1208
    %v1210 = vsel %vm503, %v1209, %v1205
    %v1211 = vlaneseq
    %v1212 = vshrl.u32 %v1211, 7
    %v1213 = vsub.s32 %v505, %v1212
    %v1214 = vrot.slane %v1064, %v1213
    %v1215 = vsel %vm510, %v1214, %v1210
    %v1216 = vlaneseq
    %v1217 = vshrl.u32 %v1216, 7
    %v1218 = vsub.s32 %v512, %v1217
    %v1219 = vrot.slane %v1067, %v1218
    %v1220 = vsel %vm517, %v1219, %v1215
    %v1221 = vlaneseq
    %v1222 = vshrl.u32 %v1221, 7
    %v1223 = vsub.s32 %v519, %v1222
    %v1224 = vrot.slane %v1070, %v1223
    %v1225 = vsel %vm524, %v1224, %v1220
    %v1226 = vlaneseq
    %v1227 = vshrl.u32 %v1226, 7
    %v1228 = vsub.s32 %v526, %v1227
    %v1229 = vrot.slane %v1073, %v1228
    %v1230 = vsel %vm531, %v1229, %v1225
    %v1231 = vlaneseq
    %v1232 = vshrl.u32 %v1231, 7
    %v1233 = vsub.s32 %v533, %v1232
    %v1234 = vrot.slane %v1076, %v1233
    %v1235 = vsel %vm538, %v1234, %v1230
    %v1236 = vlaneseq
    %v1237 = vshrl.u32 %v1236, 7
    %v1238 = vsub.s32 %v430, %v1237
    %v1239 = vrot.slane %v1079, %v1238
    %v1240 = vlaneseq
    %v1241 = vshrl.u32 %v1240, 7
    %v1242 = vsub.s32 %v435, %v1241
    %v1243 = vrot.slane %v1082, %v1242
    %v1244 = vsel %vm440, %v1243, %v1239
    %v1245 = vlaneseq
    %v1246 = vshrl.u32 %v1245, 7
    %v1247 = vsub.s32 %v442, %v1246
    %v1248 = vrot.slane %v1085, %v1247
    %v1249 = vsel %vm447, %v1248, %v1244
    %v1250 = vlaneseq
    %v1251 = vshrl.u32 %v1250, 7
    %v1252 = vsub.s32 %v449, %v1251
    %v1253 = vrot.slane %v1088, %v1252
    %v1254 = vsel %vm454, %v1253, %v1249
    %v1255 = vlaneseq
    %v1256 = vshrl.u32 %v1255, 7
    %v1257 = vsub.s32 %v456, %v1256
    %v1258 = vrot.slane %v1091, %v1257
    %v1259 = vsel %vm461, %v1258, %v1254
    %v1260 = vlaneseq
    %v1261 = vshrl.u32 %v1260, 7
    %v1262 = vsub.s32 %v463, %v1261
    %v1263 = vrot.slane %v1094, %v1262
    %v1264 = vsel %vm468, %v1263, %v1259
    %v1265 = vlaneseq
    %v1266 = vshrl.u32 %v1265, 7
    %v1267 = vsub.s32 %v470, %v1266
    %v1268 = vrot.slane %v1097, %v1267
    %v1269 = vsel %vm475, %v1268, %v1264
    %v1270 = vlaneseq
    %v1271 = vshrl.u32 %v1270, 7
    %v1272 = vsub.s32 %v477, %v1271
    %v1273 = vrot.slane %v1100, %v1272
    %v1274 = vsel %vm482, %v1273, %v1269
    %v1275 = vlaneseq
    %v1276 = vshrl.u32 %v1275, 7
    %v1277 = vsub.s32 %v484, %v1276
    %v1278 = vrot.slane %v1103, %v1277
    %v1279 = vsel %vm489, %v1278, %v1274
    %v1280 = vlaneseq
    %v1281 = vshrl.u32 %v1280, 7
    %v1282 = vsub.s32 %v491, %v1281
    %v1283 = vrot.slane %v1106, %v1282
    %v1284 = vsel %vm496, %v1283, %v1279
    %v1285 = vlaneseq
    %v1286 = vshrl.u32 %v1285, 7
    %v1287 = vsub.s32 %v498, %v1286
    %v1288 = vrot.slane %v1109, %v1287
    %v1289 = vsel %vm503, %v1288, %v1284
    %v1290 = vlaneseq
    %v1291 = vshrl.u32 %v1290, 7
    %v1292 = vsub.s32 %v505, %v1291
    %v1293 = vrot.slane %v1112, %v1292
    %v1294 = vsel %vm510, %v1293, %v1289
    %v1295 = vlaneseq
    %v1296 = vshrl.u32 %v1295, 7
    %v1297 = vsub.s32 %v512, %v1296
    %v1298 = vrot.slane %v1115, %v1297
    %v1299 = vsel %vm517, %v1298, %v1294
    %v1300 = vlaneseq
    %v1301 = vshrl.u32 %v1300, 7
    %v1302 = vsub.s32 %v519, %v1301
    %v1303 = vrot.slane %v1118, %v1302
    %v1304 = vsel %vm524, %v1303, %v1299
    %v1305 = vlaneseq
    %v1306 = vshrl.u32 %v1305, 7
    %v1307 = vsub.s32 %v526, %v1306
    %v1308 = vrot.slane %v1121, %v1307
    %v1309 = vsel %vm531, %v1308, %v1304
    %v1310 = vlaneseq
    %v1311 = vshrl.u32 %v1310, 7
    %v1312 = vsub.s32 %v533, %v1311
    %v1313 = vrot.slane %v1124, %v1312
    %v1314 = vsel %vm538, %v1313, %v1309
    %vm1315 = vcmask 1045509
    %v1316 = vsel %vm1315, %v1314, %v1235
    %1318 = vst [vmem:[#allocation2 + $0x10] sm:$0x30] %v1316
    %v1319 = vlaneseq
    %v1320 = vshrl.u32 %v1319, 7
    %v1321 = vsub.s32 1, %v1320
    %v1322 = vrot.slane %v945, %v1321
    %v1323 = vlaneseq
    %v1324 = vshrl.u32 %v1323, 7
    %v1325 = vsub.s32 3, %v1324
    %v1326 = vrot.slane %v945, %v1325
    %v1329 = vlaneseq
    %v1330 = vshrl.u32 %v1329, 7
    %v1331 = vsub.s32 1, %v1330
    %v1332 = vrot.slane %v1322, %v1331
    %v1333 = vlaneseq
    %v1334 = vshrl.u32 %v1333, 7
    %v1335 = vsub.s32 1, %v1334
    %v1336 = vrot.slane %v1326, %v1335
    %v1337 = vadd.f32 %v140, %v1332
    %v1338 = vadd.f32 %v141, %v1336
    %v1339 = vadd.f32 %v142, %v1332
    %v1340 = vadd.f32 %v143, %v1336
    %v1341 = vadd.f32 %v144, %v1332
    %v1342 = vadd.f32 %v145, %v1336
    %v1343 = vadd.f32 %v146, %v1332
    %v1344 = vadd.f32 %v147, %v1336
    %v1345 = vadd.f32 %v148, %v1332
    %v1346 = vadd.f32 %v149, %v1336
    %v1347 = vadd.f32 %v150, %v1332
    %v1348 = vadd.f32 %v151, %v1336
    %v1349 = vadd.f32 %v152, %v1332
    %v1350 = vadd.f32 %v153, %v1336
    %v1351 = vadd.f32 %v154, %v1332
    %v1352 = vadd.f32 %v155, %v1336
    %v1353 = vadd.f32 %v156, %v1332
    %v1354 = vadd.f32 %v157, %v1336
    %v1355 = vadd.f32 %v158, %v1332
    %v1356 = vadd.f32 %v159, %v1336
    %v1357 = vadd.f32 %v160, %v1332
    %v1358 = vadd.f32 %v161, %v1336
    %v1359 = vadd.f32 %v162, %v1332
    %v1360 = vadd.f32 %v163, %v1336
    %v1361 = vadd.f32 %v164, %v1332
    %v1362 = vadd.f32 %v165, %v1336
    %v1363 = vadd.f32 %v166, %v1332
    %v1364 = vadd.f32 %v167, %v1336
    %v1365 = vadd.f32 %v168, %v1332
    %v1366 = vadd.f32 %v169, %v1336
    %v1367 = vadd.f32 %v170, %v1332
    %v1368 = vadd.f32 %v171, %v1336
    %v1369 = vadd.f32 %v172, %v1332
    %v1370 = vadd.f32 %v173, %v1336
    %v1371 = vadd.f32 %v174, %v1332
    %v1372 = vadd.f32 %v175, %v1336
    %v1373 = vadd.f32 %v176, %v1332
    %v1374 = vadd.f32 %v177, %v1336
    %v1375 = vadd.f32 %v178, %v1332
    %v1376 = vadd.f32 %v179, %v1336
    %v1377 = vadd.f32 %v180, %v1332
    %v1378 = vadd.f32 %v181, %v1336
    %v1379 = vadd.f32 %v182, %v1332
    %v1380 = vadd.f32 %v183, %v1336
    %v1381 = vadd.f32 %v184, %v1332
    %v1382 = vadd.f32 %v185, %v1336
    %v1383 = vadd.f32 %v186, %v1332
    %v1384 = vadd.f32 %v187, %v1336
    %v1385 = vadd.f32 %v188, %v1332
    %v1386 = vadd.f32 %v189, %v1336
    %v1387 = vadd.f32 %v190, %v1332
    %v1388 = vadd.f32 %v191, %v1336
    %v1389 = vadd.f32 %v192, %v1332
    %v1390 = vadd.f32 %v193, %v1336
    %v1391 = vadd.f32 %v194, %v1332
    %v1392 = vadd.f32 %v195, %v1336
    %v1393 = vadd.f32 %v196, %v1332
    %v1394 = vadd.f32 %v197, %v1336
    %v1395 = vadd.f32 %v198, %v1332
    %v1396 = vadd.f32 %v199, %v1336
    %v1397 = vadd.f32 %v200, %v1332
    %v1398 = vadd.f32 %v201, %v1336
    %v1399 = vadd.f32 %v202, %v1332
    %v1400 = vadd.f32 %v203, %v1336
    %v1401 = vmax.f32 %v1337, %v1338
    %1402 = vmax.xlane.f32.xlu0 %v1401
    %v1403 = vpop.xlane.xlu0 %1402
    %v1404 = vmax.f32 %v1339, %v1340
    %1405 = vmax.xlane.f32.xlu0 %v1404
    %v1406 = vpop.xlane.xlu0 %1405
    %v1407 = vmax.f32 %v1341, %v1342
    %1408 = vmax.xlane.f32.xlu0 %v1407
    %v1409 = vpop.xlane.xlu0 %1408
    %v1410 = vmax.f32 %v1343, %v1344
    %1411 = vmax.xlane.f32.xlu0 %v1410
    %v1412 = vpop.xlane.xlu0 %1411
    %v1413 = vmax.f32 %v1345, %v1346
    %1414 = vmax.xlane.f32.xlu0 %v1413
    %v1415 = vpop.xlane.xlu0 %1414
    %v1416 = vmax.f32 %v1347, %v1348
    %1417 = vmax.xlane.f32.xlu0 %v1416
    %v1418 = vpop.xlane.xlu0 %1417
    %v1419 = vmax.f32 %v1349, %v1350
    %1420 = vmax.xlane.f32.xlu0 %v1419
    %v1421 = vpop.xlane.xlu0 %1420
    %v1422 = vmax.f32 %v1351, %v1352
    %1423 = vmax.xlane.f32.xlu0 %v1422
    %v1424 = vpop.xlane.xlu0 %1423
    %v1425 = vmax.f32 %v1353, %v1354
    %1426 = vmax.xlane.f32.xlu0 %v1425
    %v1427 = vpop.xlane.xlu0 %1426
    %v1428 = vmax.f32 %v1355, %v1356
    %1429 = vmax.xlane.f32.xlu0 %v1428
    %v1430 = vpop.xlane.xlu0 %1429
    %v1431 = vmax.f32 %v1357, %v1358
    %1432 = vmax.xlane.f32.xlu0 %v1431
    %v1433 = vpop.xlane.xlu0 %1432
    %v1434 = vmax.f32 %v1359, %v1360
    %1435 = vmax.xlane.f32.xlu0 %v1434
    %v1436 = vpop.xlane.xlu0 %1435
    %v1437 = vmax.f32 %v1361, %v1362
    %1438 = vmax.xlane.f32.xlu0 %v1437
    %v1439 = vpop.xlane.xlu0 %1438
    %v1440 = vmax.f32 %v1363, %v1364
    %1441 = vmax.xlane.f32.xlu0 %v1440
    %v1442 = vpop.xlane.xlu0 %1441
    %v1443 = vmax.f32 %v1365, %v1366
    %1444 = vmax.xlane.f32.xlu0 %v1443
    %v1445 = vpop.xlane.xlu0 %1444
    %v1446 = vmax.f32 %v1367, %v1368
    %1447 = vmax.xlane.f32.xlu0 %v1446
    %v1448 = vpop.xlane.xlu0 %1447
    %v1449 = vmax.f32 %v1369, %v1370
    %1450 = vmax.xlane.f32.xlu0 %v1449
    %v1451 = vpop.xlane.xlu0 %1450
    %v1452 = vmax.f32 %v1371, %v1372
    %1453 = vmax.xlane.f32.xlu0 %v1452
    %v1454 = vpop.xlane.xlu0 %1453
    %v1455 = vmax.f32 %v1373, %v1374
    %1456 = vmax.xlane.f32.xlu0 %v1455
    %v1457 = vpop.xlane.xlu0 %1456
    %v1458 = vmax.f32 %v1375, %v1376
    %1459 = vmax.xlane.f32.xlu0 %v1458
    %v1460 = vpop.xlane.xlu0 %1459
    %v1461 = vmax.f32 %v1377, %v1378
    %1462 = vmax.xlane.f32.xlu0 %v1461
    %v1463 = vpop.xlane.xlu0 %1462
    %v1464 = vmax.f32 %v1379, %v1380
    %1465 = vmax.xlane.f32.xlu0 %v1464
    %v1466 = vpop.xlane.xlu0 %1465
    %v1467 = vmax.f32 %v1381, %v1382
    %1468 = vmax.xlane.f32.xlu0 %v1467
    %v1469 = vpop.xlane.xlu0 %1468
    %v1470 = vmax.f32 %v1383, %v1384
    %1471 = vmax.xlane.f32.xlu0 %v1470
    %v1472 = vpop.xlane.xlu0 %1471
    %v1473 = vmax.f32 %v1385, %v1386
    %1474 = vmax.xlane.f32.xlu0 %v1473
    %v1475 = vpop.xlane.xlu0 %1474
    %v1476 = vmax.f32 %v1387, %v1388
    %1477 = vmax.xlane.f32.xlu0 %v1476
    %v1478 = vpop.xlane.xlu0 %1477
    %v1479 = vmax.f32 %v1389, %v1390
    %1480 = vmax.xlane.f32.xlu0 %v1479
    %v1481 = vpop.xlane.xlu0 %1480
    %v1482 = vmax.f32 %v1391, %v1392
    %1483 = vmax.xlane.f32.xlu0 %v1482
    %v1484 = vpop.xlane.xlu0 %1483
    %v1485 = vmax.f32 %v1393, %v1394
    %1486 = vmax.xlane.f32.xlu0 %v1485
    %v1487 = vpop.xlane.xlu0 %1486
    %v1488 = vmax.f32 %v1395, %v1396
    %1489 = vmax.xlane.f32.xlu0 %v1488
    %v1490 = vpop.xlane.xlu0 %1489
    %v1491 = vmax.f32 %v1397, %v1398
    %1492 = vmax.xlane.f32.xlu0 %v1491
    %v1493 = vpop.xlane.xlu0 %1492
    %v1494 = vmax.f32 %v1399, %v1400
    %1495 = vmax.xlane.f32.xlu0 %v1494
    %v1496 = vpop.xlane.xlu0 %1495
    %v1497 = vmax.f32 %v1403, 0.0
    %v1498 = vmax.f32 %v1406, 0.0
    %v1499 = vmax.f32 %v1409, 0.0
    %v1500 = vmax.f32 %v1412, 0.0
    %v1501 = vmax.f32 %v1415, 0.0
    %v1502 = vmax.f32 %v1418, 0.0
    %v1503 = vmax.f32 %v1421, 0.0
    %v1504 = vmax.f32 %v1424, 0.0
    %v1505 = vmax.f32 %v1427, 0.0
    %v1506 = vmax.f32 %v1430, 0.0
    %v1507 = vmax.f32 %v1433, 0.0
    %v1508 = vmax.f32 %v1436, 0.0
    %v1509 = vmax.f32 %v1439, 0.0
    %v1510 = vmax.f32 %v1442, 0.0
    %v1511 = vmax.f32 %v1445, 0.0
    %v1512 = vmax.f32 %v1448, 0.0
    %v1513 = vmax.f32 %v1451, 0.0
    %v1514 = vmax.f32 %v1454, 0.0
    %v1515 = vmax.f32 %v1457, 0.0
    %v1516 = vmax.f32 %v1460, 0.0
    %v1517 = vmax.f32 %v1463, 0.0
    %v1518 = vmax.f32 %v1466, 0.0
    %v1519 = vmax.f32 %v1469, 0.0
    %v1520 = vmax.f32 %v1472, 0.0
    %v1521 = vmax.f32 %v1475, 0.0
    %v1522 = vmax.f32 %v1478, 0.0
    %v1523 = vmax.f32 %v1481, 0.0
    %v1524 = vmax.f32 %v1484, 0.0
    %v1525 = vmax.f32 %v1487, 0.0
    %v1526 = vmax.f32 %v1490, 0.0
    %v1527 = vmax.f32 %v1493, 0.0
    %v1528 = vmax.f32 %v1496, 0.0
    %v1561 = vlaneseq
    %v1562 = vshrl.u32 %v1561, 7
    %v1563 = vsub.s32 %v430, %v1562
    %v1564 = vrot.slane %v1497, %v1563
    %v1565 = vlaneseq
    %v1566 = vshrl.u32 %v1565, 7
    %v1567 = vsub.s32 %v435, %v1566
    %v1568 = vrot.slane %v1498, %v1567
    %v1569 = vsel %vm440, %v1568, %v1564
    %v1570 = vlaneseq
    %v1571 = vshrl.u32 %v1570, 7
    %v1572 = vsub.s32 %v442, %v1571
    %v1573 = vrot.slane %v1499, %v1572
    %v1574 = vsel %vm447, %v1573, %v1569
    %v1575 = vlaneseq
    %v1576 = vshrl.u32 %v1575, 7
    %v1577 = vsub.s32 %v449, %v1576
    %v1578 = vrot.slane %v1500, %v1577
    %v1579 = vsel %vm454, %v1578, %v1574
    %v1580 = vlaneseq
    %v1581 = vshrl.u32 %v1580, 7
    %v1582 = vsub.s32 %v456, %v1581
    %v1583 = vrot.slane %v1501, %v1582
    %v1584 = vsel %vm461, %v1583, %v1579
    %v1585 = vlaneseq
    %v1586 = vshrl.u32 %v1585, 7
    %v1587 = vsub.s32 %v463, %v1586
    %v1588 = vrot.slane %v1502, %v1587
    %v1589 = vsel %vm468, %v1588, %v1584
    %v1590 = vlaneseq
    %v1591 = vshrl.u32 %v1590, 7
    %v1592 = vsub.s32 %v470, %v1591
    %v1593 = vrot.slane %v1503, %v1592
    %v1594 = vsel %vm475, %v1593, %v1589
    %v1595 = vlaneseq
    %v1596 = vshrl.u32 %v1595, 7
    %v1597 = vsub.s32 %v477, %v1596
    %v1598 = vrot.slane %v1504, %v1597
    %v1599 = vsel %vm482, %v1598, %v1594
    %v1600 = vlaneseq
    %v1601 = vshrl.u32 %v1600, 7
    %v1602 = vsub.s32 %v484, %v1601
    %v1603 = vrot.slane %v1505, %v1602
    %v1604 = vsel %vm489, %v1603, %v1599
    %v1605 = vlaneseq
    %v1606 = vshrl.u32 %v1605, 7
    %v1607 = vsub.s32 %v491, %v1606
    %v1608 = vrot.slane %v1506, %v1607
    %v1609 = vsel %vm496, %v1608, %v1604
    %v1610 = vlaneseq
    %v1611 = vshrl.u32 %v1610, 7
    %v1612 = vsub.s32 %v498, %v1611
    %v1613 = vrot.slane %v1507, %v1612
    %v1614 = vsel %vm503, %v1613, %v1609
    %v1615 = vlaneseq
    %v1616 = vshrl.u32 %v1615, 7
    %v1617 = vsub.s32 %v505, %v1616
    %v1618 = vrot.slane %v1508, %v1617
    %v1619 = vsel %vm510, %v1618, %v1614
    %v1620 = vlaneseq
    %v1621 = vshrl.u32 %v1620, 7
    %v1622 = vsub.s32 %v512, %v1621
    %v1623 = vrot.slane %v1509, %v1622
    %v1624 = vsel %vm517, %v1623, %v1619
    %v1625 = vlaneseq
    %v1626 = vshrl.u32 %v1625, 7
    %v1627 = vsub.s32 %v519, %v1626
    %v1628 = vrot.slane %v1510, %v1627
    %v1629 = vsel %vm524, %v1628, %v1624
    %v1630 = vlaneseq
    %v1631 = vshrl.u32 %v1630, 7
    %v1632 = vsub.s32 %v526, %v1631
    %v1633 = vrot.slane %v1511, %v1632
    %v1634 = vsel %vm531, %v1633, %v1629
    %v1635 = vlaneseq
    %v1636 = vshrl.u32 %v1635, 7
    %v1637 = vsub.s32 %v533, %v1636
    %v1638 = vrot.slane %v1512, %v1637
    %v1639 = vsel %vm538, %v1638, %v1634
    %v1640 = vlaneseq
    %v1641 = vshrl.u32 %v1640, 7
    %v1642 = vsub.s32 %v430, %v1641
    %v1643 = vrot.slane %v1513, %v1642
    %v1644 = vlaneseq
    %v1645 = vshrl.u32 %v1644, 7
    %v1646 = vsub.s32 %v435, %v1645
    %v1647 = vrot.slane %v1514, %v1646
    %v1648 = vsel %vm440, %v1647, %v1643
    %v1649 = vlaneseq
    %v1650 = vshrl.u32 %v1649, 7
    %v1651 = vsub.s32 %v442, %v1650
    %v1652 = vrot.slane %v1515, %v1651
    %v1653 = vsel %vm447, %v1652, %v1648
    %v1654 = vlaneseq
    %v1655 = vshrl.u32 %v1654, 7
    %v1656 = vsub.s32 %v449, %v1655
    %v1657 = vrot.slane %v1516, %v1656
    %v1658 = vsel %vm454, %v1657, %v1653
    %v1659 = vlaneseq
    %v1660 = vshrl.u32 %v1659, 7
    %v1661 = vsub.s32 %v456, %v1660
    %v1662 = vrot.slane %v1517, %v1661
    %v1663 = vsel %vm461, %v1662, %v1658
    %v1664 = vlaneseq
    %v1665 = vshrl.u32 %v1664, 7
    %v1666 = vsub.s32 %v463, %v1665
    %v1667 = vrot.slane %v1518, %v1666
    %v1668 = vsel %vm468, %v1667, %v1663
    %v1669 = vlaneseq
    %v1670 = vshrl.u32 %v1669, 7
    %v1671 = vsub.s32 %v470, %v1670
    %v1672 = vrot.slane %v1519, %v1671
    %v1673 = vsel %vm475, %v1672, %v1668
    %v1674 = vlaneseq
    %v1675 = vshrl.u32 %v1674, 7
    %v1676 = vsub.s32 %v477, %v1675
    %v1677 = vrot.slane %v1520, %v1676
    %v1678 = vsel %vm482, %v1677, %v1673
    %v1679 = vlaneseq
    %v1680 = vshrl.u32 %v1679, 7
    %v1681 = vsub.s32 %v484, %v1680
    %v1682 = vrot.slane %v1521, %v1681
    %v1683 = vsel %vm489, %v1682, %v1678
    %v1684 = vlaneseq
    %v1685 = vshrl.u32 %v1684, 7
    %v1686 = vsub.s32 %v491, %v1685
    %v1687 = vrot.slane %v1522, %v1686
    %v1688 = vsel %vm496, %v1687, %v1683
    %v1689 = vlaneseq
    %v1690 = vshrl.u32 %v1689, 7
    %v1691 = vsub.s32 %v498, %v1690
    %v1692 = vrot.slane %v1523, %v1691
    %v1693 = vsel %vm503, %v1692, %v1688
    %v1694 = vlaneseq
    %v1695 = vshrl.u32 %v1694, 7
    %v1696 = vsub.s32 %v505, %v1695
    %v1697 = vrot.slane %v1524, %v1696
    %v1698 = vsel %vm510, %v1697, %v1693
    %v1699 = vlaneseq
    %v1700 = vshrl.u32 %v1699, 7
    %v1701 = vsub.s32 %v512, %v1700
    %v1702 = vrot.slane %v1525, %v1701
    %v1703 = vsel %vm517, %v1702, %v1698
    %v1704 = vlaneseq
    %v1705 = vshrl.u32 %v1704, 7
    %v1706 = vsub.s32 %v519, %v1705
    %v1707 = vrot.slane %v1526, %v1706
    %v1708 = vsel %vm524, %v1707, %v1703
    %v1709 = vlaneseq
    %v1710 = vshrl.u32 %v1709, 7
    %v1711 = vsub.s32 %v526, %v1710
    %v1712 = vrot.slane %v1527, %v1711
    %v1713 = vsel %vm531, %v1712, %v1708
    %v1714 = vlaneseq
    %v1715 = vshrl.u32 %v1714, 7
    %v1716 = vsub.s32 %v533, %v1715
    %v1717 = vrot.slane %v1528, %v1716
    %v1718 = vsel %vm538, %v1717, %v1713
    %vm1719 = vcmask 1047559
    %v1720 = vsel %vm1719, %v1718, %v1639
    %1722 = vst [vmem:[#allocation2 + $0x18] sm:$0xc0] %v1720
    %v1723 = vld [vmem:[#allocation5] sm:$0xff]
    %v1725 = vlaneseq
    %v1726 = vshrl.u32 %v1725, 7
    %v1727 = vsub.s32 0, %v1726
    %v1728 = vrot.slane %v1723, %v1727
    %v1729 = vlaneseq
    %v1730 = vshrl.u32 %v1729, 7
    %v1731 = vsub.s32 4, %v1730
    %v1732 = vrot.slane %v1723, %v1731
    %v1735 = vlaneseq
    %v1736 = vshrl.u32 %v1735, 7
    %v1737 = vsub.s32 0, %v1736
    %v1738 = vrot.slane %v1728, %v1737
    %v1739 = vlaneseq
    %v1740 = vshrl.u32 %v1739, 7
    %v1741 = vsub.s32 0, %v1740
    %v1742 = vrot.slane %v1732, %v1741
    %v1743 = vadd.f32 %v204, %v1738
    %v1744 = vadd.f32 %v205, %v1742
    %v1745 = vadd.f32 %v206, %v1738
    %v1746 = vadd.f32 %v207, %v1742
    %v1747 = vadd.f32 %v208, %v1738
    %v1748 = vadd.f32 %v209, %v1742
    %v1749 = vadd.f32 %v210, %v1738
    %v1750 = vadd.f32 %v211, %v1742
    %v1751 = vadd.f32 %v212, %v1738
    %v1752 = vadd.f32 %v213, %v1742
    %v1753 = vadd.f32 %v214, %v1738
    %v1754 = vadd.f32 %v215, %v1742
    %v1755 = vadd.f32 %v216, %v1738
    %v1756 = vadd.f32 %v217, %v1742
    %v1757 = vadd.f32 %v218, %v1738
    %v1758 = vadd.f32 %v219, %v1742
    %v1759 = vadd.f32 %v220, %v1738
    %v1760 = vadd.f32 %v221, %v1742
    %v1761 = vadd.f32 %v222, %v1738
    %v1762 = vadd.f32 %v223, %v1742
    %v1763 = vadd.f32 %v224, %v1738
    %v1764 = vadd.f32 %v225, %v1742
    %v1765 = vadd.f32 %v226, %v1738
    %v1766 = vadd.f32 %v227, %v1742
    %v1767 = vadd.f32 %v228, %v1738
    %v1768 = vadd.f32 %v229, %v1742
    %v1769 = vadd.f32 %v230, %v1738
    %v1770 = vadd.f32 %v231, %v1742
    %v1771 = vadd.f32 %v232, %v1738
    %v1772 = vadd.f32 %v233, %v1742
    %v1773 = vadd.f32 %v234, %v1738
    %v1774 = vadd.f32 %v235, %v1742
    %v1775 = vadd.f32 %v236, %v1738
    %v1776 = vadd.f32 %v237, %v1742
    %v1777 = vadd.f32 %v238, %v1738
    %v1778 = vadd.f32 %v239, %v1742
    %v1779 = vadd.f32 %v240, %v1738
    %v1780 = vadd.f32 %v241, %v1742
    %v1781 = vadd.f32 %v242, %v1738
    %v1782 = vadd.f32 %v243, %v1742
    %v1783 = vadd.f32 %v244, %v1738
    %v1784 = vadd.f32 %v245, %v1742
    %v1785 = vadd.f32 %v246, %v1738
    %v1786 = vadd.f32 %v247, %v1742
    %v1787 = vadd.f32 %v248, %v1738
    %v1788 = vadd.f32 %v249, %v1742
    %v1789 = vadd.f32 %v250, %v1738
    %v1790 = vadd.f32 %v251, %v1742
    %v1791 = vadd.f32 %v252, %v1738
    %v1792 = vadd.f32 %v253, %v1742
    %v1793 = vadd.f32 %v254, %v1738
    %v1794 = vadd.f32 %v255, %v1742
    %v1795 = vadd.f32 %v256, %v1738
    %v1796 = vadd.f32 %v257, %v1742
    %v1797 = vadd.f32 %v258, %v1738
    %v1798 = vadd.f32 %v259, %v1742
    %v1799 = vadd.f32 %v260, %v1738
    %v1800 = vadd.f32 %v261, %v1742
    %v1801 = vadd.f32 %v262, %v1738
    %v1802 = vadd.f32 %v263, %v1742
    %v1803 = vadd.f32 %v264, %v1738
    %v1804 = vadd.f32 %v265, %v1742
    %v1805 = vadd.f32 %v266, %v1738
    %v1806 = vadd.f32 %v267, %v1742
    %v1807 = vmax.f32 %v1743, %v1744
    %1808 = vmax.xlane.f32.xlu0 %v1807
    %v1809 = vpop.xlane.xlu0 %1808
    %v1810 = vmax.f32 %v1745, %v1746
    %1811 = vmax.xlane.f32.xlu0 %v1810
    %v1812 = vpop.xlane.xlu0 %1811
    %v1813 = vmax.f32 %v1747, %v1748
    %1814 = vmax.xlane.f32.xlu0 %v1813
    %v1815 = vpop.xlane.xlu0 %1814
    %v1816 = vmax.f32 %v1749, %v1750
    %1817 = vmax.xlane.f32.xlu0 %v1816
    %v1818 = vpop.xlane.xlu0 %1817
    %v1819 = vmax.f32 %v1751, %v1752
    %1820 = vmax.xlane.f32.xlu0 %v1819
    %v1821 = vpop.xlane.xlu0 %1820
    %v1822 = vmax.f32 %v1753, %v1754
    %1823 = vmax.xlane.f32.xlu0 %v1822
    %v1824 = vpop.xlane.xlu0 %1823
    %v1825 = vmax.f32 %v1755, %v1756
    %1826 = vmax.xlane.f32.xlu0 %v1825
    %v1827 = vpop.xlane.xlu0 %1826
    %v1828 = vmax.f32 %v1757, %v1758
    %1829 = vmax.xlane.f32.xlu0 %v1828
    %v1830 = vpop.xlane.xlu0 %1829
    %v1831 = vmax.f32 %v1759, %v1760
    %1832 = vmax.xlane.f32.xlu0 %v1831
    %v1833 = vpop.xlane.xlu0 %1832
    %v1834 = vmax.f32 %v1761, %v1762
    %1835 = vmax.xlane.f32.xlu0 %v1834
    %v1836 = vpop.xlane.xlu0 %1835
    %v1837 = vmax.f32 %v1763, %v1764
    %1838 = vmax.xlane.f32.xlu0 %v1837
    %v1839 = vpop.xlane.xlu0 %1838
    %v1840 = vmax.f32 %v1765, %v1766
    %1841 = vmax.xlane.f32.xlu0 %v1840
    %v1842 = vpop.xlane.xlu0 %1841
    %v1843 = vmax.f32 %v1767, %v1768
    %1844 = vmax.xlane.f32.xlu0 %v1843
    %v1845 = vpop.xlane.xlu0 %1844
    %v1846 = vmax.f32 %v1769, %v1770
    %1847 = vmax.xlane.f32.xlu0 %v1846
    %v1848 = vpop.xlane.xlu0 %1847
    %v1849 = vmax.f32 %v1771, %v1772
    %1850 = vmax.xlane.f32.xlu0 %v1849
    %v1851 = vpop.xlane.xlu0 %1850
    %v1852 = vmax.f32 %v1773, %v1774
    %1853 = vmax.xlane.f32.xlu0 %v1852
    %v1854 = vpop.xlane.xlu0 %1853
    %v1855 = vmax.f32 %v1775, %v1776
    %1856 = vmax.xlane.f32.xlu0 %v1855
    %v1857 = vpop.xlane.xlu0 %1856
    %v1858 = vmax.f32 %v1777, %v1778
    %1859 = vmax.xlane.f32.xlu0 %v1858
    %v1860 = vpop.xlane.xlu0 %1859
    %v1861 = vmax.f32 %v1779, %v1780
    %1862 = vmax.xlane.f32.xlu0 %v1861
    %v1863 = vpop.xlane.xlu0 %1862
    %v1864 = vmax.f32 %v1781, %v1782
    %1865 = vmax.xlane.f32.xlu0 %v1864
    %v1866 = vpop.xlane.xlu0 %1865
    %v1867 = vmax.f32 %v1783, %v1784
    %1868 = vmax.xlane.f32.xlu0 %v1867
    %v1869 = vpop.xlane.xlu0 %1868
    %v1870 = vmax.f32 %v1785, %v1786
    %1871 = vmax.xlane.f32.xlu0 %v1870
    %v1872 = vpop.xlane.xlu0 %1871
    %v1873 = vmax.f32 %v1787, %v1788
    %1874 = vmax.xlane.f32.xlu0 %v1873
    %v1875 = vpop.xlane.xlu0 %1874
    %v1876 = vmax.f32 %v1789, %v1790
    %1877 = vmax.xlane.f32.xlu0 %v1876
    %v1878 = vpop.xlane.xlu0 %1877
    %v1879 = vmax.f32 %v1791, %v1792
    %1880 = vmax.xlane.f32.xlu0 %v1879
    %v1881 = vpop.xlane.xlu0 %1880
    %v1882 = vmax.f32 %v1793, %v1794
    %1883 = vmax.xlane.f32.xlu0 %v1882
    %v1884 = vpop.xlane.xlu0 %1883
    %v1885 = vmax.f32 %v1795, %v1796
    %1886 = vmax.xlane.f32.xlu0 %v1885
    %v1887 = vpop.xlane.xlu0 %1886
    %v1888 = vmax.f32 %v1797, %v1798
    %1889 = vmax.xlane.f32.xlu0 %v1888
    %v1890 = vpop.xlane.xlu0 %1889
    %v1891 = vmax.f32 %v1799, %v1800
    %1892 = vmax.xlane.f32.xlu0 %v1891
    %v1893 = vpop.xlane.xlu0 %1892
    %v1894 = vmax.f32 %v1801, %v1802
    %1895 = vmax.xlane.f32.xlu0 %v1894
    %v1896 = vpop.xlane.xlu0 %1895
    %v1897 = vmax.f32 %v1803, %v1804
    %1898 = vmax.xlane.f32.xlu0 %v1897
    %v1899 = vpop.xlane.xlu0 %1898
    %v1900 = vmax.f32 %v1805, %v1806
    %1901 = vmax.xlane.f32.xlu0 %v1900
    %v1902 = vpop.xlane.xlu0 %1901
    %v1935 = vlaneseq
    %v1936 = vshrl.u32 %v1935, 7
    %v1937 = vsub.s32 %v430, %v1936
    %v1938 = vrot.slane %v1809, %v1937
    %v1939 = vlaneseq
    %v1940 = vshrl.u32 %v1939, 7
    %v1941 = vsub.s32 %v435, %v1940
    %v1942 = vrot.slane %v1812, %v1941
    %v1943 = vsel %vm440, %v1942, %v1938
    %v1944 = vlaneseq
    %v1945 = vshrl.u32 %v1944, 7
    %v1946 = vsub.s32 %v442, %v1945
    %v1947 = vrot.slane %v1815, %v1946
    %v1948 = vsel %vm447, %v1947, %v1943
    %v1949 = vlaneseq
    %v1950 = vshrl.u32 %v1949, 7
    %v1951 = vsub.s32 %v449, %v1950
    %v1952 = vrot.slane %v1818, %v1951
    %v1953 = vsel %vm454, %v1952, %v1948
    %v1954 = vlaneseq
    %v1955 = vshrl.u32 %v1954, 7
    %v1956 = vsub.s32 %v456, %v1955
    %v1957 = vrot.slane %v1821, %v1956
    %v1958 = vsel %vm461, %v1957, %v1953
    %v1959 = vlaneseq
    %v1960 = vshrl.u32 %v1959, 7
    %v1961 = vsub.s32 %v463, %v1960
    %v1962 = vrot.slane %v1824, %v1961
    %v1963 = vsel %vm468, %v1962, %v1958
    %v1964 = vlaneseq
    %v1965 = vshrl.u32 %v1964, 7
    %v1966 = vsub.s32 %v470, %v1965
    %v1967 = vrot.slane %v1827, %v1966
    %v1968 = vsel %vm475, %v1967, %v1963
    %v1969 = vlaneseq
    %v1970 = vshrl.u32 %v1969, 7
    %v1971 = vsub.s32 %v477, %v1970
    %v1972 = vrot.slane %v1830, %v1971
    %v1973 = vsel %vm482, %v1972, %v1968
    %v1974 = vlaneseq
    %v1975 = vshrl.u32 %v1974, 7
    %v1976 = vsub.s32 %v484, %v1975
    %v1977 = vrot.slane %v1833, %v1976
    %v1978 = vsel %vm489, %v1977, %v1973
    %v1979 = vlaneseq
    %v1980 = vshrl.u32 %v1979, 7
    %v1981 = vsub.s32 %v491, %v1980
    %v1982 = vrot.slane %v1836, %v1981
    %v1983 = vsel %vm496, %v1982, %v1978
    %v1984 = vlaneseq
    %v1985 = vshrl.u32 %v1984, 7
    %v1986 = vsub.s32 %v498, %v1985
    %v1987 = vrot.slane %v1839, %v1986
    %v1988 = vsel %vm503, %v1987, %v1983
    %v1989 = vlaneseq
    %v1990 = vshrl.u32 %v1989, 7
    %v1991 = vsub.s32 %v505, %v1990
    %v1992 = vrot.slane %v1842, %v1991
    %v1993 = vsel %vm510, %v1992, %v1988
    %v1994 = vlaneseq
    %v1995 = vshrl.u32 %v1994, 7
    %v1996 = vsub.s32 %v512, %v1995
    %v1997 = vrot.slane %v1845, %v1996
    %v1998 = vsel %vm517, %v1997, %v1993
    %v1999 = vlaneseq
    %v2000 = vshrl.u32 %v1999, 7
    %v2001 = vsub.s32 %v519, %v2000
    %v2002 = vrot.slane %v1848, %v2001
    %v2003 = vsel %vm524, %v2002, %v1998
    %v2004 = vlaneseq
    %v2005 = vshrl.u32 %v2004, 7
    %v2006 = vsub.s32 %v526, %v2005
    %v2007 = vrot.slane %v1851, %v2006
    %v2008 = vsel %vm531, %v2007, %v2003
    %v2009 = vlaneseq
    %v2010 = vshrl.u32 %v2009, 7
    %v2011 = vsub.s32 %v533, %v2010
    %v2012 = vrot.slane %v1854, %v2011
    %v2013 = vsel %vm538, %v2012, %v2008
    %v2014 = vlaneseq
    %v2015 = vshrl.u32 %v2014, 7
    %v2016 = vsub.s32 %v430, %v2015
    %v2017 = vrot.slane %v1857, %v2016
    %v2018 = vlaneseq
    %v2019 = vshrl.u32 %v2018, 7
    %v2020 = vsub.s32 %v435, %v2019
    %v2021 = vrot.slane %v1860, %v2020
    %v2022 = vsel %vm440, %v2021, %v2017
    %v2023 = vlaneseq
    %v2024 = vshrl.u32 %v2023, 7
    %v2025 = vsub.s32 %v442, %v2024
    %v2026 = vrot.slane %v1863, %v2025
    %v2027 = vsel %vm447, %v2026, %v2022
    %v2028 = vlaneseq
    %v2029 = vshrl.u32 %v2028, 7
    %v2030 = vsub.s32 %v449, %v2029
    %v2031 = vrot.slane %v1866, %v2030
    %v2032 = vsel %vm454, %v2031, %v2027
    %v2033 = vlaneseq
    %v2034 = vshrl.u32 %v2033, 7
    %v2035 = vsub.s32 %v456, %v2034
    %v2036 = vrot.slane %v1869, %v2035
    %v2037 = vsel %vm461, %v2036, %v2032
    %v2038 = vlaneseq
    %v2039 = vshrl.u32 %v2038, 7
    %v2040 = vsub.s32 %v463, %v2039
    %v2041 = vrot.slane %v1872, %v2040
    %v2042 = vsel %vm468, %v2041, %v2037
    %v2043 = vlaneseq
    %v2044 = vshrl.u32 %v2043, 7
    %v2045 = vsub.s32 %v470, %v2044
    %v2046 = vrot.slane %v1875, %v2045
    %v2047 = vsel %vm475, %v2046, %v2042
    %v2048 = vlaneseq
    %v2049 = vshrl.u32 %v2048, 7
    %v2050 = vsub.s32 %v477, %v2049
    %v2051 = vrot.slane %v1878, %v2050
    %v2052 = vsel %vm482, %v2051, %v2047
    %v2053 = vlaneseq
    %v2054 = vshrl.u32 %v2053, 7
    %v2055 = vsub.s32 %v484, %v2054
    %v2056 = vrot.slane %v1881, %v2055
    %v2057 = vsel %vm489, %v2056, %v2052
    %v2058 = vlaneseq
    %v2059 = vshrl.u32 %v2058, 7
    %v2060 = vsub.s32 %v491, %v2059
    %v2061 = vrot.slane %v1884, %v2060
    %v2062 = vsel %vm496, %v2061, %v2057
    %v2063 = vlaneseq
    %v2064 = vshrl.u32 %v2063, 7
    %v2065 = vsub.s32 %v498, %v2064
    %v2066 = vrot.slane %v1887, %v2065
    %v2067 = vsel %vm503, %v2066, %v2062
    %v2068 = vlaneseq
    %v2069 = vshrl.u32 %v2068, 7
    %v2070 = vsub.s32 %v505, %v2069
    %v2071 = vrot.slane %v1890, %v2070
    %v2072 = vsel %vm510, %v2071, %v2067
    %v2073 = vlaneseq
    %v2074 = vshrl.u32 %v2073, 7
    %v2075 = vsub.s32 %v512, %v2074
    %v2076 = vrot.slane %v1893, %v2075
    %v2077 = vsel %vm517, %v2076, %v2072
    %v2078 = vlaneseq
    %v2079 = vshrl.u32 %v2078, 7
    %v2080 = vsub.s32 %v519, %v2079
    %v2081 = vrot.slane %v1896, %v2080
    %v2082 = vsel %vm524, %v2081, %v2077
    %v2083 = vlaneseq
    %v2084 = vshrl.u32 %v2083, 7
    %v2085 = vsub.s32 %v526, %v2084
    %v2086 = vrot.slane %v1899, %v2085
    %v2087 = vsel %vm531, %v2086, %v2082
    %v2088 = vlaneseq
    %v2089 = vshrl.u32 %v2088, 7
    %v2090 = vsub.s32 %v533, %v2089
    %v2091 = vrot.slane %v1902, %v2090
    %v2092 = vsel %vm538, %v2091, %v2087
    %v2093 = vsel %vm619, %v2092, %v2013
    %2095 = vst [vmem:[#allocation2 + $0x60] sm:$0x3] %v2093
    %v2096 = vlaneseq
    %v2097 = vshrl.u32 %v2096, 7
    %v2098 = vsub.s32 1, %v2097
    %v2099 = vrot.slane %v1723, %v2098
    %v2100 = vlaneseq
    %v2101 = vshrl.u32 %v2100, 7
    %v2102 = vsub.s32 5, %v2101
    %v2103 = vrot.slane %v1723, %v2102
    %v2106 = vlaneseq
    %v2107 = vshrl.u32 %v2106, 7
    %v2108 = vsub.s32 1, %v2107
    %v2109 = vrot.slane %v2099, %v2108
    %v2110 = vlaneseq
    %v2111 = vshrl.u32 %v2110, 7
    %v2112 = vsub.s32 1, %v2111
    %v2113 = vrot.slane %v2103, %v2112
    %v2114 = vadd.f32 %v204, %v2109
    %v2115 = vadd.f32 %v205, %v2113
    %v2116 = vadd.f32 %v206, %v2109
    %v2117 = vadd.f32 %v207, %v2113
    %v2118 = vadd.f32 %v208, %v2109
    %v2119 = vadd.f32 %v209, %v2113
    %v2120 = vadd.f32 %v210, %v2109
    %v2121 = vadd.f32 %v211, %v2113
    %v2122 = vadd.f32 %v212, %v2109
    %v2123 = vadd.f32 %v213, %v2113
    %v2124 = vadd.f32 %v214, %v2109
    %v2125 = vadd.f32 %v215, %v2113
    %v2126 = vadd.f32 %v216, %v2109
    %v2127 = vadd.f32 %v217, %v2113
    %v2128 = vadd.f32 %v218, %v2109
    %v2129 = vadd.f32 %v219, %v2113
    %v2130 = vadd.f32 %v220, %v2109
    %v2131 = vadd.f32 %v221, %v2113
    %v2132 = vadd.f32 %v222, %v2109
    %v2133 = vadd.f32 %v223, %v2113
    %v2134 = vadd.f32 %v224, %v2109
    %v2135 = vadd.f32 %v225, %v2113
    %v2136 = vadd.f32 %v226, %v2109
    %v2137 = vadd.f32 %v227, %v2113
    %v2138 = vadd.f32 %v228, %v2109
    %v2139 = vadd.f32 %v229, %v2113
    %v2140 = vadd.f32 %v230, %v2109
    %v2141 = vadd.f32 %v231, %v2113
    %v2142 = vadd.f32 %v232, %v2109
    %v2143 = vadd.f32 %v233, %v2113
    %v2144 = vadd.f32 %v234, %v2109
    %v2145 = vadd.f32 %v235, %v2113
    %v2146 = vadd.f32 %v236, %v2109
    %v2147 = vadd.f32 %v237, %v2113
    %v2148 = vadd.f32 %v238, %v2109
    %v2149 = vadd.f32 %v239, %v2113
    %v2150 = vadd.f32 %v240, %v2109
    %v2151 = vadd.f32 %v241, %v2113
    %v2152 = vadd.f32 %v242, %v2109
    %v2153 = vadd.f32 %v243, %v2113
    %v2154 = vadd.f32 %v244, %v2109
    %v2155 = vadd.f32 %v245, %v2113
    %v2156 = vadd.f32 %v246, %v2109
    %v2157 = vadd.f32 %v247, %v2113
    %v2158 = vadd.f32 %v248, %v2109
    %v2159 = vadd.f32 %v249, %v2113
    %v2160 = vadd.f32 %v250, %v2109
    %v2161 = vadd.f32 %v251, %v2113
    %v2162 = vadd.f32 %v252, %v2109
    %v2163 = vadd.f32 %v253, %v2113
    %v2164 = vadd.f32 %v254, %v2109
    %v2165 = vadd.f32 %v255, %v2113
    %v2166 = vadd.f32 %v256, %v2109
    %v2167 = vadd.f32 %v257, %v2113
    %v2168 = vadd.f32 %v258, %v2109
    %v2169 = vadd.f32 %v259, %v2113
    %v2170 = vadd.f32 %v260, %v2109
    %v2171 = vadd.f32 %v261, %v2113
    %v2172 = vadd.f32 %v262, %v2109
    %v2173 = vadd.f32 %v263, %v2113
    %v2174 = vadd.f32 %v264, %v2109
    %v2175 = vadd.f32 %v265, %v2113
    %v2176 = vadd.f32 %v266, %v2109
    %v2177 = vadd.f32 %v267, %v2113
    %v2178 = vmax.f32 %v2114, %v2115
    %2179 = vmax.xlane.f32.xlu0 %v2178
    %v2180 = vpop.xlane.xlu0 %2179
    %v2181 = vmax.f32 %v2116, %v2117
    %2182 = vmax.xlane.f32.xlu0 %v2181
    %v2183 = vpop.xlane.xlu0 %2182
    %v2184 = vmax.f32 %v2118, %v2119
    %2185 = vmax.xlane.f32.xlu0 %v2184
    %v2186 = vpop.xlane.xlu0 %2185
    %v2187 = vmax.f32 %v2120, %v2121
    %2188 = vmax.xlane.f32.xlu0 %v2187
    %v2189 = vpop.xlane.xlu0 %2188
    %v2190 = vmax.f32 %v2122, %v2123
    %2191 = vmax.xlane.f32.xlu0 %v2190
    %v2192 = vpop.xlane.xlu0 %2191
    %v2193 = vmax.f32 %v2124, %v2125
    %2194 = vmax.xlane.f32.xlu0 %v2193
    %v2195 = vpop.xlane.xlu0 %2194
    %v2196 = vmax.f32 %v2126, %v2127
    %2197 = vmax.xlane.f32.xlu0 %v2196
    %v2198 = vpop.xlane.xlu0 %2197
    %v2199 = vmax.f32 %v2128, %v2129
    %2200 = vmax.xlane.f32.xlu0 %v2199
    %v2201 = vpop.xlane.xlu0 %2200
    %v2202 = vmax.f32 %v2130, %v2131
    %2203 = vmax.xlane.f32.xlu0 %v2202
    %v2204 = vpop.xlane.xlu0 %2203
    %v2205 = vmax.f32 %v2132, %v2133
    %2206 = vmax.xlane.f32.xlu0 %v2205
    %v2207 = vpop.xlane.xlu0 %2206
    %v2208 = vmax.f32 %v2134, %v2135
    %2209 = vmax.xlane.f32.xlu0 %v2208
    %v2210 = vpop.xlane.xlu0 %2209
    %v2211 = vmax.f32 %v2136, %v2137
    %2212 = vmax.xlane.f32.xlu0 %v2211
    %v2213 = vpop.xlane.xlu0 %2212
    %v2214 = vmax.f32 %v2138, %v2139
    %2215 = vmax.xlane.f32.xlu0 %v2214
    %v2216 = vpop.xlane.xlu0 %2215
    %v2217 = vmax.f32 %v2140, %v2141
    %2218 = vmax.xlane.f32.xlu0 %v2217
    %v2219 = vpop.xlane.xlu0 %2218
    %v2220 = vmax.f32 %v2142, %v2143
    %2221 = vmax.xlane.f32.xlu0 %v2220
    %v2222 = vpop.xlane.xlu0 %2221
    %v2223 = vmax.f32 %v2144, %v2145
    %2224 = vmax.xlane.f32.xlu0 %v2223
    %v2225 = vpop.xlane.xlu0 %2224
    %v2226 = vmax.f32 %v2146, %v2147
    %2227 = vmax.xlane.f32.xlu0 %v2226
    %v2228 = vpop.xlane.xlu0 %2227
    %v2229 = vmax.f32 %v2148, %v2149
    %2230 = vmax.xlane.f32.xlu0 %v2229
    %v2231 = vpop.xlane.xlu0 %2230
    %v2232 = vmax.f32 %v2150, %v2151
    %2233 = vmax.xlane.f32.xlu0 %v2232
    %v2234 = vpop.xlane.xlu0 %2233
    %v2235 = vmax.f32 %v2152, %v2153
    %2236 = vmax.xlane.f32.xlu0 %v2235
    %v2237 = vpop.xlane.xlu0 %2236
    %v2238 = vmax.f32 %v2154, %v2155
    %2239 = vmax.xlane.f32.xlu0 %v2238
    %v2240 = vpop.xlane.xlu0 %2239
    %v2241 = vmax.f32 %v2156, %v2157
    %2242 = vmax.xlane.f32.xlu0 %v2241
    %v2243 = vpop.xlane.xlu0 %2242
    %v2244 = vmax.f32 %v2158, %v2159
    %2245 = vmax.xlane.f32.xlu0 %v2244
    %v2246 = vpop.xlane.xlu0 %2245
    %v2247 = vmax.f32 %v2160, %v2161
    %2248 = vmax.xlane.f32.xlu0 %v2247
    %v2249 = vpop.xlane.xlu0 %2248
    %v2250 = vmax.f32 %v2162, %v2163
    %2251 = vmax.xlane.f32.xlu0 %v2250
    %v2252 = vpop.xlane.xlu0 %2251
    %v2253 = vmax.f32 %v2164, %v2165
    %2254 = vmax.xlane.f32.xlu0 %v2253
    %v2255 = vpop.xlane.xlu0 %2254
    %v2256 = vmax.f32 %v2166, %v2167
    %2257 = vmax.xlane.f32.xlu0 %v2256
    %v2258 = vpop.xlane.xlu0 %2257
    %v2259 = vmax.f32 %v2168, %v2169
    %2260 = vmax.xlane.f32.xlu0 %v2259
    %v2261 = vpop.xlane.xlu0 %2260
    %v2262 = vmax.f32 %v2170, %v2171
    %2263 = vmax.xlane.f32.xlu0 %v2262
    %v2264 = vpop.xlane.xlu0 %2263
    %v2265 = vmax.f32 %v2172, %v2173
    %2266 = vmax.xlane.f32.xlu0 %v2265
    %v2267 = vpop.xlane.xlu0 %2266
    %v2268 = vmax.f32 %v2174, %v2175
    %2269 = vmax.xlane.f32.xlu0 %v2268
    %v2270 = vpop.xlane.xlu0 %2269
    %v2271 = vmax.f32 %v2176, %v2177
    %2272 = vmax.xlane.f32.xlu0 %v2271
    %v2273 = vpop.xlane.xlu0 %2272
    %v2274 = vmax.f32 %v2180, 0.0
    %v2275 = vmax.f32 %v2183, 0.0
    %v2276 = vmax.f32 %v2186, 0.0
    %v2277 = vmax.f32 %v2189, 0.0
    %v2278 = vmax.f32 %v2192, 0.0
    %v2279 = vmax.f32 %v2195, 0.0
    %v2280 = vmax.f32 %v2198, 0.0
    %v2281 = vmax.f32 %v2201, 0.0
    %v2282 = vmax.f32 %v2204, 0.0
    %v2283 = vmax.f32 %v2207, 0.0
    %v2284 = vmax.f32 %v2210, 0.0
    %v2285 = vmax.f32 %v2213, 0.0
    %v2286 = vmax.f32 %v2216, 0.0
    %v2287 = vmax.f32 %v2219, 0.0
    %v2288 = vmax.f32 %v2222, 0.0
    %v2289 = vmax.f32 %v2225, 0.0
    %v2290 = vmax.f32 %v2228, 0.0
    %v2291 = vmax.f32 %v2231, 0.0
    %v2292 = vmax.f32 %v2234, 0.0
    %v2293 = vmax.f32 %v2237, 0.0
    %v2294 = vmax.f32 %v2240, 0.0
    %v2295 = vmax.f32 %v2243, 0.0
    %v2296 = vmax.f32 %v2246, 0.0
    %v2297 = vmax.f32 %v2249, 0.0
    %v2298 = vmax.f32 %v2252, 0.0
    %v2299 = vmax.f32 %v2255, 0.0
    %v2300 = vmax.f32 %v2258, 0.0
    %v2301 = vmax.f32 %v2261, 0.0
    %v2302 = vmax.f32 %v2264, 0.0
    %v2303 = vmax.f32 %v2267, 0.0
    %v2304 = vmax.f32 %v2270, 0.0
    %v2305 = vmax.f32 %v2273, 0.0
    %v2338 = vlaneseq
    %v2339 = vshrl.u32 %v2338, 7
    %v2340 = vsub.s32 %v430, %v2339
    %v2341 = vrot.slane %v2274, %v2340
    %v2342 = vlaneseq
    %v2343 = vshrl.u32 %v2342, 7
    %v2344 = vsub.s32 %v435, %v2343
    %v2345 = vrot.slane %v2275, %v2344
    %v2346 = vsel %vm440, %v2345, %v2341
    %v2347 = vlaneseq
    %v2348 = vshrl.u32 %v2347, 7
    %v2349 = vsub.s32 %v442, %v2348
    %v2350 = vrot.slane %v2276, %v2349
    %v2351 = vsel %vm447, %v2350, %v2346
    %v2352 = vlaneseq
    %v2353 = vshrl.u32 %v2352, 7
    %v2354 = vsub.s32 %v449, %v2353
    %v2355 = vrot.slane %v2277, %v2354
    %v2356 = vsel %vm454, %v2355, %v2351
    %v2357 = vlaneseq
    %v2358 = vshrl.u32 %v2357, 7
    %v2359 = vsub.s32 %v456, %v2358
    %v2360 = vrot.slane %v2278, %v2359
    %v2361 = vsel %vm461, %v2360, %v2356
    %v2362 = vlaneseq
    %v2363 = vshrl.u32 %v2362, 7
    %v2364 = vsub.s32 %v463, %v2363
    %v2365 = vrot.slane %v2279, %v2364
    %v2366 = vsel %vm468, %v2365, %v2361
    %v2367 = vlaneseq
    %v2368 = vshrl.u32 %v2367, 7
    %v2369 = vsub.s32 %v470, %v2368
    %v2370 = vrot.slane %v2280, %v2369
    %v2371 = vsel %vm475, %v2370, %v2366
    %v2372 = vlaneseq
    %v2373 = vshrl.u32 %v2372, 7
    %v2374 = vsub.s32 %v477, %v2373
    %v2375 = vrot.slane %v2281, %v2374
    %v2376 = vsel %vm482, %v2375, %v2371
    %v2377 = vlaneseq
    %v2378 = vshrl.u32 %v2377, 7
    %v2379 = vsub.s32 %v484, %v2378
    %v2380 = vrot.slane %v2282, %v2379
    %v2381 = vsel %vm489, %v2380, %v2376
    %v2382 = vlaneseq
    %v2383 = vshrl.u32 %v2382, 7
    %v2384 = vsub.s32 %v491, %v2383
    %v2385 = vrot.slane %v2283, %v2384
    %v2386 = vsel %vm496, %v2385, %v2381
    %v2387 = vlaneseq
    %v2388 = vshrl.u32 %v2387, 7
    %v2389 = vsub.s32 %v498, %v2388
    %v2390 = vrot.slane %v2284, %v2389
    %v2391 = vsel %vm503, %v2390, %v2386
    %v2392 = vlaneseq
    %v2393 = vshrl.u32 %v2392, 7
    %v2394 = vsub.s32 %v505, %v2393
    %v2395 = vrot.slane %v2285, %v2394
    %v2396 = vsel %vm510, %v2395, %v2391
    %v2397 = vlaneseq
    %v2398 = vshrl.u32 %v2397, 7
    %v2399 = vsub.s32 %v512, %v2398
    %v2400 = vrot.slane %v2286, %v2399
    %v2401 = vsel %vm517, %v2400, %v2396
    %v2402 = vlaneseq
    %v2403 = vshrl.u32 %v2402, 7
    %v2404 = vsub.s32 %v519, %v2403
    %v2405 = vrot.slane %v2287, %v2404
    %v2406 = vsel %vm524, %v2405, %v2401
    %v2407 = vlaneseq
    %v2408 = vshrl.u32 %v2407, 7
    %v2409 = vsub.s32 %v526, %v2408
    %v2410 = vrot.slane %v2288, %v2409
    %v2411 = vsel %vm531, %v2410, %v2406
    %v2412 = vlaneseq
    %v2413 = vshrl.u32 %v2412, 7
    %v2414 = vsub.s32 %v533, %v2413
    %v2415 = vrot.slane %v2289, %v2414
    %v2416 = vsel %vm538, %v2415, %v2411
    %v2417 = vlaneseq
    %v2418 = vshrl.u32 %v2417, 7
    %v2419 = vsub.s32 %v430, %v2418
    %v2420 = vrot.slane %v2290, %v2419
    %v2421 = vlaneseq
    %v2422 = vshrl.u32 %v2421, 7
    %v2423 = vsub.s32 %v435, %v2422
    %v2424 = vrot.slane %v2291, %v2423
    %v2425 = vsel %vm440, %v2424, %v2420
    %v2426 = vlaneseq
    %v2427 = vshrl.u32 %v2426, 7
    %v2428 = vsub.s32 %v442, %v2427
    %v2429 = vrot.slane %v2292, %v2428
    %v2430 = vsel %vm447, %v2429, %v2425
    %v2431 = vlaneseq
    %v2432 = vshrl.u32 %v2431, 7
    %v2433 = vsub.s32 %v449, %v2432
    %v2434 = vrot.slane %v2293, %v2433
    %v2435 = vsel %vm454, %v2434, %v2430
    %v2436 = vlaneseq
    %v2437 = vshrl.u32 %v2436, 7
    %v2438 = vsub.s32 %v456, %v2437
    %v2439 = vrot.slane %v2294, %v2438
    %v2440 = vsel %vm461, %v2439, %v2435
    %v2441 = vlaneseq
    %v2442 = vshrl.u32 %v2441, 7
    %v2443 = vsub.s32 %v463, %v2442
    %v2444 = vrot.slane %v2295, %v2443
    %v2445 = vsel %vm468, %v2444, %v2440
    %v2446 = vlaneseq
    %v2447 = vshrl.u32 %v2446, 7
    %v2448 = vsub.s32 %v470, %v2447
    %v2449 = vrot.slane %v2296, %v2448
    %v2450 = vsel %vm475, %v2449, %v2445
    %v2451 = vlaneseq
    %v2452 = vshrl.u32 %v2451, 7
    %v2453 = vsub.s32 %v477, %v2452
    %v2454 = vrot.slane %v2297, %v2453
    %v2455 = vsel %vm482, %v2454, %v2450
    %v2456 = vlaneseq
    %v2457 = vshrl.u32 %v2456, 7
    %v2458 = vsub.s32 %v484, %v2457
    %v2459 = vrot.slane %v2298, %v2458
    %v2460 = vsel %vm489, %v2459, %v2455
    %v2461 = vlaneseq
    %v2462 = vshrl.u32 %v2461, 7
    %v2463 = vsub.s32 %v491, %v2462
    %v2464 = vrot.slane %v2299, %v2463
    %v2465 = vsel %vm496, %v2464, %v2460
    %v2466 = vlaneseq
    %v2467 = vshrl.u32 %v2466, 7
    %v2468 = vsub.s32 %v498, %v2467
    %v2469 = vrot.slane %v2300, %v2468
    %v2470 = vsel %vm503, %v2469, %v2465
    %v2471 = vlaneseq
    %v2472 = vshrl.u32 %v2471, 7
    %v2473 = vsub.s32 %v505, %v2472
    %v2474 = vrot.slane %v2301, %v2473
    %v2475 = vsel %vm510, %v2474, %v2470
    %v2476 = vlaneseq
    %v2477 = vshrl.u32 %v2476, 7
    %v2478 = vsub.s32 %v512, %v2477
    %v2479 = vrot.slane %v2302, %v2478
    %v2480 = vsel %vm517, %v2479, %v2475
    %v2481 = vlaneseq
    %v2482 = vshrl.u32 %v2481, 7
    %v2483 = vsub.s32 %v519, %v2482
    %v2484 = vrot.slane %v2303, %v2483
    %v2485 = vsel %vm524, %v2484, %v2480
    %v2486 = vlaneseq
    %v2487 = vshrl.u32 %v2486, 7
    %v2488 = vsub.s32 %v526, %v2487
    %v2489 = vrot.slane %v2304, %v2488
    %v2490 = vsel %vm531, %v2489, %v2485
    %v2491 = vlaneseq
    %v2492 = vshrl.u32 %v2491, 7
    %v2493 = vsub.s32 %v533, %v2492
    %v2494 = vrot.slane %v2305, %v2493
    %v2495 = vsel %vm538, %v2494, %v2490
    %v2496 = vsel %vm941, %v2495, %v2416
    %2498 = vst [vmem:[#allocation2 + $0x68] sm:$0xc] %v2496
    %v2499 = vlaneseq
    %v2500 = vshrl.u32 %v2499, 7
    %v2501 = vsub.s32 2, %v2500
    %v2502 = vrot.slane %v1723, %v2501
    %v2503 = vlaneseq
    %v2504 = vshrl.u32 %v2503, 7
    %v2505 = vsub.s32 6, %v2504
    %v2506 = vrot.slane %v1723, %v2505
    %v2509 = vlaneseq
    %v2510 = vshrl.u32 %v2509, 7
    %v2511 = vsub.s32 2, %v2510
    %v2512 = vrot.slane %v2502, %v2511
    %v2513 = vlaneseq
    %v2514 = vshrl.u32 %v2513, 7
    %v2515 = vsub.s32 2, %v2514
    %v2516 = vrot.slane %v2506, %v2515
    %v2517 = vadd.f32 %v204, %v2512
    %v2518 = vadd.f32 %v205, %v2516
    %v2519 = vadd.f32 %v206, %v2512
    %v2520 = vadd.f32 %v207, %v2516
    %v2521 = vadd.f32 %v208, %v2512
    %v2522 = vadd.f32 %v209, %v2516
    %v2523 = vadd.f32 %v210, %v2512
    %v2524 = vadd.f32 %v211, %v2516
    %v2525 = vadd.f32 %v212, %v2512
    %v2526 = vadd.f32 %v213, %v2516
    %v2527 = vadd.f32 %v214, %v2512
    %v2528 = vadd.f32 %v215, %v2516
    %v2529 = vadd.f32 %v216, %v2512
    %v2530 = vadd.f32 %v217, %v2516
    %v2531 = vadd.f32 %v218, %v2512
    %v2532 = vadd.f32 %v219, %v2516
    %v2533 = vadd.f32 %v220, %v2512
    %v2534 = vadd.f32 %v221, %v2516
    %v2535 = vadd.f32 %v222, %v2512
    %v2536 = vadd.f32 %v223, %v2516
    %v2537 = vadd.f32 %v224, %v2512
    %v2538 = vadd.f32 %v225, %v2516
    %v2539 = vadd.f32 %v226, %v2512
    %v2540 = vadd.f32 %v227, %v2516
    %v2541 = vadd.f32 %v228, %v2512
    %v2542 = vadd.f32 %v229, %v2516
    %v2543 = vadd.f32 %v230, %v2512
    %v2544 = vadd.f32 %v231, %v2516
    %v2545 = vadd.f32 %v232, %v2512
    %v2546 = vadd.f32 %v233, %v2516
    %v2547 = vadd.f32 %v234, %v2512
    %v2548 = vadd.f32 %v235, %v2516
    %v2549 = vadd.f32 %v236, %v2512
    %v2550 = vadd.f32 %v237, %v2516
    %v2551 = vadd.f32 %v238, %v2512
    %v2552 = vadd.f32 %v239, %v2516
    %v2553 = vadd.f32 %v240, %v2512
    %v2554 = vadd.f32 %v241, %v2516
    %v2555 = vadd.f32 %v242, %v2512
    %v2556 = vadd.f32 %v243, %v2516
    %v2557 = vadd.f32 %v244, %v2512
    %v2558 = vadd.f32 %v245, %v2516
    %v2559 = vadd.f32 %v246, %v2512
    %v2560 = vadd.f32 %v247, %v2516
    %v2561 = vadd.f32 %v248, %v2512
    %v2562 = vadd.f32 %v249, %v2516
    %v2563 = vadd.f32 %v250, %v2512
    %v2564 = vadd.f32 %v251, %v2516
    %v2565 = vadd.f32 %v252, %v2512
    %v2566 = vadd.f32 %v253, %v2516
    %v2567 = vadd.f32 %v254, %v2512
    %v2568 = vadd.f32 %v255, %v2516
    %v2569 = vadd.f32 %v256, %v2512
    %v2570 = vadd.f32 %v257, %v2516
    %v2571 = vadd.f32 %v258, %v2512
    %v2572 = vadd.f32 %v259, %v2516
    %v2573 = vadd.f32 %v260, %v2512
    %v2574 = vadd.f32 %v261, %v2516
    %v2575 = vadd.f32 %v262, %v2512
    %v2576 = vadd.f32 %v263, %v2516
    %v2577 = vadd.f32 %v264, %v2512
    %v2578 = vadd.f32 %v265, %v2516
    %v2579 = vadd.f32 %v266, %v2512
    %v2580 = vadd.f32 %v267, %v2516
    %v2581 = vmax.f32 %v2517, %v2518
    %2582 = vmax.xlane.f32.xlu0 %v2581
    %v2583 = vpop.xlane.xlu0 %2582
    %v2584 = vmax.f32 %v2519, %v2520
    %2585 = vmax.xlane.f32.xlu0 %v2584
    %v2586 = vpop.xlane.xlu0 %2585
    %v2587 = vmax.f32 %v2521, %v2522
    %2588 = vmax.xlane.f32.xlu0 %v2587
    %v2589 = vpop.xlane.xlu0 %2588
    %v2590 = vmax.f32 %v2523, %v2524
    %2591 = vmax.xlane.f32.xlu0 %v2590
    %v2592 = vpop.xlane.xlu0 %2591
    %v2593 = vmax.f32 %v2525, %v2526
    %2594 = vmax.xlane.f32.xlu0 %v2593
    %v2595 = vpop.xlane.xlu0 %2594
    %v2596 = vmax.f32 %v2527, %v2528
    %2597 = vmax.xlane.f32.xlu0 %v2596
    %v2598 = vpop.xlane.xlu0 %2597
    %v2599 = vmax.f32 %v2529, %v2530
    %2600 = vmax.xlane.f32.xlu0 %v2599
    %v2601 = vpop.xlane.xlu0 %2600
    %v2602 = vmax.f32 %v2531, %v2532
    %2603 = vmax.xlane.f32.xlu0 %v2602
    %v2604 = vpop.xlane.xlu0 %2603
    %v2605 = vmax.f32 %v2533, %v2534
    %2606 = vmax.xlane.f32.xlu0 %v2605
    %v2607 = vpop.xlane.xlu0 %2606
    %v2608 = vmax.f32 %v2535, %v2536
    %2609 = vmax.xlane.f32.xlu0 %v2608
    %v2610 = vpop.xlane.xlu0 %2609
    %v2611 = vmax.f32 %v2537, %v2538
    %2612 = vmax.xlane.f32.xlu0 %v2611
    %v2613 = vpop.xlane.xlu0 %2612
    %v2614 = vmax.f32 %v2539, %v2540
    %2615 = vmax.xlane.f32.xlu0 %v2614
    %v2616 = vpop.xlane.xlu0 %2615
    %v2617 = vmax.f32 %v2541, %v2542
    %2618 = vmax.xlane.f32.xlu0 %v2617
    %v2619 = vpop.xlane.xlu0 %2618
    %v2620 = vmax.f32 %v2543, %v2544
    %2621 = vmax.xlane.f32.xlu0 %v2620
    %v2622 = vpop.xlane.xlu0 %2621
    %v2623 = vmax.f32 %v2545, %v2546
    %2624 = vmax.xlane.f32.xlu0 %v2623
    %v2625 = vpop.xlane.xlu0 %2624
    %v2626 = vmax.f32 %v2547, %v2548
    %2627 = vmax.xlane.f32.xlu0 %v2626
    %v2628 = vpop.xlane.xlu0 %2627
    %v2629 = vmax.f32 %v2549, %v2550
    %2630 = vmax.xlane.f32.xlu0 %v2629
    %v2631 = vpop.xlane.xlu0 %2630
    %v2632 = vmax.f32 %v2551, %v2552
    %2633 = vmax.xlane.f32.xlu0 %v2632
    %v2634 = vpop.xlane.xlu0 %2633
    %v2635 = vmax.f32 %v2553, %v2554
    %2636 = vmax.xlane.f32.xlu0 %v2635
    %v2637 = vpop.xlane.xlu0 %2636
    %v2638 = vmax.f32 %v2555, %v2556
    %2639 = vmax.xlane.f32.xlu0 %v2638
    %v2640 = vpop.xlane.xlu0 %2639
    %v2641 = vmax.f32 %v2557, %v2558
    %2642 = vmax.xlane.f32.xlu0 %v2641
    %v2643 = vpop.xlane.xlu0 %2642
    %v2644 = vmax.f32 %v2559, %v2560
    %2645 = vmax.xlane.f32.xlu0 %v2644
    %v2646 = vpop.xlane.xlu0 %2645
    %v2647 = vmax.f32 %v2561, %v2562
    %2648 = vmax.xlane.f32.xlu0 %v2647
    %v2649 = vpop.xlane.xlu0 %2648
    %v2650 = vmax.f32 %v2563, %v2564
    %2651 = vmax.xlane.f32.xlu0 %v2650
    %v2652 = vpop.xlane.xlu0 %2651
    %v2653 = vmax.f32 %v2565, %v2566
    %2654 = vmax.xlane.f32.xlu0 %v2653
    %v2655 = vpop.xlane.xlu0 %2654
    %v2656 = vmax.f32 %v2567, %v2568
    %2657 = vmax.xlane.f32.xlu0 %v2656
    %v2658 = vpop.xlane.xlu0 %2657
    %v2659 = vmax.f32 %v2569, %v2570
    %2660 = vmax.xlane.f32.xlu0 %v2659
    %v2661 = vpop.xlane.xlu0 %2660
    %v2662 = vmax.f32 %v2571, %v2572
    %2663 = vmax.xlane.f32.xlu0 %v2662
    %v2664 = vpop.xlane.xlu0 %2663
    %v2665 = vmax.f32 %v2573, %v2574
    %2666 = vmax.xlane.f32.xlu0 %v2665
    %v2667 = vpop.xlane.xlu0 %2666
    %v2668 = vmax.f32 %v2575, %v2576
    %2669 = vmax.xlane.f32.xlu0 %v2668
    %v2670 = vpop.xlane.xlu0 %2669
    %v2671 = vmax.f32 %v2577, %v2578
    %2672 = vmax.xlane.f32.xlu0 %v2671
    %v2673 = vpop.xlane.xlu0 %2672
    %v2674 = vmax.f32 %v2579, %v2580
    %2675 = vmax.xlane.f32.xlu0 %v2674
    %v2676 = vpop.xlane.xlu0 %2675
    %v2677 = vmax.f32 %v2583, 0.0
    %v2678 = vmax.f32 %v2586, 0.0
    %v2679 = vmax.f32 %v2589, 0.0
    %v2680 = vmax.f32 %v2592, 0.0
    %v2681 = vmax.f32 %v2595, 0.0
    %v2682 = vmax.f32 %v2598, 0.0
    %v2683 = vmax.f32 %v2601, 0.0
    %v2684 = vmax.f32 %v2604, 0.0
    %v2685 = vmax.f32 %v2607, 0.0
    %v2686 = vmax.f32 %v2610, 0.0
    %v2687 = vmax.f32 %v2613, 0.0
    %v2688 = vmax.f32 %v2616, 0.0
    %v2689 = vmax.f32 %v2619, 0.0
    %v2690 = vmax.f32 %v2622, 0.0
    %v2691 = vmax.f32 %v2625, 0.0
    %v2692 = vmax.f32 %v2628, 0.0
    %v2693 = vmax.f32 %v2631, 0.0
    %v2694 = vmax.f32 %v2634, 0.0
    %v2695 = vmax.f32 %v2637, 0.0
    %v2696 = vmax.f32 %v2640, 0.0
    %v2697 = vmax.f32 %v2643, 0.0
    %v2698 = vmax.f32 %v2646, 0.0
    %v2699 = vmax.f32 %v2649, 0.0
    %v2700 = vmax.f32 %v2652, 0.0
    %v2701 = vmax.f32 %v2655, 0.0
    %v2702 = vmax.f32 %v2658, 0.0
    %v2703 = vmax.f32 %v2661, 0.0
    %v2704 = vmax.f32 %v2664, 0.0
    %v2705 = vmax.f32 %v2667, 0.0
    %v2706 = vmax.f32 %v2670, 0.0
    %v2707 = vmax.f32 %v2673, 0.0
    %v2708 = vmax.f32 %v2676, 0.0
    %v2741 = vlaneseq
    %v2742 = vshrl.u32 %v2741, 7
    %v2743 = vsub.s32 %v430, %v2742
    %v2744 = vrot.slane %v2677, %v2743
    %v2745 = vlaneseq
    %v2746 = vshrl.u32 %v2745, 7
    %v2747 = vsub.s32 %v435, %v2746
    %v2748 = vrot.slane %v2678, %v2747
    %v2749 = vsel %vm440, %v2748, %v2744
    %v2750 = vlaneseq
    %v2751 = vshrl.u32 %v2750, 7
    %v2752 = vsub.s32 %v442, %v2751
    %v2753 = vrot.slane %v2679, %v2752
    %v2754 = vsel %vm447, %v2753, %v2749
    %v2755 = vlaneseq
    %v2756 = vshrl.u32 %v2755, 7
    %v2757 = vsub.s32 %v449, %v2756
    %v2758 = vrot.slane %v2680, %v2757
    %v2759 = vsel %vm454, %v2758, %v2754
    %v2760 = vlaneseq
    %v2761 = vshrl.u32 %v2760, 7
    %v2762 = vsub.s32 %v456, %v2761
    %v2763 = vrot.slane %v2681, %v2762
    %v2764 = vsel %vm461, %v2763, %v2759
    %v2765 = vlaneseq
    %v2766 = vshrl.u32 %v2765, 7
    %v2767 = vsub.s32 %v463, %v2766
    %v2768 = vrot.slane %v2682, %v2767
    %v2769 = vsel %vm468, %v2768, %v2764
    %v2770 = vlaneseq
    %v2771 = vshrl.u32 %v2770, 7
    %v2772 = vsub.s32 %v470, %v2771
    %v2773 = vrot.slane %v2683, %v2772
    %v2774 = vsel %vm475, %v2773, %v2769
    %v2775 = vlaneseq
    %v2776 = vshrl.u32 %v2775, 7
    %v2777 = vsub.s32 %v477, %v2776
    %v2778 = vrot.slane %v2684, %v2777
    %v2779 = vsel %vm482, %v2778, %v2774
    %v2780 = vlaneseq
    %v2781 = vshrl.u32 %v2780, 7
    %v2782 = vsub.s32 %v484, %v2781
    %v2783 = vrot.slane %v2685, %v2782
    %v2784 = vsel %vm489, %v2783, %v2779
    %v2785 = vlaneseq
    %v2786 = vshrl.u32 %v2785, 7
    %v2787 = vsub.s32 %v491, %v2786
    %v2788 = vrot.slane %v2686, %v2787
    %v2789 = vsel %vm496, %v2788, %v2784
    %v2790 = vlaneseq
    %v2791 = vshrl.u32 %v2790, 7
    %v2792 = vsub.s32 %v498, %v2791
    %v2793 = vrot.slane %v2687, %v2792
    %v2794 = vsel %vm503, %v2793, %v2789
    %v2795 = vlaneseq
    %v2796 = vshrl.u32 %v2795, 7
    %v2797 = vsub.s32 %v505, %v2796
    %v2798 = vrot.slane %v2688, %v2797
    %v2799 = vsel %vm510, %v2798, %v2794
    %v2800 = vlaneseq
    %v2801 = vshrl.u32 %v2800, 7
    %v2802 = vsub.s32 %v512, %v2801
    %v2803 = vrot.slane %v2689, %v2802
    %v2804 = vsel %vm517, %v2803, %v2799
    %v2805 = vlaneseq
    %v2806 = vshrl.u32 %v2805, 7
    %v2807 = vsub.s32 %v519, %v2806
    %v2808 = vrot.slane %v2690, %v2807
    %v2809 = vsel %vm524, %v2808, %v2804
    %v2810 = vlaneseq
    %v2811 = vshrl.u32 %v2810, 7
    %v2812 = vsub.s32 %v526, %v2811
    %v2813 = vrot.slane %v2691, %v2812
    %v2814 = vsel %vm531, %v2813, %v2809
    %v2815 = vlaneseq
    %v2816 = vshrl.u32 %v2815, 7
    %v2817 = vsub.s32 %v533, %v2816
    %v2818 = vrot.slane %v2692, %v2817
    %v2819 = vsel %vm538, %v2818, %v2814
    %v2820 = vlaneseq
    %v2821 = vshrl.u32 %v2820, 7
    %v2822 = vsub.s32 %v430, %v2821
    %v2823 = vrot.slane %v2693, %v2822
    %v2824 = vlaneseq
    %v2825 = vshrl.u32 %v2824, 7
    %v2826 = vsub.s32 %v435, %v2825
    %v2827 = vrot.slane %v2694, %v2826
    %v2828 = vsel %vm440, %v2827, %v2823
    %v2829 = vlaneseq
    %v2830 = vshrl.u32 %v2829, 7
    %v2831 = vsub.s32 %v442, %v2830
    %v2832 = vrot.slane %v2695, %v2831
    %v2833 = vsel %vm447, %v2832, %v2828
    %v2834 = vlaneseq
    %v2835 = vshrl.u32 %v2834, 7
    %v2836 = vsub.s32 %v449, %v2835
    %v2837 = vrot.slane %v2696, %v2836
    %v2838 = vsel %vm454, %v2837, %v2833
    %v2839 = vlaneseq
    %v2840 = vshrl.u32 %v2839, 7
    %v2841 = vsub.s32 %v456, %v2840
    %v2842 = vrot.slane %v2697, %v2841
    %v2843 = vsel %vm461, %v2842, %v2838
    %v2844 = vlaneseq
    %v2845 = vshrl.u32 %v2844, 7
    %v2846 = vsub.s32 %v463, %v2845
    %v2847 = vrot.slane %v2698, %v2846
    %v2848 = vsel %vm468, %v2847, %v2843
    %v2849 = vlaneseq
    %v2850 = vshrl.u32 %v2849, 7
    %v2851 = vsub.s32 %v470, %v2850
    %v2852 = vrot.slane %v2699, %v2851
    %v2853 = vsel %vm475, %v2852, %v2848
    %v2854 = vlaneseq
    %v2855 = vshrl.u32 %v2854, 7
    %v2856 = vsub.s32 %v477, %v2855
    %v2857 = vrot.slane %v2700, %v2856
    %v2858 = vsel %vm482, %v2857, %v2853
    %v2859 = vlaneseq
    %v2860 = vshrl.u32 %v2859, 7
    %v2861 = vsub.s32 %v484, %v2860
    %v2862 = vrot.slane %v2701, %v2861
    %v2863 = vsel %vm489, %v2862, %v2858
    %v2864 = vlaneseq
    %v2865 = vshrl.u32 %v2864, 7
    %v2866 = vsub.s32 %v491, %v2865
    %v2867 = vrot.slane %v2702, %v2866
    %v2868 = vsel %vm496, %v2867, %v2863
    %v2869 = vlaneseq
    %v2870 = vshrl.u32 %v2869, 7
    %v2871 = vsub.s32 %v498, %v2870
    %v2872 = vrot.slane %v2703, %v2871
    %v2873 = vsel %vm503, %v2872, %v2868
    %v2874 = vlaneseq
    %v2875 = vshrl.u32 %v2874, 7
    %v2876 = vsub.s32 %v505, %v2875
    %v2877 = vrot.slane %v2704, %v2876
    %v2878 = vsel %vm510, %v2877, %v2873
    %v2879 = vlaneseq
    %v2880 = vshrl.u32 %v2879, 7
    %v2881 = vsub.s32 %v512, %v2880
    %v2882 = vrot.slane %v2705, %v2881
    %v2883 = vsel %vm517, %v2882, %v2878
    %v2884 = vlaneseq
    %v2885 = vshrl.u32 %v2884, 7
    %v2886 = vsub.s32 %v519, %v2885
    %v2887 = vrot.slane %v2706, %v2886
    %v2888 = vsel %vm524, %v2887, %v2883
    %v2889 = vlaneseq
    %v2890 = vshrl.u32 %v2889, 7
    %v2891 = vsub.s32 %v526, %v2890
    %v2892 = vrot.slane %v2707, %v2891
    %v2893 = vsel %vm531, %v2892, %v2888
    %v2894 = vlaneseq
    %v2895 = vshrl.u32 %v2894, 7
    %v2896 = vsub.s32 %v533, %v2895
    %v2897 = vrot.slane %v2708, %v2896
    %v2898 = vsel %vm538, %v2897, %v2893
    %v2899 = vsel %vm1315, %v2898, %v2819
    %2901 = vst [vmem:[#allocation2 + $0x70] sm:$0x30] %v2899
    %v2902 = vlaneseq
    %v2903 = vshrl.u32 %v2902, 7
    %v2904 = vsub.s32 3, %v2903
    %v2905 = vrot.slane %v1723, %v2904
    %v2906 = vlaneseq
    %v2907 = vshrl.u32 %v2906, 7
    %v2908 = vsub.s32 7, %v2907
    %v2909 = vrot.slane %v1723, %v2908
    %v2912 = vlaneseq
    %v2913 = vshrl.u32 %v2912, 7
    %v2914 = vsub.s32 3, %v2913
    %v2915 = vrot.slane %v2905, %v2914
    %v2916 = vlaneseq
    %v2917 = vshrl.u32 %v2916, 7
    %v2918 = vsub.s32 3, %v2917
    %v2919 = vrot.slane %v2909, %v2918
    %v2920 = vadd.f32 %v204, %v2915
    %v2921 = vadd.f32 %v205, %v2919
    %v2922 = vadd.f32 %v206, %v2915
    %v2923 = vadd.f32 %v207, %v2919
    %v2924 = vadd.f32 %v208, %v2915
    %v2925 = vadd.f32 %v209, %v2919
    %v2926 = vadd.f32 %v210, %v2915
    %v2927 = vadd.f32 %v211, %v2919
    %v2928 = vadd.f32 %v212, %v2915
    %v2929 = vadd.f32 %v213, %v2919
    %v2930 = vadd.f32 %v214, %v2915
    %v2931 = vadd.f32 %v215, %v2919
    %v2932 = vadd.f32 %v216, %v2915
    %v2933 = vadd.f32 %v217, %v2919
    %v2934 = vadd.f32 %v218, %v2915
    %v2935 = vadd.f32 %v219, %v2919
    %v2936 = vadd.f32 %v220, %v2915
    %v2937 = vadd.f32 %v221, %v2919
    %v2938 = vadd.f32 %v222, %v2915
    %v2939 = vadd.f32 %v223, %v2919
    %v2940 = vadd.f32 %v224, %v2915
    %v2941 = vadd.f32 %v225, %v2919
    %v2942 = vadd.f32 %v226, %v2915
    %v2943 = vadd.f32 %v227, %v2919
    %v2944 = vadd.f32 %v228, %v2915
    %v2945 = vadd.f32 %v229, %v2919
    %v2946 = vadd.f32 %v230, %v2915
    %v2947 = vadd.f32 %v231, %v2919
    %v2948 = vadd.f32 %v232, %v2915
    %v2949 = vadd.f32 %v233, %v2919
    %v2950 = vadd.f32 %v234, %v2915
    %v2951 = vadd.f32 %v235, %v2919
    %v2952 = vadd.f32 %v236, %v2915
    %v2953 = vadd.f32 %v237, %v2919
    %v2954 = vadd.f32 %v238, %v2915
    %v2955 = vadd.f32 %v239, %v2919
    %v2956 = vadd.f32 %v240, %v2915
    %v2957 = vadd.f32 %v241, %v2919
    %v2958 = vadd.f32 %v242, %v2915
    %v2959 = vadd.f32 %v243, %v2919
    %v2960 = vadd.f32 %v244, %v2915
    %v2961 = vadd.f32 %v245, %v2919
    %v2962 = vadd.f32 %v246, %v2915
    %v2963 = vadd.f32 %v247, %v2919
    %v2964 = vadd.f32 %v248, %v2915
    %v2965 = vadd.f32 %v249, %v2919
    %v2966 = vadd.f32 %v250, %v2915
    %v2967 = vadd.f32 %v251, %v2919
    %v2968 = vadd.f32 %v252, %v2915
    %v2969 = vadd.f32 %v253, %v2919
    %v2970 = vadd.f32 %v254, %v2915
    %v2971 = vadd.f32 %v255, %v2919
    %v2972 = vadd.f32 %v256, %v2915
    %v2973 = vadd.f32 %v257, %v2919
    %v2974 = vadd.f32 %v258, %v2915
    %v2975 = vadd.f32 %v259, %v2919
    %v2976 = vadd.f32 %v260, %v2915
    %v2977 = vadd.f32 %v261, %v2919
    %v2978 = vadd.f32 %v262, %v2915
    %v2979 = vadd.f32 %v263, %v2919
    %v2980 = vadd.f32 %v264, %v2915
    %v2981 = vadd.f32 %v265, %v2919
    %v2982 = vadd.f32 %v266, %v2915
    %v2983 = vadd.f32 %v267, %v2919
    %v2984 = vmax.f32 %v2920, %v2921
    %2985 = vmax.xlane.f32.xlu0 %v2984
    %v2986 = vpop.xlane.xlu0 %2985
    %v2987 = vmax.f32 %v2922, %v2923
    %2988 = vmax.xlane.f32.xlu0 %v2987
    %v2989 = vpop.xlane.xlu0 %2988
    %v2990 = vmax.f32 %v2924, %v2925
    %2991 = vmax.xlane.f32.xlu0 %v2990
    %v2992 = vpop.xlane.xlu0 %2991
    %v2993 = vmax.f32 %v2926, %v2927
    %2994 = vmax.xlane.f32.xlu0 %v2993
    %v2995 = vpop.xlane.xlu0 %2994
    %v2996 = vmax.f32 %v2928, %v2929
    %2997 = vmax.xlane.f32.xlu0 %v2996
    %v2998 = vpop.xlane.xlu0 %2997
    %v2999 = vmax.f32 %v2930, %v2931
    %3000 = vmax.xlane.f32.xlu0 %v2999
    %v3001 = vpop.xlane.xlu0 %3000
    %v3002 = vmax.f32 %v2932, %v2933
    %3003 = vmax.xlane.f32.xlu0 %v3002
    %v3004 = vpop.xlane.xlu0 %3003
    %v3005 = vmax.f32 %v2934, %v2935
    %3006 = vmax.xlane.f32.xlu0 %v3005
    %v3007 = vpop.xlane.xlu0 %3006
    %v3008 = vmax.f32 %v2936, %v2937
    %3009 = vmax.xlane.f32.xlu0 %v3008
    %v3010 = vpop.xlane.xlu0 %3009
    %v3011 = vmax.f32 %v2938, %v2939
    %3012 = vmax.xlane.f32.xlu0 %v3011
    %v3013 = vpop.xlane.xlu0 %3012
    %v3014 = vmax.f32 %v2940, %v2941
    %3015 = vmax.xlane.f32.xlu0 %v3014
    %v3016 = vpop.xlane.xlu0 %3015
    %v3017 = vmax.f32 %v2942, %v2943
    %3018 = vmax.xlane.f32.xlu0 %v3017
    %v3019 = vpop.xlane.xlu0 %3018
    %v3020 = vmax.f32 %v2944, %v2945
    %3021 = vmax.xlane.f32.xlu0 %v3020
    %v3022 = vpop.xlane.xlu0 %3021
    %v3023 = vmax.f32 %v2946, %v2947
    %3024 = vmax.xlane.f32.xlu0 %v3023
    %v3025 = vpop.xlane.xlu0 %3024
    %v3026 = vmax.f32 %v2948, %v2949
    %3027 = vmax.xlane.f32.xlu0 %v3026
    %v3028 = vpop.xlane.xlu0 %3027
    %v3029 = vmax.f32 %v2950, %v2951
    %3030 = vmax.xlane.f32.xlu0 %v3029
    %v3031 = vpop.xlane.xlu0 %3030
    %v3032 = vmax.f32 %v2952, %v2953
    %3033 = vmax.xlane.f32.xlu0 %v3032
    %v3034 = vpop.xlane.xlu0 %3033
    %v3035 = vmax.f32 %v2954, %v2955
    %3036 = vmax.xlane.f32.xlu0 %v3035
    %v3037 = vpop.xlane.xlu0 %3036
    %v3038 = vmax.f32 %v2956, %v2957
    %3039 = vmax.xlane.f32.xlu0 %v3038
    %v3040 = vpop.xlane.xlu0 %3039
    %v3041 = vmax.f32 %v2958, %v2959
    %3042 = vmax.xlane.f32.xlu0 %v3041
    %v3043 = vpop.xlane.xlu0 %3042
    %v3044 = vmax.f32 %v2960, %v2961
    %3045 = vmax.xlane.f32.xlu0 %v3044
    %v3046 = vpop.xlane.xlu0 %3045
    %v3047 = vmax.f32 %v2962, %v2963
    %3048 = vmax.xlane.f32.xlu0 %v3047
    %v3049 = vpop.xlane.xlu0 %3048
    %v3050 = vmax.f32 %v2964, %v2965
    %3051 = vmax.xlane.f32.xlu0 %v3050
    %v3052 = vpop.xlane.xlu0 %3051
    %v3053 = vmax.f32 %v2966, %v2967
    %3054 = vmax.xlane.f32.xlu0 %v3053
    %v3055 = vpop.xlane.xlu0 %3054
    %v3056 = vmax.f32 %v2968, %v2969
    %3057 = vmax.xlane.f32.xlu0 %v3056
    %v3058 = vpop.xlane.xlu0 %3057
    %v3059 = vmax.f32 %v2970, %v2971
    %3060 = vmax.xlane.f32.xlu0 %v3059
    %v3061 = vpop.xlane.xlu0 %3060
    %v3062 = vmax.f32 %v2972, %v2973
    %3063 = vmax.xlane.f32.xlu0 %v3062
    %v3064 = vpop.xlane.xlu0 %3063
    %v3065 = vmax.f32 %v2974, %v2975
    %3066 = vmax.xlane.f32.xlu0 %v3065
    %v3067 = vpop.xlane.xlu0 %3066
    %v3068 = vmax.f32 %v2976, %v2977
    %3069 = vmax.xlane.f32.xlu0 %v3068
    %v3070 = vpop.xlane.xlu0 %3069
    %v3071 = vmax.f32 %v2978, %v2979
    %3072 = vmax.xlane.f32.xlu0 %v3071
    %v3073 = vpop.xlane.xlu0 %3072
    %v3074 = vmax.f32 %v2980, %v2981
    %3075 = vmax.xlane.f32.xlu0 %v3074
    %v3076 = vpop.xlane.xlu0 %3075
    %v3077 = vmax.f32 %v2982, %v2983
    %3078 = vmax.xlane.f32.xlu0 %v3077
    %v3079 = vpop.xlane.xlu0 %3078
    %v3080 = vmax.f32 %v2986, 0.0
    %v3081 = vmax.f32 %v2989, 0.0
    %v3082 = vmax.f32 %v2992, 0.0
    %v3083 = vmax.f32 %v2995, 0.0
    %v3084 = vmax.f32 %v2998, 0.0
    %v3085 = vmax.f32 %v3001, 0.0
    %v3086 = vmax.f32 %v3004, 0.0
    %v3087 = vmax.f32 %v3007, 0.0
    %v3088 = vmax.f32 %v3010, 0.0
    %v3089 = vmax.f32 %v3013, 0.0
    %v3090 = vmax.f32 %v3016, 0.0
    %v3091 = vmax.f32 %v3019, 0.0
    %v3092 = vmax.f32 %v3022, 0.0
    %v3093 = vmax.f32 %v3025, 0.0
    %v3094 = vmax.f32 %v3028, 0.0
    %v3095 = vmax.f32 %v3031, 0.0
    %v3096 = vmax.f32 %v3034, 0.0
    %v3097 = vmax.f32 %v3037, 0.0
    %v3098 = vmax.f32 %v3040, 0.0
    %v3099 = vmax.f32 %v3043, 0.0
    %v3100 = vmax.f32 %v3046, 0.0
    %v3101 = vmax.f32 %v3049, 0.0
    %v3102 = vmax.f32 %v3052, 0.0
    %v3103 = vmax.f32 %v3055, 0.0
    %v3104 = vmax.f32 %v3058, 0.0
    %v3105 = vmax.f32 %v3061, 0.0
    %v3106 = vmax.f32 %v3064, 0.0
    %v3107 = vmax.f32 %v3067, 0.0
    %v3108 = vmax.f32 %v3070, 0.0
    %v3109 = vmax.f32 %v3073, 0.0
    %v3110 = vmax.f32 %v3076, 0.0
    %v3111 = vmax.f32 %v3079, 0.0
    %v3144 = vlaneseq
    %v3145 = vshrl.u32 %v3144, 7
    %v3146 = vsub.s32 %v430, %v3145
    %v3147 = vrot.slane %v3080, %v3146
    %v3148 = vlaneseq
    %v3149 = vshrl.u32 %v3148, 7
    %v3150 = vsub.s32 %v435, %v3149
    %v3151 = vrot.slane %v3081, %v3150
    %v3152 = vsel %vm440, %v3151, %v3147
    %v3153 = vlaneseq
    %v3154 = vshrl.u32 %v3153, 7
    %v3155 = vsub.s32 %v442, %v3154
    %v3156 = vrot.slane %v3082, %v3155
    %v3157 = vsel %vm447, %v3156, %v3152
    %v3158 = vlaneseq
    %v3159 = vshrl.u32 %v3158, 7
    %v3160 = vsub.s32 %v449, %v3159
    %v3161 = vrot.slane %v3083, %v3160
    %v3162 = vsel %vm454, %v3161, %v3157
    %v3163 = vlaneseq
    %v3164 = vshrl.u32 %v3163, 7
    %v3165 = vsub.s32 %v456, %v3164
    %v3166 = vrot.slane %v3084, %v3165
    %v3167 = vsel %vm461, %v3166, %v3162
    %v3168 = vlaneseq
    %v3169 = vshrl.u32 %v3168, 7
    %v3170 = vsub.s32 %v463, %v3169
    %v3171 = vrot.slane %v3085, %v3170
    %v3172 = vsel %vm468, %v3171, %v3167
    %v3173 = vlaneseq
    %v3174 = vshrl.u32 %v3173, 7
    %v3175 = vsub.s32 %v470, %v3174
    %v3176 = vrot.slane %v3086, %v3175
    %v3177 = vsel %vm475, %v3176, %v3172
    %v3178 = vlaneseq
    %v3179 = vshrl.u32 %v3178, 7
    %v3180 = vsub.s32 %v477, %v3179
    %v3181 = vrot.slane %v3087, %v3180
    %v3182 = vsel %vm482, %v3181, %v3177
    %v3183 = vlaneseq
    %v3184 = vshrl.u32 %v3183, 7
    %v3185 = vsub.s32 %v484, %v3184
    %v3186 = vrot.slane %v3088, %v3185
    %v3187 = vsel %vm489, %v3186, %v3182
    %v3188 = vlaneseq
    %v3189 = vshrl.u32 %v3188, 7
    %v3190 = vsub.s32 %v491, %v3189
    %v3191 = vrot.slane %v3089, %v3190
    %v3192 = vsel %vm496, %v3191, %v3187
    %v3193 = vlaneseq
    %v3194 = vshrl.u32 %v3193, 7
    %v3195 = vsub.s32 %v498, %v3194
    %v3196 = vrot.slane %v3090, %v3195
    %v3197 = vsel %vm503, %v3196, %v3192
    %v3198 = vlaneseq
    %v3199 = vshrl.u32 %v3198, 7
    %v3200 = vsub.s32 %v505, %v3199
    %v3201 = vrot.slane %v3091, %v3200
    %v3202 = vsel %vm510, %v3201, %v3197
    %v3203 = vlaneseq
    %v3204 = vshrl.u32 %v3203, 7
    %v3205 = vsub.s32 %v512, %v3204
    %v3206 = vrot.slane %v3092, %v3205
    %v3207 = vsel %vm517, %v3206, %v3202
    %v3208 = vlaneseq
    %v3209 = vshrl.u32 %v3208, 7
    %v3210 = vsub.s32 %v519, %v3209
    %v3211 = vrot.slane %v3093, %v3210
    %v3212 = vsel %vm524, %v3211, %v3207
    %v3213 = vlaneseq
    %v3214 = vshrl.u32 %v3213, 7
    %v3215 = vsub.s32 %v526, %v3214
    %v3216 = vrot.slane %v3094, %v3215
    %v3217 = vsel %vm531, %v3216, %v3212
    %v3218 = vlaneseq
    %v3219 = vshrl.u32 %v3218, 7
    %v3220 = vsub.s32 %v533, %v3219
    %v3221 = vrot.slane %v3095, %v3220
    %v3222 = vsel %vm538, %v3221, %v3217
    %v3223 = vlaneseq
    %v3224 = vshrl.u32 %v3223, 7
    %v3225 = vsub.s32 %v430, %v3224
    %v3226 = vrot.slane %v3096, %v3225
    %v3227 = vlaneseq
    %v3228 = vshrl.u32 %v3227, 7
    %v3229 = vsub.s32 %v435, %v3228
    %v3230 = vrot.slane %v3097, %v3229
    %v3231 = vsel %vm440, %v3230, %v3226
    %v3232 = vlaneseq
    %v3233 = vshrl.u32 %v3232, 7
    %v3234 = vsub.s32 %v442, %v3233
    %v3235 = vrot.slane %v3098, %v3234
    %v3236 = vsel %vm447, %v3235, %v3231
    %v3237 = vlaneseq
    %v3238 = vshrl.u32 %v3237, 7
    %v3239 = vsub.s32 %v449, %v3238
    %v3240 = vrot.slane %v3099, %v3239
    %v3241 = vsel %vm454, %v3240, %v3236
    %v3242 = vlaneseq
    %v3243 = vshrl.u32 %v3242, 7
    %v3244 = vsub.s32 %v456, %v3243
    %v3245 = vrot.slane %v3100, %v3244
    %v3246 = vsel %vm461, %v3245, %v3241
    %v3247 = vlaneseq
    %v3248 = vshrl.u32 %v3247, 7
    %v3249 = vsub.s32 %v463, %v3248
    %v3250 = vrot.slane %v3101, %v3249
    %v3251 = vsel %vm468, %v3250, %v3246
    %v3252 = vlaneseq
    %v3253 = vshrl.u32 %v3252, 7
    %v3254 = vsub.s32 %v470, %v3253
    %v3255 = vrot.slane %v3102, %v3254
    %v3256 = vsel %vm475, %v3255, %v3251
    %v3257 = vlaneseq
    %v3258 = vshrl.u32 %v3257, 7
    %v3259 = vsub.s32 %v477, %v3258
    %v3260 = vrot.slane %v3103, %v3259
    %v3261 = vsel %vm482, %v3260, %v3256
    %v3262 = vlaneseq
    %v3263 = vshrl.u32 %v3262, 7
    %v3264 = vsub.s32 %v484, %v3263
    %v3265 = vrot.slane %v3104, %v3264
    %v3266 = vsel %vm489, %v3265, %v3261
    %v3267 = vlaneseq
    %v3268 = vshrl.u32 %v3267, 7
    %v3269 = vsub.s32 %v491, %v3268
    %v3270 = vrot.slane %v3105, %v3269
    %v3271 = vsel %vm496, %v3270, %v3266
    %v3272 = vlaneseq
    %v3273 = vshrl.u32 %v3272, 7
    %v3274 = vsub.s32 %v498, %v3273
    %v3275 = vrot.slane %v3106, %v3274
    %v3276 = vsel %vm503, %v3275, %v3271
    %v3277 = vlaneseq
    %v3278 = vshrl.u32 %v3277, 7
    %v3279 = vsub.s32 %v505, %v3278
    %v3280 = vrot.slane %v3107, %v3279
    %v3281 = vsel %vm510, %v3280, %v3276
    %v3282 = vlaneseq
    %v3283 = vshrl.u32 %v3282, 7
    %v3284 = vsub.s32 %v512, %v3283
    %v3285 = vrot.slane %v3108, %v3284
    %v3286 = vsel %vm517, %v3285, %v3281
    %v3287 = vlaneseq
    %v3288 = vshrl.u32 %v3287, 7
    %v3289 = vsub.s32 %v519, %v3288
    %v3290 = vrot.slane %v3109, %v3289
    %v3291 = vsel %vm524, %v3290, %v3286
    %v3292 = vlaneseq
    %v3293 = vshrl.u32 %v3292, 7
    %v3294 = vsub.s32 %v526, %v3293
    %v3295 = vrot.slane %v3110, %v3294
    %v3296 = vsel %vm531, %v3295, %v3291
    %v3297 = vlaneseq
    %v3298 = vshrl.u32 %v3297, 7
    %v3299 = vsub.s32 %v533, %v3298
    %v3300 = vrot.slane %v3111, %v3299
    %v3301 = vsel %vm538, %v3300, %v3296
    %v3302 = vsel %vm1719, %v3301, %v3222
    %3304 = vst [vmem:[#allocation2 + $0x78] sm:$0xc0] %v3302
    %v3305 = vld [vmem:[#allocation2] sm:$0xff]
    %v3306 = vld [vmem:[#allocation2 + $0x8] sm:$0xff]
    %v3307 = vld [vmem:[#allocation2 + $0x10] sm:$0xff]
    %v3308 = vld [vmem:[#allocation2 + $0x18] sm:$0xff]
    %v3309 = vld [vmem:[#allocation2 + $0x20] sm:$0xff]
    %v3310 = vld [vmem:[#allocation2 + $0x28] sm:$0xff]
    %v3311 = vld [vmem:[#allocation2 + $0x30] sm:$0xff]
    %v3312 = vld [vmem:[#allocation2 + $0x38] sm:$0xff]
    %v3313 = vld [vmem:[#allocation2 + $0x40] sm:$0xff]
    %v3314 = vld [vmem:[#allocation2 + $0x48] sm:$0xff]
    %v3315 = vld [vmem:[#allocation2 + $0x50] sm:$0xff]
    %v3316 = vld [vmem:[#allocation2 + $0x58] sm:$0xff]
    %v3317 = vld [vmem:[#allocation2 + $0x60] sm:$0xff]
    %v3318 = vld [vmem:[#allocation2 + $0x68] sm:$0xff]
    %v3319 = vld [vmem:[#allocation2 + $0x70] sm:$0xff]
    %v3320 = vld [vmem:[#allocation2 + $0x78] sm:$0xff]
    %v3321 = vpack.c.bf16 %v3313, %v3305
    %v3322 = vpack.c.bf16 %v3314, %v3306
    %v3323 = vpack.c.bf16 %v3315, %v3307
    %v3324 = vpack.c.bf16 %v3316, %v3308
    %v3325 = vpack.c.bf16 %v3317, %v3309
    %v3326 = vpack.c.bf16 %v3318, %v3310
    %v3327 = vpack.c.bf16 %v3319, %v3311
    %v3328 = vpack.c.bf16 %v3320, %v3312
    %v3329 = vld [vmem:[#allocation7] sm:$0xff]
    %v3330 = vld [vmem:[#allocation7 + $0x8] sm:$0xff]
    %v3331 = vld [vmem:[#allocation7 + $0x10] sm:$0xff]
    %v3332 = vld [vmem:[#allocation7 + $0x18] sm:$0xff]
    %v3333 = vld [vmem:[#allocation7 + $0x20] sm:$0xff]
    %v3334 = vld [vmem:[#allocation7 + $0x28] sm:$0xff]
    %v3335 = vld [vmem:[#allocation7 + $0x30] sm:$0xff]
    %v3336 = vld [vmem:[#allocation7 + $0x38] sm:$0xff]
    %v3337 = vld [vmem:[#allocation7 + $0x40] sm:$0xff]
    %v3338 = vld [vmem:[#allocation7 + $0x48] sm:$0xff]
    %v3339 = vld [vmem:[#allocation7 + $0x50] sm:$0xff]
    %v3340 = vld [vmem:[#allocation7 + $0x58] sm:$0xff]
    %v3341 = vld [vmem:[#allocation7 + $0x60] sm:$0xff]
    %v3342 = vld [vmem:[#allocation7 + $0x68] sm:$0xff]
    %v3343 = vld [vmem:[#allocation7 + $0x70] sm:$0xff]
    %v3344 = vld [vmem:[#allocation7 + $0x78] sm:$0xff]
    %v3345 = vld [vmem:[#allocation7 + $0x80] sm:$0xff]
    %v3346 = vld [vmem:[#allocation7 + $0x88] sm:$0xff]
    %v3347 = vld [vmem:[#allocation7 + $0x90] sm:$0xff]
    %v3348 = vld [vmem:[#allocation7 + $0x98] sm:$0xff]
    %v3349 = vld [vmem:[#allocation7 + $0xa0] sm:$0xff]
    %v3350 = vld [vmem:[#allocation7 + $0xa8] sm:$0xff]
    %v3351 = vld [vmem:[#allocation7 + $0xb0] sm:$0xff]
    %v3352 = vld [vmem:[#allocation7 + $0xb8] sm:$0xff]
    %v3353 = vld [vmem:[#allocation7 + $0xc0] sm:$0xff]
    %v3354 = vld [vmem:[#allocation7 + $0xc8] sm:$0xff]
    %v3355 = vld [vmem:[#allocation7 + $0xd0] sm:$0xff]
    %v3356 = vld [vmem:[#allocation7 + $0xd8] sm:$0xff]
    %v3357 = vld [vmem:[#allocation7 + $0xe0] sm:$0xff]
    %v3358 = vld [vmem:[#allocation7 + $0xe8] sm:$0xff]
    %v3359 = vld [vmem:[#allocation7 + $0xf0] sm:$0xff]
    %v3360 = vld [vmem:[#allocation7 + $0xf8] sm:$0xff]
    %v3361 = vld [vmem:[#allocation7 + $0x100] sm:$0xff]
    %v3362 = vld [vmem:[#allocation7 + $0x108] sm:$0xff]
    %v3363 = vld [vmem:[#allocation7 + $0x110] sm:$0xff]
    %v3364 = vld [vmem:[#allocation7 + $0x118] sm:$0xff]
    %v3365 = vld [vmem:[#allocation7 + $0x120] sm:$0xff]
    %v3366 = vld [vmem:[#allocation7 + $0x128] sm:$0xff]
    %v3367 = vld [vmem:[#allocation7 + $0x130] sm:$0xff]
    %v3368 = vld [vmem:[#allocation7 + $0x138] sm:$0xff]
    %v3369 = vld [vmem:[#allocation7 + $0x140] sm:$0xff]
    %v3370 = vld [vmem:[#allocation7 + $0x148] sm:$0xff]
    %v3371 = vld [vmem:[#allocation7 + $0x150] sm:$0xff]
    %v3372 = vld [vmem:[#allocation7 + $0x158] sm:$0xff]
    %v3373 = vld [vmem:[#allocation7 + $0x160] sm:$0xff]
    %v3374 = vld [vmem:[#allocation7 + $0x168] sm:$0xff]
    %v3375 = vld [vmem:[#allocation7 + $0x170] sm:$0xff]
    %v3376 = vld [vmem:[#allocation7 + $0x178] sm:$0xff]
    %v3377 = vld [vmem:[#allocation7 + $0x180] sm:$0xff]
    %v3378 = vld [vmem:[#allocation7 + $0x188] sm:$0xff]
    %v3379 = vld [vmem:[#allocation7 + $0x190] sm:$0xff]
    %v3380 = vld [vmem:[#allocation7 + $0x198] sm:$0xff]
    %v3381 = vld [vmem:[#allocation7 + $0x1a0] sm:$0xff]
    %v3382 = vld [vmem:[#allocation7 + $0x1a8] sm:$0xff]
    %v3383 = vld [vmem:[#allocation7 + $0x1b0] sm:$0xff]
    %v3384 = vld [vmem:[#allocation7 + $0x1b8] sm:$0xff]
    %v3385 = vld [vmem:[#allocation7 + $0x1c0] sm:$0xff]
    %v3386 = vld [vmem:[#allocation7 + $0x1c8] sm:$0xff]
    %v3387 = vld [vmem:[#allocation7 + $0x1d0] sm:$0xff]
    %v3388 = vld [vmem:[#allocation7 + $0x1d8] sm:$0xff]
    %v3389 = vld [vmem:[#allocation7 + $0x1e0] sm:$0xff]
    %v3390 = vld [vmem:[#allocation7 + $0x1e8] sm:$0xff]
    %v3391 = vld [vmem:[#allocation7 + $0x1f0] sm:$0xff]
    %v3392 = vld [vmem:[#allocation7 + $0x1f8] sm:$0xff]
    %v3393 = vld [vmem:[#allocation7 + $0x200] sm:$0xff]
    %v3394 = vld [vmem:[#allocation7 + $0x208] sm:$0xff]
    %v3395 = vld [vmem:[#allocation7 + $0x210] sm:$0xff]
    %v3396 = vld [vmem:[#allocation7 + $0x218] sm:$0xff]
    %v3397 = vld [vmem:[#allocation7 + $0x220] sm:$0xff]
    %v3398 = vld [vmem:[#allocation7 + $0x228] sm:$0xff]
    %v3399 = vld [vmem:[#allocation7 + $0x230] sm:$0xff]
    %v3400 = vld [vmem:[#allocation7 + $0x238] sm:$0xff]
    %v3401 = vld [vmem:[#allocation7 + $0x240] sm:$0xff]
    %v3402 = vld [vmem:[#allocation7 + $0x248] sm:$0xff]
    %v3403 = vld [vmem:[#allocation7 + $0x250] sm:$0xff]
    %v3404 = vld [vmem:[#allocation7 + $0x258] sm:$0xff]
    %v3405 = vld [vmem:[#allocation7 + $0x260] sm:$0xff]
    %v3406 = vld [vmem:[#allocation7 + $0x268] sm:$0xff]
    %v3407 = vld [vmem:[#allocation7 + $0x270] sm:$0xff]
    %v3408 = vld [vmem:[#allocation7 + $0x278] sm:$0xff]
    %v3409 = vld [vmem:[#allocation7 + $0x280] sm:$0xff]
    %v3410 = vld [vmem:[#allocation7 + $0x288] sm:$0xff]
    %v3411 = vld [vmem:[#allocation7 + $0x290] sm:$0xff]
    %v3412 = vld [vmem:[#allocation7 + $0x298] sm:$0xff]
    %v3413 = vld [vmem:[#allocation7 + $0x2a0] sm:$0xff]
    %v3414 = vld [vmem:[#allocation7 + $0x2a8] sm:$0xff]
    %v3415 = vld [vmem:[#allocation7 + $0x2b0] sm:$0xff]
    %v3416 = vld [vmem:[#allocation7 + $0x2b8] sm:$0xff]
    %v3417 = vld [vmem:[#allocation7 + $0x2c0] sm:$0xff]
    %v3418 = vld [vmem:[#allocation7 + $0x2c8] sm:$0xff]
    %v3419 = vld [vmem:[#allocation7 + $0x2d0] sm:$0xff]
    %v3420 = vld [vmem:[#allocation7 + $0x2d8] sm:$0xff]
    %v3421 = vld [vmem:[#allocation7 + $0x2e0] sm:$0xff]
    %v3422 = vld [vmem:[#allocation7 + $0x2e8] sm:$0xff]
    %v3423 = vld [vmem:[#allocation7 + $0x2f0] sm:$0xff]
    %v3424 = vld [vmem:[#allocation7 + $0x2f8] sm:$0xff]
    %v3425 = vld [vmem:[#allocation7 + $0x300] sm:$0xff]
    %v3426 = vld [vmem:[#allocation7 + $0x308] sm:$0xff]
    %v3427 = vld [vmem:[#allocation7 + $0x310] sm:$0xff]
    %v3428 = vld [vmem:[#allocation7 + $0x318] sm:$0xff]
    %v3429 = vld [vmem:[#allocation7 + $0x320] sm:$0xff]
    %v3430 = vld [vmem:[#allocation7 + $0x328] sm:$0xff]
    %v3431 = vld [vmem:[#allocation7 + $0x330] sm:$0xff]
    %v3432 = vld [vmem:[#allocation7 + $0x338] sm:$0xff]
    %v3433 = vld [vmem:[#allocation7 + $0x340] sm:$0xff]
    %v3434 = vld [vmem:[#allocation7 + $0x348] sm:$0xff]
    %v3435 = vld [vmem:[#allocation7 + $0x350] sm:$0xff]
    %v3436 = vld [vmem:[#allocation7 + $0x358] sm:$0xff]
    %v3437 = vld [vmem:[#allocation7 + $0x360] sm:$0xff]
    %v3438 = vld [vmem:[#allocation7 + $0x368] sm:$0xff]
    %v3439 = vld [vmem:[#allocation7 + $0x370] sm:$0xff]
    %v3440 = vld [vmem:[#allocation7 + $0x378] sm:$0xff]
    %v3441 = vld [vmem:[#allocation7 + $0x380] sm:$0xff]
    %v3442 = vld [vmem:[#allocation7 + $0x388] sm:$0xff]
    %v3443 = vld [vmem:[#allocation7 + $0x390] sm:$0xff]
    %v3444 = vld [vmem:[#allocation7 + $0x398] sm:$0xff]
    %v3445 = vld [vmem:[#allocation7 + $0x3a0] sm:$0xff]
    %v3446 = vld [vmem:[#allocation7 + $0x3a8] sm:$0xff]
    %v3447 = vld [vmem:[#allocation7 + $0x3b0] sm:$0xff]
    %v3448 = vld [vmem:[#allocation7 + $0x3b8] sm:$0xff]
    %v3449 = vld [vmem:[#allocation7 + $0x3c0] sm:$0xff]
    %v3450 = vld [vmem:[#allocation7 + $0x3c8] sm:$0xff]
    %v3451 = vld [vmem:[#allocation7 + $0x3d0] sm:$0xff]
    %v3452 = vld [vmem:[#allocation7 + $0x3d8] sm:$0xff]
    %v3453 = vld [vmem:[#allocation7 + $0x3e0] sm:$0xff]
    %v3454 = vld [vmem:[#allocation7 + $0x3e8] sm:$0xff]
    %v3455 = vld [vmem:[#allocation7 + $0x3f0] sm:$0xff]
    %v3456 = vld [vmem:[#allocation7 + $0x3f8] sm:$0xff]
    %v3457 = vld [vmem:[#allocation7 + $0x400] sm:$0xff]
    %v3458 = vld [vmem:[#allocation7 + $0x408] sm:$0xff]
    %v3459 = vld [vmem:[#allocation7 + $0x410] sm:$0xff]
    %v3460 = vld [vmem:[#allocation7 + $0x418] sm:$0xff]
    %v3461 = vld [vmem:[#allocation7 + $0x420] sm:$0xff]
    %v3462 = vld [vmem:[#allocation7 + $0x428] sm:$0xff]
    %v3463 = vld [vmem:[#allocation7 + $0x430] sm:$0xff]
    %v3464 = vld [vmem:[#allocation7 + $0x438] sm:$0xff]
    %v3465 = vld [vmem:[#allocation7 + $0x440] sm:$0xff]
    %v3466 = vld [vmem:[#allocation7 + $0x448] sm:$0xff]
    %v3467 = vld [vmem:[#allocation7 + $0x450] sm:$0xff]
    %v3468 = vld [vmem:[#allocation7 + $0x458] sm:$0xff]
    %v3469 = vld [vmem:[#allocation7 + $0x460] sm:$0xff]
    %v3470 = vld [vmem:[#allocation7 + $0x468] sm:$0xff]
    %v3471 = vld [vmem:[#allocation7 + $0x470] sm:$0xff]
    %v3472 = vld [vmem:[#allocation7 + $0x478] sm:$0xff]
    %v3473 = vld [vmem:[#allocation7 + $0x480] sm:$0xff]
    %v3474 = vld [vmem:[#allocation7 + $0x488] sm:$0xff]
    %v3475 = vld [vmem:[#allocation7 + $0x490] sm:$0xff]
    %v3476 = vld [vmem:[#allocation7 + $0x498] sm:$0xff]
    %v3477 = vld [vmem:[#allocation7 + $0x4a0] sm:$0xff]
    %v3478 = vld [vmem:[#allocation7 + $0x4a8] sm:$0xff]
    %v3479 = vld [vmem:[#allocation7 + $0x4b0] sm:$0xff]
    %v3480 = vld [vmem:[#allocation7 + $0x4b8] sm:$0xff]
    %v3481 = vld [vmem:[#allocation7 + $0x4c0] sm:$0xff]
    %v3482 = vld [vmem:[#allocation7 + $0x4c8] sm:$0xff]
    %v3483 = vld [vmem:[#allocation7 + $0x4d0] sm:$0xff]
    %v3484 = vld [vmem:[#allocation7 + $0x4d8] sm:$0xff]
    %v3485 = vld [vmem:[#allocation7 + $0x4e0] sm:$0xff]
    %v3486 = vld [vmem:[#allocation7 + $0x4e8] sm:$0xff]
    %v3487 = vld [vmem:[#allocation7 + $0x4f0] sm:$0xff]
    %v3488 = vld [vmem:[#allocation7 + $0x4f8] sm:$0xff]
    %v3489 = vld [vmem:[#allocation7 + $0x500] sm:$0xff]
    %v3490 = vld [vmem:[#allocation7 + $0x508] sm:$0xff]
    %v3491 = vld [vmem:[#allocation7 + $0x510] sm:$0xff]
    %v3492 = vld [vmem:[#allocation7 + $0x518] sm:$0xff]
    %v3493 = vld [vmem:[#allocation7 + $0x520] sm:$0xff]
    %v3494 = vld [vmem:[#allocation7 + $0x528] sm:$0xff]
    %v3495 = vld [vmem:[#allocation7 + $0x530] sm:$0xff]
    %v3496 = vld [vmem:[#allocation7 + $0x538] sm:$0xff]
    %v3497 = vld [vmem:[#allocation7 + $0x540] sm:$0xff]
    %v3498 = vld [vmem:[#allocation7 + $0x548] sm:$0xff]
    %v3499 = vld [vmem:[#allocation7 + $0x550] sm:$0xff]
    %v3500 = vld [vmem:[#allocation7 + $0x558] sm:$0xff]
    %v3501 = vld [vmem:[#allocation7 + $0x560] sm:$0xff]
    %v3502 = vld [vmem:[#allocation7 + $0x568] sm:$0xff]
    %v3503 = vld [vmem:[#allocation7 + $0x570] sm:$0xff]
    %v3504 = vld [vmem:[#allocation7 + $0x578] sm:$0xff]
    %v3505 = vld [vmem:[#allocation7 + $0x580] sm:$0xff]
    %v3506 = vld [vmem:[#allocation7 + $0x588] sm:$0xff]
    %v3507 = vld [vmem:[#allocation7 + $0x590] sm:$0xff]
    %v3508 = vld [vmem:[#allocation7 + $0x598] sm:$0xff]
    %v3509 = vld [vmem:[#allocation7 + $0x5a0] sm:$0xff]
    %v3510 = vld [vmem:[#allocation7 + $0x5a8] sm:$0xff]
    %v3511 = vld [vmem:[#allocation7 + $0x5b0] sm:$0xff]
    %v3512 = vld [vmem:[#allocation7 + $0x5b8] sm:$0xff]
    %v3513 = vld [vmem:[#allocation7 + $0x5c0] sm:$0xff]
    %v3514 = vld [vmem:[#allocation7 + $0x5c8] sm:$0xff]
    %v3515 = vld [vmem:[#allocation7 + $0x5d0] sm:$0xff]
    %v3516 = vld [vmem:[#allocation7 + $0x5d8] sm:$0xff]
    %v3517 = vld [vmem:[#allocation7 + $0x5e0] sm:$0xff]
    %v3518 = vld [vmem:[#allocation7 + $0x5e8] sm:$0xff]
    %v3519 = vld [vmem:[#allocation7 + $0x5f0] sm:$0xff]
    %v3520 = vld [vmem:[#allocation7 + $0x5f8] sm:$0xff]
    %v3521 = vld [vmem:[#allocation7 + $0x600] sm:$0xff]
    %v3522 = vld [vmem:[#allocation7 + $0x608] sm:$0xff]
    %v3523 = vld [vmem:[#allocation7 + $0x610] sm:$0xff]
    %v3524 = vld [vmem:[#allocation7 + $0x618] sm:$0xff]
    %v3525 = vld [vmem:[#allocation7 + $0x620] sm:$0xff]
    %v3526 = vld [vmem:[#allocation7 + $0x628] sm:$0xff]
    %v3527 = vld [vmem:[#allocation7 + $0x630] sm:$0xff]
    %v3528 = vld [vmem:[#allocation7 + $0x638] sm:$0xff]
    %v3529 = vld [vmem:[#allocation7 + $0x640] sm:$0xff]
    %v3530 = vld [vmem:[#allocation7 + $0x648] sm:$0xff]
    %v3531 = vld [vmem:[#allocation7 + $0x650] sm:$0xff]
    %v3532 = vld [vmem:[#allocation7 + $0x658] sm:$0xff]
    %v3533 = vld [vmem:[#allocation7 + $0x660] sm:$0xff]
    %v3534 = vld [vmem:[#allocation7 + $0x668] sm:$0xff]
    %v3535 = vld [vmem:[#allocation7 + $0x670] sm:$0xff]
    %v3536 = vld [vmem:[#allocation7 + $0x678] sm:$0xff]
    %v3537 = vld [vmem:[#allocation7 + $0x680] sm:$0xff]
    %v3538 = vld [vmem:[#allocation7 + $0x688] sm:$0xff]
    %v3539 = vld [vmem:[#allocation7 + $0x690] sm:$0xff]
    %v3540 = vld [vmem:[#allocation7 + $0x698] sm:$0xff]
    %v3541 = vld [vmem:[#allocation7 + $0x6a0] sm:$0xff]
    %v3542 = vld [vmem:[#allocation7 + $0x6a8] sm:$0xff]
    %v3543 = vld [vmem:[#allocation7 + $0x6b0] sm:$0xff]
    %v3544 = vld [vmem:[#allocation7 + $0x6b8] sm:$0xff]
    %v3545 = vld [vmem:[#allocation7 + $0x6c0] sm:$0xff]
    %v3546 = vld [vmem:[#allocation7 + $0x6c8] sm:$0xff]
    %v3547 = vld [vmem:[#allocation7 + $0x6d0] sm:$0xff]
    %v3548 = vld [vmem:[#allocation7 + $0x6d8] sm:$0xff]
    %v3549 = vld [vmem:[#allocation7 + $0x6e0] sm:$0xff]
    %v3550 = vld [vmem:[#allocation7 + $0x6e8] sm:$0xff]
    %v3551 = vld [vmem:[#allocation7 + $0x6f0] sm:$0xff]
    %v3552 = vld [vmem:[#allocation7 + $0x6f8] sm:$0xff]
    %v3553 = vld [vmem:[#allocation7 + $0x700] sm:$0xff]
    %v3554 = vld [vmem:[#allocation7 + $0x708] sm:$0xff]
    %v3555 = vld [vmem:[#allocation7 + $0x710] sm:$0xff]
    %v3556 = vld [vmem:[#allocation7 + $0x718] sm:$0xff]
    %v3557 = vld [vmem:[#allocation7 + $0x720] sm:$0xff]
    %v3558 = vld [vmem:[#allocation7 + $0x728] sm:$0xff]
    %v3559 = vld [vmem:[#allocation7 + $0x730] sm:$0xff]
    %v3560 = vld [vmem:[#allocation7 + $0x738] sm:$0xff]
    %v3561 = vld [vmem:[#allocation7 + $0x740] sm:$0xff]
    %v3562 = vld [vmem:[#allocation7 + $0x748] sm:$0xff]
    %v3563 = vld [vmem:[#allocation7 + $0x750] sm:$0xff]
    %v3564 = vld [vmem:[#allocation7 + $0x758] sm:$0xff]
    %v3565 = vld [vmem:[#allocation7 + $0x760] sm:$0xff]
    %v3566 = vld [vmem:[#allocation7 + $0x768] sm:$0xff]
    %v3567 = vld [vmem:[#allocation7 + $0x770] sm:$0xff]
    %v3568 = vld [vmem:[#allocation7 + $0x778] sm:$0xff]
    %v3569 = vld [vmem:[#allocation7 + $0x780] sm:$0xff]
    %v3570 = vld [vmem:[#allocation7 + $0x788] sm:$0xff]
    %v3571 = vld [vmem:[#allocation7 + $0x790] sm:$0xff]
    %v3572 = vld [vmem:[#allocation7 + $0x798] sm:$0xff]
    %v3573 = vld [vmem:[#allocation7 + $0x7a0] sm:$0xff]
    %v3574 = vld [vmem:[#allocation7 + $0x7a8] sm:$0xff]
    %v3575 = vld [vmem:[#allocation7 + $0x7b0] sm:$0xff]
    %v3576 = vld [vmem:[#allocation7 + $0x7b8] sm:$0xff]
    %v3577 = vld [vmem:[#allocation7 + $0x7c0] sm:$0xff]
    %v3578 = vld [vmem:[#allocation7 + $0x7c8] sm:$0xff]
    %v3579 = vld [vmem:[#allocation7 + $0x7d0] sm:$0xff]
    %v3580 = vld [vmem:[#allocation7 + $0x7d8] sm:$0xff]
    %v3581 = vld [vmem:[#allocation7 + $0x7e0] sm:$0xff]
    %v3582 = vld [vmem:[#allocation7 + $0x7e8] sm:$0xff]
    %v3583 = vld [vmem:[#allocation7 + $0x7f0] sm:$0xff]
    %v3584 = vld [vmem:[#allocation7 + $0x7f8] sm:$0xff]
    %v3585 = vld [vmem:[#allocation7 + $0x800] sm:$0xff]
    %v3586 = vld [vmem:[#allocation7 + $0x808] sm:$0xff]
    %v3587 = vld [vmem:[#allocation7 + $0x810] sm:$0xff]
    %v3588 = vld [vmem:[#allocation7 + $0x818] sm:$0xff]
    %v3589 = vld [vmem:[#allocation7 + $0x820] sm:$0xff]
    %v3590 = vld [vmem:[#allocation7 + $0x828] sm:$0xff]
    %v3591 = vld [vmem:[#allocation7 + $0x830] sm:$0xff]
    %v3592 = vld [vmem:[#allocation7 + $0x838] sm:$0xff]
    %v3593 = vld [vmem:[#allocation7 + $0x840] sm:$0xff]
    %v3594 = vld [vmem:[#allocation7 + $0x848] sm:$0xff]
    %v3595 = vld [vmem:[#allocation7 + $0x850] sm:$0xff]
    %v3596 = vld [vmem:[#allocation7 + $0x858] sm:$0xff]
    %v3597 = vld [vmem:[#allocation7 + $0x860] sm:$0xff]
    %v3598 = vld [vmem:[#allocation7 + $0x868] sm:$0xff]
    %v3599 = vld [vmem:[#allocation7 + $0x870] sm:$0xff]
    %v3600 = vld [vmem:[#allocation7 + $0x878] sm:$0xff]
    %v3601 = vld [vmem:[#allocation7 + $0x880] sm:$0xff]
    %v3602 = vld [vmem:[#allocation7 + $0x888] sm:$0xff]
    %v3603 = vld [vmem:[#allocation7 + $0x890] sm:$0xff]
    %v3604 = vld [vmem:[#allocation7 + $0x898] sm:$0xff]
    %v3605 = vld [vmem:[#allocation7 + $0x8a0] sm:$0xff]
    %v3606 = vld [vmem:[#allocation7 + $0x8a8] sm:$0xff]
    %v3607 = vld [vmem:[#allocation7 + $0x8b0] sm:$0xff]
    %v3608 = vld [vmem:[#allocation7 + $0x8b8] sm:$0xff]
    %v3609 = vld [vmem:[#allocation7 + $0x8c0] sm:$0xff]
    %v3610 = vld [vmem:[#allocation7 + $0x8c8] sm:$0xff]
    %v3611 = vld [vmem:[#allocation7 + $0x8d0] sm:$0xff]
    %v3612 = vld [vmem:[#allocation7 + $0x8d8] sm:$0xff]
    %v3613 = vld [vmem:[#allocation7 + $0x8e0] sm:$0xff]
    %v3614 = vld [vmem:[#allocation7 + $0x8e8] sm:$0xff]
    %v3615 = vld [vmem:[#allocation7 + $0x8f0] sm:$0xff]
    %v3616 = vld [vmem:[#allocation7 + $0x8f8] sm:$0xff]
    %v3617 = vld [vmem:[#allocation7 + $0x900] sm:$0xff]
    %v3618 = vld [vmem:[#allocation7 + $0x908] sm:$0xff]
    %v3619 = vld [vmem:[#allocation7 + $0x910] sm:$0xff]
    %v3620 = vld [vmem:[#allocation7 + $0x918] sm:$0xff]
    %v3621 = vld [vmem:[#allocation7 + $0x920] sm:$0xff]
    %v3622 = vld [vmem:[#allocation7 + $0x928] sm:$0xff]
    %v3623 = vld [vmem:[#allocation7 + $0x930] sm:$0xff]
    %v3624 = vld [vmem:[#allocation7 + $0x938] sm:$0xff]
    %v3625 = vld [vmem:[#allocation7 + $0x940] sm:$0xff]
    %v3626 = vld [vmem:[#allocation7 + $0x948] sm:$0xff]
    %v3627 = vld [vmem:[#allocation7 + $0x950] sm:$0xff]
    %v3628 = vld [vmem:[#allocation7 + $0x958] sm:$0xff]
    %v3629 = vld [vmem:[#allocation7 + $0x960] sm:$0xff]
    %v3630 = vld [vmem:[#allocation7 + $0x968] sm:$0xff]
    %v3631 = vld [vmem:[#allocation7 + $0x970] sm:$0xff]
    %v3632 = vld [vmem:[#allocation7 + $0x978] sm:$0xff]
    %v3633 = vld [vmem:[#allocation7 + $0x980] sm:$0xff]
    %v3634 = vld [vmem:[#allocation7 + $0x988] sm:$0xff]
    %v3635 = vld [vmem:[#allocation7 + $0x990] sm:$0xff]
    %v3636 = vld [vmem:[#allocation7 + $0x998] sm:$0xff]
    %v3637 = vld [vmem:[#allocation7 + $0x9a0] sm:$0xff]
    %v3638 = vld [vmem:[#allocation7 + $0x9a8] sm:$0xff]
    %v3639 = vld [vmem:[#allocation7 + $0x9b0] sm:$0xff]
    %v3640 = vld [vmem:[#allocation7 + $0x9b8] sm:$0xff]
    %v3641 = vld [vmem:[#allocation7 + $0x9c0] sm:$0xff]
    %v3642 = vld [vmem:[#allocation7 + $0x9c8] sm:$0xff]
    %v3643 = vld [vmem:[#allocation7 + $0x9d0] sm:$0xff]
    %v3644 = vld [vmem:[#allocation7 + $0x9d8] sm:$0xff]
    %v3645 = vld [vmem:[#allocation7 + $0x9e0] sm:$0xff]
    %v3646 = vld [vmem:[#allocation7 + $0x9e8] sm:$0xff]
    %v3647 = vld [vmem:[#allocation7 + $0x9f0] sm:$0xff]
    %v3648 = vld [vmem:[#allocation7 + $0x9f8] sm:$0xff]
    %v3649 = vld [vmem:[#allocation7 + $0xa00] sm:$0xff]
    %v3650 = vld [vmem:[#allocation7 + $0xa08] sm:$0xff]
    %v3651 = vld [vmem:[#allocation7 + $0xa10] sm:$0xff]
    %v3652 = vld [vmem:[#allocation7 + $0xa18] sm:$0xff]
    %v3653 = vld [vmem:[#allocation7 + $0xa20] sm:$0xff]
    %v3654 = vld [vmem:[#allocation7 + $0xa28] sm:$0xff]
    %v3655 = vld [vmem:[#allocation7 + $0xa30] sm:$0xff]
    %v3656 = vld [vmem:[#allocation7 + $0xa38] sm:$0xff]
    %v3657 = vld [vmem:[#allocation7 + $0xa40] sm:$0xff]
    %v3658 = vld [vmem:[#allocation7 + $0xa48] sm:$0xff]
    %v3659 = vld [vmem:[#allocation7 + $0xa50] sm:$0xff]
    %v3660 = vld [vmem:[#allocation7 + $0xa58] sm:$0xff]
    %v3661 = vld [vmem:[#allocation7 + $0xa60] sm:$0xff]
    %v3662 = vld [vmem:[#allocation7 + $0xa68] sm:$0xff]
    %v3663 = vld [vmem:[#allocation7 + $0xa70] sm:$0xff]
    %v3664 = vld [vmem:[#allocation7 + $0xa78] sm:$0xff]
    %v3665 = vld [vmem:[#allocation7 + $0xa80] sm:$0xff]
    %v3666 = vld [vmem:[#allocation7 + $0xa88] sm:$0xff]
    %v3667 = vld [vmem:[#allocation7 + $0xa90] sm:$0xff]
    %v3668 = vld [vmem:[#allocation7 + $0xa98] sm:$0xff]
    %v3669 = vld [vmem:[#allocation7 + $0xaa0] sm:$0xff]
    %v3670 = vld [vmem:[#allocation7 + $0xaa8] sm:$0xff]
    %v3671 = vld [vmem:[#allocation7 + $0xab0] sm:$0xff]
    %v3672 = vld [vmem:[#allocation7 + $0xab8] sm:$0xff]
    %v3673 = vld [vmem:[#allocation7 + $0xac0] sm:$0xff]
    %v3674 = vld [vmem:[#allocation7 + $0xac8] sm:$0xff]
    %v3675 = vld [vmem:[#allocation7 + $0xad0] sm:$0xff]
    %v3676 = vld [vmem:[#allocation7 + $0xad8] sm:$0xff]
    %v3677 = vld [vmem:[#allocation7 + $0xae0] sm:$0xff]
    %v3678 = vld [vmem:[#allocation7 + $0xae8] sm:$0xff]
    %v3679 = vld [vmem:[#allocation7 + $0xaf0] sm:$0xff]
    %v3680 = vld [vmem:[#allocation7 + $0xaf8] sm:$0xff]
    %v3681 = vld [vmem:[#allocation7 + $0xb00] sm:$0xff]
    %v3682 = vld [vmem:[#allocation7 + $0xb08] sm:$0xff]
    %v3683 = vld [vmem:[#allocation7 + $0xb10] sm:$0xff]
    %v3684 = vld [vmem:[#allocation7 + $0xb18] sm:$0xff]
    %v3685 = vld [vmem:[#allocation7 + $0xb20] sm:$0xff]
    %v3686 = vld [vmem:[#allocation7 + $0xb28] sm:$0xff]
    %v3687 = vld [vmem:[#allocation7 + $0xb30] sm:$0xff]
    %v3688 = vld [vmem:[#allocation7 + $0xb38] sm:$0xff]
    %v3689 = vld [vmem:[#allocation7 + $0xb40] sm:$0xff]
    %v3690 = vld [vmem:[#allocation7 + $0xb48] sm:$0xff]
    %v3691 = vld [vmem:[#allocation7 + $0xb50] sm:$0xff]
    %v3692 = vld [vmem:[#allocation7 + $0xb58] sm:$0xff]
    %v3693 = vld [vmem:[#allocation7 + $0xb60] sm:$0xff]
    %v3694 = vld [vmem:[#allocation7 + $0xb68] sm:$0xff]
    %v3695 = vld [vmem:[#allocation7 + $0xb70] sm:$0xff]
    %v3696 = vld [vmem:[#allocation7 + $0xb78] sm:$0xff]
    %v3697 = vld [vmem:[#allocation7 + $0xb80] sm:$0xff]
    %v3698 = vld [vmem:[#allocation7 + $0xb88] sm:$0xff]
    %v3699 = vld [vmem:[#allocation7 + $0xb90] sm:$0xff]
    %v3700 = vld [vmem:[#allocation7 + $0xb98] sm:$0xff]
    %v3701 = vld [vmem:[#allocation7 + $0xba0] sm:$0xff]
    %v3702 = vld [vmem:[#allocation7 + $0xba8] sm:$0xff]
    %v3703 = vld [vmem:[#allocation7 + $0xbb0] sm:$0xff]
    %v3704 = vld [vmem:[#allocation7 + $0xbb8] sm:$0xff]
    %v3705 = vld [vmem:[#allocation7 + $0xbc0] sm:$0xff]
    %v3706 = vld [vmem:[#allocation7 + $0xbc8] sm:$0xff]
    %v3707 = vld [vmem:[#allocation7 + $0xbd0] sm:$0xff]
    %v3708 = vld [vmem:[#allocation7 + $0xbd8] sm:$0xff]
    %v3709 = vld [vmem:[#allocation7 + $0xbe0] sm:$0xff]
    %v3710 = vld [vmem:[#allocation7 + $0xbe8] sm:$0xff]
    %v3711 = vld [vmem:[#allocation7 + $0xbf0] sm:$0xff]
    %v3712 = vld [vmem:[#allocation7 + $0xbf8] sm:$0xff]
    %v3713 = vld [vmem:[#allocation7 + $0xc00] sm:$0xff]
    %v3714 = vld [vmem:[#allocation7 + $0xc08] sm:$0xff]
    %v3715 = vld [vmem:[#allocation7 + $0xc10] sm:$0xff]
    %v3716 = vld [vmem:[#allocation7 + $0xc18] sm:$0xff]
    %v3717 = vld [vmem:[#allocation7 + $0xc20] sm:$0xff]
    %v3718 = vld [vmem:[#allocation7 + $0xc28] sm:$0xff]
    %v3719 = vld [vmem:[#allocation7 + $0xc30] sm:$0xff]
    %v3720 = vld [vmem:[#allocation7 + $0xc38] sm:$0xff]
    %v3721 = vld [vmem:[#allocation7 + $0xc40] sm:$0xff]
    %v3722 = vld [vmem:[#allocation7 + $0xc48] sm:$0xff]
    %v3723 = vld [vmem:[#allocation7 + $0xc50] sm:$0xff]
    %v3724 = vld [vmem:[#allocation7 + $0xc58] sm:$0xff]
    %v3725 = vld [vmem:[#allocation7 + $0xc60] sm:$0xff]
    %v3726 = vld [vmem:[#allocation7 + $0xc68] sm:$0xff]
    %v3727 = vld [vmem:[#allocation7 + $0xc70] sm:$0xff]
    %v3728 = vld [vmem:[#allocation7 + $0xc78] sm:$0xff]
    %v3729 = vld [vmem:[#allocation7 + $0xc80] sm:$0xff]
    %v3730 = vld [vmem:[#allocation7 + $0xc88] sm:$0xff]
    %v3731 = vld [vmem:[#allocation7 + $0xc90] sm:$0xff]
    %v3732 = vld [vmem:[#allocation7 + $0xc98] sm:$0xff]
    %v3733 = vld [vmem:[#allocation7 + $0xca0] sm:$0xff]
    %v3734 = vld [vmem:[#allocation7 + $0xca8] sm:$0xff]
    %v3735 = vld [vmem:[#allocation7 + $0xcb0] sm:$0xff]
    %v3736 = vld [vmem:[#allocation7 + $0xcb8] sm:$0xff]
    %v3737 = vld [vmem:[#allocation7 + $0xcc0] sm:$0xff]
    %v3738 = vld [vmem:[#allocation7 + $0xcc8] sm:$0xff]
    %v3739 = vld [vmem:[#allocation7 + $0xcd0] sm:$0xff]
    %v3740 = vld [vmem:[#allocation7 + $0xcd8] sm:$0xff]
    %v3741 = vld [vmem:[#allocation7 + $0xce0] sm:$0xff]
    %v3742 = vld [vmem:[#allocation7 + $0xce8] sm:$0xff]
    %v3743 = vld [vmem:[#allocation7 + $0xcf0] sm:$0xff]
    %v3744 = vld [vmem:[#allocation7 + $0xcf8] sm:$0xff]
    %v3745 = vld [vmem:[#allocation7 + $0xd00] sm:$0xff]
    %v3746 = vld [vmem:[#allocation7 + $0xd08] sm:$0xff]
    %v3747 = vld [vmem:[#allocation7 + $0xd10] sm:$0xff]
    %v3748 = vld [vmem:[#allocation7 + $0xd18] sm:$0xff]
    %v3749 = vld [vmem:[#allocation7 + $0xd20] sm:$0xff]
    %v3750 = vld [vmem:[#allocation7 + $0xd28] sm:$0xff]
    %v3751 = vld [vmem:[#allocation7 + $0xd30] sm:$0xff]
    %v3752 = vld [vmem:[#allocation7 + $0xd38] sm:$0xff]
    %v3753 = vld [vmem:[#allocation7 + $0xd40] sm:$0xff]
    %v3754 = vld [vmem:[#allocation7 + $0xd48] sm:$0xff]
    %v3755 = vld [vmem:[#allocation7 + $0xd50] sm:$0xff]
    %v3756 = vld [vmem:[#allocation7 + $0xd58] sm:$0xff]
    %v3757 = vld [vmem:[#allocation7 + $0xd60] sm:$0xff]
    %v3758 = vld [vmem:[#allocation7 + $0xd68] sm:$0xff]
    %v3759 = vld [vmem:[#allocation7 + $0xd70] sm:$0xff]
    %v3760 = vld [vmem:[#allocation7 + $0xd78] sm:$0xff]
    %v3761 = vld [vmem:[#allocation7 + $0xd80] sm:$0xff]
    %v3762 = vld [vmem:[#allocation7 + $0xd88] sm:$0xff]
    %v3763 = vld [vmem:[#allocation7 + $0xd90] sm:$0xff]
    %v3764 = vld [vmem:[#allocation7 + $0xd98] sm:$0xff]
    %v3765 = vld [vmem:[#allocation7 + $0xda0] sm:$0xff]
    %v3766 = vld [vmem:[#allocation7 + $0xda8] sm:$0xff]
    %v3767 = vld [vmem:[#allocation7 + $0xdb0] sm:$0xff]
    %v3768 = vld [vmem:[#allocation7 + $0xdb8] sm:$0xff]
    %v3769 = vld [vmem:[#allocation7 + $0xdc0] sm:$0xff]
    %v3770 = vld [vmem:[#allocation7 + $0xdc8] sm:$0xff]
    %v3771 = vld [vmem:[#allocation7 + $0xdd0] sm:$0xff]
    %v3772 = vld [vmem:[#allocation7 + $0xdd8] sm:$0xff]
    %v3773 = vld [vmem:[#allocation7 + $0xde0] sm:$0xff]
    %v3774 = vld [vmem:[#allocation7 + $0xde8] sm:$0xff]
    %v3775 = vld [vmem:[#allocation7 + $0xdf0] sm:$0xff]
    %v3776 = vld [vmem:[#allocation7 + $0xdf8] sm:$0xff]
    %v3777 = vld [vmem:[#allocation7 + $0xe00] sm:$0xff]
    %v3778 = vld [vmem:[#allocation7 + $0xe08] sm:$0xff]
    %v3779 = vld [vmem:[#allocation7 + $0xe10] sm:$0xff]
    %v3780 = vld [vmem:[#allocation7 + $0xe18] sm:$0xff]
    %v3781 = vld [vmem:[#allocation7 + $0xe20] sm:$0xff]
    %v3782 = vld [vmem:[#allocation7 + $0xe28] sm:$0xff]
    %v3783 = vld [vmem:[#allocation7 + $0xe30] sm:$0xff]
    %v3784 = vld [vmem:[#allocation7 + $0xe38] sm:$0xff]
    %v3785 = vld [vmem:[#allocation7 + $0xe40] sm:$0xff]
    %v3786 = vld [vmem:[#allocation7 + $0xe48] sm:$0xff]
    %v3787 = vld [vmem:[#allocation7 + $0xe50] sm:$0xff]
    %v3788 = vld [vmem:[#allocation7 + $0xe58] sm:$0xff]
    %v3789 = vld [vmem:[#allocation7 + $0xe60] sm:$0xff]
    %v3790 = vld [vmem:[#allocation7 + $0xe68] sm:$0xff]
    %v3791 = vld [vmem:[#allocation7 + $0xe70] sm:$0xff]
    %v3792 = vld [vmem:[#allocation7 + $0xe78] sm:$0xff]
    %v3793 = vld [vmem:[#allocation7 + $0xe80] sm:$0xff]
    %v3794 = vld [vmem:[#allocation7 + $0xe88] sm:$0xff]
    %v3795 = vld [vmem:[#allocation7 + $0xe90] sm:$0xff]
    %v3796 = vld [vmem:[#allocation7 + $0xe98] sm:$0xff]
    %v3797 = vld [vmem:[#allocation7 + $0xea0] sm:$0xff]
    %v3798 = vld [vmem:[#allocation7 + $0xea8] sm:$0xff]
    %v3799 = vld [vmem:[#allocation7 + $0xeb0] sm:$0xff]
    %v3800 = vld [vmem:[#allocation7 + $0xeb8] sm:$0xff]
    %v3801 = vld [vmem:[#allocation7 + $0xec0] sm:$0xff]
    %v3802 = vld [vmem:[#allocation7 + $0xec8] sm:$0xff]
    %v3803 = vld [vmem:[#allocation7 + $0xed0] sm:$0xff]
    %v3804 = vld [vmem:[#allocation7 + $0xed8] sm:$0xff]
    %v3805 = vld [vmem:[#allocation7 + $0xee0] sm:$0xff]
    %v3806 = vld [vmem:[#allocation7 + $0xee8] sm:$0xff]
    %v3807 = vld [vmem:[#allocation7 + $0xef0] sm:$0xff]
    %v3808 = vld [vmem:[#allocation7 + $0xef8] sm:$0xff]
    %v3809 = vld [vmem:[#allocation7 + $0xf00] sm:$0xff]
    %v3810 = vld [vmem:[#allocation7 + $0xf08] sm:$0xff]
    %v3811 = vld [vmem:[#allocation7 + $0xf10] sm:$0xff]
    %v3812 = vld [vmem:[#allocation7 + $0xf18] sm:$0xff]
    %v3813 = vld [vmem:[#allocation7 + $0xf20] sm:$0xff]
    %v3814 = vld [vmem:[#allocation7 + $0xf28] sm:$0xff]
    %v3815 = vld [vmem:[#allocation7 + $0xf30] sm:$0xff]
    %v3816 = vld [vmem:[#allocation7 + $0xf38] sm:$0xff]
    %v3817 = vld [vmem:[#allocation7 + $0xf40] sm:$0xff]
    %v3818 = vld [vmem:[#allocation7 + $0xf48] sm:$0xff]
    %v3819 = vld [vmem:[#allocation7 + $0xf50] sm:$0xff]
    %v3820 = vld [vmem:[#allocation7 + $0xf58] sm:$0xff]
    %v3821 = vld [vmem:[#allocation7 + $0xf60] sm:$0xff]
    %v3822 = vld [vmem:[#allocation7 + $0xf68] sm:$0xff]
    %v3823 = vld [vmem:[#allocation7 + $0xf70] sm:$0xff]
    %v3824 = vld [vmem:[#allocation7 + $0xf78] sm:$0xff]
    %v3825 = vld [vmem:[#allocation7 + $0xf80] sm:$0xff]
    %v3826 = vld [vmem:[#allocation7 + $0xf88] sm:$0xff]
    %v3827 = vld [vmem:[#allocation7 + $0xf90] sm:$0xff]
    %v3828 = vld [vmem:[#allocation7 + $0xf98] sm:$0xff]
    %v3829 = vld [vmem:[#allocation7 + $0xfa0] sm:$0xff]
    %v3830 = vld [vmem:[#allocation7 + $0xfa8] sm:$0xff]
    %v3831 = vld [vmem:[#allocation7 + $0xfb0] sm:$0xff]
    %v3832 = vld [vmem:[#allocation7 + $0xfb8] sm:$0xff]
    %v3833 = vld [vmem:[#allocation7 + $0xfc0] sm:$0xff]
    %v3834 = vld [vmem:[#allocation7 + $0xfc8] sm:$0xff]
    %v3835 = vld [vmem:[#allocation7 + $0xfd0] sm:$0xff]
    %v3836 = vld [vmem:[#allocation7 + $0xfd8] sm:$0xff]
    %v3837 = vld [vmem:[#allocation7 + $0xfe0] sm:$0xff]
    %v3838 = vld [vmem:[#allocation7 + $0xfe8] sm:$0xff]
    %v3839 = vld [vmem:[#allocation7 + $0xff0] sm:$0xff]
    %v3840 = vld [vmem:[#allocation7 + $0xff8] sm:$0xff]
    %v4353 = vunpack.c.l.b16 %v3329
    %v4354 = vunpack.c.h.b16 %v3329
    %v4355 = vunpack.c.l.b16 %v3330
    %v4356 = vunpack.c.h.b16 %v3330
    %v4357 = vunpack.c.l.b16 %v3331
    %v4358 = vunpack.c.h.b16 %v3331
    %v4359 = vunpack.c.l.b16 %v3332
    %v4360 = vunpack.c.h.b16 %v3332
    %v4361 = vunpack.c.l.b16 %v3333
    %v4362 = vunpack.c.h.b16 %v3333
    %v4363 = vunpack.c.l.b16 %v3334
    %v4364 = vunpack.c.h.b16 %v3334
    %v4365 = vunpack.c.l.b16 %v3335
    %v4366 = vunpack.c.h.b16 %v3335
    %v4367 = vunpack.c.l.b16 %v3336
    %v4368 = vunpack.c.h.b16 %v3336
    %v4369 = vunpack.c.l.b16 %v3337
    %v4370 = vunpack.c.h.b16 %v3337
    %v4371 = vunpack.c.l.b16 %v3338
    %v4372 = vunpack.c.h.b16 %v3338
    %v4373 = vunpack.c.l.b16 %v3339
    %v4374 = vunpack.c.h.b16 %v3339
    %v4375 = vunpack.c.l.b16 %v3340
    %v4376 = vunpack.c.h.b16 %v3340
    %v4377 = vunpack.c.l.b16 %v3341
    %v4378 = vunpack.c.h.b16 %v3341
    %v4379 = vunpack.c.l.b16 %v3342
    %v4380 = vunpack.c.h.b16 %v3342
    %v4381 = vunpack.c.l.b16 %v3343
    %v4382 = vunpack.c.h.b16 %v3343
    %v4383 = vunpack.c.l.b16 %v3344
    %v4384 = vunpack.c.h.b16 %v3344
    %v4385 = vunpack.c.l.b16 %v3345
    %v4386 = vunpack.c.h.b16 %v3345
    %v4387 = vunpack.c.l.b16 %v3346
    %v4388 = vunpack.c.h.b16 %v3346
    %v4389 = vunpack.c.l.b16 %v3347
    %v4390 = vunpack.c.h.b16 %v3347
    %v4391 = vunpack.c.l.b16 %v3348
    %v4392 = vunpack.c.h.b16 %v3348
    %v4393 = vunpack.c.l.b16 %v3349
    %v4394 = vunpack.c.h.b16 %v3349
    %v4395 = vunpack.c.l.b16 %v3350
    %v4396 = vunpack.c.h.b16 %v3350
    %v4397 = vunpack.c.l.b16 %v3351
    %v4398 = vunpack.c.h.b16 %v3351
    %v4399 = vunpack.c.l.b16 %v3352
    %v4400 = vunpack.c.h.b16 %v3352
    %v4401 = vunpack.c.l.b16 %v3353
    %v4402 = vunpack.c.h.b16 %v3353
    %v4403 = vunpack.c.l.b16 %v3354
    %v4404 = vunpack.c.h.b16 %v3354
    %v4405 = vunpack.c.l.b16 %v3355
    %v4406 = vunpack.c.h.b16 %v3355
    %v4407 = vunpack.c.l.b16 %v3356
    %v4408 = vunpack.c.h.b16 %v3356
    %v4409 = vunpack.c.l.b16 %v3357
    %v4410 = vunpack.c.h.b16 %v3357
    %v4411 = vunpack.c.l.b16 %v3358
    %v4412 = vunpack.c.h.b16 %v3358
    %v4413 = vunpack.c.l.b16 %v3359
    %v4414 = vunpack.c.h.b16 %v3359
    %v4415 = vunpack.c.l.b16 %v3360
    %v4416 = vunpack.c.h.b16 %v3360
    %v4417 = vunpack.c.l.b16 %v3361
    %v4418 = vunpack.c.h.b16 %v3361
    %v4419 = vunpack.c.l.b16 %v3362
    %v4420 = vunpack.c.h.b16 %v3362
    %v4421 = vunpack.c.l.b16 %v3363
    %v4422 = vunpack.c.h.b16 %v3363
    %v4423 = vunpack.c.l.b16 %v3364
    %v4424 = vunpack.c.h.b16 %v3364
    %v4425 = vunpack.c.l.b16 %v3365
    %v4426 = vunpack.c.h.b16 %v3365
    %v4427 = vunpack.c.l.b16 %v3366
    %v4428 = vunpack.c.h.b16 %v3366
    %v4429 = vunpack.c.l.b16 %v3367
    %v4430 = vunpack.c.h.b16 %v3367
    %v4431 = vunpack.c.l.b16 %v3368
    %v4432 = vunpack.c.h.b16 %v3368
    %v4433 = vunpack.c.l.b16 %v3369
    %v4434 = vunpack.c.h.b16 %v3369
    %v4435 = vunpack.c.l.b16 %v3370
    %v4436 = vunpack.c.h.b16 %v3370
    %v4437 = vunpack.c.l.b16 %v3371
    %v4438 = vunpack.c.h.b16 %v3371
    %v4439 = vunpack.c.l.b16 %v3372
    %v4440 = vunpack.c.h.b16 %v3372
    %v4441 = vunpack.c.l.b16 %v3373
    %v4442 = vunpack.c.h.b16 %v3373
    %v4443 = vunpack.c.l.b16 %v3374
    %v4444 = vunpack.c.h.b16 %v3374
    %v4445 = vunpack.c.l.b16 %v3375
    %v4446 = vunpack.c.h.b16 %v3375
    %v4447 = vunpack.c.l.b16 %v3376
    %v4448 = vunpack.c.h.b16 %v3376
    %v4449 = vunpack.c.l.b16 %v3377
    %v4450 = vunpack.c.h.b16 %v3377
    %v4451 = vunpack.c.l.b16 %v3378
    %v4452 = vunpack.c.h.b16 %v3378
    %v4453 = vunpack.c.l.b16 %v3379
    %v4454 = vunpack.c.h.b16 %v3379
    %v4455 = vunpack.c.l.b16 %v3380
    %v4456 = vunpack.c.h.b16 %v3380
    %v4457 = vunpack.c.l.b16 %v3381
    %v4458 = vunpack.c.h.b16 %v3381
    %v4459 = vunpack.c.l.b16 %v3382
    %v4460 = vunpack.c.h.b16 %v3382
    %v4461 = vunpack.c.l.b16 %v3383
    %v4462 = vunpack.c.h.b16 %v3383
    %v4463 = vunpack.c.l.b16 %v3384
    %v4464 = vunpack.c.h.b16 %v3384
    %v4465 = vunpack.c.l.b16 %v3385
    %v4466 = vunpack.c.h.b16 %v3385
    %v4467 = vunpack.c.l.b16 %v3386
    %v4468 = vunpack.c.h.b16 %v3386
    %v4469 = vunpack.c.l.b16 %v3387
    %v4470 = vunpack.c.h.b16 %v3387
    %v4471 = vunpack.c.l.b16 %v3388
    %v4472 = vunpack.c.h.b16 %v3388
    %v4473 = vunpack.c.l.b16 %v3389
    %v4474 = vunpack.c.h.b16 %v3389
    %v4475 = vunpack.c.l.b16 %v3390
    %v4476 = vunpack.c.h.b16 %v3390
    %v4477 = vunpack.c.l.b16 %v3391
    %v4478 = vunpack.c.h.b16 %v3391
    %v4479 = vunpack.c.l.b16 %v3392
    %v4480 = vunpack.c.h.b16 %v3392
    %v4481 = vunpack.c.l.b16 %v3393
    %v4482 = vunpack.c.h.b16 %v3393
    %v4483 = vunpack.c.l.b16 %v3394
    %v4484 = vunpack.c.h.b16 %v3394
    %v4485 = vunpack.c.l.b16 %v3395
    %v4486 = vunpack.c.h.b16 %v3395
    %v4487 = vunpack.c.l.b16 %v3396
    %v4488 = vunpack.c.h.b16 %v3396
    %v4489 = vunpack.c.l.b16 %v3397
    %v4490 = vunpack.c.h.b16 %v3397
    %v4491 = vunpack.c.l.b16 %v3398
    %v4492 = vunpack.c.h.b16 %v3398
    %v4493 = vunpack.c.l.b16 %v3399
    %v4494 = vunpack.c.h.b16 %v3399
    %v4495 = vunpack.c.l.b16 %v3400
    %v4496 = vunpack.c.h.b16 %v3400
    %v4497 = vunpack.c.l.b16 %v3401
    %v4498 = vunpack.c.h.b16 %v3401
    %v4499 = vunpack.c.l.b16 %v3402
    %v4500 = vunpack.c.h.b16 %v3402
    %v4501 = vunpack.c.l.b16 %v3403
    %v4502 = vunpack.c.h.b16 %v3403
    %v4503 = vunpack.c.l.b16 %v3404
    %v4504 = vunpack.c.h.b16 %v3404
    %v4505 = vunpack.c.l.b16 %v3405
    %v4506 = vunpack.c.h.b16 %v3405
    %v4507 = vunpack.c.l.b16 %v3406
    %v4508 = vunpack.c.h.b16 %v3406
    %v4509 = vunpack.c.l.b16 %v3407
    %v4510 = vunpack.c.h.b16 %v3407
    %v4511 = vunpack.c.l.b16 %v3408
    %v4512 = vunpack.c.h.b16 %v3408
    %v4513 = vunpack.c.l.b16 %v3409
    %v4514 = vunpack.c.h.b16 %v3409
    %v4515 = vunpack.c.l.b16 %v3410
    %v4516 = vunpack.c.h.b16 %v3410
    %v4517 = vunpack.c.l.b16 %v3411
    %v4518 = vunpack.c.h.b16 %v3411
    %v4519 = vunpack.c.l.b16 %v3412
    %v4520 = vunpack.c.h.b16 %v3412
    %v4521 = vunpack.c.l.b16 %v3413
    %v4522 = vunpack.c.h.b16 %v3413
    %v4523 = vunpack.c.l.b16 %v3414
    %v4524 = vunpack.c.h.b16 %v3414
    %v4525 = vunpack.c.l.b16 %v3415
    %v4526 = vunpack.c.h.b16 %v3415
    %v4527 = vunpack.c.l.b16 %v3416
    %v4528 = vunpack.c.h.b16 %v3416
    %v4529 = vunpack.c.l.b16 %v3417
    %v4530 = vunpack.c.h.b16 %v3417
    %v4531 = vunpack.c.l.b16 %v3418
    %v4532 = vunpack.c.h.b16 %v3418
    %v4533 = vunpack.c.l.b16 %v3419
    %v4534 = vunpack.c.h.b16 %v3419
    %v4535 = vunpack.c.l.b16 %v3420
    %v4536 = vunpack.c.h.b16 %v3420
    %v4537 = vunpack.c.l.b16 %v3421
    %v4538 = vunpack.c.h.b16 %v3421
    %v4539 = vunpack.c.l.b16 %v3422
    %v4540 = vunpack.c.h.b16 %v3422
    %v4541 = vunpack.c.l.b16 %v3423
    %v4542 = vunpack.c.h.b16 %v3423
    %v4543 = vunpack.c.l.b16 %v3424
    %v4544 = vunpack.c.h.b16 %v3424
    %v4545 = vunpack.c.l.b16 %v3425
    %v4546 = vunpack.c.h.b16 %v3425
    %v4547 = vunpack.c.l.b16 %v3426
    %v4548 = vunpack.c.h.b16 %v3426
    %v4549 = vunpack.c.l.b16 %v3427
    %v4550 = vunpack.c.h.b16 %v3427
    %v4551 = vunpack.c.l.b16 %v3428
    %v4552 = vunpack.c.h.b16 %v3428
    %v4553 = vunpack.c.l.b16 %v3429
    %v4554 = vunpack.c.h.b16 %v3429
    %v4555 = vunpack.c.l.b16 %v3430
    %v4556 = vunpack.c.h.b16 %v3430
    %v4557 = vunpack.c.l.b16 %v3431
    %v4558 = vunpack.c.h.b16 %v3431
    %v4559 = vunpack.c.l.b16 %v3432
    %v4560 = vunpack.c.h.b16 %v3432
    %v4561 = vunpack.c.l.b16 %v3433
    %v4562 = vunpack.c.h.b16 %v3433
    %v4563 = vunpack.c.l.b16 %v3434
    %v4564 = vunpack.c.h.b16 %v3434
    %v4565 = vunpack.c.l.b16 %v3435
    %v4566 = vunpack.c.h.b16 %v3435
    %v4567 = vunpack.c.l.b16 %v3436
    %v4568 = vunpack.c.h.b16 %v3436
    %v4569 = vunpack.c.l.b16 %v3437
    %v4570 = vunpack.c.h.b16 %v3437
    %v4571 = vunpack.c.l.b16 %v3438
    %v4572 = vunpack.c.h.b16 %v3438
    %v4573 = vunpack.c.l.b16 %v3439
    %v4574 = vunpack.c.h.b16 %v3439
    %v4575 = vunpack.c.l.b16 %v3440
    %v4576 = vunpack.c.h.b16 %v3440
    %v4577 = vunpack.c.l.b16 %v3441
    %v4578 = vunpack.c.h.b16 %v3441
    %v4579 = vunpack.c.l.b16 %v3442
    %v4580 = vunpack.c.h.b16 %v3442
    %v4581 = vunpack.c.l.b16 %v3443
    %v4582 = vunpack.c.h.b16 %v3443
    %v4583 = vunpack.c.l.b16 %v3444
    %v4584 = vunpack.c.h.b16 %v3444
    %v4585 = vunpack.c.l.b16 %v3445
    %v4586 = vunpack.c.h.b16 %v3445
    %v4587 = vunpack.c.l.b16 %v3446
    %v4588 = vunpack.c.h.b16 %v3446
    %v4589 = vunpack.c.l.b16 %v3447
    %v4590 = vunpack.c.h.b16 %v3447
    %v4591 = vunpack.c.l.b16 %v3448
    %v4592 = vunpack.c.h.b16 %v3448
    %v4593 = vunpack.c.l.b16 %v3449
    %v4594 = vunpack.c.h.b16 %v3449
    %v4595 = vunpack.c.l.b16 %v3450
    %v4596 = vunpack.c.h.b16 %v3450
    %v4597 = vunpack.c.l.b16 %v3451
    %v4598 = vunpack.c.h.b16 %v3451
    %v4599 = vunpack.c.l.b16 %v3452
    %v4600 = vunpack.c.h.b16 %v3452
    %v4601 = vunpack.c.l.b16 %v3453
    %v4602 = vunpack.c.h.b16 %v3453
    %v4603 = vunpack.c.l.b16 %v3454
    %v4604 = vunpack.c.h.b16 %v3454
    %v4605 = vunpack.c.l.b16 %v3455
    %v4606 = vunpack.c.h.b16 %v3455
    %v4607 = vunpack.c.l.b16 %v3456
    %v4608 = vunpack.c.h.b16 %v3456
    %v4609 = vunpack.c.l.b16 %v3457
    %v4610 = vunpack.c.h.b16 %v3457
    %v4611 = vunpack.c.l.b16 %v3458
    %v4612 = vunpack.c.h.b16 %v3458
    %v4613 = vunpack.c.l.b16 %v3459
    %v4614 = vunpack.c.h.b16 %v3459
    %v4615 = vunpack.c.l.b16 %v3460
    %v4616 = vunpack.c.h.b16 %v3460
    %v4617 = vunpack.c.l.b16 %v3461
    %v4618 = vunpack.c.h.b16 %v3461
    %v4619 = vunpack.c.l.b16 %v3462
    %v4620 = vunpack.c.h.b16 %v3462
    %v4621 = vunpack.c.l.b16 %v3463
    %v4622 = vunpack.c.h.b16 %v3463
    %v4623 = vunpack.c.l.b16 %v3464
    %v4624 = vunpack.c.h.b16 %v3464
    %v4625 = vunpack.c.l.b16 %v3465
    %v4626 = vunpack.c.h.b16 %v3465
    %v4627 = vunpack.c.l.b16 %v3466
    %v4628 = vunpack.c.h.b16 %v3466
    %v4629 = vunpack.c.l.b16 %v3467
    %v4630 = vunpack.c.h.b16 %v3467
    %v4631 = vunpack.c.l.b16 %v3468
    %v4632 = vunpack.c.h.b16 %v3468
    %v4633 = vunpack.c.l.b16 %v3469
    %v4634 = vunpack.c.h.b16 %v3469
    %v4635 = vunpack.c.l.b16 %v3470
    %v4636 = vunpack.c.h.b16 %v3470
    %v4637 = vunpack.c.l.b16 %v3471
    %v4638 = vunpack.c.h.b16 %v3471
    %v4639 = vunpack.c.l.b16 %v3472
    %v4640 = vunpack.c.h.b16 %v3472
    %v4641 = vunpack.c.l.b16 %v3473
    %v4642 = vunpack.c.h.b16 %v3473
    %v4643 = vunpack.c.l.b16 %v3474
    %v4644 = vunpack.c.h.b16 %v3474
    %v4645 = vunpack.c.l.b16 %v3475
    %v4646 = vunpack.c.h.b16 %v3475
    %v4647 = vunpack.c.l.b16 %v3476
    %v4648 = vunpack.c.h.b16 %v3476
    %v4649 = vunpack.c.l.b16 %v3477
    %v4650 = vunpack.c.h.b16 %v3477
    %v4651 = vunpack.c.l.b16 %v3478
    %v4652 = vunpack.c.h.b16 %v3478
    %v4653 = vunpack.c.l.b16 %v3479
    %v4654 = vunpack.c.h.b16 %v3479
    %v4655 = vunpack.c.l.b16 %v3480
    %v4656 = vunpack.c.h.b16 %v3480
    %v4657 = vunpack.c.l.b16 %v3481
    %v4658 = vunpack.c.h.b16 %v3481
    %v4659 = vunpack.c.l.b16 %v3482
    %v4660 = vunpack.c.h.b16 %v3482
    %v4661 = vunpack.c.l.b16 %v3483
    %v4662 = vunpack.c.h.b16 %v3483
    %v4663 = vunpack.c.l.b16 %v3484
    %v4664 = vunpack.c.h.b16 %v3484
    %v4665 = vunpack.c.l.b16 %v3485
    %v4666 = vunpack.c.h.b16 %v3485
    %v4667 = vunpack.c.l.b16 %v3486
    %v4668 = vunpack.c.h.b16 %v3486
    %v4669 = vunpack.c.l.b16 %v3487
    %v4670 = vunpack.c.h.b16 %v3487
    %v4671 = vunpack.c.l.b16 %v3488
    %v4672 = vunpack.c.h.b16 %v3488
    %v4673 = vunpack.c.l.b16 %v3489
    %v4674 = vunpack.c.h.b16 %v3489
    %v4675 = vunpack.c.l.b16 %v3490
    %v4676 = vunpack.c.h.b16 %v3490
    %v4677 = vunpack.c.l.b16 %v3491
    %v4678 = vunpack.c.h.b16 %v3491
    %v4679 = vunpack.c.l.b16 %v3492
    %v4680 = vunpack.c.h.b16 %v3492
    %v4681 = vunpack.c.l.b16 %v3493
    %v4682 = vunpack.c.h.b16 %v3493
    %v4683 = vunpack.c.l.b16 %v3494
    %v4684 = vunpack.c.h.b16 %v3494
    %v4685 = vunpack.c.l.b16 %v3495
    %v4686 = vunpack.c.h.b16 %v3495
    %v4687 = vunpack.c.l.b16 %v3496
    %v4688 = vunpack.c.h.b16 %v3496
    %v4689 = vunpack.c.l.b16 %v3497
    %v4690 = vunpack.c.h.b16 %v3497
    %v4691 = vunpack.c.l.b16 %v3498
    %v4692 = vunpack.c.h.b16 %v3498
    %v4693 = vunpack.c.l.b16 %v3499
    %v4694 = vunpack.c.h.b16 %v3499
    %v4695 = vunpack.c.l.b16 %v3500
    %v4696 = vunpack.c.h.b16 %v3500
    %v4697 = vunpack.c.l.b16 %v3501
    %v4698 = vunpack.c.h.b16 %v3501
    %v4699 = vunpack.c.l.b16 %v3502
    %v4700 = vunpack.c.h.b16 %v3502
    %v4701 = vunpack.c.l.b16 %v3503
    %v4702 = vunpack.c.h.b16 %v3503
    %v4703 = vunpack.c.l.b16 %v3504
    %v4704 = vunpack.c.h.b16 %v3504
    %v4705 = vunpack.c.l.b16 %v3505
    %v4706 = vunpack.c.h.b16 %v3505
    %v4707 = vunpack.c.l.b16 %v3506
    %v4708 = vunpack.c.h.b16 %v3506
    %v4709 = vunpack.c.l.b16 %v3507
    %v4710 = vunpack.c.h.b16 %v3507
    %v4711 = vunpack.c.l.b16 %v3508
    %v4712 = vunpack.c.h.b16 %v3508
    %v4713 = vunpack.c.l.b16 %v3509
    %v4714 = vunpack.c.h.b16 %v3509
    %v4715 = vunpack.c.l.b16 %v3510
    %v4716 = vunpack.c.h.b16 %v3510
    %v4717 = vunpack.c.l.b16 %v3511
    %v4718 = vunpack.c.h.b16 %v3511
    %v4719 = vunpack.c.l.b16 %v3512
    %v4720 = vunpack.c.h.b16 %v3512
    %v4721 = vunpack.c.l.b16 %v3513
    %v4722 = vunpack.c.h.b16 %v3513
    %v4723 = vunpack.c.l.b16 %v3514
    %v4724 = vunpack.c.h.b16 %v3514
    %v4725 = vunpack.c.l.b16 %v3515
    %v4726 = vunpack.c.h.b16 %v3515
    %v4727 = vunpack.c.l.b16 %v3516
    %v4728 = vunpack.c.h.b16 %v3516
    %v4729 = vunpack.c.l.b16 %v3517
    %v4730 = vunpack.c.h.b16 %v3517
    %v4731 = vunpack.c.l.b16 %v3518
    %v4732 = vunpack.c.h.b16 %v3518
    %v4733 = vunpack.c.l.b16 %v3519
    %v4734 = vunpack.c.h.b16 %v3519
    %v4735 = vunpack.c.l.b16 %v3520
    %v4736 = vunpack.c.h.b16 %v3520
    %v4737 = vunpack.c.l.b16 %v3521
    %v4738 = vunpack.c.h.b16 %v3521
    %v4739 = vunpack.c.l.b16 %v3522
    %v4740 = vunpack.c.h.b16 %v3522
    %v4741 = vunpack.c.l.b16 %v3523
    %v4742 = vunpack.c.h.b16 %v3523
    %v4743 = vunpack.c.l.b16 %v3524
    %v4744 = vunpack.c.h.b16 %v3524
    %v4745 = vunpack.c.l.b16 %v3525
    %v4746 = vunpack.c.h.b16 %v3525
    %v4747 = vunpack.c.l.b16 %v3526
    %v4748 = vunpack.c.h.b16 %v3526
    %v4749 = vunpack.c.l.b16 %v3527
    %v4750 = vunpack.c.h.b16 %v3527
    %v4751 = vunpack.c.l.b16 %v3528
    %v4752 = vunpack.c.h.b16 %v3528
    %v4753 = vunpack.c.l.b16 %v3529
    %v4754 = vunpack.c.h.b16 %v3529
    %v4755 = vunpack.c.l.b16 %v3530
    %v4756 = vunpack.c.h.b16 %v3530
    %v4757 = vunpack.c.l.b16 %v3531
    %v4758 = vunpack.c.h.b16 %v3531
    %v4759 = vunpack.c.l.b16 %v3532
    %v4760 = vunpack.c.h.b16 %v3532
    %v4761 = vunpack.c.l.b16 %v3533
    %v4762 = vunpack.c.h.b16 %v3533
    %v4763 = vunpack.c.l.b16 %v3534
    %v4764 = vunpack.c.h.b16 %v3534
    %v4765 = vunpack.c.l.b16 %v3535
    %v4766 = vunpack.c.h.b16 %v3535
    %v4767 = vunpack.c.l.b16 %v3536
    %v4768 = vunpack.c.h.b16 %v3536
    %v4769 = vunpack.c.l.b16 %v3537
    %v4770 = vunpack.c.h.b16 %v3537
    %v4771 = vunpack.c.l.b16 %v3538
    %v4772 = vunpack.c.h.b16 %v3538
    %v4773 = vunpack.c.l.b16 %v3539
    %v4774 = vunpack.c.h.b16 %v3539
    %v4775 = vunpack.c.l.b16 %v3540
    %v4776 = vunpack.c.h.b16 %v3540
    %v4777 = vunpack.c.l.b16 %v3541
    %v4778 = vunpack.c.h.b16 %v3541
    %v4779 = vunpack.c.l.b16 %v3542
    %v4780 = vunpack.c.h.b16 %v3542
    %v4781 = vunpack.c.l.b16 %v3543
    %v4782 = vunpack.c.h.b16 %v3543
    %v4783 = vunpack.c.l.b16 %v3544
    %v4784 = vunpack.c.h.b16 %v3544
    %v4785 = vunpack.c.l.b16 %v3545
    %v4786 = vunpack.c.h.b16 %v3545
    %v4787 = vunpack.c.l.b16 %v3546
    %v4788 = vunpack.c.h.b16 %v3546
    %v4789 = vunpack.c.l.b16 %v3547
    %v4790 = vunpack.c.h.b16 %v3547
    %v4791 = vunpack.c.l.b16 %v3548
    %v4792 = vunpack.c.h.b16 %v3548
    %v4793 = vunpack.c.l.b16 %v3549
    %v4794 = vunpack.c.h.b16 %v3549
    %v4795 = vunpack.c.l.b16 %v3550
    %v4796 = vunpack.c.h.b16 %v3550
    %v4797 = vunpack.c.l.b16 %v3551
    %v4798 = vunpack.c.h.b16 %v3551
    %v4799 = vunpack.c.l.b16 %v3552
    %v4800 = vunpack.c.h.b16 %v3552
    %v4801 = vunpack.c.l.b16 %v3553
    %v4802 = vunpack.c.h.b16 %v3553
    %v4803 = vunpack.c.l.b16 %v3554
    %v4804 = vunpack.c.h.b16 %v3554
    %v4805 = vunpack.c.l.b16 %v3555
    %v4806 = vunpack.c.h.b16 %v3555
    %v4807 = vunpack.c.l.b16 %v3556
    %v4808 = vunpack.c.h.b16 %v3556
    %v4809 = vunpack.c.l.b16 %v3557
    %v4810 = vunpack.c.h.b16 %v3557
    %v4811 = vunpack.c.l.b16 %v3558
    %v4812 = vunpack.c.h.b16 %v3558
    %v4813 = vunpack.c.l.b16 %v3559
    %v4814 = vunpack.c.h.b16 %v3559
    %v4815 = vunpack.c.l.b16 %v3560
    %v4816 = vunpack.c.h.b16 %v3560
    %v4817 = vunpack.c.l.b16 %v3561
    %v4818 = vunpack.c.h.b16 %v3561
    %v4819 = vunpack.c.l.b16 %v3562
    %v4820 = vunpack.c.h.b16 %v3562
    %v4821 = vunpack.c.l.b16 %v3563
    %v4822 = vunpack.c.h.b16 %v3563
    %v4823 = vunpack.c.l.b16 %v3564
    %v4824 = vunpack.c.h.b16 %v3564
    %v4825 = vunpack.c.l.b16 %v3565
    %v4826 = vunpack.c.h.b16 %v3565
    %v4827 = vunpack.c.l.b16 %v3566
    %v4828 = vunpack.c.h.b16 %v3566
    %v4829 = vunpack.c.l.b16 %v3567
    %v4830 = vunpack.c.h.b16 %v3567
    %v4831 = vunpack.c.l.b16 %v3568
    %v4832 = vunpack.c.h.b16 %v3568
    %v4833 = vunpack.c.l.b16 %v3569
    %v4834 = vunpack.c.h.b16 %v3569
    %v4835 = vunpack.c.l.b16 %v3570
    %v4836 = vunpack.c.h.b16 %v3570
    %v4837 = vunpack.c.l.b16 %v3571
    %v4838 = vunpack.c.h.b16 %v3571
    %v4839 = vunpack.c.l.b16 %v3572
    %v4840 = vunpack.c.h.b16 %v3572
    %v4841 = vunpack.c.l.b16 %v3573
    %v4842 = vunpack.c.h.b16 %v3573
    %v4843 = vunpack.c.l.b16 %v3574
    %v4844 = vunpack.c.h.b16 %v3574
    %v4845 = vunpack.c.l.b16 %v3575
    %v4846 = vunpack.c.h.b16 %v3575
    %v4847 = vunpack.c.l.b16 %v3576
    %v4848 = vunpack.c.h.b16 %v3576
    %v4849 = vunpack.c.l.b16 %v3577
    %v4850 = vunpack.c.h.b16 %v3577
    %v4851 = vunpack.c.l.b16 %v3578
    %v4852 = vunpack.c.h.b16 %v3578
    %v4853 = vunpack.c.l.b16 %v3579
    %v4854 = vunpack.c.h.b16 %v3579
    %v4855 = vunpack.c.l.b16 %v3580
    %v4856 = vunpack.c.h.b16 %v3580
    %v4857 = vunpack.c.l.b16 %v3581
    %v4858 = vunpack.c.h.b16 %v3581
    %v4859 = vunpack.c.l.b16 %v3582
    %v4860 = vunpack.c.h.b16 %v3582
    %v4861 = vunpack.c.l.b16 %v3583
    %v4862 = vunpack.c.h.b16 %v3583
    %v4863 = vunpack.c.l.b16 %v3584
    %v4864 = vunpack.c.h.b16 %v3584
    %v4865 = vunpack.c.l.b16 %v3585
    %v4866 = vunpack.c.h.b16 %v3585
    %v4867 = vunpack.c.l.b16 %v3586
    %v4868 = vunpack.c.h.b16 %v3586
    %v4869 = vunpack.c.l.b16 %v3587
    %v4870 = vunpack.c.h.b16 %v3587
    %v4871 = vunpack.c.l.b16 %v3588
    %v4872 = vunpack.c.h.b16 %v3588
    %v4873 = vunpack.c.l.b16 %v3589
    %v4874 = vunpack.c.h.b16 %v3589
    %v4875 = vunpack.c.l.b16 %v3590
    %v4876 = vunpack.c.h.b16 %v3590
    %v4877 = vunpack.c.l.b16 %v3591
    %v4878 = vunpack.c.h.b16 %v3591
    %v4879 = vunpack.c.l.b16 %v3592
    %v4880 = vunpack.c.h.b16 %v3592
    %v4881 = vunpack.c.l.b16 %v3593
    %v4882 = vunpack.c.h.b16 %v3593
    %v4883 = vunpack.c.l.b16 %v3594
    %v4884 = vunpack.c.h.b16 %v3594
    %v4885 = vunpack.c.l.b16 %v3595
    %v4886 = vunpack.c.h.b16 %v3595
    %v4887 = vunpack.c.l.b16 %v3596
    %v4888 = vunpack.c.h.b16 %v3596
    %v4889 = vunpack.c.l.b16 %v3597
    %v4890 = vunpack.c.h.b16 %v3597
    %v4891 = vunpack.c.l.b16 %v3598
    %v4892 = vunpack.c.h.b16 %v3598
    %v4893 = vunpack.c.l.b16 %v3599
    %v4894 = vunpack.c.h.b16 %v3599
    %v4895 = vunpack.c.l.b16 %v3600
    %v4896 = vunpack.c.h.b16 %v3600
    %v4897 = vunpack.c.l.b16 %v3601
    %v4898 = vunpack.c.h.b16 %v3601
    %v4899 = vunpack.c.l.b16 %v3602
    %v4900 = vunpack.c.h.b16 %v3602
    %v4901 = vunpack.c.l.b16 %v3603
    %v4902 = vunpack.c.h.b16 %v3603
    %v4903 = vunpack.c.l.b16 %v3604
    %v4904 = vunpack.c.h.b16 %v3604
    %v4905 = vunpack.c.l.b16 %v3605
    %v4906 = vunpack.c.h.b16 %v3605
    %v4907 = vunpack.c.l.b16 %v3606
    %v4908 = vunpack.c.h.b16 %v3606
    %v4909 = vunpack.c.l.b16 %v3607
    %v4910 = vunpack.c.h.b16 %v3607
    %v4911 = vunpack.c.l.b16 %v3608
    %v4912 = vunpack.c.h.b16 %v3608
    %v4913 = vunpack.c.l.b16 %v3609
    %v4914 = vunpack.c.h.b16 %v3609
    %v4915 = vunpack.c.l.b16 %v3610
    %v4916 = vunpack.c.h.b16 %v3610
    %v4917 = vunpack.c.l.b16 %v3611
    %v4918 = vunpack.c.h.b16 %v3611
    %v4919 = vunpack.c.l.b16 %v3612
    %v4920 = vunpack.c.h.b16 %v3612
    %v4921 = vunpack.c.l.b16 %v3613
    %v4922 = vunpack.c.h.b16 %v3613
    %v4923 = vunpack.c.l.b16 %v3614
    %v4924 = vunpack.c.h.b16 %v3614
    %v4925 = vunpack.c.l.b16 %v3615
    %v4926 = vunpack.c.h.b16 %v3615
    %v4927 = vunpack.c.l.b16 %v3616
    %v4928 = vunpack.c.h.b16 %v3616
    %v4929 = vunpack.c.l.b16 %v3617
    %v4930 = vunpack.c.h.b16 %v3617
    %v4931 = vunpack.c.l.b16 %v3618
    %v4932 = vunpack.c.h.b16 %v3618
    %v4933 = vunpack.c.l.b16 %v3619
    %v4934 = vunpack.c.h.b16 %v3619
    %v4935 = vunpack.c.l.b16 %v3620
    %v4936 = vunpack.c.h.b16 %v3620
    %v4937 = vunpack.c.l.b16 %v3621
    %v4938 = vunpack.c.h.b16 %v3621
    %v4939 = vunpack.c.l.b16 %v3622
    %v4940 = vunpack.c.h.b16 %v3622
    %v4941 = vunpack.c.l.b16 %v3623
    %v4942 = vunpack.c.h.b16 %v3623
    %v4943 = vunpack.c.l.b16 %v3624
    %v4944 = vunpack.c.h.b16 %v3624
    %v4945 = vunpack.c.l.b16 %v3625
    %v4946 = vunpack.c.h.b16 %v3625
    %v4947 = vunpack.c.l.b16 %v3626
    %v4948 = vunpack.c.h.b16 %v3626
    %v4949 = vunpack.c.l.b16 %v3627
    %v4950 = vunpack.c.h.b16 %v3627
    %v4951 = vunpack.c.l.b16 %v3628
    %v4952 = vunpack.c.h.b16 %v3628
    %v4953 = vunpack.c.l.b16 %v3629
    %v4954 = vunpack.c.h.b16 %v3629
    %v4955 = vunpack.c.l.b16 %v3630
    %v4956 = vunpack.c.h.b16 %v3630
    %v4957 = vunpack.c.l.b16 %v3631
    %v4958 = vunpack.c.h.b16 %v3631
    %v4959 = vunpack.c.l.b16 %v3632
    %v4960 = vunpack.c.h.b16 %v3632
    %v4961 = vunpack.c.l.b16 %v3633
    %v4962 = vunpack.c.h.b16 %v3633
    %v4963 = vunpack.c.l.b16 %v3634
    %v4964 = vunpack.c.h.b16 %v3634
    %v4965 = vunpack.c.l.b16 %v3635
    %v4966 = vunpack.c.h.b16 %v3635
    %v4967 = vunpack.c.l.b16 %v3636
    %v4968 = vunpack.c.h.b16 %v3636
    %v4969 = vunpack.c.l.b16 %v3637
    %v4970 = vunpack.c.h.b16 %v3637
    %v4971 = vunpack.c.l.b16 %v3638
    %v4972 = vunpack.c.h.b16 %v3638
    %v4973 = vunpack.c.l.b16 %v3639
    %v4974 = vunpack.c.h.b16 %v3639
    %v4975 = vunpack.c.l.b16 %v3640
    %v4976 = vunpack.c.h.b16 %v3640
    %v4977 = vunpack.c.l.b16 %v3641
    %v4978 = vunpack.c.h.b16 %v3641
    %v4979 = vunpack.c.l.b16 %v3642
    %v4980 = vunpack.c.h.b16 %v3642
    %v4981 = vunpack.c.l.b16 %v3643
    %v4982 = vunpack.c.h.b16 %v3643
    %v4983 = vunpack.c.l.b16 %v3644
    %v4984 = vunpack.c.h.b16 %v3644
    %v4985 = vunpack.c.l.b16 %v3645
    %v4986 = vunpack.c.h.b16 %v3645
    %v4987 = vunpack.c.l.b16 %v3646
    %v4988 = vunpack.c.h.b16 %v3646
    %v4989 = vunpack.c.l.b16 %v3647
    %v4990 = vunpack.c.h.b16 %v3647
    %v4991 = vunpack.c.l.b16 %v3648
    %v4992 = vunpack.c.h.b16 %v3648
    %v4993 = vunpack.c.l.b16 %v3649
    %v4994 = vunpack.c.h.b16 %v3649
    %v4995 = vunpack.c.l.b16 %v3650
    %v4996 = vunpack.c.h.b16 %v3650
    %v4997 = vunpack.c.l.b16 %v3651
    %v4998 = vunpack.c.h.b16 %v3651
    %v4999 = vunpack.c.l.b16 %v3652
    %v5000 = vunpack.c.h.b16 %v3652
    %v5001 = vunpack.c.l.b16 %v3653
    %v5002 = vunpack.c.h.b16 %v3653
    %v5003 = vunpack.c.l.b16 %v3654
    %v5004 = vunpack.c.h.b16 %v3654
    %v5005 = vunpack.c.l.b16 %v3655
    %v5006 = vunpack.c.h.b16 %v3655
    %v5007 = vunpack.c.l.b16 %v3656
    %v5008 = vunpack.c.h.b16 %v3656
    %v5009 = vunpack.c.l.b16 %v3657
    %v5010 = vunpack.c.h.b16 %v3657
    %v5011 = vunpack.c.l.b16 %v3658
    %v5012 = vunpack.c.h.b16 %v3658
    %v5013 = vunpack.c.l.b16 %v3659
    %v5014 = vunpack.c.h.b16 %v3659
    %v5015 = vunpack.c.l.b16 %v3660
    %v5016 = vunpack.c.h.b16 %v3660
    %v5017 = vunpack.c.l.b16 %v3661
    %v5018 = vunpack.c.h.b16 %v3661
    %v5019 = vunpack.c.l.b16 %v3662
    %v5020 = vunpack.c.h.b16 %v3662
    %v5021 = vunpack.c.l.b16 %v3663
    %v5022 = vunpack.c.h.b16 %v3663
    %v5023 = vunpack.c.l.b16 %v3664
    %v5024 = vunpack.c.h.b16 %v3664
    %v5025 = vunpack.c.l.b16 %v3665
    %v5026 = vunpack.c.h.b16 %v3665
    %v5027 = vunpack.c.l.b16 %v3666
    %v5028 = vunpack.c.h.b16 %v3666
    %v5029 = vunpack.c.l.b16 %v3667
    %v5030 = vunpack.c.h.b16 %v3667
    %v5031 = vunpack.c.l.b16 %v3668
    %v5032 = vunpack.c.h.b16 %v3668
    %v5033 = vunpack.c.l.b16 %v3669
    %v5034 = vunpack.c.h.b16 %v3669
    %v5035 = vunpack.c.l.b16 %v3670
    %v5036 = vunpack.c.h.b16 %v3670
    %v5037 = vunpack.c.l.b16 %v3671
    %v5038 = vunpack.c.h.b16 %v3671
    %v5039 = vunpack.c.l.b16 %v3672
    %v5040 = vunpack.c.h.b16 %v3672
    %v5041 = vunpack.c.l.b16 %v3673
    %v5042 = vunpack.c.h.b16 %v3673
    %v5043 = vunpack.c.l.b16 %v3674
    %v5044 = vunpack.c.h.b16 %v3674
    %v5045 = vunpack.c.l.b16 %v3675
    %v5046 = vunpack.c.h.b16 %v3675
    %v5047 = vunpack.c.l.b16 %v3676
    %v5048 = vunpack.c.h.b16 %v3676
    %v5049 = vunpack.c.l.b16 %v3677
    %v5050 = vunpack.c.h.b16 %v3677
    %v5051 = vunpack.c.l.b16 %v3678
    %v5052 = vunpack.c.h.b16 %v3678
    %v5053 = vunpack.c.l.b16 %v3679
    %v5054 = vunpack.c.h.b16 %v3679
    %v5055 = vunpack.c.l.b16 %v3680
    %v5056 = vunpack.c.h.b16 %v3680
    %v5057 = vunpack.c.l.b16 %v3681
    %v5058 = vunpack.c.h.b16 %v3681
    %v5059 = vunpack.c.l.b16 %v3682
    %v5060 = vunpack.c.h.b16 %v3682
    %v5061 = vunpack.c.l.b16 %v3683
    %v5062 = vunpack.c.h.b16 %v3683
    %v5063 = vunpack.c.l.b16 %v3684
    %v5064 = vunpack.c.h.b16 %v3684
    %v5065 = vunpack.c.l.b16 %v3685
    %v5066 = vunpack.c.h.b16 %v3685
    %v5067 = vunpack.c.l.b16 %v3686
    %v5068 = vunpack.c.h.b16 %v3686
    %v5069 = vunpack.c.l.b16 %v3687
    %v5070 = vunpack.c.h.b16 %v3687
    %v5071 = vunpack.c.l.b16 %v3688
    %v5072 = vunpack.c.h.b16 %v3688
    %v5073 = vunpack.c.l.b16 %v3689
    %v5074 = vunpack.c.h.b16 %v3689
    %v5075 = vunpack.c.l.b16 %v3690
    %v5076 = vunpack.c.h.b16 %v3690
    %v5077 = vunpack.c.l.b16 %v3691
    %v5078 = vunpack.c.h.b16 %v3691
    %v5079 = vunpack.c.l.b16 %v3692
    %v5080 = vunpack.c.h.b16 %v3692
    %v5081 = vunpack.c.l.b16 %v3693
    %v5082 = vunpack.c.h.b16 %v3693
    %v5083 = vunpack.c.l.b16 %v3694
    %v5084 = vunpack.c.h.b16 %v3694
    %v5085 = vunpack.c.l.b16 %v3695
    %v5086 = vunpack.c.h.b16 %v3695
    %v5087 = vunpack.c.l.b16 %v3696
    %v5088 = vunpack.c.h.b16 %v3696
    %v5089 = vunpack.c.l.b16 %v3697
    %v5090 = vunpack.c.h.b16 %v3697
    %v5091 = vunpack.c.l.b16 %v3698
    %v5092 = vunpack.c.h.b16 %v3698
    %v5093 = vunpack.c.l.b16 %v3699
    %v5094 = vunpack.c.h.b16 %v3699
    %v5095 = vunpack.c.l.b16 %v3700
    %v5096 = vunpack.c.h.b16 %v3700
    %v5097 = vunpack.c.l.b16 %v3701
    %v5098 = vunpack.c.h.b16 %v3701
    %v5099 = vunpack.c.l.b16 %v3702
    %v5100 = vunpack.c.h.b16 %v3702
    %v5101 = vunpack.c.l.b16 %v3703
    %v5102 = vunpack.c.h.b16 %v3703
    %v5103 = vunpack.c.l.b16 %v3704
    %v5104 = vunpack.c.h.b16 %v3704
    %v5105 = vunpack.c.l.b16 %v3705
    %v5106 = vunpack.c.h.b16 %v3705
    %v5107 = vunpack.c.l.b16 %v3706
    %v5108 = vunpack.c.h.b16 %v3706
    %v5109 = vunpack.c.l.b16 %v3707
    %v5110 = vunpack.c.h.b16 %v3707
    %v5111 = vunpack.c.l.b16 %v3708
    %v5112 = vunpack.c.h.b16 %v3708
    %v5113 = vunpack.c.l.b16 %v3709
    %v5114 = vunpack.c.h.b16 %v3709
    %v5115 = vunpack.c.l.b16 %v3710
    %v5116 = vunpack.c.h.b16 %v3710
    %v5117 = vunpack.c.l.b16 %v3711
    %v5118 = vunpack.c.h.b16 %v3711
    %v5119 = vunpack.c.l.b16 %v3712
    %v5120 = vunpack.c.h.b16 %v3712
    %v5121 = vunpack.c.l.b16 %v3713
    %v5122 = vunpack.c.h.b16 %v3713
    %v5123 = vunpack.c.l.b16 %v3714
    %v5124 = vunpack.c.h.b16 %v3714
    %v5125 = vunpack.c.l.b16 %v3715
    %v5126 = vunpack.c.h.b16 %v3715
    %v5127 = vunpack.c.l.b16 %v3716
    %v5128 = vunpack.c.h.b16 %v3716
    %v5129 = vunpack.c.l.b16 %v3717
    %v5130 = vunpack.c.h.b16 %v3717
    %v5131 = vunpack.c.l.b16 %v3718
    %v5132 = vunpack.c.h.b16 %v3718
    %v5133 = vunpack.c.l.b16 %v3719
    %v5134 = vunpack.c.h.b16 %v3719
    %v5135 = vunpack.c.l.b16 %v3720
    %v5136 = vunpack.c.h.b16 %v3720
    %v5137 = vunpack.c.l.b16 %v3721
    %v5138 = vunpack.c.h.b16 %v3721
    %v5139 = vunpack.c.l.b16 %v3722
    %v5140 = vunpack.c.h.b16 %v3722
    %v5141 = vunpack.c.l.b16 %v3723
    %v5142 = vunpack.c.h.b16 %v3723
    %v5143 = vunpack.c.l.b16 %v3724
    %v5144 = vunpack.c.h.b16 %v3724
    %v5145 = vunpack.c.l.b16 %v3725
    %v5146 = vunpack.c.h.b16 %v3725
    %v5147 = vunpack.c.l.b16 %v3726
    %v5148 = vunpack.c.h.b16 %v3726
    %v5149 = vunpack.c.l.b16 %v3727
    %v5150 = vunpack.c.h.b16 %v3727
    %v5151 = vunpack.c.l.b16 %v3728
    %v5152 = vunpack.c.h.b16 %v3728
    %v5153 = vunpack.c.l.b16 %v3729
    %v5154 = vunpack.c.h.b16 %v3729
    %v5155 = vunpack.c.l.b16 %v3730
    %v5156 = vunpack.c.h.b16 %v3730
    %v5157 = vunpack.c.l.b16 %v3731
    %v5158 = vunpack.c.h.b16 %v3731
    %v5159 = vunpack.c.l.b16 %v3732
    %v5160 = vunpack.c.h.b16 %v3732
    %v5161 = vunpack.c.l.b16 %v3733
    %v5162 = vunpack.c.h.b16 %v3733
    %v5163 = vunpack.c.l.b16 %v3734
    %v5164 = vunpack.c.h.b16 %v3734
    %v5165 = vunpack.c.l.b16 %v3735
    %v5166 = vunpack.c.h.b16 %v3735
    %v5167 = vunpack.c.l.b16 %v3736
    %v5168 = vunpack.c.h.b16 %v3736
    %v5169 = vunpack.c.l.b16 %v3737
    %v5170 = vunpack.c.h.b16 %v3737
    %v5171 = vunpack.c.l.b16 %v3738
    %v5172 = vunpack.c.h.b16 %v3738
    %v5173 = vunpack.c.l.b16 %v3739
    %v5174 = vunpack.c.h.b16 %v3739
    %v5175 = vunpack.c.l.b16 %v3740
    %v5176 = vunpack.c.h.b16 %v3740
    %v5177 = vunpack.c.l.b16 %v3741
    %v5178 = vunpack.c.h.b16 %v3741
    %v5179 = vunpack.c.l.b16 %v3742
    %v5180 = vunpack.c.h.b16 %v3742
    %v5181 = vunpack.c.l.b16 %v3743
    %v5182 = vunpack.c.h.b16 %v3743
    %v5183 = vunpack.c.l.b16 %v3744
    %v5184 = vunpack.c.h.b16 %v3744
    %v5185 = vunpack.c.l.b16 %v3745
    %v5186 = vunpack.c.h.b16 %v3745
    %v5187 = vunpack.c.l.b16 %v3746
    %v5188 = vunpack.c.h.b16 %v3746
    %v5189 = vunpack.c.l.b16 %v3747
    %v5190 = vunpack.c.h.b16 %v3747
    %v5191 = vunpack.c.l.b16 %v3748
    %v5192 = vunpack.c.h.b16 %v3748
    %v5193 = vunpack.c.l.b16 %v3749
    %v5194 = vunpack.c.h.b16 %v3749
    %v5195 = vunpack.c.l.b16 %v3750
    %v5196 = vunpack.c.h.b16 %v3750
    %v5197 = vunpack.c.l.b16 %v3751
    %v5198 = vunpack.c.h.b16 %v3751
    %v5199 = vunpack.c.l.b16 %v3752
    %v5200 = vunpack.c.h.b16 %v3752
    %v5201 = vunpack.c.l.b16 %v3753
    %v5202 = vunpack.c.h.b16 %v3753
    %v5203 = vunpack.c.l.b16 %v3754
    %v5204 = vunpack.c.h.b16 %v3754
    %v5205 = vunpack.c.l.b16 %v3755
    %v5206 = vunpack.c.h.b16 %v3755
    %v5207 = vunpack.c.l.b16 %v3756
    %v5208 = vunpack.c.h.b16 %v3756
    %v5209 = vunpack.c.l.b16 %v3757
    %v5210 = vunpack.c.h.b16 %v3757
    %v5211 = vunpack.c.l.b16 %v3758
    %v5212 = vunpack.c.h.b16 %v3758
    %v5213 = vunpack.c.l.b16 %v3759
    %v5214 = vunpack.c.h.b16 %v3759
    %v5215 = vunpack.c.l.b16 %v3760
    %v5216 = vunpack.c.h.b16 %v3760
    %v5217 = vunpack.c.l.b16 %v3761
    %v5218 = vunpack.c.h.b16 %v3761
    %v5219 = vunpack.c.l.b16 %v3762
    %v5220 = vunpack.c.h.b16 %v3762
    %v5221 = vunpack.c.l.b16 %v3763
    %v5222 = vunpack.c.h.b16 %v3763
    %v5223 = vunpack.c.l.b16 %v3764
    %v5224 = vunpack.c.h.b16 %v3764
    %v5225 = vunpack.c.l.b16 %v3765
    %v5226 = vunpack.c.h.b16 %v3765
    %v5227 = vunpack.c.l.b16 %v3766
    %v5228 = vunpack.c.h.b16 %v3766
    %v5229 = vunpack.c.l.b16 %v3767
    %v5230 = vunpack.c.h.b16 %v3767
    %v5231 = vunpack.c.l.b16 %v3768
    %v5232 = vunpack.c.h.b16 %v3768
    %v5233 = vunpack.c.l.b16 %v3769
    %v5234 = vunpack.c.h.b16 %v3769
    %v5235 = vunpack.c.l.b16 %v3770
    %v5236 = vunpack.c.h.b16 %v3770
    %v5237 = vunpack.c.l.b16 %v3771
    %v5238 = vunpack.c.h.b16 %v3771
    %v5239 = vunpack.c.l.b16 %v3772
    %v5240 = vunpack.c.h.b16 %v3772
    %v5241 = vunpack.c.l.b16 %v3773
    %v5242 = vunpack.c.h.b16 %v3773
    %v5243 = vunpack.c.l.b16 %v3774
    %v5244 = vunpack.c.h.b16 %v3774
    %v5245 = vunpack.c.l.b16 %v3775
    %v5246 = vunpack.c.h.b16 %v3775
    %v5247 = vunpack.c.l.b16 %v3776
    %v5248 = vunpack.c.h.b16 %v3776
    %v5249 = vunpack.c.l.b16 %v3777
    %v5250 = vunpack.c.h.b16 %v3777
    %v5251 = vunpack.c.l.b16 %v3778
    %v5252 = vunpack.c.h.b16 %v3778
    %v5253 = vunpack.c.l.b16 %v3779
    %v5254 = vunpack.c.h.b16 %v3779
    %v5255 = vunpack.c.l.b16 %v3780
    %v5256 = vunpack.c.h.b16 %v3780
    %v5257 = vunpack.c.l.b16 %v3781
    %v5258 = vunpack.c.h.b16 %v3781
    %v5259 = vunpack.c.l.b16 %v3782
    %v5260 = vunpack.c.h.b16 %v3782
    %v5261 = vunpack.c.l.b16 %v3783
    %v5262 = vunpack.c.h.b16 %v3783
    %v5263 = vunpack.c.l.b16 %v3784
    %v5264 = vunpack.c.h.b16 %v3784
    %v5265 = vunpack.c.l.b16 %v3785
    %v5266 = vunpack.c.h.b16 %v3785
    %v5267 = vunpack.c.l.b16 %v3786
    %v5268 = vunpack.c.h.b16 %v3786
    %v5269 = vunpack.c.l.b16 %v3787
    %v5270 = vunpack.c.h.b16 %v3787
    %v5271 = vunpack.c.l.b16 %v3788
    %v5272 = vunpack.c.h.b16 %v3788
    %v5273 = vunpack.c.l.b16 %v3789
    %v5274 = vunpack.c.h.b16 %v3789
    %v5275 = vunpack.c.l.b16 %v3790
    %v5276 = vunpack.c.h.b16 %v3790
    %v5277 = vunpack.c.l.b16 %v3791
    %v5278 = vunpack.c.h.b16 %v3791
    %v5279 = vunpack.c.l.b16 %v3792
    %v5280 = vunpack.c.h.b16 %v3792
    %v5281 = vunpack.c.l.b16 %v3793
    %v5282 = vunpack.c.h.b16 %v3793
    %v5283 = vunpack.c.l.b16 %v3794
    %v5284 = vunpack.c.h.b16 %v3794
    %v5285 = vunpack.c.l.b16 %v3795
    %v5286 = vunpack.c.h.b16 %v3795
    %v5287 = vunpack.c.l.b16 %v3796
    %v5288 = vunpack.c.h.b16 %v3796
    %v5289 = vunpack.c.l.b16 %v3797
    %v5290 = vunpack.c.h.b16 %v3797
    %v5291 = vunpack.c.l.b16 %v3798
    %v5292 = vunpack.c.h.b16 %v3798
    %v5293 = vunpack.c.l.b16 %v3799
    %v5294 = vunpack.c.h.b16 %v3799
    %v5295 = vunpack.c.l.b16 %v3800
    %v5296 = vunpack.c.h.b16 %v3800
    %v5297 = vunpack.c.l.b16 %v3801
    %v5298 = vunpack.c.h.b16 %v3801
    %v5299 = vunpack.c.l.b16 %v3802
    %v5300 = vunpack.c.h.b16 %v3802
    %v5301 = vunpack.c.l.b16 %v3803
    %v5302 = vunpack.c.h.b16 %v3803
    %v5303 = vunpack.c.l.b16 %v3804
    %v5304 = vunpack.c.h.b16 %v3804
    %v5305 = vunpack.c.l.b16 %v3805
    %v5306 = vunpack.c.h.b16 %v3805
    %v5307 = vunpack.c.l.b16 %v3806
    %v5308 = vunpack.c.h.b16 %v3806
    %v5309 = vunpack.c.l.b16 %v3807
    %v5310 = vunpack.c.h.b16 %v3807
    %v5311 = vunpack.c.l.b16 %v3808
    %v5312 = vunpack.c.h.b16 %v3808
    %v5313 = vunpack.c.l.b16 %v3809
    %v5314 = vunpack.c.h.b16 %v3809
    %v5315 = vunpack.c.l.b16 %v3810
    %v5316 = vunpack.c.h.b16 %v3810
    %v5317 = vunpack.c.l.b16 %v3811
    %v5318 = vunpack.c.h.b16 %v3811
    %v5319 = vunpack.c.l.b16 %v3812
    %v5320 = vunpack.c.h.b16 %v3812
    %v5321 = vunpack.c.l.b16 %v3813
    %v5322 = vunpack.c.h.b16 %v3813
    %v5323 = vunpack.c.l.b16 %v3814
    %v5324 = vunpack.c.h.b16 %v3814
    %v5325 = vunpack.c.l.b16 %v3815
    %v5326 = vunpack.c.h.b16 %v3815
    %v5327 = vunpack.c.l.b16 %v3816
    %v5328 = vunpack.c.h.b16 %v3816
    %v5329 = vunpack.c.l.b16 %v3817
    %v5330 = vunpack.c.h.b16 %v3817
    %v5331 = vunpack.c.l.b16 %v3818
    %v5332 = vunpack.c.h.b16 %v3818
    %v5333 = vunpack.c.l.b16 %v3819
    %v5334 = vunpack.c.h.b16 %v3819
    %v5335 = vunpack.c.l.b16 %v3820
    %v5336 = vunpack.c.h.b16 %v3820
    %v5337 = vunpack.c.l.b16 %v3821
    %v5338 = vunpack.c.h.b16 %v3821
    %v5339 = vunpack.c.l.b16 %v3822
    %v5340 = vunpack.c.h.b16 %v3822
    %v5341 = vunpack.c.l.b16 %v3823
    %v5342 = vunpack.c.h.b16 %v3823
    %v5343 = vunpack.c.l.b16 %v3824
    %v5344 = vunpack.c.h.b16 %v3824
    %v5345 = vunpack.c.l.b16 %v3825
    %v5346 = vunpack.c.h.b16 %v3825
    %v5347 = vunpack.c.l.b16 %v3826
    %v5348 = vunpack.c.h.b16 %v3826
    %v5349 = vunpack.c.l.b16 %v3827
    %v5350 = vunpack.c.h.b16 %v3827
    %v5351 = vunpack.c.l.b16 %v3828
    %v5352 = vunpack.c.h.b16 %v3828
    %v5353 = vunpack.c.l.b16 %v3829
    %v5354 = vunpack.c.h.b16 %v3829
    %v5355 = vunpack.c.l.b16 %v3830
    %v5356 = vunpack.c.h.b16 %v3830
    %v5357 = vunpack.c.l.b16 %v3831
    %v5358 = vunpack.c.h.b16 %v3831
    %v5359 = vunpack.c.l.b16 %v3832
    %v5360 = vunpack.c.h.b16 %v3832
    %v5361 = vunpack.c.l.b16 %v3833
    %v5362 = vunpack.c.h.b16 %v3833
    %v5363 = vunpack.c.l.b16 %v3834
    %v5364 = vunpack.c.h.b16 %v3834
    %v5365 = vunpack.c.l.b16 %v3835
    %v5366 = vunpack.c.h.b16 %v3835
    %v5367 = vunpack.c.l.b16 %v3836
    %v5368 = vunpack.c.h.b16 %v3836
    %v5369 = vunpack.c.l.b16 %v3837
    %v5370 = vunpack.c.h.b16 %v3837
    %v5371 = vunpack.c.l.b16 %v3838
    %v5372 = vunpack.c.h.b16 %v3838
    %v5373 = vunpack.c.l.b16 %v3839
    %v5374 = vunpack.c.h.b16 %v3839
    %v5375 = vunpack.c.l.b16 %v3840
    %v5376 = vunpack.c.h.b16 %v3840
    %v5377 = vpack.c.b16 %v4361, %v4353
    %v5378 = vpack.c.b16 %v4362, %v4354
    %v5379 = vpack.c.b16 %v4363, %v4355
    %v5380 = vpack.c.b16 %v4364, %v4356
    %v5381 = vpack.c.b16 %v4365, %v4357
    %v5382 = vpack.c.b16 %v4366, %v4358
    %v5383 = vpack.c.b16 %v4367, %v4359
    %v5384 = vpack.c.b16 %v4368, %v4360
    %v5385 = vpack.c.b16 %v4377, %v4369
    %v5386 = vpack.c.b16 %v4378, %v4370
    %v5387 = vpack.c.b16 %v4379, %v4371
    %v5388 = vpack.c.b16 %v4380, %v4372
    %v5389 = vpack.c.b16 %v4381, %v4373
    %v5390 = vpack.c.b16 %v4382, %v4374
    %v5391 = vpack.c.b16 %v4383, %v4375
    %v5392 = vpack.c.b16 %v4384, %v4376
    %v5393 = vpack.c.b16 %v4393, %v4385
    %v5394 = vpack.c.b16 %v4394, %v4386
    %v5395 = vpack.c.b16 %v4395, %v4387
    %v5396 = vpack.c.b16 %v4396, %v4388
    %v5397 = vpack.c.b16 %v4397, %v4389
    %v5398 = vpack.c.b16 %v4398, %v4390
    %v5399 = vpack.c.b16 %v4399, %v4391
    %v5400 = vpack.c.b16 %v4400, %v4392
    %v5401 = vpack.c.b16 %v4409, %v4401
    %v5402 = vpack.c.b16 %v4410, %v4402
    %v5403 = vpack.c.b16 %v4411, %v4403
    %v5404 = vpack.c.b16 %v4412, %v4404
    %v5405 = vpack.c.b16 %v4413, %v4405
    %v5406 = vpack.c.b16 %v4414, %v4406
    %v5407 = vpack.c.b16 %v4415, %v4407
    %v5408 = vpack.c.b16 %v4416, %v4408
    %v5409 = vpack.c.b16 %v4425, %v4417
    %v5410 = vpack.c.b16 %v4426, %v4418
    %v5411 = vpack.c.b16 %v4427, %v4419
    %v5412 = vpack.c.b16 %v4428, %v4420
    %v5413 = vpack.c.b16 %v4429, %v4421
    %v5414 = vpack.c.b16 %v4430, %v4422
    %v5415 = vpack.c.b16 %v4431, %v4423
    %v5416 = vpack.c.b16 %v4432, %v4424
    %v5417 = vpack.c.b16 %v4441, %v4433
    %v5418 = vpack.c.b16 %v4442, %v4434
    %v5419 = vpack.c.b16 %v4443, %v4435
    %v5420 = vpack.c.b16 %v4444, %v4436
    %v5421 = vpack.c.b16 %v4445, %v4437
    %v5422 = vpack.c.b16 %v4446, %v4438
    %v5423 = vpack.c.b16 %v4447, %v4439
    %v5424 = vpack.c.b16 %v4448, %v4440
    %v5425 = vpack.c.b16 %v4457, %v4449
    %v5426 = vpack.c.b16 %v4458, %v4450
    %v5427 = vpack.c.b16 %v4459, %v4451
    %v5428 = vpack.c.b16 %v4460, %v4452
    %v5429 = vpack.c.b16 %v4461, %v4453
    %v5430 = vpack.c.b16 %v4462, %v4454
    %v5431 = vpack.c.b16 %v4463, %v4455
    %v5432 = vpack.c.b16 %v4464, %v4456
    %v5433 = vpack.c.b16 %v4473, %v4465
    %v5434 = vpack.c.b16 %v4474, %v4466
    %v5435 = vpack.c.b16 %v4475, %v4467
    %v5436 = vpack.c.b16 %v4476, %v4468
    %v5437 = vpack.c.b16 %v4477, %v4469
    %v5438 = vpack.c.b16 %v4478, %v4470
    %v5439 = vpack.c.b16 %v4479, %v4471
    %v5440 = vpack.c.b16 %v4480, %v4472
    %v5441 = vpack.c.b16 %v4489, %v4481
    %v5442 = vpack.c.b16 %v4490, %v4482
    %v5443 = vpack.c.b16 %v4491, %v4483
    %v5444 = vpack.c.b16 %v4492, %v4484
    %v5445 = vpack.c.b16 %v4493, %v4485
    %v5446 = vpack.c.b16 %v4494, %v4486
    %v5447 = vpack.c.b16 %v4495, %v4487
    %v5448 = vpack.c.b16 %v4496, %v4488
    %v5449 = vpack.c.b16 %v4505, %v4497
    %v5450 = vpack.c.b16 %v4506, %v4498
    %v5451 = vpack.c.b16 %v4507, %v4499
    %v5452 = vpack.c.b16 %v4508, %v4500
    %v5453 = vpack.c.b16 %v4509, %v4501
    %v5454 = vpack.c.b16 %v4510, %v4502
    %v5455 = vpack.c.b16 %v4511, %v4503
    %v5456 = vpack.c.b16 %v4512, %v4504
    %v5457 = vpack.c.b16 %v4521, %v4513
    %v5458 = vpack.c.b16 %v4522, %v4514
    %v5459 = vpack.c.b16 %v4523, %v4515
    %v5460 = vpack.c.b16 %v4524, %v4516
    %v5461 = vpack.c.b16 %v4525, %v4517
    %v5462 = vpack.c.b16 %v4526, %v4518
    %v5463 = vpack.c.b16 %v4527, %v4519
    %v5464 = vpack.c.b16 %v4528, %v4520
    %v5465 = vpack.c.b16 %v4537, %v4529
    %v5466 = vpack.c.b16 %v4538, %v4530
    %v5467 = vpack.c.b16 %v4539, %v4531
    %v5468 = vpack.c.b16 %v4540, %v4532
    %v5469 = vpack.c.b16 %v4541, %v4533
    %v5470 = vpack.c.b16 %v4542, %v4534
    %v5471 = vpack.c.b16 %v4543, %v4535
    %v5472 = vpack.c.b16 %v4544, %v4536
    %v5473 = vpack.c.b16 %v4553, %v4545
    %v5474 = vpack.c.b16 %v4554, %v4546
    %v5475 = vpack.c.b16 %v4555, %v4547
    %v5476 = vpack.c.b16 %v4556, %v4548
    %v5477 = vpack.c.b16 %v4557, %v4549
    %v5478 = vpack.c.b16 %v4558, %v4550
    %v5479 = vpack.c.b16 %v4559, %v4551
    %v5480 = vpack.c.b16 %v4560, %v4552
    %v5481 = vpack.c.b16 %v4569, %v4561
    %v5482 = vpack.c.b16 %v4570, %v4562
    %v5483 = vpack.c.b16 %v4571, %v4563
    %v5484 = vpack.c.b16 %v4572, %v4564
    %v5485 = vpack.c.b16 %v4573, %v4565
    %v5486 = vpack.c.b16 %v4574, %v4566
    %v5487 = vpack.c.b16 %v4575, %v4567
    %v5488 = vpack.c.b16 %v4576, %v4568
    %v5489 = vpack.c.b16 %v4585, %v4577
    %v5490 = vpack.c.b16 %v4586, %v4578
    %v5491 = vpack.c.b16 %v4587, %v4579
    %v5492 = vpack.c.b16 %v4588, %v4580
    %v5493 = vpack.c.b16 %v4589, %v4581
    %v5494 = vpack.c.b16 %v4590, %v4582
    %v5495 = vpack.c.b16 %v4591, %v4583
    %v5496 = vpack.c.b16 %v4592, %v4584
    %v5497 = vpack.c.b16 %v4601, %v4593
    %v5498 = vpack.c.b16 %v4602, %v4594
    %v5499 = vpack.c.b16 %v4603, %v4595
    %v5500 = vpack.c.b16 %v4604, %v4596
    %v5501 = vpack.c.b16 %v4605, %v4597
    %v5502 = vpack.c.b16 %v4606, %v4598
    %v5503 = vpack.c.b16 %v4607, %v4599
    %v5504 = vpack.c.b16 %v4608, %v4600
    %v5505 = vpack.c.b16 %v4617, %v4609
    %v5506 = vpack.c.b16 %v4618, %v4610
    %v5507 = vpack.c.b16 %v4619, %v4611
    %v5508 = vpack.c.b16 %v4620, %v4612
    %v5509 = vpack.c.b16 %v4621, %v4613
    %v5510 = vpack.c.b16 %v4622, %v4614
    %v5511 = vpack.c.b16 %v4623, %v4615
    %v5512 = vpack.c.b16 %v4624, %v4616
    %v5513 = vpack.c.b16 %v4633, %v4625
    %v5514 = vpack.c.b16 %v4634, %v4626
    %v5515 = vpack.c.b16 %v4635, %v4627
    %v5516 = vpack.c.b16 %v4636, %v4628
    %v5517 = vpack.c.b16 %v4637, %v4629
    %v5518 = vpack.c.b16 %v4638, %v4630
    %v5519 = vpack.c.b16 %v4639, %v4631
    %v5520 = vpack.c.b16 %v4640, %v4632
    %v5521 = vpack.c.b16 %v4649, %v4641
    %v5522 = vpack.c.b16 %v4650, %v4642
    %v5523 = vpack.c.b16 %v4651, %v4643
    %v5524 = vpack.c.b16 %v4652, %v4644
    %v5525 = vpack.c.b16 %v4653, %v4645
    %v5526 = vpack.c.b16 %v4654, %v4646
    %v5527 = vpack.c.b16 %v4655, %v4647
    %v5528 = vpack.c.b16 %v4656, %v4648
    %v5529 = vpack.c.b16 %v4665, %v4657
    %v5530 = vpack.c.b16 %v4666, %v4658
    %v5531 = vpack.c.b16 %v4667, %v4659
    %v5532 = vpack.c.b16 %v4668, %v4660
    %v5533 = vpack.c.b16 %v4669, %v4661
    %v5534 = vpack.c.b16 %v4670, %v4662
    %v5535 = vpack.c.b16 %v4671, %v4663
    %v5536 = vpack.c.b16 %v4672, %v4664
    %v5537 = vpack.c.b16 %v4681, %v4673
    %v5538 = vpack.c.b16 %v4682, %v4674
    %v5539 = vpack.c.b16 %v4683, %v4675
    %v5540 = vpack.c.b16 %v4684, %v4676
    %v5541 = vpack.c.b16 %v4685, %v4677
    %v5542 = vpack.c.b16 %v4686, %v4678
    %v5543 = vpack.c.b16 %v4687, %v4679
    %v5544 = vpack.c.b16 %v4688, %v4680
    %v5545 = vpack.c.b16 %v4697, %v4689
    %v5546 = vpack.c.b16 %v4698, %v4690
    %v5547 = vpack.c.b16 %v4699, %v4691
    %v5548 = vpack.c.b16 %v4700, %v4692
    %v5549 = vpack.c.b16 %v4701, %v4693
    %v5550 = vpack.c.b16 %v4702, %v4694
    %v5551 = vpack.c.b16 %v4703, %v4695
    %v5552 = vpack.c.b16 %v4704, %v4696
    %v5553 = vpack.c.b16 %v4713, %v4705
    %v5554 = vpack.c.b16 %v4714, %v4706
    %v5555 = vpack.c.b16 %v4715, %v4707
    %v5556 = vpack.c.b16 %v4716, %v4708
    %v5557 = vpack.c.b16 %v4717, %v4709
    %v5558 = vpack.c.b16 %v4718, %v4710
    %v5559 = vpack.c.b16 %v4719, %v4711
    %v5560 = vpack.c.b16 %v4720, %v4712
    %v5561 = vpack.c.b16 %v4729, %v4721
    %v5562 = vpack.c.b16 %v4730, %v4722
    %v5563 = vpack.c.b16 %v4731, %v4723
    %v5564 = vpack.c.b16 %v4732, %v4724
    %v5565 = vpack.c.b16 %v4733, %v4725
    %v5566 = vpack.c.b16 %v4734, %v4726
    %v5567 = vpack.c.b16 %v4735, %v4727
    %v5568 = vpack.c.b16 %v4736, %v4728
    %v5569 = vpack.c.b16 %v4745, %v4737
    %v5570 = vpack.c.b16 %v4746, %v4738
    %v5571 = vpack.c.b16 %v4747, %v4739
    %v5572 = vpack.c.b16 %v4748, %v4740
    %v5573 = vpack.c.b16 %v4749, %v4741
    %v5574 = vpack.c.b16 %v4750, %v4742
    %v5575 = vpack.c.b16 %v4751, %v4743
    %v5576 = vpack.c.b16 %v4752, %v4744
    %v5577 = vpack.c.b16 %v4761, %v4753
    %v5578 = vpack.c.b16 %v4762, %v4754
    %v5579 = vpack.c.b16 %v4763, %v4755
    %v5580 = vpack.c.b16 %v4764, %v4756
    %v5581 = vpack.c.b16 %v4765, %v4757
    %v5582 = vpack.c.b16 %v4766, %v4758
    %v5583 = vpack.c.b16 %v4767, %v4759
    %v5584 = vpack.c.b16 %v4768, %v4760
    %v5585 = vpack.c.b16 %v4777, %v4769
    %v5586 = vpack.c.b16 %v4778, %v4770
    %v5587 = vpack.c.b16 %v4779, %v4771
    %v5588 = vpack.c.b16 %v4780, %v4772
    %v5589 = vpack.c.b16 %v4781, %v4773
    %v5590 = vpack.c.b16 %v4782, %v4774
    %v5591 = vpack.c.b16 %v4783, %v4775
    %v5592 = vpack.c.b16 %v4784, %v4776
    %v5593 = vpack.c.b16 %v4793, %v4785
    %v5594 = vpack.c.b16 %v4794, %v4786
    %v5595 = vpack.c.b16 %v4795, %v4787
    %v5596 = vpack.c.b16 %v4796, %v4788
    %v5597 = vpack.c.b16 %v4797, %v4789
    %v5598 = vpack.c.b16 %v4798, %v4790
    %v5599 = vpack.c.b16 %v4799, %v4791
    %v5600 = vpack.c.b16 %v4800, %v4792
    %v5601 = vpack.c.b16 %v4809, %v4801
    %v5602 = vpack.c.b16 %v4810, %v4802
    %v5603 = vpack.c.b16 %v4811, %v4803
    %v5604 = vpack.c.b16 %v4812, %v4804
    %v5605 = vpack.c.b16 %v4813, %v4805
    %v5606 = vpack.c.b16 %v4814, %v4806
    %v5607 = vpack.c.b16 %v4815, %v4807
    %v5608 = vpack.c.b16 %v4816, %v4808
    %v5609 = vpack.c.b16 %v4825, %v4817
    %v5610 = vpack.c.b16 %v4826, %v4818
    %v5611 = vpack.c.b16 %v4827, %v4819
    %v5612 = vpack.c.b16 %v4828, %v4820
    %v5613 = vpack.c.b16 %v4829, %v4821
    %v5614 = vpack.c.b16 %v4830, %v4822
    %v5615 = vpack.c.b16 %v4831, %v4823
    %v5616 = vpack.c.b16 %v4832, %v4824
    %v5617 = vpack.c.b16 %v4841, %v4833
    %v5618 = vpack.c.b16 %v4842, %v4834
    %v5619 = vpack.c.b16 %v4843, %v4835
    %v5620 = vpack.c.b16 %v4844, %v4836
    %v5621 = vpack.c.b16 %v4845, %v4837
    %v5622 = vpack.c.b16 %v4846, %v4838
    %v5623 = vpack.c.b16 %v4847, %v4839
    %v5624 = vpack.c.b16 %v4848, %v4840
    %v5625 = vpack.c.b16 %v4857, %v4849
    %v5626 = vpack.c.b16 %v4858, %v4850
    %v5627 = vpack.c.b16 %v4859, %v4851
    %v5628 = vpack.c.b16 %v4860, %v4852
    %v5629 = vpack.c.b16 %v4861, %v4853
    %v5630 = vpack.c.b16 %v4862, %v4854
    %v5631 = vpack.c.b16 %v4863, %v4855
    %v5632 = vpack.c.b16 %v4864, %v4856
    %v5633 = vpack.c.b16 %v4873, %v4865
    %v5634 = vpack.c.b16 %v4874, %v4866
    %v5635 = vpack.c.b16 %v4875, %v4867
    %v5636 = vpack.c.b16 %v4876, %v4868
    %v5637 = vpack.c.b16 %v4877, %v4869
    %v5638 = vpack.c.b16 %v4878, %v4870
    %v5639 = vpack.c.b16 %v4879, %v4871
    %v5640 = vpack.c.b16 %v4880, %v4872
    %v5641 = vpack.c.b16 %v4889, %v4881
    %v5642 = vpack.c.b16 %v4890, %v4882
    %v5643 = vpack.c.b16 %v4891, %v4883
    %v5644 = vpack.c.b16 %v4892, %v4884
    %v5645 = vpack.c.b16 %v4893, %v4885
    %v5646 = vpack.c.b16 %v4894, %v4886
    %v5647 = vpack.c.b16 %v4895, %v4887
    %v5648 = vpack.c.b16 %v4896, %v4888
    %v5649 = vpack.c.b16 %v4905, %v4897
    %v5650 = vpack.c.b16 %v4906, %v4898
    %v5651 = vpack.c.b16 %v4907, %v4899
    %v5652 = vpack.c.b16 %v4908, %v4900
    %v5653 = vpack.c.b16 %v4909, %v4901
    %v5654 = vpack.c.b16 %v4910, %v4902
    %v5655 = vpack.c.b16 %v4911, %v4903
    %v5656 = vpack.c.b16 %v4912, %v4904
    %v5657 = vpack.c.b16 %v4921, %v4913
    %v5658 = vpack.c.b16 %v4922, %v4914
    %v5659 = vpack.c.b16 %v4923, %v4915
    %v5660 = vpack.c.b16 %v4924, %v4916
    %v5661 = vpack.c.b16 %v4925, %v4917
    %v5662 = vpack.c.b16 %v4926, %v4918
    %v5663 = vpack.c.b16 %v4927, %v4919
    %v5664 = vpack.c.b16 %v4928, %v4920
    %v5665 = vpack.c.b16 %v4937, %v4929
    %v5666 = vpack.c.b16 %v4938, %v4930
    %v5667 = vpack.c.b16 %v4939, %v4931
    %v5668 = vpack.c.b16 %v4940, %v4932
    %v5669 = vpack.c.b16 %v4941, %v4933
    %v5670 = vpack.c.b16 %v4942, %v4934
    %v5671 = vpack.c.b16 %v4943, %v4935
    %v5672 = vpack.c.b16 %v4944, %v4936
    %v5673 = vpack.c.b16 %v4953, %v4945
    %v5674 = vpack.c.b16 %v4954, %v4946
    %v5675 = vpack.c.b16 %v4955, %v4947
    %v5676 = vpack.c.b16 %v4956, %v4948
    %v5677 = vpack.c.b16 %v4957, %v4949
    %v5678 = vpack.c.b16 %v4958, %v4950
    %v5679 = vpack.c.b16 %v4959, %v4951
    %v5680 = vpack.c.b16 %v4960, %v4952
    %v5681 = vpack.c.b16 %v4969, %v4961
    %v5682 = vpack.c.b16 %v4970, %v4962
    %v5683 = vpack.c.b16 %v4971, %v4963
    %v5684 = vpack.c.b16 %v4972, %v4964
    %v5685 = vpack.c.b16 %v4973, %v4965
    %v5686 = vpack.c.b16 %v4974, %v4966
    %v5687 = vpack.c.b16 %v4975, %v4967
    %v5688 = vpack.c.b16 %v4976, %v4968
    %v5689 = vpack.c.b16 %v4985, %v4977
    %v5690 = vpack.c.b16 %v4986, %v4978
    %v5691 = vpack.c.b16 %v4987, %v4979
    %v5692 = vpack.c.b16 %v4988, %v4980
    %v5693 = vpack.c.b16 %v4989, %v4981
    %v5694 = vpack.c.b16 %v4990, %v4982
    %v5695 = vpack.c.b16 %v4991, %v4983
    %v5696 = vpack.c.b16 %v4992, %v4984
    %v5697 = vpack.c.b16 %v5001, %v4993
    %v5698 = vpack.c.b16 %v5002, %v4994
    %v5699 = vpack.c.b16 %v5003, %v4995
    %v5700 = vpack.c.b16 %v5004, %v4996
    %v5701 = vpack.c.b16 %v5005, %v4997
    %v5702 = vpack.c.b16 %v5006, %v4998
    %v5703 = vpack.c.b16 %v5007, %v4999
    %v5704 = vpack.c.b16 %v5008, %v5000
    %v5705 = vpack.c.b16 %v5017, %v5009
    %v5706 = vpack.c.b16 %v5018, %v5010
    %v5707 = vpack.c.b16 %v5019, %v5011
    %v5708 = vpack.c.b16 %v5020, %v5012
    %v5709 = vpack.c.b16 %v5021, %v5013
    %v5710 = vpack.c.b16 %v5022, %v5014
    %v5711 = vpack.c.b16 %v5023, %v5015
    %v5712 = vpack.c.b16 %v5024, %v5016
    %v5713 = vpack.c.b16 %v5033, %v5025
    %v5714 = vpack.c.b16 %v5034, %v5026
    %v5715 = vpack.c.b16 %v5035, %v5027
    %v5716 = vpack.c.b16 %v5036, %v5028
    %v5717 = vpack.c.b16 %v5037, %v5029
    %v5718 = vpack.c.b16 %v5038, %v5030
    %v5719 = vpack.c.b16 %v5039, %v5031
    %v5720 = vpack.c.b16 %v5040, %v5032
    %v5721 = vpack.c.b16 %v5049, %v5041
    %v5722 = vpack.c.b16 %v5050, %v5042
    %v5723 = vpack.c.b16 %v5051, %v5043
    %v5724 = vpack.c.b16 %v5052, %v5044
    %v5725 = vpack.c.b16 %v5053, %v5045
    %v5726 = vpack.c.b16 %v5054, %v5046
    %v5727 = vpack.c.b16 %v5055, %v5047
    %v5728 = vpack.c.b16 %v5056, %v5048
    %v5729 = vpack.c.b16 %v5065, %v5057
    %v5730 = vpack.c.b16 %v5066, %v5058
    %v5731 = vpack.c.b16 %v5067, %v5059
    %v5732 = vpack.c.b16 %v5068, %v5060
    %v5733 = vpack.c.b16 %v5069, %v5061
    %v5734 = vpack.c.b16 %v5070, %v5062
    %v5735 = vpack.c.b16 %v5071, %v5063
    %v5736 = vpack.c.b16 %v5072, %v5064
    %v5737 = vpack.c.b16 %v5081, %v5073
    %v5738 = vpack.c.b16 %v5082, %v5074
    %v5739 = vpack.c.b16 %v5083, %v5075
    %v5740 = vpack.c.b16 %v5084, %v5076
    %v5741 = vpack.c.b16 %v5085, %v5077
    %v5742 = vpack.c.b16 %v5086, %v5078
    %v5743 = vpack.c.b16 %v5087, %v5079
    %v5744 = vpack.c.b16 %v5088, %v5080
    %v5745 = vpack.c.b16 %v5097, %v5089
    %v5746 = vpack.c.b16 %v5098, %v5090
    %v5747 = vpack.c.b16 %v5099, %v5091
    %v5748 = vpack.c.b16 %v5100, %v5092
    %v5749 = vpack.c.b16 %v5101, %v5093
    %v5750 = vpack.c.b16 %v5102, %v5094
    %v5751 = vpack.c.b16 %v5103, %v5095
    %v5752 = vpack.c.b16 %v5104, %v5096
    %v5753 = vpack.c.b16 %v5113, %v5105
    %v5754 = vpack.c.b16 %v5114, %v5106
    %v5755 = vpack.c.b16 %v5115, %v5107
    %v5756 = vpack.c.b16 %v5116, %v5108
    %v5757 = vpack.c.b16 %v5117, %v5109
    %v5758 = vpack.c.b16 %v5118, %v5110
    %v5759 = vpack.c.b16 %v5119, %v5111
    %v5760 = vpack.c.b16 %v5120, %v5112
    %v5761 = vpack.c.b16 %v5129, %v5121
    %v5762 = vpack.c.b16 %v5130, %v5122
    %v5763 = vpack.c.b16 %v5131, %v5123
    %v5764 = vpack.c.b16 %v5132, %v5124
    %v5765 = vpack.c.b16 %v5133, %v5125
    %v5766 = vpack.c.b16 %v5134, %v5126
    %v5767 = vpack.c.b16 %v5135, %v5127
    %v5768 = vpack.c.b16 %v5136, %v5128
    %v5769 = vpack.c.b16 %v5145, %v5137
    %v5770 = vpack.c.b16 %v5146, %v5138
    %v5771 = vpack.c.b16 %v5147, %v5139
    %v5772 = vpack.c.b16 %v5148, %v5140
    %v5773 = vpack.c.b16 %v5149, %v5141
    %v5774 = vpack.c.b16 %v5150, %v5142
    %v5775 = vpack.c.b16 %v5151, %v5143
    %v5776 = vpack.c.b16 %v5152, %v5144
    %v5777 = vpack.c.b16 %v5161, %v5153
    %v5778 = vpack.c.b16 %v5162, %v5154
    %v5779 = vpack.c.b16 %v5163, %v5155
    %v5780 = vpack.c.b16 %v5164, %v5156
    %v5781 = vpack.c.b16 %v5165, %v5157
    %v5782 = vpack.c.b16 %v5166, %v5158
    %v5783 = vpack.c.b16 %v5167, %v5159
    %v5784 = vpack.c.b16 %v5168, %v5160
    %v5785 = vpack.c.b16 %v5177, %v5169
    %v5786 = vpack.c.b16 %v5178, %v5170
    %v5787 = vpack.c.b16 %v5179, %v5171
    %v5788 = vpack.c.b16 %v5180, %v5172
    %v5789 = vpack.c.b16 %v5181, %v5173
    %v5790 = vpack.c.b16 %v5182, %v5174
    %v5791 = vpack.c.b16 %v5183, %v5175
    %v5792 = vpack.c.b16 %v5184, %v5176
    %v5793 = vpack.c.b16 %v5193, %v5185
    %v5794 = vpack.c.b16 %v5194, %v5186
    %v5795 = vpack.c.b16 %v5195, %v5187
    %v5796 = vpack.c.b16 %v5196, %v5188
    %v5797 = vpack.c.b16 %v5197, %v5189
    %v5798 = vpack.c.b16 %v5198, %v5190
    %v5799 = vpack.c.b16 %v5199, %v5191
    %v5800 = vpack.c.b16 %v5200, %v5192
    %v5801 = vpack.c.b16 %v5209, %v5201
    %v5802 = vpack.c.b16 %v5210, %v5202
    %v5803 = vpack.c.b16 %v5211, %v5203
    %v5804 = vpack.c.b16 %v5212, %v5204
    %v5805 = vpack.c.b16 %v5213, %v5205
    %v5806 = vpack.c.b16 %v5214, %v5206
    %v5807 = vpack.c.b16 %v5215, %v5207
    %v5808 = vpack.c.b16 %v5216, %v5208
    %v5809 = vpack.c.b16 %v5225, %v5217
    %v5810 = vpack.c.b16 %v5226, %v5218
    %v5811 = vpack.c.b16 %v5227, %v5219
    %v5812 = vpack.c.b16 %v5228, %v5220
    %v5813 = vpack.c.b16 %v5229, %v5221
    %v5814 = vpack.c.b16 %v5230, %v5222
    %v5815 = vpack.c.b16 %v5231, %v5223
    %v5816 = vpack.c.b16 %v5232, %v5224
    %v5817 = vpack.c.b16 %v5241, %v5233
    %v5818 = vpack.c.b16 %v5242, %v5234
    %v5819 = vpack.c.b16 %v5243, %v5235
    %v5820 = vpack.c.b16 %v5244, %v5236
    %v5821 = vpack.c.b16 %v5245, %v5237
    %v5822 = vpack.c.b16 %v5246, %v5238
    %v5823 = vpack.c.b16 %v5247, %v5239
    %v5824 = vpack.c.b16 %v5248, %v5240
    %v5825 = vpack.c.b16 %v5257, %v5249
    %v5826 = vpack.c.b16 %v5258, %v5250
    %v5827 = vpack.c.b16 %v5259, %v5251
    %v5828 = vpack.c.b16 %v5260, %v5252
    %v5829 = vpack.c.b16 %v5261, %v5253
    %v5830 = vpack.c.b16 %v5262, %v5254
    %v5831 = vpack.c.b16 %v5263, %v5255
    %v5832 = vpack.c.b16 %v5264, %v5256
    %v5833 = vpack.c.b16 %v5273, %v5265
    %v5834 = vpack.c.b16 %v5274, %v5266
    %v5835 = vpack.c.b16 %v5275, %v5267
    %v5836 = vpack.c.b16 %v5276, %v5268
    %v5837 = vpack.c.b16 %v5277, %v5269
    %v5838 = vpack.c.b16 %v5278, %v5270
    %v5839 = vpack.c.b16 %v5279, %v5271
    %v5840 = vpack.c.b16 %v5280, %v5272
    %v5841 = vpack.c.b16 %v5289, %v5281
    %v5842 = vpack.c.b16 %v5290, %v5282
    %v5843 = vpack.c.b16 %v5291, %v5283
    %v5844 = vpack.c.b16 %v5292, %v5284
    %v5845 = vpack.c.b16 %v5293, %v5285
    %v5846 = vpack.c.b16 %v5294, %v5286
    %v5847 = vpack.c.b16 %v5295, %v5287
    %v5848 = vpack.c.b16 %v5296, %v5288
    %v5849 = vpack.c.b16 %v5305, %v5297
    %v5850 = vpack.c.b16 %v5306, %v5298
    %v5851 = vpack.c.b16 %v5307, %v5299
    %v5852 = vpack.c.b16 %v5308, %v5300
    %v5853 = vpack.c.b16 %v5309, %v5301
    %v5854 = vpack.c.b16 %v5310, %v5302
    %v5855 = vpack.c.b16 %v5311, %v5303
    %v5856 = vpack.c.b16 %v5312, %v5304
    %v5857 = vpack.c.b16 %v5321, %v5313
    %v5858 = vpack.c.b16 %v5322, %v5314
    %v5859 = vpack.c.b16 %v5323, %v5315
    %v5860 = vpack.c.b16 %v5324, %v5316
    %v5861 = vpack.c.b16 %v5325, %v5317
    %v5862 = vpack.c.b16 %v5326, %v5318
    %v5863 = vpack.c.b16 %v5327, %v5319
    %v5864 = vpack.c.b16 %v5328, %v5320
    %v5865 = vpack.c.b16 %v5337, %v5329
    %v5866 = vpack.c.b16 %v5338, %v5330
    %v5867 = vpack.c.b16 %v5339, %v5331
    %v5868 = vpack.c.b16 %v5340, %v5332
    %v5869 = vpack.c.b16 %v5341, %v5333
    %v5870 = vpack.c.b16 %v5342, %v5334
    %v5871 = vpack.c.b16 %v5343, %v5335
    %v5872 = vpack.c.b16 %v5344, %v5336
    %v5873 = vpack.c.b16 %v5353, %v5345
    %v5874 = vpack.c.b16 %v5354, %v5346
    %v5875 = vpack.c.b16 %v5355, %v5347
    %v5876 = vpack.c.b16 %v5356, %v5348
    %v5877 = vpack.c.b16 %v5357, %v5349
    %v5878 = vpack.c.b16 %v5358, %v5350
    %v5879 = vpack.c.b16 %v5359, %v5351
    %v5880 = vpack.c.b16 %v5360, %v5352
    %v5881 = vpack.c.b16 %v5369, %v5361
    %v5882 = vpack.c.b16 %v5370, %v5362
    %v5883 = vpack.c.b16 %v5371, %v5363
    %v5884 = vpack.c.b16 %v5372, %v5364
    %v5885 = vpack.c.b16 %v5373, %v5365
    %v5886 = vpack.c.b16 %v5374, %v5366
    %v5887 = vpack.c.b16 %v5375, %v5367
    %v5888 = vpack.c.b16 %v5376, %v5368
    %6401 = vmatprep.subr.bf16.mxu0 %v5378
    %6402 = vmatpush1.bf16.msra.mxu0 %v5377
    %6403 = vmatprep.subr.bf16.mxu0 %v5386
    %6404 = vmatpush1.bf16.msra.mxu0 %v5385
    %6405 = vmatprep.subr.bf16.mxu0 %v5394
    %6406 = vmatpush1.bf16.msra.mxu0 %v5393
    %6407 = vmatprep.subr.bf16.mxu0 %v5402
    %6408 = vmatpush1.bf16.msra.mxu0 %v5401
    %6409 = vmatprep.subr.bf16.mxu0 %v5410
    %6410 = vmatpush1.bf16.msra.mxu0 %v5409
    %6411 = vmatprep.subr.bf16.mxu0 %v5418
    %6412 = vmatpush1.bf16.msra.mxu0 %v5417
    %6413 = vmatprep.subr.bf16.mxu0 %v5426
    %6414 = vmatpush1.bf16.msra.mxu0 %v5425
    %6415 = vmatprep.subr.bf16.mxu0 %v5434
    %6416 = vmatpush1.bf16.msra.mxu0 %v5433
    %6417 = vmatprep.subr.bf16.mxu0 %v5442
    %6418 = vmatpush1.bf16.msra.mxu0 %v5441
    %6419 = vmatprep.subr.bf16.mxu0 %v5450
    %6420 = vmatpush1.bf16.msra.mxu0 %v5449
    %6421 = vmatprep.subr.bf16.mxu0 %v5458
    %6422 = vmatpush1.bf16.msra.mxu0 %v5457
    %6423 = vmatprep.subr.bf16.mxu0 %v5466
    %6424 = vmatpush1.bf16.msra.mxu0 %v5465
    %6425 = vmatprep.subr.bf16.mxu0 %v5474
    %6426 = vmatpush1.bf16.msra.mxu0 %v5473
    %6427 = vmatprep.subr.bf16.mxu0 %v5482
    %6428 = vmatpush1.bf16.msra.mxu0 %v5481
    %6429 = vmatprep.subr.bf16.mxu0 %v5490
    %6430 = vmatpush1.bf16.msra.mxu0 %v5489
    %6431 = vmatprep.subr.bf16.mxu0 %v5498
    %6432 = vmatpush1.bf16.msra.mxu0 %v5497
    %6433 = vmatprep.mubr.bf16.mxu0 %v3322
    %6434 = vmatmul.mubr.bf16.gmra.mrb[0].mxu0 %v3321
    %v6435 = vpop.f32.mrb[0].mxu0
    %v6436 = vadd.f32 0.0, %v6435
    %v6437 = vpop.f32.mrb[0].mxu0
    %v6438 = vadd.f32 0.0, %v6437
    %v6439 = vpop.f32.mrb[0].mxu0
    %v6440 = vadd.f32 0.0, %v6439
    %v6441 = vpop.f32.mrb[0].mxu0
    %v6442 = vadd.f32 0.0, %v6441
    %6443 = vdwg.mxu0
    %6444 = vmatprep.subr.bf16.mxu0 %v5506
    %6445 = vmatpush1.bf16.msra.mxu0 %v5505
    %6446 = vmatprep.subr.bf16.mxu0 %v5514
    %6447 = vmatpush1.bf16.msra.mxu0 %v5513
    %6448 = vmatprep.subr.bf16.mxu0 %v5522
    %6449 = vmatpush1.bf16.msra.mxu0 %v5521
    %6450 = vmatprep.subr.bf16.mxu0 %v5530
    %6451 = vmatpush1.bf16.msra.mxu0 %v5529
    %6452 = vmatprep.subr.bf16.mxu0 %v5538
    %6453 = vmatpush1.bf16.msra.mxu0 %v5537
    %6454 = vmatprep.subr.bf16.mxu0 %v5546
    %6455 = vmatpush1.bf16.msra.mxu0 %v5545
    %6456 = vmatprep.subr.bf16.mxu0 %v5554
    %6457 = vmatpush1.bf16.msra.mxu0 %v5553
    %6458 = vmatprep.subr.bf16.mxu0 %v5562
    %6459 = vmatpush1.bf16.msra.mxu0 %v5561
    %6460 = vmatprep.subr.bf16.mxu0 %v5570
    %6461 = vmatpush1.bf16.msra.mxu0 %v5569
    %6462 = vmatprep.subr.bf16.mxu0 %v5578
    %6463 = vmatpush1.bf16.msra.mxu0 %v5577
    %6464 = vmatprep.subr.bf16.mxu0 %v5586
    %6465 = vmatpush1.bf16.msra.mxu0 %v5585
    %6466 = vmatprep.subr.bf16.mxu0 %v5594
    %6467 = vmatpush1.bf16.msra.mxu0 %v5593
    %6468 = vmatprep.subr.bf16.mxu0 %v5602
    %6469 = vmatpush1.bf16.msra.mxu0 %v5601
    %6470 = vmatprep.subr.bf16.mxu0 %v5610
    %6471 = vmatpush1.bf16.msra.mxu0 %v5609
    %6472 = vmatprep.subr.bf16.mxu0 %v5618
    %6473 = vmatpush1.bf16.msra.mxu0 %v5617
    %6474 = vmatprep.subr.bf16.mxu0 %v5626
    %6475 = vmatpush1.bf16.msra.mxu0 %v5625
    %6476 = vmatprep.mubr.bf16.mxu0 %v3324
    %6477 = vmatmul.mubr.bf16.gmra.mrb[0].mxu0 %v3323
    %v6478 = vpop.f32.mrb[0].mxu0
    %v6479 = vadd.f32 %v6436, %v6478
    %v6480 = vpop.f32.mrb[0].mxu0
    %v6481 = vadd.f32 %v6438, %v6480
    %v6482 = vpop.f32.mrb[0].mxu0
    %v6483 = vadd.f32 %v6440, %v6482
    %v6484 = vpop.f32.mrb[0].mxu0
    %v6485 = vadd.f32 %v6442, %v6484
    %6486 = vdwg.mxu0
    %6487 = vmatprep.subr.bf16.mxu0 %v5634
    %6488 = vmatpush1.bf16.msra.mxu0 %v5633
    %6489 = vmatprep.subr.bf16.mxu0 %v5642
    %6490 = vmatpush1.bf16.msra.mxu0 %v5641
    %6491 = vmatprep.subr.bf16.mxu0 %v5650
    %6492 = vmatpush1.bf16.msra.mxu0 %v5649
    %6493 = vmatprep.subr.bf16.mxu0 %v5658
    %6494 = vmatpush1.bf16.msra.mxu0 %v5657
    %6495 = vmatprep.subr.bf16.mxu0 %v5666
    %6496 = vmatpush1.bf16.msra.mxu0 %v5665
    %6497 = vmatprep.subr.bf16.mxu0 %v5674
    %6498 = vmatpush1.bf16.msra.mxu0 %v5673
    %6499 = vmatprep.subr.bf16.mxu0 %v5682
    %6500 = vmatpush1.bf16.msra.mxu0 %v5681
    %6501 = vmatprep.subr.bf16.mxu0 %v5690
    %6502 = vmatpush1.bf16.msra.mxu0 %v5689
    %6503 = vmatprep.subr.bf16.mxu0 %v5698
    %6504 = vmatpush1.bf16.msra.mxu0 %v5697
    %6505 = vmatprep.subr.bf16.mxu0 %v5706
    %6506 = vmatpush1.bf16.msra.mxu0 %v5705
    %6507 = vmatprep.subr.bf16.mxu0 %v5714
    %6508 = vmatpush1.bf16.msra.mxu0 %v5713
    %6509 = vmatprep.subr.bf16.mxu0 %v5722
    %6510 = vmatpush1.bf16.msra.mxu0 %v5721
    %6511 = vmatprep.subr.bf16.mxu0 %v5730
    %6512 = vmatpush1.bf16.msra.mxu0 %v5729
    %6513 = vmatprep.subr.bf16.mxu0 %v5738
    %6514 = vmatpush1.bf16.msra.mxu0 %v5737
    %6515 = vmatprep.subr.bf16.mxu0 %v5746
    %6516 = vmatpush1.bf16.msra.mxu0 %v5745
    %6517 = vmatprep.subr.bf16.mxu0 %v5754
    %6518 = vmatpush1.bf16.msra.mxu0 %v5753
    %6519 = vmatprep.mubr.bf16.mxu0 %v3326
    %6520 = vmatmul.mubr.bf16.gmra.mrb[0].mxu0 %v3325
    %v6521 = vpop.f32.mrb[0].mxu0
    %v6522 = vadd.f32 %v6479, %v6521
    %v6523 = vpop.f32.mrb[0].mxu0
    %v6524 = vadd.f32 %v6481, %v6523
    %v6525 = vpop.f32.mrb[0].mxu0
    %v6526 = vadd.f32 %v6483, %v6525
    %v6527 = vpop.f32.mrb[0].mxu0
    %v6528 = vadd.f32 %v6485, %v6527
    %6529 = vdwg.mxu0
    %6530 = vmatprep.subr.bf16.mxu0 %v5762
    %6531 = vmatpush1.bf16.msra.mxu0 %v5761
    %6532 = vmatprep.subr.bf16.mxu0 %v5770
    %6533 = vmatpush1.bf16.msra.mxu0 %v5769
    %6534 = vmatprep.subr.bf16.mxu0 %v5778
    %6535 = vmatpush1.bf16.msra.mxu0 %v5777
    %6536 = vmatprep.subr.bf16.mxu0 %v5786
    %6537 = vmatpush1.bf16.msra.mxu0 %v5785
    %6538 = vmatprep.subr.bf16.mxu0 %v5794
    %6539 = vmatpush1.bf16.msra.mxu0 %v5793
    %6540 = vmatprep.subr.bf16.mxu0 %v5802
    %6541 = vmatpush1.bf16.msra.mxu0 %v5801
    %6542 = vmatprep.subr.bf16.mxu0 %v5810
    %6543 = vmatpush1.bf16.msra.mxu0 %v5809
    %6544 = vmatprep.subr.bf16.mxu0 %v5818
    %6545 = vmatpush1.bf16.msra.mxu0 %v5817
    %6546 = vmatprep.subr.bf16.mxu0 %v5826
    %6547 = vmatpush1.bf16.msra.mxu0 %v5825
    %6548 = vmatprep.subr.bf16.mxu0 %v5834
    %6549 = vmatpush1.bf16.msra.mxu0 %v5833
    %6550 = vmatprep.subr.bf16.mxu0 %v5842
    %6551 = vmatpush1.bf16.msra.mxu0 %v5841
    %6552 = vmatprep.subr.bf16.mxu0 %v5850
    %6553 = vmatpush1.bf16.msra.mxu0 %v5849
    %6554 = vmatprep.subr.bf16.mxu0 %v5858
    %6555 = vmatpush1.bf16.msra.mxu0 %v5857
    %6556 = vmatprep.subr.bf16.mxu0 %v5866
    %6557 = vmatpush1.bf16.msra.mxu0 %v5865
    %6558 = vmatprep.subr.bf16.mxu0 %v5874
    %6559 = vmatpush1.bf16.msra.mxu0 %v5873
    %6560 = vmatprep.subr.bf16.mxu0 %v5882
    %6561 = vmatpush1.bf16.msra.mxu0 %v5881
    %6562 = vmatprep.mubr.bf16.mxu0 %v3328
    %6563 = vmatmul.mubr.bf16.gmra.mrb[0].mxu0 %v3327
    %v6564 = vpop.f32.mrb[0].mxu0
    %v6565 = vadd.f32 %v6522, %v6564
    %v6566 = vpop.f32.mrb[0].mxu0
    %v6567 = vadd.f32 %v6524, %v6566
    %v6568 = vpop.f32.mrb[0].mxu0
    %v6569 = vadd.f32 %v6526, %v6568
    %v6570 = vpop.f32.mrb[0].mxu0
    %v6571 = vadd.f32 %v6528, %v6570
    %6572 = vdwg.mxu0
    %6573 = vmatprep.subr.bf16.mxu0 %v5380
    %6574 = vmatpush1.bf16.msra.mxu0 %v5379
    %6575 = vmatprep.subr.bf16.mxu0 %v5388
    %6576 = vmatpush1.bf16.msra.mxu0 %v5387
    %6577 = vmatprep.subr.bf16.mxu0 %v5396
    %6578 = vmatpush1.bf16.msra.mxu0 %v5395
    %6579 = vmatprep.subr.bf16.mxu0 %v5404
    %6580 = vmatpush1.bf16.msra.mxu0 %v5403
    %6581 = vmatprep.subr.bf16.mxu0 %v5412
    %6582 = vmatpush1.bf16.msra.mxu0 %v5411
    %6583 = vmatprep.subr.bf16.mxu0 %v5420
    %6584 = vmatpush1.bf16.msra.mxu0 %v5419
    %6585 = vmatprep.subr.bf16.mxu0 %v5428
    %6586 = vmatpush1.bf16.msra.mxu0 %v5427
    %6587 = vmatprep.subr.bf16.mxu0 %v5436
    %6588 = vmatpush1.bf16.msra.mxu0 %v5435
    %6589 = vmatprep.subr.bf16.mxu0 %v5444
    %6590 = vmatpush1.bf16.msra.mxu0 %v5443
    %6591 = vmatprep.subr.bf16.mxu0 %v5452
    %6592 = vmatpush1.bf16.msra.mxu0 %v5451
    %6593 = vmatprep.subr.bf16.mxu0 %v5460
    %6594 = vmatpush1.bf16.msra.mxu0 %v5459
    %6595 = vmatprep.subr.bf16.mxu0 %v5468
    %6596 = vmatpush1.bf16.msra.mxu0 %v5467
    %6597 = vmatprep.subr.bf16.mxu0 %v5476
    %6598 = vmatpush1.bf16.msra.mxu0 %v5475
    %6599 = vmatprep.subr.bf16.mxu0 %v5484
    %6600 = vmatpush1.bf16.msra.mxu0 %v5483
    %6601 = vmatprep.subr.bf16.mxu0 %v5492
    %6602 = vmatpush1.bf16.msra.mxu0 %v5491
    %6603 = vmatprep.subr.bf16.mxu0 %v5500
    %6604 = vmatpush1.bf16.msra.mxu0 %v5499
    %6605 = vmatprep.mubr.bf16.mxu0 %v3322
    %6606 = vmatmul.mubr.bf16.gmra.mrb[0].mxu0 %v3321
    %v6607 = vpop.f32.mrb[0].mxu0
    %v6608 = vadd.f32 0.0, %v6607
    %v6609 = vpop.f32.mrb[0].mxu0
    %v6610 = vadd.f32 0.0, %v6609
    %v6611 = vpop.f32.mrb[0].mxu0
    %v6612 = vadd.f32 0.0, %v6611
    %v6613 = vpop.f32.mrb[0].mxu0
    %v6614 = vadd.f32 0.0, %v6613
    %6615 = vdwg.mxu0
    %6616 = vmatprep.subr.bf16.mxu0 %v5508
    %6617 = vmatpush1.bf16.msra.mxu0 %v5507
    %6618 = vmatprep.subr.bf16.mxu0 %v5516
    %6619 = vmatpush1.bf16.msra.mxu0 %v5515
    %6620 = vmatprep.subr.bf16.mxu0 %v5524
    %6621 = vmatpush1.bf16.msra.mxu0 %v5523
    %6622 = vmatprep.subr.bf16.mxu0 %v5532
    %6623 = vmatpush1.bf16.msra.mxu0 %v5531
    %6624 = vmatprep.subr.bf16.mxu0 %v5540
    %6625 = vmatpush1.bf16.msra.mxu0 %v5539
    %6626 = vmatprep.subr.bf16.mxu0 %v5548
    %6627 = vmatpush1.bf16.msra.mxu0 %v5547
    %6628 = vmatprep.subr.bf16.mxu0 %v5556
    %6629 = vmatpush1.bf16.msra.mxu0 %v5555
    %6630 = vmatprep.subr.bf16.mxu0 %v5564
    %6631 = vmatpush1.bf16.msra.mxu0 %v5563
    %6632 = vmatprep.subr.bf16.mxu0 %v5572
    %6633 = vmatpush1.bf16.msra.mxu0 %v5571
    %6634 = vmatprep.subr.bf16.mxu0 %v5580
    %6635 = vmatpush1.bf16.msra.mxu0 %v5579
    %6636 = vmatprep.subr.bf16.mxu0 %v5588
    %6637 = vmatpush1.bf16.msra.mxu0 %v5587
    %6638 = vmatprep.subr.bf16.mxu0 %v5596
    %6639 = vmatpush1.bf16.msra.mxu0 %v5595
    %6640 = vmatprep.subr.bf16.mxu0 %v5604
    %6641 = vmatpush1.bf16.msra.mxu0 %v5603
    %6642 = vmatprep.subr.bf16.mxu0 %v5612
    %6643 = vmatpush1.bf16.msra.mxu0 %v5611
    %6644 = vmatprep.subr.bf16.mxu0 %v5620
    %6645 = vmatpush1.bf16.msra.mxu0 %v5619
    %6646 = vmatprep.subr.bf16.mxu0 %v5628
    %6647 = vmatpush1.bf16.msra.mxu0 %v5627
    %6648 = vmatprep.mubr.bf16.mxu0 %v3324
    %6649 = vmatmul.mubr.bf16.gmra.mrb[0].mxu0 %v3323
    %v6650 = vpop.f32.mrb[0].mxu0
    %v6651 = vadd.f32 %v6608, %v6650
    %v6652 = vpop.f32.mrb[0].mxu0
    %v6653 = vadd.f32 %v6610, %v6652
    %v6654 = vpop.f32.mrb[0].mxu0
    %v6655 = vadd.f32 %v6612, %v6654
    %v6656 = vpop.f32.mrb[0].mxu0
    %v6657 = vadd.f32 %v6614, %v6656
    %6658 = vdwg.mxu0
    %6659 = vmatprep.subr.bf16.mxu0 %v5636
    %6660 = vmatpush1.bf16.msra.mxu0 %v5635
    %6661 = vmatprep.subr.bf16.mxu0 %v5644
    %6662 = vmatpush1.bf16.msra.mxu0 %v5643
    %6663 = vmatprep.subr.bf16.mxu0 %v5652
    %6664 = vmatpush1.bf16.msra.mxu0 %v5651
    %6665 = vmatprep.subr.bf16.mxu0 %v5660
    %6666 = vmatpush1.bf16.msra.mxu0 %v5659
    %6667 = vmatprep.subr.bf16.mxu0 %v5668
    %6668 = vmatpush1.bf16.msra.mxu0 %v5667
    %6669 = vmatprep.subr.bf16.mxu0 %v5676
    %6670 = vmatpush1.bf16.msra.mxu0 %v5675
    %6671 = vmatprep.subr.bf16.mxu0 %v5684
    %6672 = vmatpush1.bf16.msra.mxu0 %v5683
    %6673 = vmatprep.subr.bf16.mxu0 %v5692
    %6674 = vmatpush1.bf16.msra.mxu0 %v5691
    %6675 = vmatprep.subr.bf16.mxu0 %v5700
    %6676 = vmatpush1.bf16.msra.mxu0 %v5699
    %6677 = vmatprep.subr.bf16.mxu0 %v5708
    %6678 = vmatpush1.bf16.msra.mxu0 %v5707
    %6679 = vmatprep.subr.bf16.mxu0 %v5716
    %6680 = vmatpush1.bf16.msra.mxu0 %v5715
    %6681 = vmatprep.subr.bf16.mxu0 %v5724
    %6682 = vmatpush1.bf16.msra.mxu0 %v5723
    %6683 = vmatprep.subr.bf16.mxu0 %v5732
    %6684 = vmatpush1.bf16.msra.mxu0 %v5731
    %6685 = vmatprep.subr.bf16.mxu0 %v5740
    %6686 = vmatpush1.bf16.msra.mxu0 %v5739
    %6687 = vmatprep.subr.bf16.mxu0 %v5748
    %6688 = vmatpush1.bf16.msra.mxu0 %v5747
    %6689 = vmatprep.subr.bf16.mxu0 %v5756
    %6690 = vmatpush1.bf16.msra.mxu0 %v5755
    %6691 = vmatprep.mubr.bf16.mxu0 %v3326
    %6692 = vmatmul.mubr.bf16.gmra.mrb[0].mxu0 %v3325
    %v6693 = vpop.f32.mrb[0].mxu0
    %v6694 = vadd.f32 %v6651, %v6693
    %v6695 = vpop.f32.mrb[0].mxu0
    %v6696 = vadd.f32 %v6653, %v6695
    %v6697 = vpop.f32.mrb[0].mxu0
    %v6698 = vadd.f32 %v6655, %v6697
    %v6699 = vpop.f32.mrb[0].mxu0
    %v6700 = vadd.f32 %v6657, %v6699
    %6701 = vdwg.mxu0
    %6702 = vmatprep.subr.bf16.mxu0 %v5764
    %6703 = vmatpush1.bf16.msra.mxu0 %v5763
    %6704 = vmatprep.subr.bf16.mxu0 %v5772
    %6705 = vmatpush1.bf16.msra.mxu0 %v5771
    %6706 = vmatprep.subr.bf16.mxu0 %v5780
    %6707 = vmatpush1.bf16.msra.mxu0 %v5779
    %6708 = vmatprep.subr.bf16.mxu0 %v5788
    %6709 = vmatpush1.bf16.msra.mxu0 %v5787
    %6710 = vmatprep.subr.bf16.mxu0 %v5796
    %6711 = vmatpush1.bf16.msra.mxu0 %v5795
    %6712 = vmatprep.subr.bf16.mxu0 %v5804
    %6713 = vmatpush1.bf16.msra.mxu0 %v5803
    %6714 = vmatprep.subr.bf16.mxu0 %v5812
    %6715 = vmatpush1.bf16.msra.mxu0 %v5811
    %6716 = vmatprep.subr.bf16.mxu0 %v5820
    %6717 = vmatpush1.bf16.msra.mxu0 %v5819
    %6718 = vmatprep.subr.bf16.mxu0 %v5828
    %6719 = vmatpush1.bf16.msra.mxu0 %v5827
    %6720 = vmatprep.subr.bf16.mxu0 %v5836
    %6721 = vmatpush1.bf16.msra.mxu0 %v5835
    %6722 = vmatprep.subr.bf16.mxu0 %v5844
    %6723 = vmatpush1.bf16.msra.mxu0 %v5843
    %6724 = vmatprep.subr.bf16.mxu0 %v5852
    %6725 = vmatpush1.bf16.msra.mxu0 %v5851
    %6726 = vmatprep.subr.bf16.mxu0 %v5860
    %6727 = vmatpush1.bf16.msra.mxu0 %v5859
    %6728 = vmatprep.subr.bf16.mxu0 %v5868
    %6729 = vmatpush1.bf16.msra.mxu0 %v5867
    %6730 = vmatprep.subr.bf16.mxu0 %v5876
    %6731 = vmatpush1.bf16.msra.mxu0 %v5875
    %6732 = vmatprep.subr.bf16.mxu0 %v5884
    %6733 = vmatpush1.bf16.msra.mxu0 %v5883
    %6734 = vmatprep.mubr.bf16.mxu0 %v3328
    %6735 = vmatmul.mubr.bf16.gmra.mrb[0].mxu0 %v3327
    %v6736 = vpop.f32.mrb[0].mxu0
    %v6737 = vadd.f32 %v6694, %v6736
    %v6738 = vpop.f32.mrb[0].mxu0
    %v6739 = vadd.f32 %v6696, %v6738
    %v6740 = vpop.f32.mrb[0].mxu0
    %v6741 = vadd.f32 %v6698, %v6740
    %v6742 = vpop.f32.mrb[0].mxu0
    %v6743 = vadd.f32 %v6700, %v6742
    %6744 = vdwg.mxu0
    %6745 = vmatprep.subr.bf16.mxu0 %v5382
    %6746 = vmatpush1.bf16.msra.mxu0 %v5381
    %6747 = vmatprep.subr.bf16.mxu0 %v5390
    %6748 = vmatpush1.bf16.msra.mxu0 %v5389
    %6749 = vmatprep.subr.bf16.mxu0 %v5398
    %6750 = vmatpush1.bf16.msra.mxu0 %v5397
    %6751 = vmatprep.subr.bf16.mxu0 %v5406
    %6752 = vmatpush1.bf16.msra.mxu0 %v5405
    %6753 = vmatprep.subr.bf16.mxu0 %v5414
    %6754 = vmatpush1.bf16.msra.mxu0 %v5413
    %6755 = vmatprep.subr.bf16.mxu0 %v5422
    %6756 = vmatpush1.bf16.msra.mxu0 %v5421
    %6757 = vmatprep.subr.bf16.mxu0 %v5430
    %6758 = vmatpush1.bf16.msra.mxu0 %v5429
    %6759 = vmatprep.subr.bf16.mxu0 %v5438
    %6760 = vmatpush1.bf16.msra.mxu0 %v5437
    %6761 = vmatprep.subr.bf16.mxu0 %v5446
    %6762 = vmatpush1.bf16.msra.mxu0 %v5445
    %6763 = vmatprep.subr.bf16.mxu0 %v5454
    %6764 = vmatpush1.bf16.msra.mxu0 %v5453
    %6765 = vmatprep.subr.bf16.mxu0 %v5462
    %6766 = vmatpush1.bf16.msra.mxu0 %v5461
    %6767 = vmatprep.subr.bf16.mxu0 %v5470
    %6768 = vmatpush1.bf16.msra.mxu0 %v5469
    %6769 = vmatprep.subr.bf16.mxu0 %v5478
    %6770 = vmatpush1.bf16.msra.mxu0 %v5477
    %6771 = vmatprep.subr.bf16.mxu0 %v5486
    %6772 = vmatpush1.bf16.msra.mxu0 %v5485
    %6773 = vmatprep.subr.bf16.mxu0 %v5494
    %6774 = vmatpush1.bf16.msra.mxu0 %v5493
    %6775 = vmatprep.subr.bf16.mxu0 %v5502
    %6776 = vmatpush1.bf16.msra.mxu0 %v5501
    %6777 = vmatprep.mubr.bf16.mxu0 %v3322
    %6778 = vmatmul.mubr.bf16.gmra.mrb[0].mxu0 %v3321
    %v6779 = vpop.f32.mrb[0].mxu0
    %v6780 = vadd.f32 0.0, %v6779
    %v6781 = vpop.f32.mrb[0].mxu0
    %v6782 = vadd.f32 0.0, %v6781
    %v6783 = vpop.f32.mrb[0].mxu0
    %v6784 = vadd.f32 0.0, %v6783
    %v6785 = vpop.f32.mrb[0].mxu0
    %v6786 = vadd.f32 0.0, %v6785
    %6787 = vdwg.mxu0
    %6788 = vmatprep.subr.bf16.mxu0 %v5510
    %6789 = vmatpush1.bf16.msra.mxu0 %v5509
    %6790 = vmatprep.subr.bf16.mxu0 %v5518
    %6791 = vmatpush1.bf16.msra.mxu0 %v5517
    %6792 = vmatprep.subr.bf16.mxu0 %v5526
    %6793 = vmatpush1.bf16.msra.mxu0 %v5525
    %6794 = vmatprep.subr.bf16.mxu0 %v5534
    %6795 = vmatpush1.bf16.msra.mxu0 %v5533
    %6796 = vmatprep.subr.bf16.mxu0 %v5542
    %6797 = vmatpush1.bf16.msra.mxu0 %v5541
    %6798 = vmatprep.subr.bf16.mxu0 %v5550
    %6799 = vmatpush1.bf16.msra.mxu0 %v5549
    %6800 = vmatprep.subr.bf16.mxu0 %v5558
    %6801 = vmatpush1.bf16.msra.mxu0 %v5557
    %6802 = vmatprep.subr.bf16.mxu0 %v5566
    %6803 = vmatpush1.bf16.msra.mxu0 %v5565
    %6804 = vmatprep.subr.bf16.mxu0 %v5574
    %6805 = vmatpush1.bf16.msra.mxu0 %v5573
    %6806 = vmatprep.subr.bf16.mxu0 %v5582
    %6807 = vmatpush1.bf16.msra.mxu0 %v5581
    %6808 = vmatprep.subr.bf16.mxu0 %v5590
    %6809 = vmatpush1.bf16.msra.mxu0 %v5589
    %6810 = vmatprep.subr.bf16.mxu0 %v5598
    %6811 = vmatpush1.bf16.msra.mxu0 %v5597
    %6812 = vmatprep.subr.bf16.mxu0 %v5606
    %6813 = vmatpush1.bf16.msra.mxu0 %v5605
    %6814 = vmatprep.subr.bf16.mxu0 %v5614
    %6815 = vmatpush1.bf16.msra.mxu0 %v5613
    %6816 = vmatprep.subr.bf16.mxu0 %v5622
    %6817 = vmatpush1.bf16.msra.mxu0 %v5621
    %6818 = vmatprep.subr.bf16.mxu0 %v5630
    %6819 = vmatpush1.bf16.msra.mxu0 %v5629
    %6820 = vmatprep.mubr.bf16.mxu0 %v3324
    %6821 = vmatmul.mubr.bf16.gmra.mrb[0].mxu0 %v3323
    %v6822 = vpop.f32.mrb[0].mxu0
    %v6823 = vadd.f32 %v6780, %v6822
    %v6824 = vpop.f32.mrb[0].mxu0
    %v6825 = vadd.f32 %v6782, %v6824
    %v6826 = vpop.f32.mrb[0].mxu0
    %v6827 = vadd.f32 %v6784, %v6826
    %v6828 = vpop.f32.mrb[0].mxu0
    %v6829 = vadd.f32 %v6786, %v6828
    %6830 = vdwg.mxu0
    %6831 = vmatprep.subr.bf16.mxu0 %v5638
    %6832 = vmatpush1.bf16.msra.mxu0 %v5637
    %6833 = vmatprep.subr.bf16.mxu0 %v5646
    %6834 = vmatpush1.bf16.msra.mxu0 %v5645
    %6835 = vmatprep.subr.bf16.mxu0 %v5654
    %6836 = vmatpush1.bf16.msra.mxu0 %v5653
    %6837 = vmatprep.subr.bf16.mxu0 %v5662
    %6838 = vmatpush1.bf16.msra.mxu0 %v5661
    %6839 = vmatprep.subr.bf16.mxu0 %v5670
    %6840 = vmatpush1.bf16.msra.mxu0 %v5669
    %6841 = vmatprep.subr.bf16.mxu0 %v5678
    %6842 = vmatpush1.bf16.msra.mxu0 %v5677
    %6843 = vmatprep.subr.bf16.mxu0 %v5686
    %6844 = vmatpush1.bf16.msra.mxu0 %v5685
    %6845 = vmatprep.subr.bf16.mxu0 %v5694
    %6846 = vmatpush1.bf16.msra.mxu0 %v5693
    %6847 = vmatprep.subr.bf16.mxu0 %v5702
    %6848 = vmatpush1.bf16.msra.mxu0 %v5701
    %6849 = vmatprep.subr.bf16.mxu0 %v5710
    %6850 = vmatpush1.bf16.msra.mxu0 %v5709
    %6851 = vmatprep.subr.bf16.mxu0 %v5718
    %6852 = vmatpush1.bf16.msra.mxu0 %v5717
    %6853 = vmatprep.subr.bf16.mxu0 %v5726
    %6854 = vmatpush1.bf16.msra.mxu0 %v5725
    %6855 = vmatprep.subr.bf16.mxu0 %v5734
    %6856 = vmatpush1.bf16.msra.mxu0 %v5733
    %6857 = vmatprep.subr.bf16.mxu0 %v5742
    %6858 = vmatpush1.bf16.msra.mxu0 %v5741
    %6859 = vmatprep.subr.bf16.mxu0 %v5750
    %6860 = vmatpush1.bf16.msra.mxu0 %v5749
    %6861 = vmatprep.subr.bf16.mxu0 %v5758
    %6862 = vmatpush1.bf16.msra.mxu0 %v5757
    %6863 = vmatprep.mubr.bf16.mxu0 %v3326
    %6864 = vmatmul.mubr.bf16.gmra.mrb[0].mxu0 %v3325
    %v6865 = vpop.f32.mrb[0].mxu0
    %v6866 = vadd.f32 %v6823, %v6865
    %v6867 = vpop.f32.mrb[0].mxu0
    %v6868 = vadd.f32 %v6825, %v6867
    %v6869 = vpop.f32.mrb[0].mxu0
    %v6870 = vadd.f32 %v6827, %v6869
    %v6871 = vpop.f32.mrb[0].mxu0
    %v6872 = vadd.f32 %v6829, %v6871
    %6873 = vdwg.mxu0
    %6874 = vmatprep.subr.bf16.mxu0 %v5766
    %6875 = vmatpush1.bf16.msra.mxu0 %v5765
    %6876 = vmatprep.subr.bf16.mxu0 %v5774
    %6877 = vmatpush1.bf16.msra.mxu0 %v5773
    %6878 = vmatprep.subr.bf16.mxu0 %v5782
    %6879 = vmatpush1.bf16.msra.mxu0 %v5781
    %6880 = vmatprep.subr.bf16.mxu0 %v5790
    %6881 = vmatpush1.bf16.msra.mxu0 %v5789
    %6882 = vmatprep.subr.bf16.mxu0 %v5798
    %6883 = vmatpush1.bf16.msra.mxu0 %v5797
    %6884 = vmatprep.subr.bf16.mxu0 %v5806
    %6885 = vmatpush1.bf16.msra.mxu0 %v5805
    %6886 = vmatprep.subr.bf16.mxu0 %v5814
    %6887 = vmatpush1.bf16.msra.mxu0 %v5813
    %6888 = vmatprep.subr.bf16.mxu0 %v5822
    %6889 = vmatpush1.bf16.msra.mxu0 %v5821
    %6890 = vmatprep.subr.bf16.mxu0 %v5830
    %6891 = vmatpush1.bf16.msra.mxu0 %v5829
    %6892 = vmatprep.subr.bf16.mxu0 %v5838
    %6893 = vmatpush1.bf16.msra.mxu0 %v5837
    %6894 = vmatprep.subr.bf16.mxu0 %v5846
    %6895 = vmatpush1.bf16.msra.mxu0 %v5845
    %6896 = vmatprep.subr.bf16.mxu0 %v5854
    %6897 = vmatpush1.bf16.msra.mxu0 %v5853
    %6898 = vmatprep.subr.bf16.mxu0 %v5862
    %6899 = vmatpush1.bf16.msra.mxu0 %v5861
    %6900 = vmatprep.subr.bf16.mxu0 %v5870
    %6901 = vmatpush1.bf16.msra.mxu0 %v5869
    %6902 = vmatprep.subr.bf16.mxu0 %v5878
    %6903 = vmatpush1.bf16.msra.mxu0 %v5877
    %6904 = vmatprep.subr.bf16.mxu0 %v5886
    %6905 = vmatpush1.bf16.msra.mxu0 %v5885
    %6906 = vmatprep.mubr.bf16.mxu0 %v3328
    %6907 = vmatmul.mubr.bf16.gmra.mrb[0].mxu0 %v3327
    %v6908 = vpop.f32.mrb[0].mxu0
    %v6909 = vadd.f32 %v6866, %v6908
    %v6910 = vpop.f32.mrb[0].mxu0
    %v6911 = vadd.f32 %v6868, %v6910
    %v6912 = vpop.f32.mrb[0].mxu0
    %v6913 = vadd.f32 %v6870, %v6912
    %v6914 = vpop.f32.mrb[0].mxu0
    %v6915 = vadd.f32 %v6872, %v6914
    %6916 = vdwg.mxu0
    %6917 = vmatprep.subr.bf16.mxu0 %v5384
    %6918 = vmatpush1.bf16.msra.mxu0 %v5383
    %6919 = vmatprep.subr.bf16.mxu0 %v5392
    %6920 = vmatpush1.bf16.msra.mxu0 %v5391
    %6921 = vmatprep.subr.bf16.mxu0 %v5400
    %6922 = vmatpush1.bf16.msra.mxu0 %v5399
    %6923 = vmatprep.subr.bf16.mxu0 %v5408
    %6924 = vmatpush1.bf16.msra.mxu0 %v5407
    %6925 = vmatprep.subr.bf16.mxu0 %v5416
    %6926 = vmatpush1.bf16.msra.mxu0 %v5415
    %6927 = vmatprep.subr.bf16.mxu0 %v5424
    %6928 = vmatpush1.bf16.msra.mxu0 %v5423
    %6929 = vmatprep.subr.bf16.mxu0 %v5432
    %6930 = vmatpush1.bf16.msra.mxu0 %v5431
    %6931 = vmatprep.subr.bf16.mxu0 %v5440
    %6932 = vmatpush1.bf16.msra.mxu0 %v5439
    %6933 = vmatprep.subr.bf16.mxu0 %v5448
    %6934 = vmatpush1.bf16.msra.mxu0 %v5447
    %6935 = vmatprep.subr.bf16.mxu0 %v5456
    %6936 = vmatpush1.bf16.msra.mxu0 %v5455
    %6937 = vmatprep.subr.bf16.mxu0 %v5464
    %6938 = vmatpush1.bf16.msra.mxu0 %v5463
    %6939 = vmatprep.subr.bf16.mxu0 %v5472
    %6940 = vmatpush1.bf16.msra.mxu0 %v5471
    %6941 = vmatprep.subr.bf16.mxu0 %v5480
    %6942 = vmatpush1.bf16.msra.mxu0 %v5479
    %6943 = vmatprep.subr.bf16.mxu0 %v5488
    %6944 = vmatpush1.bf16.msra.mxu0 %v5487
    %6945 = vmatprep.subr.bf16.mxu0 %v5496
    %6946 = vmatpush1.bf16.msra.mxu0 %v5495
    %6947 = vmatprep.subr.bf16.mxu0 %v5504
    %6948 = vmatpush1.bf16.msra.mxu0 %v5503
    %6949 = vmatprep.mubr.bf16.mxu0 %v3322
    %6950 = vmatmul.mubr.bf16.gmra.mrb[0].mxu0 %v3321
    %v6951 = vpop.f32.mrb[0].mxu0
    %v6952 = vadd.f32 0.0, %v6951
    %v6953 = vpop.f32.mrb[0].mxu0
    %v6954 = vadd.f32 0.0, %v6953
    %v6955 = vpop.f32.mrb[0].mxu0
    %v6956 = vadd.f32 0.0, %v6955
    %v6957 = vpop.f32.mrb[0].mxu0
    %v6958 = vadd.f32 0.0, %v6957
    %6959 = vdwg.mxu0
    %6960 = vmatprep.subr.bf16.mxu0 %v5512
    %6961 = vmatpush1.bf16.msra.mxu0 %v5511
    %6962 = vmatprep.subr.bf16.mxu0 %v5520
    %6963 = vmatpush1.bf16.msra.mxu0 %v5519
    %6964 = vmatprep.subr.bf16.mxu0 %v5528
    %6965 = vmatpush1.bf16.msra.mxu0 %v5527
    %6966 = vmatprep.subr.bf16.mxu0 %v5536
    %6967 = vmatpush1.bf16.msra.mxu0 %v5535
    %6968 = vmatprep.subr.bf16.mxu0 %v5544
    %6969 = vmatpush1.bf16.msra.mxu0 %v5543
    %6970 = vmatprep.subr.bf16.mxu0 %v5552
    %6971 = vmatpush1.bf16.msra.mxu0 %v5551
    %6972 = vmatprep.subr.bf16.mxu0 %v5560
    %6973 = vmatpush1.bf16.msra.mxu0 %v5559
    %6974 = vmatprep.subr.bf16.mxu0 %v5568
    %6975 = vmatpush1.bf16.msra.mxu0 %v5567
    %6976 = vmatprep.subr.bf16.mxu0 %v5576
    %6977 = vmatpush1.bf16.msra.mxu0 %v5575
    %6978 = vmatprep.subr.bf16.mxu0 %v5584
    %6979 = vmatpush1.bf16.msra.mxu0 %v5583
    %6980 = vmatprep.subr.bf16.mxu0 %v5592
    %6981 = vmatpush1.bf16.msra.mxu0 %v5591
    %6982 = vmatprep.subr.bf16.mxu0 %v5600
    %6983 = vmatpush1.bf16.msra.mxu0 %v5599
    %6984 = vmatprep.subr.bf16.mxu0 %v5608
    %6985 = vmatpush1.bf16.msra.mxu0 %v5607
    %6986 = vmatprep.subr.bf16.mxu0 %v5616
    %6987 = vmatpush1.bf16.msra.mxu0 %v5615
    %6988 = vmatprep.subr.bf16.mxu0 %v5624
    %6989 = vmatpush1.bf16.msra.mxu0 %v5623
    %6990 = vmatprep.subr.bf16.mxu0 %v5632
    %6991 = vmatpush1.bf16.msra.mxu0 %v5631
    %6992 = vmatprep.mubr.bf16.mxu0 %v3324
    %6993 = vmatmul.mubr.bf16.gmra.mrb[0].mxu0 %v3323
    %v6994 = vpop.f32.mrb[0].mxu0
    %v6995 = vadd.f32 %v6952, %v6994
    %v6996 = vpop.f32.mrb[0].mxu0
    %v6997 = vadd.f32 %v6954, %v6996
    %v6998 = vpop.f32.mrb[0].mxu0
    %v6999 = vadd.f32 %v6956, %v6998
    %v7000 = vpop.f32.mrb[0].mxu0
    %v7001 = vadd.f32 %v6958, %v7000
    %7002 = vdwg.mxu0
    %7003 = vmatprep.subr.bf16.mxu0 %v5640
    %7004 = vmatpush1.bf16.msra.mxu0 %v5639
    %7005 = vmatprep.subr.bf16.mxu0 %v5648
    %7006 = vmatpush1.bf16.msra.mxu0 %v5647
    %7007 = vmatprep.subr.bf16.mxu0 %v5656
    %7008 = vmatpush1.bf16.msra.mxu0 %v5655
    %7009 = vmatprep.subr.bf16.mxu0 %v5664
    %7010 = vmatpush1.bf16.msra.mxu0 %v5663
    %7011 = vmatprep.subr.bf16.mxu0 %v5672
    %7012 = vmatpush1.bf16.msra.mxu0 %v5671
    %7013 = vmatprep.subr.bf16.mxu0 %v5680
    %7014 = vmatpush1.bf16.msra.mxu0 %v5679
    %7015 = vmatprep.subr.bf16.mxu0 %v5688
    %7016 = vmatpush1.bf16.msra.mxu0 %v5687
    %7017 = vmatprep.subr.bf16.mxu0 %v5696
    %7018 = vmatpush1.bf16.msra.mxu0 %v5695
    %7019 = vmatprep.subr.bf16.mxu0 %v5704
    %7020 = vmatpush1.bf16.msra.mxu0 %v5703
    %7021 = vmatprep.subr.bf16.mxu0 %v5712
    %7022 = vmatpush1.bf16.msra.mxu0 %v5711
    %7023 = vmatprep.subr.bf16.mxu0 %v5720
    %7024 = vmatpush1.bf16.msra.mxu0 %v5719
    %7025 = vmatprep.subr.bf16.mxu0 %v5728
    %7026 = vmatpush1.bf16.msra.mxu0 %v5727
    %7027 = vmatprep.subr.bf16.mxu0 %v5736
    %7028 = vmatpush1.bf16.msra.mxu0 %v5735
    %7029 = vmatprep.subr.bf16.mxu0 %v5744
    %7030 = vmatpush1.bf16.msra.mxu0 %v5743
    %7031 = vmatprep.subr.bf16.mxu0 %v5752
    %7032 = vmatpush1.bf16.msra.mxu0 %v5751
    %7033 = vmatprep.subr.bf16.mxu0 %v5760
    %7034 = vmatpush1.bf16.msra.mxu0 %v5759
    %7035 = vmatprep.mubr.bf16.mxu0 %v3326
    %7036 = vmatmul.mubr.bf16.gmra.mrb[0].mxu0 %v3325
    %v7037 = vpop.f32.mrb[0].mxu0
    %v7038 = vadd.f32 %v6995, %v7037
    %v7039 = vpop.f32.mrb[0].mxu0
    %v7040 = vadd.f32 %v6997, %v7039
    %v7041 = vpop.f32.mrb[0].mxu0
    %v7042 = vadd.f32 %v6999, %v7041
    %v7043 = vpop.f32.mrb[0].mxu0
    %v7044 = vadd.f32 %v7001, %v7043
    %7045 = vdwg.mxu0
    %7046 = vmatprep.subr.bf16.mxu0 %v5768
    %7047 = vmatpush1.bf16.msra.mxu0 %v5767
    %7048 = vmatprep.subr.bf16.mxu0 %v5776
    %7049 = vmatpush1.bf16.msra.mxu0 %v5775
    %7050 = vmatprep.subr.bf16.mxu0 %v5784
    %7051 = vmatpush1.bf16.msra.mxu0 %v5783
    %7052 = vmatprep.subr.bf16.mxu0 %v5792
    %7053 = vmatpush1.bf16.msra.mxu0 %v5791
    %7054 = vmatprep.subr.bf16.mxu0 %v5800
    %7055 = vmatpush1.bf16.msra.mxu0 %v5799
    %7056 = vmatprep.subr.bf16.mxu0 %v5808
    %7057 = vmatpush1.bf16.msra.mxu0 %v5807
    %7058 = vmatprep.subr.bf16.mxu0 %v5816
    %7059 = vmatpush1.bf16.msra.mxu0 %v5815
    %7060 = vmatprep.subr.bf16.mxu0 %v5824
    %7061 = vmatpush1.bf16.msra.mxu0 %v5823
    %7062 = vmatprep.subr.bf16.mxu0 %v5832
    %7063 = vmatpush1.bf16.msra.mxu0 %v5831
    %7064 = vmatprep.subr.bf16.mxu0 %v5840
    %7065 = vmatpush1.bf16.msra.mxu0 %v5839
    %7066 = vmatprep.subr.bf16.mxu0 %v5848
    %7067 = vmatpush1.bf16.msra.mxu0 %v5847
    %7068 = vmatprep.subr.bf16.mxu0 %v5856
    %7069 = vmatpush1.bf16.msra.mxu0 %v5855
    %7070 = vmatprep.subr.bf16.mxu0 %v5864
    %7071 = vmatpush1.bf16.msra.mxu0 %v5863
    %7072 = vmatprep.subr.bf16.mxu0 %v5872
    %7073 = vmatpush1.bf16.msra.mxu0 %v5871
    %7074 = vmatprep.subr.bf16.mxu0 %v5880
    %7075 = vmatpush1.bf16.msra.mxu0 %v5879
    %7076 = vmatprep.subr.bf16.mxu0 %v5888
    %7077 = vmatpush1.bf16.msra.mxu0 %v5887
    %7078 = vmatprep.mubr.bf16.mxu0 %v3328
    %7079 = vmatmul.mubr.bf16.gmra.mrb[0].mxu0 %v3327
    %v7080 = vpop.f32.mrb[0].mxu0
    %v7081 = vadd.f32 %v7038, %v7080
    %v7082 = vpop.f32.mrb[0].mxu0
    %v7083 = vadd.f32 %v7040, %v7082
    %v7084 = vpop.f32.mrb[0].mxu0
    %v7085 = vadd.f32 %v7042, %v7084
    %v7086 = vpop.f32.mrb[0].mxu0
    %v7087 = vadd.f32 %v7044, %v7086
    %7088 = vdwg.mxu0
    %v7089 = vld [vmem:[#allocation8] sm:$0xff]
    %v7090 = vld [vmem:[#allocation8 + $0x8] sm:$0xff]
    %v7091 = vld [vmem:[#allocation8 + $0x10] sm:$0xff]
    %v7092 = vld [vmem:[#allocation8 + $0x18] sm:$0xff]
    %v7093 = vld [vmem:[#allocation8 + $0x20] sm:$0xff]
    %v7094 = vld [vmem:[#allocation8 + $0x28] sm:$0xff]
    %v7095 = vld [vmem:[#allocation8 + $0x30] sm:$0xff]
    %v7096 = vld [vmem:[#allocation8 + $0x38] sm:$0xff]
    %v7097 = vld [vmem:[#allocation8 + $0x40] sm:$0xff]
    %v7098 = vld [vmem:[#allocation8 + $0x48] sm:$0xff]
    %v7099 = vld [vmem:[#allocation8 + $0x50] sm:$0xff]
    %v7100 = vld [vmem:[#allocation8 + $0x58] sm:$0xff]
    %v7101 = vld [vmem:[#allocation8 + $0x60] sm:$0xff]
    %v7102 = vld [vmem:[#allocation8 + $0x68] sm:$0xff]
    %v7103 = vld [vmem:[#allocation8 + $0x70] sm:$0xff]
    %v7104 = vld [vmem:[#allocation8 + $0x78] sm:$0xff]
    %v7105 = vmul.f32 %v6565, %v7089
    %v7106 = vmul.f32 %v6567, %v7090
    %v7107 = vmul.f32 %v6737, %v7091
    %v7108 = vmul.f32 %v6739, %v7092
    %v7109 = vmul.f32 %v6909, %v7093
    %v7110 = vmul.f32 %v6911, %v7094
    %v7111 = vmul.f32 %v7081, %v7095
    %v7112 = vmul.f32 %v7083, %v7096
    %v7113 = vmul.f32 %v6569, %v7097
    %v7114 = vmul.f32 %v6571, %v7098
    %v7115 = vmul.f32 %v6741, %v7099
    %v7116 = vmul.f32 %v6743, %v7100
    %v7117 = vmul.f32 %v6913, %v7101
    %v7118 = vmul.f32 %v6915, %v7102
    %v7119 = vmul.f32 %v7085, %v7103
    %v7120 = vmul.f32 %v7087, %v7104
    %v7121 = vld [vmem:[#allocation10] sm:$0xff]
    %v7122 = vld [vmem:[#allocation10 + $0x8] sm:$0xff]
    %v7123 = vld [vmem:[#allocation10 + $0x10] sm:$0xff]
    %v7124 = vld [vmem:[#allocation10 + $0x18] sm:$0xff]
    %v7125 = vld [vmem:[#allocation10 + $0x20] sm:$0xff]
    %v7126 = vld [vmem:[#allocation10 + $0x28] sm:$0xff]
    %v7127 = vld [vmem:[#allocation10 + $0x30] sm:$0xff]
    %v7128 = vld [vmem:[#allocation10 + $0x38] sm:$0xff]
    %v7129 = vld [vmem:[#allocation10 + $0x40] sm:$0xff]
    %v7130 = vld [vmem:[#allocation10 + $0x48] sm:$0xff]
    %v7131 = vld [vmem:[#allocation10 + $0x50] sm:$0xff]
    %v7132 = vld [vmem:[#allocation10 + $0x58] sm:$0xff]
    %v7133 = vld [vmem:[#allocation10 + $0x60] sm:$0xff]
    %v7134 = vld [vmem:[#allocation10 + $0x68] sm:$0xff]
    %v7135 = vld [vmem:[#allocation10 + $0x70] sm:$0xff]
    %v7136 = vld [vmem:[#allocation10 + $0x78] sm:$0xff]
    %v7137 = vadd.f32 %v7105, %v7121
    %v7138 = vadd.f32 %v7106, %v7122
    %v7139 = vadd.f32 %v7107, %v7123
    %v7140 = vadd.f32 %v7108, %v7124
    %v7141 = vadd.f32 %v7109, %v7125
    %v7142 = vadd.f32 %v7110, %v7126
    %v7143 = vadd.f32 %v7111, %v7127
    %v7144 = vadd.f32 %v7112, %v7128
    %v7145 = vadd.f32 %v7113, %v7129
    %v7146 = vadd.f32 %v7114, %v7130
    %v7147 = vadd.f32 %v7115, %v7131
    %v7148 = vadd.f32 %v7116, %v7132
    %v7149 = vadd.f32 %v7117, %v7133
    %v7150 = vadd.f32 %v7118, %v7134
    %v7151 = vadd.f32 %v7119, %v7135
    %v7152 = vadd.f32 %v7120, %v7136
    %7153 = vst [vmem:[%s9] sm:$0xff] %v7137
    %7154 = vst [vmem:[%s9 + $0x8] sm:$0xff] %v7138
    %7155 = vst [vmem:[%s9 + $0x10] sm:$0xff] %v7139
    %7156 = vst [vmem:[%s9 + $0x18] sm:$0xff] %v7140
    %7157 = vst [vmem:[%s9 + $0x20] sm:$0xff] %v7141
    %7158 = vst [vmem:[%s9 + $0x28] sm:$0xff] %v7142
    %7159 = vst [vmem:[%s9 + $0x30] sm:$0xff] %v7143
    %7160 = vst [vmem:[%s9 + $0x38] sm:$0xff] %v7144
    %7161 = vst [vmem:[%s9 + $0x40] sm:$0xff] %v7145
    %7162 = vst [vmem:[%s9 + $0x48] sm:$0xff] %v7146
    %7163 = vst [vmem:[%s9 + $0x50] sm:$0xff] %v7147
    %7164 = vst [vmem:[%s9 + $0x58] sm:$0xff] %v7148
    %7165 = vst [vmem:[%s9 + $0x60] sm:$0xff] %v7149
    %7166 = vst [vmem:[%s9 + $0x68] sm:$0xff] %v7150
    %7167 = vst [vmem:[%s9 + $0x70] sm:$0xff] %v7151
    %7168 = vst [vmem:[%s9 + $0x78] sm:$0xff] %v7152
    %v7169 = vpack.c.bf16 %v7145, %v7137
    %v7170 = vpack.c.bf16 %v7146, %v7138
    %v7171 = vpack.c.bf16 %v7147, %v7139
    %v7172 = vpack.c.bf16 %v7148, %v7140
    %v7173 = vpack.c.bf16 %v7149, %v7141
    %v7174 = vpack.c.bf16 %v7150, %v7142
    %v7175 = vpack.c.bf16 %v7151, %v7143
    %v7176 = vpack.c.bf16 %v7152, %v7144
    %v7177 = vld [vmem:[#allocation11] sm:$0xf]
    %v7178 = vld [vmem:[#allocation11 + $0x4] sm:$0xf]
    %v7179 = vld [vmem:[#allocation11 + $0x8] sm:$0xf]
    %v7180 = vld [vmem:[#allocation11 + $0xc] sm:$0xf]
    %v7181 = vld [vmem:[#allocation11 + $0x10] sm:$0xf]
    %v7182 = vld [vmem:[#allocation11 + $0x14] sm:$0xf]
    %v7183 = vld [vmem:[#allocation11 + $0x18] sm:$0xf]
    %v7184 = vld [vmem:[#allocation11 + $0x1c] sm:$0xf]
    %v7185 = vld [vmem:[#allocation11 + $0x20] sm:$0xf]
    %v7186 = vld [vmem:[#allocation11 + $0x24] sm:$0xf]
    %v7187 = vld [vmem:[#allocation11 + $0x28] sm:$0xf]
    %v7188 = vld [vmem:[#allocation11 + $0x2c] sm:$0xf]
    %v7189 = vld [vmem:[#allocation11 + $0x30] sm:$0xf]
    %v7190 = vld [vmem:[#allocation11 + $0x34] sm:$0xf]
    %v7191 = vld [vmem:[#allocation11 + $0x38] sm:$0xf]
    %v7192 = vld [vmem:[#allocation11 + $0x3c] sm:$0xf]
    %v7193 = vld [vmem:[#allocation11 + $0x40] sm:$0xf]
    %v7194 = vld [vmem:[#allocation11 + $0x44] sm:$0xf]
    %v7195 = vld [vmem:[#allocation11 + $0x48] sm:$0xf]
    %v7196 = vld [vmem:[#allocation11 + $0x4c] sm:$0xf]
    %v7197 = vld [vmem:[#allocation11 + $0x50] sm:$0xf]
    %v7198 = vld [vmem:[#allocation11 + $0x54] sm:$0xf]
    %v7199 = vld [vmem:[#allocation11 + $0x58] sm:$0xf]
    %v7200 = vld [vmem:[#allocation11 + $0x5c] sm:$0xf]
    %v7201 = vld [vmem:[#allocation11 + $0x60] sm:$0xf]
    %v7202 = vld [vmem:[#allocation11 + $0x64] sm:$0xf]
    %v7203 = vld [vmem:[#allocation11 + $0x68] sm:$0xf]
    %v7204 = vld [vmem:[#allocation11 + $0x6c] sm:$0xf]
    %v7205 = vld [vmem:[#allocation11 + $0x70] sm:$0xf]
    %v7206 = vld [vmem:[#allocation11 + $0x74] sm:$0xf]
    %v7207 = vld [vmem:[#allocation11 + $0x78] sm:$0xf]
    %v7208 = vld [vmem:[#allocation11 + $0x7c] sm:$0xf]
    %v7209 = vld [vmem:[#allocation11 + $0x80] sm:$0xf]
    %v7210 = vld [vmem:[#allocation11 + $0x84] sm:$0xf]
    %v7211 = vld [vmem:[#allocation11 + $0x88] sm:$0xf]
    %v7212 = vld [vmem:[#allocation11 + $0x8c] sm:$0xf]
    %v7213 = vld [vmem:[#allocation11 + $0x90] sm:$0xf]
    %v7214 = vld [vmem:[#allocation11 + $0x94] sm:$0xf]
    %v7215 = vld [vmem:[#allocation11 + $0x98] sm:$0xf]
    %v7216 = vld [vmem:[#allocation11 + $0x9c] sm:$0xf]
    %v7217 = vld [vmem:[#allocation11 + $0xa0] sm:$0xf]
    %v7218 = vld [vmem:[#allocation11 + $0xa4] sm:$0xf]
    %v7219 = vld [vmem:[#allocation11 + $0xa8] sm:$0xf]
    %v7220 = vld [vmem:[#allocation11 + $0xac] sm:$0xf]
    %v7221 = vld [vmem:[#allocation11 + $0xb0] sm:$0xf]
    %v7222 = vld [vmem:[#allocation11 + $0xb4] sm:$0xf]
    %v7223 = vld [vmem:[#allocation11 + $0xb8] sm:$0xf]
    %v7224 = vld [vmem:[#allocation11 + $0xbc] sm:$0xf]
    %v7225 = vld [vmem:[#allocation11 + $0xc0] sm:$0xf]
    %v7226 = vld [vmem:[#allocation11 + $0xc4] sm:$0xf]
    %v7227 = vld [vmem:[#allocation11 + $0xc8] sm:$0xf]
    %v7228 = vld [vmem:[#allocation11 + $0xcc] sm:$0xf]
    %v7229 = vld [vmem:[#allocation11 + $0xd0] sm:$0xf]
    %v7230 = vld [vmem:[#allocation11 + $0xd4] sm:$0xf]
    %v7231 = vld [vmem:[#allocation11 + $0xd8] sm:$0xf]
    %v7232 = vld [vmem:[#allocation11 + $0xdc] sm:$0xf]
    %v7233 = vld [vmem:[#allocation11 + $0xe0] sm:$0xf]
    %v7234 = vld [vmem:[#allocation11 + $0xe4] sm:$0xf]
    %v7235 = vld [vmem:[#allocation11 + $0xe8] sm:$0xf]
    %v7236 = vld [vmem:[#allocation11 + $0xec] sm:$0xf]
    %v7237 = vld [vmem:[#allocation11 + $0xf0] sm:$0xf]
    %v7238 = vld [vmem:[#allocation11 + $0xf4] sm:$0xf]
    %v7239 = vld [vmem:[#allocation11 + $0xf8] sm:$0xf]
    %v7240 = vld [vmem:[#allocation11 + $0xfc] sm:$0xf]
    %v7241 = vld [vmem:[#allocation11 + $0x100] sm:$0xf]
    %v7242 = vld [vmem:[#allocation11 + $0x104] sm:$0xf]
    %v7243 = vld [vmem:[#allocation11 + $0x108] sm:$0xf]
    %v7244 = vld [vmem:[#allocation11 + $0x10c] sm:$0xf]
    %v7245 = vld [vmem:[#allocation11 + $0x110] sm:$0xf]
    %v7246 = vld [vmem:[#allocation11 + $0x114] sm:$0xf]
    %v7247 = vld [vmem:[#allocation11 + $0x118] sm:$0xf]
    %v7248 = vld [vmem:[#allocation11 + $0x11c] sm:$0xf]
    %v7249 = vld [vmem:[#allocation11 + $0x120] sm:$0xf]
    %v7250 = vld [vmem:[#allocation11 + $0x124] sm:$0xf]
    %v7251 = vld [vmem:[#allocation11 + $0x128] sm:$0xf]
    %v7252 = vld [vmem:[#allocation11 + $0x12c] sm:$0xf]
    %v7253 = vld [vmem:[#allocation11 + $0x130] sm:$0xf]
    %v7254 = vld [vmem:[#allocation11 + $0x134] sm:$0xf]
    %v7255 = vld [vmem:[#allocation11 + $0x138] sm:$0xf]
    %v7256 = vld [vmem:[#allocation11 + $0x13c] sm:$0xf]
    %v7257 = vld [vmem:[#allocation11 + $0x140] sm:$0xf]
    %v7258 = vld [vmem:[#allocation11 + $0x144] sm:$0xf]
    %v7259 = vld [vmem:[#allocation11 + $0x148] sm:$0xf]
    %v7260 = vld [vmem:[#allocation11 + $0x14c] sm:$0xf]
    %v7261 = vld [vmem:[#allocation11 + $0x150] sm:$0xf]
    %v7262 = vld [vmem:[#allocation11 + $0x154] sm:$0xf]
    %v7263 = vld [vmem:[#allocation11 + $0x158] sm:$0xf]
    %v7264 = vld [vmem:[#allocation11 + $0x15c] sm:$0xf]
    %v7265 = vld [vmem:[#allocation11 + $0x160] sm:$0xf]
    %v7266 = vld [vmem:[#allocation11 + $0x164] sm:$0xf]
    %v7267 = vld [vmem:[#allocation11 + $0x168] sm:$0xf]
    %v7268 = vld [vmem:[#allocation11 + $0x16c] sm:$0xf]
    %v7269 = vld [vmem:[#allocation11 + $0x170] sm:$0xf]
    %v7270 = vld [vmem:[#allocation11 + $0x174] sm:$0xf]
    %v7271 = vld [vmem:[#allocation11 + $0x178] sm:$0xf]
    %v7272 = vld [vmem:[#allocation11 + $0x17c] sm:$0xf]
    %v7273 = vld [vmem:[#allocation11 + $0x180] sm:$0xf]
    %v7274 = vld [vmem:[#allocation11 + $0x184] sm:$0xf]
    %v7275 = vld [vmem:[#allocation11 + $0x188] sm:$0xf]
    %v7276 = vld [vmem:[#allocation11 + $0x18c] sm:$0xf]
    %v7277 = vld [vmem:[#allocation11 + $0x190] sm:$0xf]
    %v7278 = vld [vmem:[#allocation11 + $0x194] sm:$0xf]
    %v7279 = vld [vmem:[#allocation11 + $0x198] sm:$0xf]
    %v7280 = vld [vmem:[#allocation11 + $0x19c] sm:$0xf]
    %v7281 = vld [vmem:[#allocation11 + $0x1a0] sm:$0xf]
    %v7282 = vld [vmem:[#allocation11 + $0x1a4] sm:$0xf]
    %v7283 = vld [vmem:[#allocation11 + $0x1a8] sm:$0xf]
    %v7284 = vld [vmem:[#allocation11 + $0x1ac] sm:$0xf]
    %v7285 = vld [vmem:[#allocation11 + $0x1b0] sm:$0xf]
    %v7286 = vld [vmem:[#allocation11 + $0x1b4] sm:$0xf]
    %v7287 = vld [vmem:[#allocation11 + $0x1b8] sm:$0xf]
    %v7288 = vld [vmem:[#allocation11 + $0x1bc] sm:$0xf]
    %v7289 = vld [vmem:[#allocation11 + $0x1c0] sm:$0xf]
    %v7290 = vld [vmem:[#allocation11 + $0x1c4] sm:$0xf]
    %v7291 = vld [vmem:[#allocation11 + $0x1c8] sm:$0xf]
    %v7292 = vld [vmem:[#allocation11 + $0x1cc] sm:$0xf]
    %v7293 = vld [vmem:[#allocation11 + $0x1d0] sm:$0xf]
    %v7294 = vld [vmem:[#allocation11 + $0x1d4] sm:$0xf]
    %v7295 = vld [vmem:[#allocation11 + $0x1d8] sm:$0xf]
    %v7296 = vld [vmem:[#allocation11 + $0x1dc] sm:$0xf]
    %v7297 = vld [vmem:[#allocation11 + $0x1e0] sm:$0xf]
    %v7298 = vld [vmem:[#allocation11 + $0x1e4] sm:$0xf]
    %v7299 = vld [vmem:[#allocation11 + $0x1e8] sm:$0xf]
    %v7300 = vld [vmem:[#allocation11 + $0x1ec] sm:$0xf]
    %v7301 = vld [vmem:[#allocation11 + $0x1f0] sm:$0xf]
    %v7302 = vld [vmem:[#allocation11 + $0x1f4] sm:$0xf]
    %v7303 = vld [vmem:[#allocation11 + $0x1f8] sm:$0xf]
    %v7304 = vld [vmem:[#allocation11 + $0x1fc] sm:$0xf]
    %v7305 = vld [vmem:[#allocation13] sm:$0x1]
    %v7307 = vlaneseq
    %v7308 = vshrl.u32 %v7307, 7
    %v7309 = vsub.s32 0, %v7308
    %v7310 = vrot.slane %v7305, %v7309
    %v7440 = vunpack.c.l.b16 %v7177
    %v7441 = vunpack.c.l.b16 %v7178
    %v7442 = vunpack.c.l.b16 %v7179
    %v7443 = vunpack.c.l.b16 %v7180
    %v7444 = vunpack.c.l.b16 %v7181
    %v7445 = vunpack.c.l.b16 %v7182
    %v7446 = vunpack.c.l.b16 %v7183
    %v7447 = vunpack.c.l.b16 %v7184
    %v7448 = vunpack.c.l.b16 %v7185
    %v7449 = vunpack.c.l.b16 %v7186
    %v7450 = vunpack.c.l.b16 %v7187
    %v7451 = vunpack.c.l.b16 %v7188
    %v7452 = vunpack.c.l.b16 %v7189
    %v7453 = vunpack.c.l.b16 %v7190
    %v7454 = vunpack.c.l.b16 %v7191
    %v7455 = vunpack.c.l.b16 %v7192
    %v7456 = vunpack.c.l.b16 %v7193
    %v7457 = vunpack.c.l.b16 %v7194
    %v7458 = vunpack.c.l.b16 %v7195
    %v7459 = vunpack.c.l.b16 %v7196
    %v7460 = vunpack.c.l.b16 %v7197
    %v7461 = vunpack.c.l.b16 %v7198
    %v7462 = vunpack.c.l.b16 %v7199
    %v7463 = vunpack.c.l.b16 %v7200
    %v7464 = vunpack.c.l.b16 %v7201
    %v7465 = vunpack.c.l.b16 %v7202
    %v7466 = vunpack.c.l.b16 %v7203
    %v7467 = vunpack.c.l.b16 %v7204
    %v7468 = vunpack.c.l.b16 %v7205
    %v7469 = vunpack.c.l.b16 %v7206
    %v7470 = vunpack.c.l.b16 %v7207
    %v7471 = vunpack.c.l.b16 %v7208
    %v7472 = vunpack.c.l.b16 %v7209
    %v7473 = vunpack.c.l.b16 %v7210
    %v7474 = vunpack.c.l.b16 %v7211
    %v7475 = vunpack.c.l.b16 %v7212
    %v7476 = vunpack.c.l.b16 %v7213
    %v7477 = vunpack.c.l.b16 %v7214
    %v7478 = vunpack.c.l.b16 %v7215
    %v7479 = vunpack.c.l.b16 %v7216
    %v7480 = vunpack.c.l.b16 %v7217
    %v7481 = vunpack.c.l.b16 %v7218
    %v7482 = vunpack.c.l.b16 %v7219
    %v7483 = vunpack.c.l.b16 %v7220
    %v7484 = vunpack.c.l.b16 %v7221
    %v7485 = vunpack.c.l.b16 %v7222
    %v7486 = vunpack.c.l.b16 %v7223
    %v7487 = vunpack.c.l.b16 %v7224
    %v7488 = vunpack.c.l.b16 %v7225
    %v7489 = vunpack.c.l.b16 %v7226
    %v7490 = vunpack.c.l.b16 %v7227
    %v7491 = vunpack.c.l.b16 %v7228
    %v7492 = vunpack.c.l.b16 %v7229
    %v7493 = vunpack.c.l.b16 %v7230
    %v7494 = vunpack.c.l.b16 %v7231
    %v7495 = vunpack.c.l.b16 %v7232
    %v7496 = vunpack.c.l.b16 %v7233
    %v7497 = vunpack.c.l.b16 %v7234
    %v7498 = vunpack.c.l.b16 %v7235
    %v7499 = vunpack.c.l.b16 %v7236
    %v7500 = vunpack.c.l.b16 %v7237
    %v7501 = vunpack.c.l.b16 %v7238
    %v7502 = vunpack.c.l.b16 %v7239
    %v7503 = vunpack.c.l.b16 %v7240
    %v7504 = vunpack.c.l.b16 %v7241
    %v7505 = vunpack.c.l.b16 %v7242
    %v7506 = vunpack.c.l.b16 %v7243
    %v7507 = vunpack.c.l.b16 %v7244
    %v7508 = vunpack.c.l.b16 %v7245
    %v7509 = vunpack.c.l.b16 %v7246
    %v7510 = vunpack.c.l.b16 %v7247
    %v7511 = vunpack.c.l.b16 %v7248
    %v7512 = vunpack.c.l.b16 %v7249
    %v7513 = vunpack.c.l.b16 %v7250
    %v7514 = vunpack.c.l.b16 %v7251
    %v7515 = vunpack.c.l.b16 %v7252
    %v7516 = vunpack.c.l.b16 %v7253
    %v7517 = vunpack.c.l.b16 %v7254
    %v7518 = vunpack.c.l.b16 %v7255
    %v7519 = vunpack.c.l.b16 %v7256
    %v7520 = vunpack.c.l.b16 %v7257
    %v7521 = vunpack.c.l.b16 %v7258
    %v7522 = vunpack.c.l.b16 %v7259
    %v7523 = vunpack.c.l.b16 %v7260
    %v7524 = vunpack.c.l.b16 %v7261
    %v7525 = vunpack.c.l.b16 %v7262
    %v7526 = vunpack.c.l.b16 %v7263
    %v7527 = vunpack.c.l.b16 %v7264
    %v7528 = vunpack.c.l.b16 %v7265
    %v7529 = vunpack.c.l.b16 %v7266
    %v7530 = vunpack.c.l.b16 %v7267
    %v7531 = vunpack.c.l.b16 %v7268
    %v7532 = vunpack.c.l.b16 %v7269
    %v7533 = vunpack.c.l.b16 %v7270
    %v7534 = vunpack.c.l.b16 %v7271
    %v7535 = vunpack.c.l.b16 %v7272
    %v7536 = vunpack.c.l.b16 %v7273
    %v7537 = vunpack.c.l.b16 %v7274
    %v7538 = vunpack.c.l.b16 %v7275
    %v7539 = vunpack.c.l.b16 %v7276
    %v7540 = vunpack.c.l.b16 %v7277
    %v7541 = vunpack.c.l.b16 %v7278
    %v7542 = vunpack.c.l.b16 %v7279
    %v7543 = vunpack.c.l.b16 %v7280
    %v7544 = vunpack.c.l.b16 %v7281
    %v7545 = vunpack.c.l.b16 %v7282
    %v7546 = vunpack.c.l.b16 %v7283
    %v7547 = vunpack.c.l.b16 %v7284
    %v7548 = vunpack.c.l.b16 %v7285
    %v7549 = vunpack.c.l.b16 %v7286
    %v7550 = vunpack.c.l.b16 %v7287
    %v7551 = vunpack.c.l.b16 %v7288
    %v7552 = vunpack.c.l.b16 %v7289
    %v7553 = vunpack.c.l.b16 %v7290
    %v7554 = vunpack.c.l.b16 %v7291
    %v7555 = vunpack.c.l.b16 %v7292
    %v7556 = vunpack.c.l.b16 %v7293
    %v7557 = vunpack.c.l.b16 %v7294
    %v7558 = vunpack.c.l.b16 %v7295
    %v7559 = vunpack.c.l.b16 %v7296
    %v7560 = vunpack.c.l.b16 %v7297
    %v7561 = vunpack.c.l.b16 %v7298
    %v7562 = vunpack.c.l.b16 %v7299
    %v7563 = vunpack.c.l.b16 %v7300
    %v7564 = vunpack.c.l.b16 %v7301
    %v7565 = vunpack.c.l.b16 %v7302
    %v7566 = vunpack.c.l.b16 %v7303
    %v7567 = vunpack.c.l.b16 %v7304
    %v7568 = vpack.c.b16 %v7441, %v7440
    %v7569 = vpack.c.b16 %v7443, %v7442
    %v7570 = vpack.c.b16 %v7445, %v7444
    %v7571 = vpack.c.b16 %v7447, %v7446
    %v7572 = vpack.c.b16 %v7449, %v7448
    %v7573 = vpack.c.b16 %v7451, %v7450
    %v7574 = vpack.c.b16 %v7453, %v7452
    %v7575 = vpack.c.b16 %v7455, %v7454
    %v7576 = vpack.c.b16 %v7457, %v7456
    %v7577 = vpack.c.b16 %v7459, %v7458
    %v7578 = vpack.c.b16 %v7461, %v7460
    %v7579 = vpack.c.b16 %v7463, %v7462
    %v7580 = vpack.c.b16 %v7465, %v7464
    %v7581 = vpack.c.b16 %v7467, %v7466
    %v7582 = vpack.c.b16 %v7469, %v7468
    %v7583 = vpack.c.b16 %v7471, %v7470
    %v7584 = vpack.c.b16 %v7473, %v7472
    %v7585 = vpack.c.b16 %v7475, %v7474
    %v7586 = vpack.c.b16 %v7477, %v7476
    %v7587 = vpack.c.b16 %v7479, %v7478
    %v7588 = vpack.c.b16 %v7481, %v7480
    %v7589 = vpack.c.b16 %v7483, %v7482
    %v7590 = vpack.c.b16 %v7485, %v7484
    %v7591 = vpack.c.b16 %v7487, %v7486
    %v7592 = vpack.c.b16 %v7489, %v7488
    %v7593 = vpack.c.b16 %v7491, %v7490
    %v7594 = vpack.c.b16 %v7493, %v7492
    %v7595 = vpack.c.b16 %v7495, %v7494
    %v7596 = vpack.c.b16 %v7497, %v7496
    %v7597 = vpack.c.b16 %v7499, %v7498
    %v7598 = vpack.c.b16 %v7501, %v7500
    %v7599 = vpack.c.b16 %v7503, %v7502
    %v7600 = vpack.c.b16 %v7505, %v7504
    %v7601 = vpack.c.b16 %v7507, %v7506
    %v7602 = vpack.c.b16 %v7509, %v7508
    %v7603 = vpack.c.b16 %v7511, %v7510
    %v7604 = vpack.c.b16 %v7513, %v7512
    %v7605 = vpack.c.b16 %v7515, %v7514
    %v7606 = vpack.c.b16 %v7517, %v7516
    %v7607 = vpack.c.b16 %v7519, %v7518
    %v7608 = vpack.c.b16 %v7521, %v7520
    %v7609 = vpack.c.b16 %v7523, %v7522
    %v7610 = vpack.c.b16 %v7525, %v7524
    %v7611 = vpack.c.b16 %v7527, %v7526
    %v7612 = vpack.c.b16 %v7529, %v7528
    %v7613 = vpack.c.b16 %v7531, %v7530
    %v7614 = vpack.c.b16 %v7533, %v7532
    %v7615 = vpack.c.b16 %v7535, %v7534
    %v7616 = vpack.c.b16 %v7537, %v7536
    %v7617 = vpack.c.b16 %v7539, %v7538
    %v7618 = vpack.c.b16 %v7541, %v7540
    %v7619 = vpack.c.b16 %v7543, %v7542
    %v7620 = vpack.c.b16 %v7545, %v7544
    %v7621 = vpack.c.b16 %v7547, %v7546
    %v7622 = vpack.c.b16 %v7549, %v7548
    %v7623 = vpack.c.b16 %v7551, %v7550
    %v7624 = vpack.c.b16 %v7553, %v7552
    %v7625 = vpack.c.b16 %v7555, %v7554
    %v7626 = vpack.c.b16 %v7557, %v7556
    %v7627 = vpack.c.b16 %v7559, %v7558
    %v7628 = vpack.c.b16 %v7561, %v7560
    %v7629 = vpack.c.b16 %v7563, %v7562
    %v7630 = vpack.c.b16 %v7565, %v7564
    %v7631 = vpack.c.b16 %v7567, %v7566
    %7696 = vmatprep.subr.bf16.mxu0 0
    %7697 = vmatpush1.bf16.msra.mxu0 %v7568
    %7698 = vmatprep.subr.bf16.mxu0 0
    %7699 = vmatpush1.bf16.msra.mxu0 %v7569
    %7700 = vmatprep.subr.bf16.mxu0 0
    %7701 = vmatpush1.bf16.msra.mxu0 %v7570
    %7702 = vmatprep.subr.bf16.mxu0 0
    %7703 = vmatpush1.bf16.msra.mxu0 %v7571
    %7704 = vmatprep.subr.bf16.mxu0 0
    %7705 = vmatpush1.bf16.msra.mxu0 %v7572
    %7706 = vmatprep.subr.bf16.mxu0 0
    %7707 = vmatpush1.bf16.msra.mxu0 %v7573
    %7708 = vmatprep.subr.bf16.mxu0 0
    %7709 = vmatpush1.bf16.msra.mxu0 %v7574
    %7710 = vmatprep.subr.bf16.mxu0 0
    %7711 = vmatpush1.bf16.msra.mxu0 %v7575
    %7712 = vmatprep.subr.bf16.mxu0 0
    %7713 = vmatpush1.bf16.msra.mxu0 %v7576
    %7714 = vmatprep.subr.bf16.mxu0 0
    %7715 = vmatpush1.bf16.msra.mxu0 %v7577
    %7716 = vmatprep.subr.bf16.mxu0 0
    %7717 = vmatpush1.bf16.msra.mxu0 %v7578
    %7718 = vmatprep.subr.bf16.mxu0 0
    %7719 = vmatpush1.bf16.msra.mxu0 %v7579
    %7720 = vmatprep.subr.bf16.mxu0 0
    %7721 = vmatpush1.bf16.msra.mxu0 %v7580
    %7722 = vmatprep.subr.bf16.mxu0 0
    %7723 = vmatpush1.bf16.msra.mxu0 %v7581
    %7724 = vmatprep.subr.bf16.mxu0 0
    %7725 = vmatpush1.bf16.msra.mxu0 %v7582
    %7726 = vmatprep.subr.bf16.mxu0 0
    %7727 = vmatpush1.bf16.msra.mxu0 %v7583
    %7728 = vmatprep.mubr.bf16.mxu0 %v7170
    %7729 = vmatmul.mubr.bf16.gmra.mrb[0].mxu0 %v7169
    %v7730 = vpop.f32.mrb[0].mxu0
    %v7731 = vadd.f32 %v7310, %v7730
    %v7732 = vpop.f32.mrb[0].mxu0
    %v7733 = vpop.f32.mrb[0].mxu0
    %v7734 = vadd.f32 %v7310, %v7733
    %v7735 = vpop.f32.mrb[0].mxu0
    %7736 = vdwg.mxu0
    %7737 = vmatprep.subr.bf16.mxu0 0
    %7738 = vmatpush1.bf16.msra.mxu0 %v7584
    %7739 = vmatprep.subr.bf16.mxu0 0
    %7740 = vmatpush1.bf16.msra.mxu0 %v7585
    %7741 = vmatprep.subr.bf16.mxu0 0
    %7742 = vmatpush1.bf16.msra.mxu0 %v7586
    %7743 = vmatprep.subr.bf16.mxu0 0
    %7744 = vmatpush1.bf16.msra.mxu0 %v7587
    %7745 = vmatprep.subr.bf16.mxu0 0
    %7746 = vmatpush1.bf16.msra.mxu0 %v7588
    %7747 = vmatprep.subr.bf16.mxu0 0
    %7748 = vmatpush1.bf16.msra.mxu0 %v7589
    %7749 = vmatprep.subr.bf16.mxu0 0
    %7750 = vmatpush1.bf16.msra.mxu0 %v7590
    %7751 = vmatprep.subr.bf16.mxu0 0
    %7752 = vmatpush1.bf16.msra.mxu0 %v7591
    %7753 = vmatprep.subr.bf16.mxu0 0
    %7754 = vmatpush1.bf16.msra.mxu0 %v7592
    %7755 = vmatprep.subr.bf16.mxu0 0
    %7756 = vmatpush1.bf16.msra.mxu0 %v7593
    %7757 = vmatprep.subr.bf16.mxu0 0
    %7758 = vmatpush1.bf16.msra.mxu0 %v7594
    %7759 = vmatprep.subr.bf16.mxu0 0
    %7760 = vmatpush1.bf16.msra.mxu0 %v7595
    %7761 = vmatprep.subr.bf16.mxu0 0
    %7762 = vmatpush1.bf16.msra.mxu0 %v7596
    %7763 = vmatprep.subr.bf16.mxu0 0
    %7764 = vmatpush1.bf16.msra.mxu0 %v7597
    %7765 = vmatprep.subr.bf16.mxu0 0
    %7766 = vmatpush1.bf16.msra.mxu0 %v7598
    %7767 = vmatprep.subr.bf16.mxu0 0
    %7768 = vmatpush1.bf16.msra.mxu0 %v7599
    %7769 = vmatprep.mubr.bf16.mxu0 %v7172
    %7770 = vmatmul.mubr.bf16.gmra.mrb[0].mxu0 %v7171
    %v7771 = vpop.f32.mrb[0].mxu0
    %v7772 = vadd.f32 %v7731, %v7771
    %v7773 = vpop.f32.mrb[0].mxu0
    %v7774 = vpop.f32.mrb[0].mxu0
    %v7775 = vadd.f32 %v7734, %v7774
    %v7776 = vpop.f32.mrb[0].mxu0
    %7777 = vdwg.mxu0
    %7778 = vmatprep.subr.bf16.mxu0 0
    %7779 = vmatpush1.bf16.msra.mxu0 %v7600
    %7780 = vmatprep.subr.bf16.mxu0 0
    %7781 = vmatpush1.bf16.msra.mxu0 %v7601
    %7782 = vmatprep.subr.bf16.mxu0 0
    %7783 = vmatpush1.bf16.msra.mxu0 %v7602
    %7784 = vmatprep.subr.bf16.mxu0 0
    %7785 = vmatpush1.bf16.msra.mxu0 %v7603
    %7786 = vmatprep.subr.bf16.mxu0 0
    %7787 = vmatpush1.bf16.msra.mxu0 %v7604
    %7788 = vmatprep.subr.bf16.mxu0 0
    %7789 = vmatpush1.bf16.msra.mxu0 %v7605
    %7790 = vmatprep.subr.bf16.mxu0 0
    %7791 = vmatpush1.bf16.msra.mxu0 %v7606
    %7792 = vmatprep.subr.bf16.mxu0 0
    %7793 = vmatpush1.bf16.msra.mxu0 %v7607
    %7794 = vmatprep.subr.bf16.mxu0 0
    %7795 = vmatpush1.bf16.msra.mxu0 %v7608
    %7796 = vmatprep.subr.bf16.mxu0 0
    %7797 = vmatpush1.bf16.msra.mxu0 %v7609
    %7798 = vmatprep.subr.bf16.mxu0 0
    %7799 = vmatpush1.bf16.msra.mxu0 %v7610
    %7800 = vmatprep.subr.bf16.mxu0 0
    %7801 = vmatpush1.bf16.msra.mxu0 %v7611
    %7802 = vmatprep.subr.bf16.mxu0 0
    %7803 = vmatpush1.bf16.msra.mxu0 %v7612
    %7804 = vmatprep.subr.bf16.mxu0 0
    %7805 = vmatpush1.bf16.msra.mxu0 %v7613
    %7806 = vmatprep.subr.bf16.mxu0 0
    %7807 = vmatpush1.bf16.msra.mxu0 %v7614
    %7808 = vmatprep.subr.bf16.mxu0 0
    %7809 = vmatpush1.bf16.msra.mxu0 %v7615
    %7810 = vmatprep.mubr.bf16.mxu0 %v7174
    %7811 = vmatmul.mubr.bf16.gmra.mrb[0].mxu0 %v7173
    %v7812 = vpop.f32.mrb[0].mxu0
    %v7813 = vadd.f32 %v7772, %v7812
    %v7814 = vpop.f32.mrb[0].mxu0
    %v7815 = vpop.f32.mrb[0].mxu0
    %v7816 = vadd.f32 %v7775, %v7815
    %v7817 = vpop.f32.mrb[0].mxu0
    %7818 = vdwg.mxu0
    %7819 = vmatprep.subr.bf16.mxu0 0
    %7820 = vmatpush1.bf16.msra.mxu0 %v7616
    %7821 = vmatprep.subr.bf16.mxu0 0
    %7822 = vmatpush1.bf16.msra.mxu0 %v7617
    %7823 = vmatprep.subr.bf16.mxu0 0
    %7824 = vmatpush1.bf16.msra.mxu0 %v7618
    %7825 = vmatprep.subr.bf16.mxu0 0
    %7826 = vmatpush1.bf16.msra.mxu0 %v7619
    %7827 = vmatprep.subr.bf16.mxu0 0
    %7828 = vmatpush1.bf16.msra.mxu0 %v7620
    %7829 = vmatprep.subr.bf16.mxu0 0
    %7830 = vmatpush1.bf16.msra.mxu0 %v7621
    %7831 = vmatprep.subr.bf16.mxu0 0
    %7832 = vmatpush1.bf16.msra.mxu0 %v7622
    %7833 = vmatprep.subr.bf16.mxu0 0
    %7834 = vmatpush1.bf16.msra.mxu0 %v7623
    %7835 = vmatprep.subr.bf16.mxu0 0
    %7836 = vmatpush1.bf16.msra.mxu0 %v7624
    %7837 = vmatprep.subr.bf16.mxu0 0
    %7838 = vmatpush1.bf16.msra.mxu0 %v7625
    %7839 = vmatprep.subr.bf16.mxu0 0
    %7840 = vmatpush1.bf16.msra.mxu0 %v7626
    %7841 = vmatprep.subr.bf16.mxu0 0
    %7842 = vmatpush1.bf16.msra.mxu0 %v7627
    %7843 = vmatprep.subr.bf16.mxu0 0
    %7844 = vmatpush1.bf16.msra.mxu0 %v7628
    %7845 = vmatprep.subr.bf16.mxu0 0
    %7846 = vmatpush1.bf16.msra.mxu0 %v7629
    %7847 = vmatprep.subr.bf16.mxu0 0
    %7848 = vmatpush1.bf16.msra.mxu0 %v7630
    %7849 = vmatprep.subr.bf16.mxu0 0
    %7850 = vmatpush1.bf16.msra.mxu0 %v7631
    %7851 = vmatprep.mubr.bf16.mxu0 %v7176
    %7852 = vmatmul.mubr.bf16.gmra.mrb[0].mxu0 %v7175
    %v7853 = vpop.f32.mrb[0].mxu0
    %v7854 = vadd.f32 %v7813, %v7853
    %v7855 = vpop.f32.mrb[0].mxu0
    %v7856 = vpop.f32.mrb[0].mxu0
    %v7857 = vadd.f32 %v7816, %v7856
    %v7858 = vpop.f32.mrb[0].mxu0
    %7859 = vdwg.mxu0
    %7860 = vst [vmem:[%s10] sm:$0xff] %v7854
    %7861 = vst [vmem:[%s10 + $0x8] sm:$0xff] %v7857
    // Predicated region
    $region66: #{three_view_net_forward.1} parent=1 // pred_check
      _
    $region67: #{three_view_net_forward.1} parent=1 // pred_check_branch
      %7863 = sbr.rel (0) target = $region69
    $region68: #{three_view_net_forward.1} parent=1 // pred_region
      _
    $region69: #{three_view_net_forward.1} parent=1 // pred_fallthru
      _
    // Predicated region
    $region70: #{three_view_net_forward.1} parent=1 // pred_check
      _
    $region71: #{three_view_net_forward.1} parent=1 // pred_check_branch
      %7865 = sbr.rel (0) target = $region73
    $region72: #{three_view_net_forward.1} parent=1 // pred_region
      _
    $region73: #{three_view_net_forward.1} parent=1 // pred_fallthru
      _
    // Predicated region
    $region74: #{three_view_net_forward.1} parent=1 // pred_check
      _
    $region75: #{three_view_net_forward.1} parent=1 // pred_check_branch
      %7867 = sbr.rel (0) target = $region77
    $region76: #{three_view_net_forward.1} parent=1 // pred_region
      _
    $region77: #{three_view_net_forward.1} parent=1 // pred_fallthru
      _
    // Predicated region
    $region78: #{three_view_net_forward.1} parent=1 // pred_check
      _
    $region79: #{three_view_net_forward.1} parent=1 // pred_check_branch
      %7869 = sbr.rel (0) target = $region81
    $region80: #{three_view_net_forward.1} parent=1 // pred_region
      _
    $region81: #{three_view_net_forward.1} parent=1 // pred_fallthru
      _
    %7870 = vsyncpa [#allocation4], 1
    %7871 = vsyncpa [#allocation6], 1
    %7872 = vsyncpa [#allocation9], 1
    %7873 = vsyncpa [#allocation12], 1

</llo_original>
